<compile_context>
chip_gen: v7x
topology: tpu7x:2x2x1
jax: 0.10.0
libtpu: 0.0.40
codegen_flags: <defaults>
</compile_context>

<pallas_src>
import functools

import jax
import jax.numpy as jnp
from jax.experimental import pallas as pl
from jax.experimental.pallas import tpu as pltpu

LANES = 128
BN_EPS = 1e-5


def _round_up(x, m):
    return (x + m - 1) // m * m


def _pick_batch_block(n):
    # Pack several images into the GEMM M-dimension to amortize per-grid-step
    # overhead, but keep >= 2 grid steps when possible so the "parallel" batch
    # axis can be split across v7x's two TensorCores.
    for bb in (8, 4, 2):
        if n % bb == 0 and n // bb >= 2:
            return bb
    return 1


# ----------------------------------------------------------------------------
# Fused PreActBlock kernel (one grid step = NB images)
# ----------------------------------------------------------------------------
def _make_kernel(NB, H, W, C_in, Cp_in, Cp_out, has_shortcut_conv):
    HW = NB * H * W

    def conv3x3(pad_ref, w_ref, cp):
        # pad_ref: (NB, H+2, W+2, cp) f32, zero halo of 1 + zero-padded lanes
        # w_ref:   (9, cp, Cp_out)    bf16 taps (tap = ky*3 + kx)
        # returns  (HW, Cp_out)       f32
        acc = jnp.zeros((HW, Cp_out), jnp.float32)
        for ky in range(3):
            for kx in range(3):
                patch = pad_ref[:, ky:ky + H, kx:kx + W, :]     # (NB,H,W,cp)
                patch2d = patch.reshape(HW, cp).astype(jnp.bfloat16)
                acc = acc + jnp.dot(patch2d, w_ref[ky * 3 + kx],
                                    preferred_element_type=jnp.float32)
        return acc

    def kernel(x_ref, w1_ref, s1_ref, b1_ref, w2_ref, s2_ref, b2_ref, *rest):
        if has_shortcut_conv:
            wsc_ref, o_ref, xpad_ref, hpad_ref = rest
        else:
            o_ref, xpad_ref, hpad_ref = rest

        # ---- in-kernel zero padding: spatial halo=1, channels -> 128 lanes
        xpad_ref[...] = jnp.zeros_like(xpad_ref)
        xpad_ref[:, 1:H + 1, 1:W + 1, :C_in] = x_ref[...]

        # ---- conv1 (3x3, pad=1, no bias) + folded BN1 + ReLU
        h1 = conv3x3(xpad_ref, w1_ref, Cp_in)
        h1 = jnp.maximum(h1 * s1_ref[...] + b1_ref[...], 0.0)

        hpad_ref[...] = jnp.zeros_like(hpad_ref)
        hpad_ref[:, 1:H + 1, 1:W + 1, :] = h1.reshape(NB, H, W, Cp_out)

        # ---- conv2 (3x3, pad=1, no bias) + folded BN2 + ReLU
        h2 = conv3x3(hpad_ref, w2_ref, Cp_out)
        h2 = jnp.maximum(h2 * s2_ref[...] + b2_ref[...], 0.0)

        # ---- shortcut (1x1 conv when in!=out or stride!=1, else identity)
        x2d = xpad_ref[:, 1:H + 1, 1:W + 1, :].reshape(HW, Cp_in)
        if has_shortcut_conv:
            sc = jnp.dot(x2d.astype(jnp.bfloat16), wsc_ref[...],
                         preferred_element_type=jnp.float32)
        else:
            sc = x2d  # Cp_in == Cp_out here; padded lanes are zero

        o_ref[...] = (h2 + sc).reshape(NB, H, W, Cp_out)

    return kernel


# ----------------------------------------------------------------------------
# Public wrapper: NCHW in / NCHW out (PyTorch convention)
# ----------------------------------------------------------------------------
@functools.partial(jax.jit,
                   static_argnames=("in_channels", "out_channels", "stride"))
def preact_block_forward(x_nchw, params, *, in_channels, out_channels,
                         stride=1):
    if stride != 1:
        raise NotImplementedError("stride > 1 not implemented")  # TODO(synk)
    N, C, H, W = x_nchw.shape
    assert C == in_channels

    Cp_in = _round_up(in_channels, LANES)
    Cp_out = _round_up(out_channels, LANES)
    has_sc = "wsc" in params

    NB = _pick_batch_block(N)
    grid = (N // NB,)

    x_nhwc = jnp.transpose(x_nchw, (0, 2, 3, 1))  # (N, H, W, Cin)

    kernel = _make_kernel(NB, H, W, in_channels, Cp_in, Cp_out, has_sc)

    in_specs = [
        pl.BlockSpec((NB, H, W, in_channels), lambda n: (n, 0, 0, 0)),  # x
        pl.BlockSpec((9, Cp_in, Cp_out), lambda n: (0, 0, 0)),          # w1
        pl.BlockSpec((1, Cp_out), lambda n: (0, 0)),                    # bn1 s
        pl.BlockSpec((1, Cp_out), lambda n: (0, 0)),                    # bn1 b
        pl.BlockSpec((9, Cp_out, Cp_out), lambda n: (0, 0, 0)),         # w2
        pl.BlockSpec((1, Cp_out), lambda n: (0, 0)),                    # bn2 s
        pl.BlockSpec((1, Cp_out), lambda n: (0, 0)),                    # bn2 b
    ]
    args = [x_nhwc, params["w1"], params["bn1_scale"], params["bn1_shift"],
            params["w2"], params["bn2_scale"], params["bn2_shift"]]
    if has_sc:
        in_specs.append(pl.BlockSpec((Cp_in, Cp_out), lambda n: (0, 0)))
        args.append(params["wsc"])

    out = pl.pallas_call(
        kernel,
        out_shape=jax.ShapeDtypeStruct((N, H, W, Cp_out), jnp.float32),
        grid=grid,
        in_specs=in_specs,
        out_specs=pl.BlockSpec((NB, H, W, Cp_out), lambda n: (n, 0, 0, 0)),
        scratch_shapes=[
            pltpu.VMEM((NB, H + 2, W + 2, Cp_in), jnp.float32),   # padded x
            pltpu.VMEM((NB, H + 2, W + 2, Cp_out), jnp.float32),  # padded h1
        ],
        compiler_params=pltpu.CompilerParams(
            dimension_semantics=("parallel",)),
    )(*args)

    # Drop channel padding, back to NCHW.
    return jnp.transpose(out[..., :out_channels], (0, 3, 1, 2))


# ----------------------------------------------------------------------------
# Synthetic PyTorch-layout parameters and conversion to kernel layout
# ----------------------------------------------------------------------------
def init_raw_params(key, in_channels, out_channels, stride=1):
    ks = jax.random.split(key, 12)
    s = 0.1
    p = {
        "conv1_w": jax.random.normal(ks[0], (out_channels, in_channels, 3, 3),
                                     jnp.float32) * s,
        "conv2_w": jax.random.normal(ks[1], (out_channels, out_channels, 3, 3),
                                     jnp.float32) * s,
        "bn1_gamma": 1.0 + s * jax.random.normal(ks[2], (out_channels,)),
        "bn1_beta": s * jax.random.normal(ks[3], (out_channels,)),
        "bn1_mean": s * jax.random.normal(ks[4], (out_channels,)),
        "bn1_var": jax.random.uniform(ks[5], (out_channels,),
                                      minval=0.5, maxval=1.5),
        "bn2_gamma": 1.0 + s * jax.random.normal(ks[6], (out_channels,)),
        "bn2_beta": s * jax.random.normal(ks[7], (out_channels,)),
        "bn2_mean": s * jax.random.normal(ks[8], (out_channels,)),
        "bn2_var": jax.random.uniform(ks[9], (out_channels,),
                                      minval=0.5, maxval=1.5),
    }
    if stride != 1 or in_channels != out_channels:
        p["shortcut_w"] = jax.random.normal(
            ks[10], (out_channels, in_channels, 1, 1), jnp.float32) * s
    return p


def prepare_params(raw, in_channels, out_channels, eps=BN_EPS):
    """Fold BN into scale/shift, pad channels to 128 lanes, cast MXU weights
    to bf16, and reshape conv weights to (tap, Cin_p, Cout_p)."""
    Cp_in = _round_up(in_channels, LANES)
    Cp_out = _round_up(out_channels, LANES)

    def conv3x3_taps(w_oihw, cp_i):
        o, i = w_oihw.shape[0], w_oihw.shape[1]
        w = jnp.transpose(w_oihw, (2, 3, 1, 0)).reshape(9, i, o)  # (tap, I, O)
        w = jnp.pad(w, ((0, 0), (0, cp_i - i), (0, Cp_out - o)))
        return w.astype(jnp.bfloat16)

    def bn_fold(gamma, beta, mean, var):
        scale = gamma * jax.lax.rsqrt(var + eps)
        shift = beta - mean * scale
        scale = jnp.pad(scale, (0, Cp_out - scale.shape[0])).reshape(1, Cp_out)
        shift = jnp.pad(shift, (0, Cp_out - shift.shape[0])).reshape(1, Cp_out)
        return scale.astype(jnp.float32), shift.astype(jnp.float32)

    s1, b1 = bn_fold(raw["bn1_gamma"], raw["bn1_beta"],
                     raw["bn1_mean"], raw["bn1_var"])
    s2, b2 = bn_fold(raw["bn2_gamma"], raw["bn2_beta"],
                     raw["bn2_mean"], raw["bn2_var"])
    params = {
        "w1": conv3x3_taps(raw["conv1_w"], Cp_in),
        "w2": conv3x3_taps(raw["conv2_w"], Cp_out),
        "bn1_scale": s1, "bn1_shift": b1,
        "bn2_scale": s2, "bn2_shift": b2,
    }
    if "shortcut_w" in raw:
        wsc = raw["shortcut_w"][:, :, 0, 0].T  # (I, O)
        wsc = jnp.pad(wsc, ((0, Cp_in - in_channels),
                            (0, Cp_out - out_channels)))
        params["wsc"] = wsc.astype(jnp.bfloat16)
    return params


if __name__ == "__main__":
    key = jax.random.PRNGKey(0)
    k_x, k_p = jax.random.split(key)

    N, C_IN, H, W = 2, 4, 16, 16
    C_OUT, STRIDE = 8, 1   # in != out -> 1x1-conv shortcut path is exercised

    x = jax.random.normal(k_x, (N, C_IN, H, W), jnp.float32)   # NCHW input
    raw = init_raw_params(k_p, C_IN, C_OUT, stride=STRIDE)
    params = prepare_params(raw, C_IN, C_OUT)

    out = preact_block_forward(x, params, in_channels=C_IN,
                               out_channels=C_OUT, stride=STRIDE)
    out = jax.block_until_ready(out)
    assert out.shape == (N, C_OUT, H, W), out.shape
    print("KERNEL_OK")
</pallas_src>

<mosaic_0001>
module attributes {stable_mosaic.version = 11 : i64} {
  func.func @kernel(%arg0: i32, %arg1: memref<1x16x16x4xf32, #tpu.memory_space<vmem>>, %arg2: memref<9x128x128xbf16, #tpu.memory_space<vmem>>, %arg3: memref<1x128xf32, #tpu.memory_space<vmem>>, %arg4: memref<1x128xf32, #tpu.memory_space<vmem>>, %arg5: memref<9x128x128xbf16, #tpu.memory_space<vmem>>, %arg6: memref<1x128xf32, #tpu.memory_space<vmem>>, %arg7: memref<1x128xf32, #tpu.memory_space<vmem>>, %arg8: memref<128x128xbf16, #tpu.memory_space<vmem>>, %arg9: memref<1x16x16x128xf32, #tpu.memory_space<vmem>>, %arg10: memref<1x18x18x128xf32, #tpu.memory_space<vmem>>, %arg11: memref<1x18x18x128xf32, #tpu.memory_space<vmem>>) attributes {dimension_semantics = [#tpu.dimension_semantics<parallel>], iteration_bounds = array<i64: 2>, scalar_prefetch = 0 : i64, scratch_operands = 2 : i64, tpu.core_type = #tpu.core_type<tc>, window_params = [{transform_indices = @transform_0, window_bounds = array<i64: 1, 16, 16, 4>}, {pipeline_mode = #tpu.pipeline_mode<synchronous>, transform_indices = @transform_1, window_bounds = array<i64: 9, 128, 128>}, {pipeline_mode = #tpu.pipeline_mode<synchronous>, transform_indices = @transform_2, window_bounds = array<i64: 1, 128>}, {pipeline_mode = #tpu.pipeline_mode<synchronous>, transform_indices = @transform_3, window_bounds = array<i64: 1, 128>}, {pipeline_mode = #tpu.pipeline_mode<synchronous>, transform_indices = @transform_4, window_bounds = array<i64: 9, 128, 128>}, {pipeline_mode = #tpu.pipeline_mode<synchronous>, transform_indices = @transform_5, window_bounds = array<i64: 1, 128>}, {pipeline_mode = #tpu.pipeline_mode<synchronous>, transform_indices = @transform_6, window_bounds = array<i64: 1, 128>}, {pipeline_mode = #tpu.pipeline_mode<synchronous>, transform_indices = @transform_7, window_bounds = array<i64: 128, 128>}, {transform_indices = @transform_8, window_bounds = array<i64: 1, 16, 16, 128>}]} {
    %cst = arith.constant 0.000000e+00 : f32
    %0 = vector.broadcast %cst : f32 to vector<1x18x18x128xf32>
    %c0 = arith.constant 0 : index
    %c0_0 = arith.constant 0 : index
    %c0_1 = arith.constant 0 : index
    %c0_2 = arith.constant 0 : index
    %1 = vector.load %arg10[%c0, %c0_0, %c0_1, %c0_2] : memref<1x18x18x128xf32, #tpu.memory_space<vmem>>, vector<1x18x18x128xf32>
    tpu.vector_store %arg10[%c0, %c0_0, %c0_1, %c0_2], %0 {strides = array<i32>} : memref<1x18x18x128xf32, #tpu.memory_space<vmem>>, vector<1x18x18x128xf32>,
    %c0_3 = arith.constant 0 : index
    %c0_4 = arith.constant 0 : index
    %c0_5 = arith.constant 0 : index
    %c0_6 = arith.constant 0 : index
    %2 = vector.load %arg1[%c0_3, %c0_4, %c0_5, %c0_6] : memref<1x16x16x4xf32, #tpu.memory_space<vmem>>, vector<1x16x16x4xf32>
    %c0_7 = arith.constant 0 : index
    %c1 = arith.constant 1 : index
    %c1_8 = arith.constant 1 : index
    %c0_9 = arith.constant 0 : index
    %3 = vector.load %arg10[%c0_7, %c1, %c1_8, %c0_9] : memref<1x18x18x128xf32, #tpu.memory_space<vmem>>, vector<1x16x16x4xf32>
    tpu.vector_store %arg10[%c0_7, %c1, %c1_8, %c0_9], %2 {strides = array<i32>} : memref<1x18x18x128xf32, #tpu.memory_space<vmem>>, vector<1x16x16x4xf32>,
    %cst_10 = arith.constant 0.000000e+00 : f32
    %4 = vector.broadcast %cst_10 : f32 to vector<256x128xf32>
    %c0_11 = arith.constant 0 : index
    %c0_12 = arith.constant 0 : index
    %c0_13 = arith.constant 0 : index
    %c0_14 = arith.constant 0 : index
    %5 = vector.load %arg10[%c0_11, %c0_12, %c0_13, %c0_14] : memref<1x18x18x128xf32, #tpu.memory_space<vmem>>, vector<1x16x16x128xf32>
    %6 = vector.shape_cast %5 : vector<1x16x16x128xf32> to vector<256x128xf32>
    %7 = arith.truncf %6 : vector<256x128xf32> to vector<256x128xbf16>
    %c0_15 = arith.constant 0 : index
    %c0_16 = arith.constant 0 : index
    %c0_17 = arith.constant 0 : index
    %8 = vector.load %arg2[%c0_15, %c0_16, %c0_17] : memref<9x128x128xbf16, #tpu.memory_space<vmem>>, vector<1x128x128xbf16>
    %9 = vector.shape_cast %8 : vector<1x128x128xbf16> to vector<128x128xbf16>
    %cst_18 = arith.constant dense<0.000000e+00> : vector<256x128xf32>
    %10 = tpu.matmul %7, %9, %cst_18 {dimension_numbers = #tpu.dot_dimension_numbers<[1], [0], [0], [1], [0, 0, 1, 1], [], []>} : vector<256x128xbf16>, vector<128x128xbf16>, vector<256x128xf32> -> vector<256x128xf32>
    %11 = arith.addf %4, %10 : vector<256x128xf32>
    %c0_19 = arith.constant 0 : index
    %c0_20 = arith.constant 0 : index
    %c1_21 = arith.constant 1 : index
    %c0_22 = arith.constant 0 : index
    %12 = vector.load %arg10[%c0_19, %c0_20, %c1_21, %c0_22] : memref<1x18x18x128xf32, #tpu.memory_space<vmem>>, vector<1x16x16x128xf32>
    %13 = vector.shape_cast %12 : vector<1x16x16x128xf32> to vector<256x128xf32>
    %14 = arith.truncf %13 : vector<256x128xf32> to vector<256x128xbf16>
    %c1_23 = arith.constant 1 : index
    %c0_24 = arith.constant 0 : index
    %c0_25 = arith.constant 0 : index
    %15 = vector.load %arg2[%c1_23, %c0_24, %c0_25] : memref<9x128x128xbf16, #tpu.memory_space<vmem>>, vector<1x128x128xbf16>
    %16 = vector.shape_cast %15 : vector<1x128x128xbf16> to vector<128x128xbf16>
    %cst_26 = arith.constant dense<0.000000e+00> : vector<256x128xf32>
    %17 = tpu.matmul %14, %16, %cst_26 {dimension_numbers = #tpu.dot_dimension_numbers<[1], [0], [0], [1], [0, 0, 1, 1], [], []>} : vector<256x128xbf16>, vector<128x128xbf16>, vector<256x128xf32> -> vector<256x128xf32>
    %18 = arith.addf %11, %17 : vector<256x128xf32>
    %c0_27 = arith.constant 0 : index
    %c0_28 = arith.constant 0 : index
    %c2 = arith.constant 2 : index
    %c0_29 = arith.constant 0 : index
    %19 = vector.load %arg10[%c0_27, %c0_28, %c2, %c0_29] : memref<1x18x18x128xf32, #tpu.memory_space<vmem>>, vector<1x16x16x128xf32>
    %20 = vector.shape_cast %19 : vector<1x16x16x128xf32> to vector<256x128xf32>
    %21 = arith.truncf %20 : vector<256x128xf32> to vector<256x128xbf16>
    %c2_30 = arith.constant 2 : index
    %c0_31 = arith.constant 0 : index
    %c0_32 = arith.constant 0 : index
    %22 = vector.load %arg2[%c2_30, %c0_31, %c0_32] : memref<9x128x128xbf16, #tpu.memory_space<vmem>>, vector<1x128x128xbf16>
    %23 = vector.shape_cast %22 : vector<1x128x128xbf16> to vector<128x128xbf16>
    %cst_33 = arith.constant dense<0.000000e+00> : vector<256x128xf32>
    %24 = tpu.matmul %21, %23, %cst_33 {dimension_numbers = #tpu.dot_dimension_numbers<[1], [0], [0], [1], [0, 0, 1, 1], [], []>} : vector<256x128xbf16>, vector<128x128xbf16>, vector<256x128xf32> -> vector<256x128xf32>
    %25 = arith.addf %18, %24 : vector<256x128xf32>
    %c0_34 = arith.constant 0 : index
    %c1_35 = arith.constant 1 : index
    %c0_36 = arith.constant 0 : index
    %c0_37 = arith.constant 0 : index
    %26 = vector.load %arg10[%c0_34, %c1_35, %c0_36, %c0_37] : memref<1x18x18x128xf32, #tpu.memory_space<vmem>>, vector<1x16x16x128xf32>
    %27 = vector.shape_cast %26 : vector<1x16x16x128xf32> to vector<256x128xf32>
    %28 = arith.truncf %27 : vector<256x128xf32> to vector<256x128xbf16>
    %c3 = arith.constant 3 : index
    %c0_38 = arith.constant 0 : index
    %c0_39 = arith.constant 0 : index
    %29 = vector.load %arg2[%c3, %c0_38, %c0_39] : memref<9x128x128xbf16, #tpu.memory_space<vmem>>, vector<1x128x128xbf16>
    %30 = vector.shape_cast %29 : vector<1x128x128xbf16> to vector<128x128xbf16>
    %cst_40 = arith.constant dense<0.000000e+00> : vector<256x128xf32>
    %31 = tpu.matmul %28, %30, %cst_40 {dimension_numbers = #tpu.dot_dimension_numbers<[1], [0], [0], [1], [0, 0, 1, 1], [], []>} : vector<256x128xbf16>, vector<128x128xbf16>, vector<256x128xf32> -> vector<256x128xf32>
    %32 = arith.addf %25, %31 : vector<256x128xf32>
    %c0_41 = arith.constant 0 : index
    %c1_42 = arith.constant 1 : index
    %c1_43 = arith.constant 1 : index
    %c0_44 = arith.constant 0 : index
    %33 = vector.load %arg10[%c0_41, %c1_42, %c1_43, %c0_44] : memref<1x18x18x128xf32, #tpu.memory_space<vmem>>, vector<1x16x16x128xf32>
    %34 = vector.shape_cast %33 : vector<1x16x16x128xf32> to vector<256x128xf32>
    %35 = arith.truncf %34 : vector<256x128xf32> to vector<256x128xbf16>
    %c4 = arith.constant 4 : index
    %c0_45 = arith.constant 0 : index
    %c0_46 = arith.constant 0 : index
    %36 = vector.load %arg2[%c4, %c0_45, %c0_46] : memref<9x128x128xbf16, #tpu.memory_space<vmem>>, vector<1x128x128xbf16>
    %37 = vector.shape_cast %36 : vector<1x128x128xbf16> to vector<128x128xbf16>
    %cst_47 = arith.constant dense<0.000000e+00> : vector<256x128xf32>
    %38 = tpu.matmul %35, %37, %cst_47 {dimension_numbers = #tpu.dot_dimension_numbers<[1], [0], [0], [1], [0, 0, 1, 1], [], []>} : vector<256x128xbf16>, vector<128x128xbf16>, vector<256x128xf32> -> vector<256x128xf32>
    %39 = arith.addf %32, %38 : vector<256x128xf32>
    %c0_48 = arith.constant 0 : index
    %c1_49 = arith.constant 1 : index
    %c2_50 = arith.constant 2 : index
    %c0_51 = arith.constant 0 : index
    %40 = vector.load %arg10[%c0_48, %c1_49, %c2_50, %c0_51] : memref<1x18x18x128xf32, #tpu.memory_space<vmem>>, vector<1x16x16x128xf32>
    %41 = vector.shape_cast %40 : vector<1x16x16x128xf32> to vector<256x128xf32>
    %42 = arith.truncf %41 : vector<256x128xf32> to vector<256x128xbf16>
    %c5 = arith.constant 5 : index
    %c0_52 = arith.constant 0 : index
    %c0_53 = arith.constant 0 : index
    %43 = vector.load %arg2[%c5, %c0_52, %c0_53] : memref<9x128x128xbf16, #tpu.memory_space<vmem>>, vector<1x128x128xbf16>
    %44 = vector.shape_cast %43 : vector<1x128x128xbf16> to vector<128x128xbf16>
    %cst_54 = arith.constant dense<0.000000e+00> : vector<256x128xf32>
    %45 = tpu.matmul %42, %44, %cst_54 {dimension_numbers = #tpu.dot_dimension_numbers<[1], [0], [0], [1], [0, 0, 1, 1], [], []>} : vector<256x128xbf16>, vector<128x128xbf16>, vector<256x128xf32> -> vector<256x128xf32>
    %46 = arith.addf %39, %45 : vector<256x128xf32>
    %c0_55 = arith.constant 0 : index
    %c2_56 = arith.constant 2 : index
    %c0_57 = arith.constant 0 : index
    %c0_58 = arith.constant 0 : index
    %47 = vector.load %arg10[%c0_55, %c2_56, %c0_57, %c0_58] : memref<1x18x18x128xf32, #tpu.memory_space<vmem>>, vector<1x16x16x128xf32>
    %48 = vector.shape_cast %47 : vector<1x16x16x128xf32> to vector<256x128xf32>
    %49 = arith.truncf %48 : vector<256x128xf32> to vector<256x128xbf16>
    %c6 = arith.constant 6 : index
    %c0_59 = arith.constant 0 : index
    %c0_60 = arith.constant 0 : index
    %50 = vector.load %arg2[%c6, %c0_59, %c0_60] : memref<9x128x128xbf16, #tpu.memory_space<vmem>>, vector<1x128x128xbf16>
    %51 = vector.shape_cast %50 : vector<1x128x128xbf16> to vector<128x128xbf16>
    %cst_61 = arith.constant dense<0.000000e+00> : vector<256x128xf32>
    %52 = tpu.matmul %49, %51, %cst_61 {dimension_numbers = #tpu.dot_dimension_numbers<[1], [0], [0], [1], [0, 0, 1, 1], [], []>} : vector<256x128xbf16>, vector<128x128xbf16>, vector<256x128xf32> -> vector<256x128xf32>
    %53 = arith.addf %46, %52 : vector<256x128xf32>
    %c0_62 = arith.constant 0 : index
    %c2_63 = arith.constant 2 : index
    %c1_64 = arith.constant 1 : index
    %c0_65 = arith.constant 0 : index
    %54 = vector.load %arg10[%c0_62, %c2_63, %c1_64, %c0_65] : memref<1x18x18x128xf32, #tpu.memory_space<vmem>>, vector<1x16x16x128xf32>
    %55 = vector.shape_cast %54 : vector<1x16x16x128xf32> to vector<256x128xf32>
    %56 = arith.truncf %55 : vector<256x128xf32> to vector<256x128xbf16>
    %c7 = arith.constant 7 : index
    %c0_66 = arith.constant 0 : index
    %c0_67 = arith.constant 0 : index
    %57 = vector.load %arg2[%c7, %c0_66, %c0_67] : memref<9x128x128xbf16, #tpu.memory_space<vmem>>, vector<1x128x128xbf16>
    %58 = vector.shape_cast %57 : vector<1x128x128xbf16> to vector<128x128xbf16>
    %cst_68 = arith.constant dense<0.000000e+00> : vector<256x128xf32>
    %59 = tpu.matmul %56, %58, %cst_68 {dimension_numbers = #tpu.dot_dimension_numbers<[1], [0], [0], [1], [0, 0, 1, 1], [], []>} : vector<256x128xbf16>, vector<128x128xbf16>, vector<256x128xf32> -> vector<256x128xf32>
    %60 = arith.addf %53, %59 : vector<256x128xf32>
    %c0_69 = arith.constant 0 : index
    %c2_70 = arith.constant 2 : index
    %c2_71 = arith.constant 2 : index
    %c0_72 = arith.constant 0 : index
    %61 = vector.load %arg10[%c0_69, %c2_70, %c2_71, %c0_72] : memref<1x18x18x128xf32, #tpu.memory_space<vmem>>, vector<1x16x16x128xf32>
    %62 = vector.shape_cast %61 : vector<1x16x16x128xf32> to vector<256x128xf32>
    %63 = arith.truncf %62 : vector<256x128xf32> to vector<256x128xbf16>
    %c8 = arith.constant 8 : index
    %c0_73 = arith.constant 0 : index
    %c0_74 = arith.constant 0 : index
    %64 = vector.load %arg2[%c8, %c0_73, %c0_74] : memref<9x128x128xbf16, #tpu.memory_space<vmem>>, vector<1x128x128xbf16>
    %65 = vector.shape_cast %64 : vector<1x128x128xbf16> to vector<128x128xbf16>
    %cst_75 = arith.constant dense<0.000000e+00> : vector<256x128xf32>
    %66 = tpu.matmul %63, %65, %cst_75 {dimension_numbers = #tpu.dot_dimension_numbers<[1], [0], [0], [1], [0, 0, 1, 1], [], []>} : vector<256x128xbf16>, vector<128x128xbf16>, vector<256x128xf32> -> vector<256x128xf32>
    %67 = arith.addf %60, %66 : vector<256x128xf32>
    %c0_76 = arith.constant 0 : index
    %c0_77 = arith.constant 0 : index
    %68 = vector.load %arg3[%c0_76, %c0_77] : memref<1x128xf32, #tpu.memory_space<vmem>>, vector<1x128xf32>
    %69 = vector.broadcast %68 : vector<1x128xf32> to vector<256x128xf32>
    %70 = arith.mulf %67, %69 : vector<256x128xf32>
    %c0_78 = arith.constant 0 : index
    %c0_79 = arith.constant 0 : index
    %71 = vector.load %arg4[%c0_78, %c0_79] : memref<1x128xf32, #tpu.memory_space<vmem>>, vector<1x128xf32>
    %72 = vector.broadcast %71 : vector<1x128xf32> to vector<256x128xf32>
    %73 = arith.addf %70, %72 : vector<256x128xf32>
    %cst_80 = arith.constant 0.000000e+00 : f32
    %74 = vector.broadcast %cst_80 : f32 to vector<256x128xf32>
    %75 = arith.maximumf %73, %74 : vector<256x128xf32>
    %cst_81 = arith.constant 0.000000e+00 : f32
    %76 = vector.broadcast %cst_81 : f32 to vector<1x18x18x128xf32>
    %c0_82 = arith.constant 0 : index
    %c0_83 = arith.constant 0 : index
    %c0_84 = arith.constant 0 : index
    %c0_85 = arith.constant 0 : index
    %77 = vector.load %arg11[%c0_82, %c0_83, %c0_84, %c0_85] : memref<1x18x18x128xf32, #tpu.memory_space<vmem>>, vector<1x18x18x128xf32>
    tpu.vector_store %arg11[%c0_82, %c0_83, %c0_84, %c0_85], %76 {strides = array<i32>} : memref<1x18x18x128xf32, #tpu.memory_space<vmem>>, vector<1x18x18x128xf32>,
    %78 = vector.shape_cast %75 : vector<256x128xf32> to vector<1x16x16x128xf32>
    %c0_86 = arith.constant 0 : index
    %c1_87 = arith.constant 1 : index
    %c1_88 = arith.constant 1 : index
    %c0_89 = arith.constant 0 : index
    %79 = vector.load %arg11[%c0_86, %c1_87, %c1_88, %c0_89] : memref<1x18x18x128xf32, #tpu.memory_space<vmem>>, vector<1x16x16x128xf32>
    tpu.vector_store %arg11[%c0_86, %c1_87, %c1_88, %c0_89], %78 {strides = array<i32>} : memref<1x18x18x128xf32, #tpu.memory_space<vmem>>, vector<1x16x16x128xf32>,
    %cst_90 = arith.constant 0.000000e+00 : f32
    %80 = vector.broadcast %cst_90 : f32 to vector<256x128xf32>
    %c0_91 = arith.constant 0 : index
    %c0_92 = arith.constant 0 : index
    %c0_93 = arith.constant 0 : index
    %c0_94 = arith.constant 0 : index
    %81 = vector.load %arg11[%c0_91, %c0_92, %c0_93, %c0_94] : memref<1x18x18x128xf32, #tpu.memory_space<vmem>>, vector<1x16x16x128xf32>
    %82 = vector.shape_cast %81 : vector<1x16x16x128xf32> to vector<256x128xf32>
    %83 = arith.truncf %82 : vector<256x128xf32> to vector<256x128xbf16>
    %c0_95 = arith.constant 0 : index
    %c0_96 = arith.constant 0 : index
    %c0_97 = arith.constant 0 : index
    %84 = vector.load %arg5[%c0_95, %c0_96, %c0_97] : memref<9x128x128xbf16, #tpu.memory_space<vmem>>, vector<1x128x128xbf16>
    %85 = vector.shape_cast %84 : vector<1x128x128xbf16> to vector<128x128xbf16>
    %cst_98 = arith.constant dense<0.000000e+00> : vector<256x128xf32>
    %86 = tpu.matmul %83, %85, %cst_98 {dimension_numbers = #tpu.dot_dimension_numbers<[1], [0], [0], [1], [0, 0, 1, 1], [], []>} : vector<256x128xbf16>, vector<128x128xbf16>, vector<256x128xf32> -> vector<256x128xf32>
    %87 = arith.addf %80, %86 : vector<256x128xf32>
    %c0_99 = arith.constant 0 : index
    %c0_100 = arith.constant 0 : index
    %c1_101 = arith.constant 1 : index
    %c0_102 = arith.constant 0 : index
    %88 = vector.load %arg11[%c0_99, %c0_100, %c1_101, %c0_102] : memref<1x18x18x128xf32, #tpu.memory_space<vmem>>, vector<1x16x16x128xf32>
    %89 = vector.shape_cast %88 : vector<1x16x16x128xf32> to vector<256x128xf32>
    %90 = arith.truncf %89 : vector<256x128xf32> to vector<256x128xbf16>
    %c1_103 = arith.constant 1 : index
    %c0_104 = arith.constant 0 : index
    %c0_105 = arith.constant 0 : index
    %91 = vector.load %arg5[%c1_103, %c0_104, %c0_105] : memref<9x128x128xbf16, #tpu.memory_space<vmem>>, vector<1x128x128xbf16>
    %92 = vector.shape_cast %91 : vector<1x128x128xbf16> to vector<128x128xbf16>
    %cst_106 = arith.constant dense<0.000000e+00> : vector<256x128xf32>
    %93 = tpu.matmul %90, %92, %cst_106 {dimension_numbers = #tpu.dot_dimension_numbers<[1], [0], [0], [1], [0, 0, 1, 1], [], []>} : vector<256x128xbf16>, vector<128x128xbf16>, vector<256x128xf32> -> vector<256x128xf32>
    %94 = arith.addf %87, %93 : vector<256x128xf32>
    %c0_107 = arith.constant 0 : index
    %c0_108 = arith.constant 0 : index
    %c2_109 = arith.constant 2 : index
    %c0_110 = arith.constant 0 : index
    %95 = vector.load %arg11[%c0_107, %c0_108, %c2_109, %c0_110] : memref<1x18x18x128xf32, #tpu.memory_space<vmem>>, vector<1x16x16x128xf32>
    %96 = vector.shape_cast %95 : vector<1x16x16x128xf32> to vector<256x128xf32>
    %97 = arith.truncf %96 : vector<256x128xf32> to vector<256x128xbf16>
    %c2_111 = arith.constant 2 : index
    %c0_112 = arith.constant 0 : index
    %c0_113 = arith.constant 0 : index
    %98 = vector.load %arg5[%c2_111, %c0_112, %c0_113] : memref<9x128x128xbf16, #tpu.memory_space<vmem>>, vector<1x128x128xbf16>
    %99 = vector.shape_cast %98 : vector<1x128x128xbf16> to vector<128x128xbf16>
    %cst_114 = arith.constant dense<0.000000e+00> : vector<256x128xf32>
    %100 = tpu.matmul %97, %99, %cst_114 {dimension_numbers = #tpu.dot_dimension_numbers<[1], [0], [0], [1], [0, 0, 1, 1], [], []>} : vector<256x128xbf16>, vector<128x128xbf16>, vector<256x128xf32> -> vector<256x128xf32>
    %101 = arith.addf %94, %100 : vector<256x128xf32>
    %c0_115 = arith.constant 0 : index
    %c1_116 = arith.constant 1 : index
    %c0_117 = arith.constant 0 : index
    %c0_118 = arith.constant 0 : index
    %102 = vector.load %arg11[%c0_115, %c1_116, %c0_117, %c0_118] : memref<1x18x18x128xf32, #tpu.memory_space<vmem>>, vector<1x16x16x128xf32>
    %103 = vector.shape_cast %102 : vector<1x16x16x128xf32> to vector<256x128xf32>
    %104 = arith.truncf %103 : vector<256x128xf32> to vector<256x128xbf16>
    %c3_119 = arith.constant 3 : index
    %c0_120 = arith.constant 0 : index
    %c0_121 = arith.constant 0 : index
    %105 = vector.load %arg5[%c3_119, %c0_120, %c0_121] : memref<9x128x128xbf16, #tpu.memory_space<vmem>>, vector<1x128x128xbf16>
    %106 = vector.shape_cast %105 : vector<1x128x128xbf16> to vector<128x128xbf16>
    %cst_122 = arith.constant dense<0.000000e+00> : vector<256x128xf32>
    %107 = tpu.matmul %104, %106, %cst_122 {dimension_numbers = #tpu.dot_dimension_numbers<[1], [0], [0], [1], [0, 0, 1, 1], [], []>} : vector<256x128xbf16>, vector<128x128xbf16>, vector<256x128xf32> -> vector<256x128xf32>
    %108 = arith.addf %101, %107 : vector<256x128xf32>
    %c0_123 = arith.constant 0 : index
    %c1_124 = arith.constant 1 : index
    %c1_125 = arith.constant 1 : index
    %c0_126 = arith.constant 0 : index
    %109 = vector.load %arg11[%c0_123, %c1_124, %c1_125, %c0_126] : memref<1x18x18x128xf32, #tpu.memory_space<vmem>>, vector<1x16x16x128xf32>
    %110 = vector.shape_cast %109 : vector<1x16x16x128xf32> to vector<256x128xf32>
    %111 = arith.truncf %110 : vector<256x128xf32> to vector<256x128xbf16>
    %c4_127 = arith.constant 4 : index
    %c0_128 = arith.constant 0 : index
    %c0_129 = arith.constant 0 : index
    %112 = vector.load %arg5[%c4_127, %c0_128, %c0_129] : memref<9x128x128xbf16, #tpu.memory_space<vmem>>, vector<1x128x128xbf16>
    %113 = vector.shape_cast %112 : vector<1x128x128xbf16> to vector<128x128xbf16>
    %cst_130 = arith.constant dense<0.000000e+00> : vector<256x128xf32>
    %114 = tpu.matmul %111, %113, %cst_130 {dimension_numbers = #tpu.dot_dimension_numbers<[1], [0], [0], [1], [0, 0, 1, 1], [], []>} : vector<256x128xbf16>, vector<128x128xbf16>, vector<256x128xf32> -> vector<256x128xf32>
    %115 = arith.addf %108, %114 : vector<256x128xf32>
    %c0_131 = arith.constant 0 : index
    %c1_132 = arith.constant 1 : index
    %c2_133 = arith.constant 2 : index
    %c0_134 = arith.constant 0 : index
    %116 = vector.load %arg11[%c0_131, %c1_132, %c2_133, %c0_134] : memref<1x18x18x128xf32, #tpu.memory_space<vmem>>, vector<1x16x16x128xf32>
    %117 = vector.shape_cast %116 : vector<1x16x16x128xf32> to vector<256x128xf32>
    %118 = arith.truncf %117 : vector<256x128xf32> to vector<256x128xbf16>
    %c5_135 = arith.constant 5 : index
    %c0_136 = arith.constant 0 : index
    %c0_137 = arith.constant 0 : index
    %119 = vector.load %arg5[%c5_135, %c0_136, %c0_137] : memref<9x128x128xbf16, #tpu.memory_space<vmem>>, vector<1x128x128xbf16>
    %120 = vector.shape_cast %119 : vector<1x128x128xbf16> to vector<128x128xbf16>
    %cst_138 = arith.constant dense<0.000000e+00> : vector<256x128xf32>
    %121 = tpu.matmul %118, %120, %cst_138 {dimension_numbers = #tpu.dot_dimension_numbers<[1], [0], [0], [1], [0, 0, 1, 1], [], []>} : vector<256x128xbf16>, vector<128x128xbf16>, vector<256x128xf32> -> vector<256x128xf32>
    %122 = arith.addf %115, %121 : vector<256x128xf32>
    %c0_139 = arith.constant 0 : index
    %c2_140 = arith.constant 2 : index
    %c0_141 = arith.constant 0 : index
    %c0_142 = arith.constant 0 : index
    %123 = vector.load %arg11[%c0_139, %c2_140, %c0_141, %c0_142] : memref<1x18x18x128xf32, #tpu.memory_space<vmem>>, vector<1x16x16x128xf32>
    %124 = vector.shape_cast %123 : vector<1x16x16x128xf32> to vector<256x128xf32>
    %125 = arith.truncf %124 : vector<256x128xf32> to vector<256x128xbf16>
    %c6_143 = arith.constant 6 : index
    %c0_144 = arith.constant 0 : index
    %c0_145 = arith.constant 0 : index
    %126 = vector.load %arg5[%c6_143, %c0_144, %c0_145] : memref<9x128x128xbf16, #tpu.memory_space<vmem>>, vector<1x128x128xbf16>
    %127 = vector.shape_cast %126 : vector<1x128x128xbf16> to vector<128x128xbf16>
    %cst_146 = arith.constant dense<0.000000e+00> : vector<256x128xf32>
    %128 = tpu.matmul %125, %127, %cst_146 {dimension_numbers = #tpu.dot_dimension_numbers<[1], [0], [0], [1], [0, 0, 1, 1], [], []>} : vector<256x128xbf16>, vector<128x128xbf16>, vector<256x128xf32> -> vector<256x128xf32>
    %129 = arith.addf %122, %128 : vector<256x128xf32>
    %c0_147 = arith.constant 0 : index
    %c2_148 = arith.constant 2 : index
    %c1_149 = arith.constant 1 : index
    %c0_150 = arith.constant 0 : index
    %130 = vector.load %arg11[%c0_147, %c2_148, %c1_149, %c0_150] : memref<1x18x18x128xf32, #tpu.memory_space<vmem>>, vector<1x16x16x128xf32>
    %131 = vector.shape_cast %130 : vector<1x16x16x128xf32> to vector<256x128xf32>
    %132 = arith.truncf %131 : vector<256x128xf32> to vector<256x128xbf16>
    %c7_151 = arith.constant 7 : index
    %c0_152 = arith.constant 0 : index
    %c0_153 = arith.constant 0 : index
    %133 = vector.load %arg5[%c7_151, %c0_152, %c0_153] : memref<9x128x128xbf16, #tpu.memory_space<vmem>>, vector<1x128x128xbf16>
    %134 = vector.shape_cast %133 : vector<1x128x128xbf16> to vector<128x128xbf16>
    %cst_154 = arith.constant dense<0.000000e+00> : vector<256x128xf32>
    %135 = tpu.matmul %132, %134, %cst_154 {dimension_numbers = #tpu.dot_dimension_numbers<[1], [0], [0], [1], [0, 0, 1, 1], [], []>} : vector<256x128xbf16>, vector<128x128xbf16>, vector<256x128xf32> -> vector<256x128xf32>
    %136 = arith.addf %129, %135 : vector<256x128xf32>
    %c0_155 = arith.constant 0 : index
    %c2_156 = arith.constant 2 : index
    %c2_157 = arith.constant 2 : index
    %c0_158 = arith.constant 0 : index
    %137 = vector.load %arg11[%c0_155, %c2_156, %c2_157, %c0_158] : memref<1x18x18x128xf32, #tpu.memory_space<vmem>>, vector<1x16x16x128xf32>
    %138 = vector.shape_cast %137 : vector<1x16x16x128xf32> to vector<256x128xf32>
    %139 = arith.truncf %138 : vector<256x128xf32> to vector<256x128xbf16>
    %c8_159 = arith.constant 8 : index
    %c0_160 = arith.constant 0 : index
    %c0_161 = arith.constant 0 : index
    %140 = vector.load %arg5[%c8_159, %c0_160, %c0_161] : memref<9x128x128xbf16, #tpu.memory_space<vmem>>, vector<1x128x128xbf16>
    %141 = vector.shape_cast %140 : vector<1x128x128xbf16> to vector<128x128xbf16>
    %cst_162 = arith.constant dense<0.000000e+00> : vector<256x128xf32>
    %142 = tpu.matmul %139, %141, %cst_162 {dimension_numbers = #tpu.dot_dimension_numbers<[1], [0], [0], [1], [0, 0, 1, 1], [], []>} : vector<256x128xbf16>, vector<128x128xbf16>, vector<256x128xf32> -> vector<256x128xf32>
    %143 = arith.addf %136, %142 : vector<256x128xf32>
    %c0_163 = arith.constant 0 : index
    %c0_164 = arith.constant 0 : index
    %144 = vector.load %arg6[%c0_163, %c0_164] : memref<1x128xf32, #tpu.memory_space<vmem>>, vector<1x128xf32>
    %145 = vector.broadcast %144 : vector<1x128xf32> to vector<256x128xf32>
    %146 = arith.mulf %143, %145 : vector<256x128xf32>
    %c0_165 = arith.constant 0 : index
    %c0_166 = arith.constant 0 : index
    %147 = vector.load %arg7[%c0_165, %c0_166] : memref<1x128xf32, #tpu.memory_space<vmem>>, vector<1x128xf32>
    %148 = vector.broadcast %147 : vector<1x128xf32> to vector<256x128xf32>
    %149 = arith.addf %146, %148 : vector<256x128xf32>
    %cst_167 = arith.constant 0.000000e+00 : f32
    %150 = vector.broadcast %cst_167 : f32 to vector<256x128xf32>
    %151 = arith.maximumf %149, %150 : vector<256x128xf32>
    %c0_168 = arith.constant 0 : index
    %c1_169 = arith.constant 1 : index
    %c1_170 = arith.constant 1 : index
    %c0_171 = arith.constant 0 : index
    %152 = vector.load %arg10[%c0_168, %c1_169, %c1_170, %c0_171] : memref<1x18x18x128xf32, #tpu.memory_space<vmem>>, vector<1x16x16x128xf32>
    %153 = vector.shape_cast %152 : vector<1x16x16x128xf32> to vector<256x128xf32>
    %154 = arith.truncf %153 : vector<256x128xf32> to vector<256x128xbf16>
    %c0_172 = arith.constant 0 : index
    %c0_173 = arith.constant 0 : index
    %155 = vector.load %arg8[%c0_172, %c0_173] : memref<128x128xbf16, #tpu.memory_space<vmem>>, vector<128x128xbf16>
    %cst_174 = arith.constant dense<0.000000e+00> : vector<256x128xf32>
    %156 = tpu.matmul %154, %155, %cst_174 {dimension_numbers = #tpu.dot_dimension_numbers<[1], [0], [0], [1], [0, 0, 1, 1], [], []>} : vector<256x128xbf16>, vector<128x128xbf16>, vector<256x128xf32> -> vector<256x128xf32>
    %157 = arith.addf %151, %156 : vector<256x128xf32>
    %158 = vector.shape_cast %157 : vector<256x128xf32> to vector<1x16x16x128xf32>
    %c0_175 = arith.constant 0 : index
    %c0_176 = arith.constant 0 : index
    %c0_177 = arith.constant 0 : index
    %c0_178 = arith.constant 0 : index
    %159 = vector.load %arg9[%c0_175, %c0_176, %c0_177, %c0_178] : memref<1x16x16x128xf32, #tpu.memory_space<vmem>>, vector<1x16x16x128xf32>
    tpu.vector_store %arg9[%c0_175, %c0_176, %c0_177, %c0_178], %158 {strides = array<i32>} : memref<1x16x16x128xf32, #tpu.memory_space<vmem>>, vector<1x16x16x128xf32>,
    return
  }
  func.func @transform_0(%arg0: i32) -> (i32, i32, i32, i32) {
    %c0_i32 = arith.constant 0 : i32
    %c0_i32_0 = arith.constant 0 : i32
    %c0_i32_1 = arith.constant 0 : i32
    %c0_i32_2 = arith.constant 0 : i32
    return %arg0, %c0_i32, %c0_i32_0, %c0_i32_1 : i32, i32, i32, i32
  }
  func.func @transform_1(%arg0: i32) -> (i32, i32, i32) {
    %c0_i32 = arith.constant 0 : i32
    %c0_i32_0 = arith.constant 0 : i32
    %c0_i32_1 = arith.constant 0 : i32
    %c0_i32_2 = arith.constant 0 : i32
    return %c0_i32, %c0_i32_0, %c0_i32_1 : i32, i32, i32
  }
  func.func @transform_2(%arg0: i32) -> (i32, i32) {
    %c0_i32 = arith.constant 0 : i32
    %c0_i32_0 = arith.constant 0 : i32
    %c0_i32_1 = arith.constant 0 : i32
    return %c0_i32, %c0_i32_0 : i32, i32
  }
  func.func @transform_3(%arg0: i32) -> (i32, i32) {
    %c0_i32 = arith.constant 0 : i32
    %c0_i32_0 = arith.constant 0 : i32
    %c0_i32_1 = arith.constant 0 : i32
    return %c0_i32, %c0_i32_0 : i32, i32
  }
  func.func @transform_4(%arg0: i32) -> (i32, i32, i32) {
    %c0_i32 = arith.constant 0 : i32
    %c0_i32_0 = arith.constant 0 : i32
    %c0_i32_1 = arith.constant 0 : i32
    %c0_i32_2 = arith.constant 0 : i32
    return %c0_i32, %c0_i32_0, %c0_i32_1 : i32, i32, i32
  }
  func.func @transform_5(%arg0: i32) -> (i32, i32) {
    %c0_i32 = arith.constant 0 : i32
    %c0_i32_0 = arith.constant 0 : i32
    %c0_i32_1 = arith.constant 0 : i32
    return %c0_i32, %c0_i32_0 : i32, i32
  }
  func.func @transform_6(%arg0: i32) -> (i32, i32) {
    %c0_i32 = arith.constant 0 : i32
    %c0_i32_0 = arith.constant 0 : i32
    %c0_i32_1 = arith.constant 0 : i32
    return %c0_i32, %c0_i32_0 : i32, i32
  }
  func.func @transform_7(%arg0: i32) -> (i32, i32) {
    %c0_i32 = arith.constant 0 : i32
    %c0_i32_0 = arith.constant 0 : i32
    %c0_i32_1 = arith.constant 0 : i32
    return %c0_i32, %c0_i32_0 : i32, i32
  }
  func.func @transform_8(%arg0: i32) -> (i32, i32, i32, i32) {
    %c0_i32 = arith.constant 0 : i32
    %c0_i32_0 = arith.constant 0 : i32
    %c0_i32_1 = arith.constant 0 : i32
    %c0_i32_2 = arith.constant 0 : i32
    return %arg0, %c0_i32, %c0_i32_0, %c0_i32_1 : i32, i32, i32, i32
  }
}

</mosaic_0001>

<llo_original>
// kernel: preact_block_forward.1
$region0: #{preact_block_forward.1}
  #allocation0 [shape = 'u32[]', space=smem, size = 0x4, offset = 0x4, fixed_abs, tag = 'smem constant byte address 0x4 - core index']
  #allocation1 [shape = 'u32[144,128]{1,0:T(1,128)}', space=vmem, size = 0x12000, scoped, tag = 'internal scratch']
  #allocation2 [shape = 'f32[1,18,18,128]{3,2,1,0:T(8,128)}', space=vmem, size = 0x36000, scoped, tag = 'scratch operand']
  #allocation3 [shape = 'f32[1,18,18,128]{3,2,1,0:T(8,128)}', space=vmem, size = 0x36000, scoped, tag = 'scratch operand']
  %s0 = inlined_call_operand.vmem [shape: f32[2,16,16,4], index: 0, kind: input, shape index: {}]
  %s1 = inlined_call_operand.vmem [shape: bf16[9,128,128], index: 1, kind: input, shape index: {}]
  %s2 = inlined_call_operand.vmem [shape: f32[1,128], index: 2, kind: input, shape index: {}]
  %s3 = inlined_call_operand.vmem [shape: f32[1,128], index: 3, kind: input, shape index: {}]
  %s4 = inlined_call_operand.hbm [shape: bf16[9,128,128], index: 4, kind: input, shape index: {}]
  %s5 = inlined_call_operand.vmem [shape: f32[1,128], index: 5, kind: input, shape index: {}]
  %s6 = inlined_call_operand.vmem [shape: f32[1,128], index: 6, kind: input, shape index: {}]
  %s7 = inlined_call_operand.vmem [shape: bf16[128,128], index: 7, kind: input, shape index: {}]
  %s8 = inlined_call_operand.vmem [shape: f32[2,16,16,128], index: 8, kind: output, shape index: {}]
  %s9 = sld [smem:[#allocation0]]
  $region69: #{preact_block_forward.1} parent=0
    _
  %s11 = ssub.s32 1, %s9
  %s12 = scalar_select 0, %s11, %s9
  $region1: #{preact_block_forward.1} parent=0
    #allocation4 [shape = 'u8[294912]{0}', space=vmem, size = 0x48000, scoped, tag = 'input window, operand 4, single buffered']
    #allocation5 [shape = 's32[2]{0}', space=sflag, size = 0x8, scoped, tag = 'scoped memory for preact_block_forward.1']
    %13 = vsyncpa [#allocation5], 0
    loop: start=0, step=1, limit=4
    $region2: #{preact_block_forward.1} parent=1 // loop_pre_header
      _
    $region3: #{preact_block_forward.1} parent=1 // loop_header
      %s15 = sphi 0, %s19
      %p16 = scmp.ge.s32.totalorder %s15, 4
      %s25 = sphi 0, %s27
      %s28 = sphi 0, %s25
      %s29 = sphi 0, %s28
      %s45 = sphi 0, %s29
      %s49 = sphi 0, %s49
      %s51 = sphi 0, %s49
      %s52 = sphi 0, %s51
      %s66 = sphi 0, %s52
      %s70 = sphi 0, %s70
      %s72 = sphi 0, %s70
      %s73 = sphi 0, %s72
      %s87 = sphi 0, %s73
      %s91 = sphi 0, %s91
      %s93 = sphi 0, %s91
      %s94 = sphi 0, %s93
      %s108 = sphi 0, %s94
      %s112 = sphi 0, %s112
      %s114 = sphi 0, %s112
      %s115 = sphi 0, %s114
      %s129 = sphi 0, %s115
      %s133 = sphi 0, %s133
      %s135 = sphi 0, %s133
      %s136 = sphi 0, %s135
      %s150 = sphi 0, %s136
      %s154 = sphi 0, %s154
      %s156 = sphi 0, %s154
      %s157 = sphi 0, %s156
      %s171 = sphi 0, %s157
      %s175 = sphi 0, %s175
      %s177 = sphi 0, %s175
      %s178 = sphi 0, %s177
      %s192 = sphi 0, %s178
      %s198 = sphi 0, %s200
      %s201 = sphi 0, %s198
      %s202 = sphi 0, %s201
      %s218 = sphi 0, %s202
    $region4: #{preact_block_forward.1} parent=1 // loop_header_branch
      %18 = sbr.rel (%p16) target = $region8
    $region5: #{preact_block_forward.1} parent=1 // loop_body
      %s20 = ssub.s32 %s15, 1
      %s21 = ssub.s32 %s15, 2
      %s22 = sadd.s32 %s15, 1
      %s23 = ssub.s32 %s15, %s22
      %p24 = scmp.eq.s32.totalorder %s23, 0
      %s26 = sadd.s32 %s25, 1
      %s27 = scalar_select %p24, %s25, %s26
      %p30 = pneg %p24
      %p31 = scmp.eq.s32.totalorder %s15, 1
      %p32 = por %p30, %p31
      %p33 = scmp.ne.s32.totalorder %s25, %s28
      %p34 = scmp.eq.s32.totalorder %s15, 0
      %p35 = por %p33, %p34
      %p36 = scmp.ne.s32.totalorder %s25, %s28
      %p37 = scmp.eq.s32.totalorder %s20, 1
      %p38 = por %p36, %p37
      %p39 = scmp.ne.s32.totalorder %s28, %s29
      %p40 = scmp.eq.s32.totalorder %s20, 0
      %p41 = por %p39, %p40
      %p42 = scmp.ne.s32.totalorder %s28, %s29
      %p43 = scmp.eq.s32.totalorder %s21, 1
      %p44 = por %p42, %p43
      %p46 = scmp.ne.s32.totalorder %s29, %s45
      %p47 = scmp.eq.s32.totalorder %s21, 0
      %p48 = por %p46, %p47
      %s50 = sadd.s32 %s49, 1
      %p53 = scmp.eq.s32.totalorder %s15, 1
      %p54 = scmp.ne.s32.totalorder %s49, %s51
      %p55 = scmp.eq.s32.totalorder %s15, 0
      %p56 = por %p54, %p55
      %p57 = scmp.ne.s32.totalorder %s49, %s51
      %p58 = scmp.eq.s32.totalorder %s20, 1
      %p59 = por %p57, %p58
      %p60 = scmp.ne.s32.totalorder %s51, %s52
      %p61 = scmp.eq.s32.totalorder %s20, 0
      %p62 = por %p60, %p61
      %p63 = scmp.ne.s32.totalorder %s51, %s52
      %p64 = scmp.eq.s32.totalorder %s21, 1
      %p65 = por %p63, %p64
      %p67 = scmp.ne.s32.totalorder %s52, %s66
      %p68 = scmp.eq.s32.totalorder %s21, 0
      %p69 = por %p67, %p68
      %s71 = sadd.s32 %s70, 1
      %p74 = scmp.eq.s32.totalorder %s15, 1
      %p75 = scmp.ne.s32.totalorder %s70, %s72
      %p76 = scmp.eq.s32.totalorder %s15, 0
      %p77 = por %p75, %p76
      %p78 = scmp.ne.s32.totalorder %s70, %s72
      %p79 = scmp.eq.s32.totalorder %s20, 1
      %p80 = por %p78, %p79
      %p81 = scmp.ne.s32.totalorder %s72, %s73
      %p82 = scmp.eq.s32.totalorder %s20, 0
      %p83 = por %p81, %p82
      %p84 = scmp.ne.s32.totalorder %s72, %s73
      %p85 = scmp.eq.s32.totalorder %s21, 1
      %p86 = por %p84, %p85
      %p88 = scmp.ne.s32.totalorder %s73, %s87
      %p89 = scmp.eq.s32.totalorder %s21, 0
      %p90 = por %p88, %p89
      %s92 = sadd.s32 %s91, 1
      %p95 = scmp.eq.s32.totalorder %s15, 1
      %p96 = scmp.ne.s32.totalorder %s91, %s93
      %p97 = scmp.eq.s32.totalorder %s15, 0
      %p98 = por %p96, %p97
      %p99 = scmp.ne.s32.totalorder %s91, %s93
      %p100 = scmp.eq.s32.totalorder %s20, 1
      %p101 = por %p99, %p100
      %p102 = scmp.ne.s32.totalorder %s93, %s94
      %p103 = scmp.eq.s32.totalorder %s20, 0
      %p104 = por %p102, %p103
      %p105 = scmp.ne.s32.totalorder %s93, %s94
      %p106 = scmp.eq.s32.totalorder %s21, 1
      %p107 = por %p105, %p106
      %p109 = scmp.ne.s32.totalorder %s94, %s108
      %p110 = scmp.eq.s32.totalorder %s21, 0
      %p111 = por %p109, %p110
      %s113 = sadd.s32 %s112, 1
      %p116 = scmp.eq.s32.totalorder %s15, 1
      %p117 = scmp.ne.s32.totalorder %s112, %s114
      %p118 = scmp.eq.s32.totalorder %s15, 0
      %p119 = por %p117, %p118
      %p120 = scmp.ne.s32.totalorder %s112, %s114
      %p121 = scmp.eq.s32.totalorder %s20, 1
      %p122 = por %p120, %p121
      %p123 = scmp.ne.s32.totalorder %s114, %s115
      %p124 = scmp.eq.s32.totalorder %s20, 0
      %p125 = por %p123, %p124
      %p126 = scmp.ne.s32.totalorder %s114, %s115
      %p127 = scmp.eq.s32.totalorder %s21, 1
      %p128 = por %p126, %p127
      %p130 = scmp.ne.s32.totalorder %s115, %s129
      %p131 = scmp.eq.s32.totalorder %s21, 0
      %p132 = por %p130, %p131
      %s134 = sadd.s32 %s133, 1
      %p137 = scmp.eq.s32.totalorder %s15, 1
      %p138 = scmp.ne.s32.totalorder %s133, %s135
      %p139 = scmp.eq.s32.totalorder %s15, 0
      %p140 = por %p138, %p139
      %p141 = scmp.ne.s32.totalorder %s133, %s135
      %p142 = scmp.eq.s32.totalorder %s20, 1
      %p143 = por %p141, %p142
      %p144 = scmp.ne.s32.totalorder %s135, %s136
      %p145 = scmp.eq.s32.totalorder %s20, 0
      %p146 = por %p144, %p145
      %p147 = scmp.ne.s32.totalorder %s135, %s136
      %p148 = scmp.eq.s32.totalorder %s21, 1
      %p149 = por %p147, %p148
      %p151 = scmp.ne.s32.totalorder %s136, %s150
      %p152 = scmp.eq.s32.totalorder %s21, 0
      %p153 = por %p151, %p152
      %s155 = sadd.s32 %s154, 1
      %p158 = scmp.eq.s32.totalorder %s15, 1
      %p159 = scmp.ne.s32.totalorder %s154, %s156
      %p160 = scmp.eq.s32.totalorder %s15, 0
      %p161 = por %p159, %p160
      %p162 = scmp.ne.s32.totalorder %s154, %s156
      %p163 = scmp.eq.s32.totalorder %s20, 1
      %p164 = por %p162, %p163
      %p165 = scmp.ne.s32.totalorder %s156, %s157
      %p166 = scmp.eq.s32.totalorder %s20, 0
      %p167 = por %p165, %p166
      %p168 = scmp.ne.s32.totalorder %s156, %s157
      %p169 = scmp.eq.s32.totalorder %s21, 1
      %p170 = por %p168, %p169
      %p172 = scmp.ne.s32.totalorder %s157, %s171
      %p173 = scmp.eq.s32.totalorder %s21, 0
      %p174 = por %p172, %p173
      %s176 = sadd.s32 %s175, 1
      %p179 = scmp.eq.s32.totalorder %s15, 1
      %p180 = scmp.ne.s32.totalorder %s175, %s177
      %p181 = scmp.eq.s32.totalorder %s15, 0
      %p182 = por %p180, %p181
      %p183 = scmp.ne.s32.totalorder %s175, %s177
      %p184 = scmp.eq.s32.totalorder %s20, 1
      %p185 = por %p183, %p184
      %p186 = scmp.ne.s32.totalorder %s177, %s178
      %p187 = scmp.eq.s32.totalorder %s20, 0
      %p188 = por %p186, %p187
      %p189 = scmp.ne.s32.totalorder %s177, %s178
      %p190 = scmp.eq.s32.totalorder %s21, 1
      %p191 = por %p189, %p190
      %p193 = scmp.ne.s32.totalorder %s178, %s192
      %p194 = scmp.eq.s32.totalorder %s21, 0
      %p195 = por %p193, %p194
      %s196 = ssub.s32 %s15, %s22
      %p197 = scmp.eq.s32.totalorder %s196, 0
      %s199 = sadd.s32 %s198, 1
      %s200 = scalar_select %p197, %s198, %s199
      %p203 = pneg %p197
      %p204 = scmp.eq.s32.totalorder %s15, 1
      %p205 = por %p203, %p204
      %p206 = scmp.ne.s32.totalorder %s198, %s201
      %p207 = scmp.eq.s32.totalorder %s15, 0
      %p208 = por %p206, %p207
      %p209 = scmp.ne.s32.totalorder %s198, %s201
      %p210 = scmp.eq.s32.totalorder %s20, 1
      %p211 = por %p209, %p210
      %p212 = scmp.ne.s32.totalorder %s201, %s202
      %p213 = scmp.eq.s32.totalorder %s20, 0
      %p214 = por %p212, %p213
      %p215 = scmp.ne.s32.totalorder %s201, %s202
      %p216 = scmp.eq.s32.totalorder %s21, 1
      %p217 = por %p215, %p216
      %p219 = scmp.ne.s32.totalorder %s202, %s218
      %p220 = scmp.eq.s32.totalorder %s21, 0
      %p221 = por %p219, %p220
      %p222 = scmp.le.s32.totalorder 1, %s15
      %p223 = scmp.lt.s32.totalorder %s15, 3
      %p224 = pnand %p222, %p223
      %p225 = pneg %p224
      // Predicated region
      $region9: #{preact_block_forward.1} parent=5 // pred_check
        _
      $region10: #{preact_block_forward.1} parent=5 // pred_check_branch
        %227 = sbr.rel (%p224) target = $region12
      $region11: #{preact_block_forward.1} parent=5 // pred_region
        %s228 = ssub.s32 %s15, 1
        // Predicated region
        $region13: #{preact_block_forward.1} parent=11 // pred_check
          %p229 = pneg %p62
        $region14: #{preact_block_forward.1} parent=11 // pred_check_branch
          %231 = sbr.rel (%p229) target = $region16
        $region15: #{preact_block_forward.1} parent=11 // pred_region
          _
        $region16: #{preact_block_forward.1} parent=11 // pred_fallthru
          _
        // Predicated region
        $region17: #{preact_block_forward.1} parent=11 // pred_check
          %p232 = pneg %p83
        $region18: #{preact_block_forward.1} parent=11 // pred_check_branch
          %234 = sbr.rel (%p232) target = $region20
        $region19: #{preact_block_forward.1} parent=11 // pred_region
          _
        $region20: #{preact_block_forward.1} parent=11 // pred_fallthru
          _
        // Predicated region
        $region21: #{preact_block_forward.1} parent=11 // pred_check
          %p235 = pneg %p104
        $region22: #{preact_block_forward.1} parent=11 // pred_check_branch
          %237 = sbr.rel (%p235) target = $region24
        $region23: #{preact_block_forward.1} parent=11 // pred_region
          _
        $region24: #{preact_block_forward.1} parent=11 // pred_fallthru
          _
        // Predicated region
        $region25: #{preact_block_forward.1} parent=11 // pred_check
          %p238 = pneg %p125
        $region26: #{preact_block_forward.1} parent=11 // pred_check_branch
          %240 = sbr.rel (%p238) target = $region28
        $region27: #{preact_block_forward.1} parent=11 // pred_region
          %s242 = ssub.s32 9216, 9216
          %243 = vsyncadd [#allocation5], %s242
          %s244 = sshll.u32 [#allocation4], 4
          %s245 = int_to_ptr.vmem [resolvable:$true] %s244
          %250 = dma.hbm_to_vmem [thread:$0]  %s4, 9216, %s245, [#allocation5], 64, 64, 4
        $region28: #{preact_block_forward.1} parent=11 // pred_fallthru
          _
        // Predicated region
        $region29: #{preact_block_forward.1} parent=11 // pred_check
          %p251 = pneg %p146
        $region30: #{preact_block_forward.1} parent=11 // pred_check_branch
          %253 = sbr.rel (%p251) target = $region32
        $region31: #{preact_block_forward.1} parent=11 // pred_region
          _
        $region32: #{preact_block_forward.1} parent=11 // pred_fallthru
          _
        // Predicated region
        $region33: #{preact_block_forward.1} parent=11 // pred_check
          %p254 = pneg %p167
        $region34: #{preact_block_forward.1} parent=11 // pred_check_branch
          %256 = sbr.rel (%p254) target = $region36
        $region35: #{preact_block_forward.1} parent=11 // pred_region
          _
        $region36: #{preact_block_forward.1} parent=11 // pred_fallthru
          _
        // Predicated region
        $region37: #{preact_block_forward.1} parent=11 // pred_check
          %p257 = pneg %p188
        $region38: #{preact_block_forward.1} parent=11 // pred_check_branch
          %259 = sbr.rel (%p257) target = $region40
        $region39: #{preact_block_forward.1} parent=11 // pred_region
          _
        $region40: #{preact_block_forward.1} parent=11 // pred_fallthru
          _
      $region12: #{preact_block_forward.1} parent=5 // pred_fallthru
        _
      %p260 = scmp.lt.s32.totalorder %s15, 2
      // Predicated region
      $region41: #{preact_block_forward.1} parent=5 // pred_check
        %p261 = pneg %p260
      $region42: #{preact_block_forward.1} parent=5 // pred_check_branch
        %263 = sbr.rel (%p261) target = $region44
      $region43: #{preact_block_forward.1} parent=5 // pred_region
        // Predicated region
        $region45: #{preact_block_forward.1} parent=43 // pred_check
          %p264 = pneg %p35
        $region46: #{preact_block_forward.1} parent=43 // pred_check_branch
          %266 = sbr.rel (%p264) target = $region48
        $region47: #{preact_block_forward.1} parent=43 // pred_region
          %p267 = scmp.lt.s32.totalorder %s15, 1
          %s268 = scalar_select %p267, %s15, 1
          %s269 = smul.addr %s268, 32
          %s270 = smul.addr %s269, 8
          %s271 = scalar_lea.vmem %s0, %s270
        $region48: #{preact_block_forward.1} parent=43 // pred_fallthru
          _
      $region44: #{preact_block_forward.1} parent=5 // pred_fallthru
        _
      %p272 = scmp.le.s32.totalorder 1, %s15
      %p273 = scmp.lt.s32.totalorder %s15, 3
      %p274 = pnand %p272, %p273
      %p275 = pneg %p274
      // Predicated region
      $region49: #{preact_block_forward.1} parent=5 // pred_check
        _
      $region50: #{preact_block_forward.1} parent=5 // pred_check_branch
        %277 = sbr.rel (%p274) target = $region52
      $region51: #{preact_block_forward.1} parent=5 // pred_region
        %s278 = ssub.s32 %s15, 1
        // Predicated region
        $region53: #{preact_block_forward.1} parent=51 // pred_check
          %p279 = pneg %p125
        $region54: #{preact_block_forward.1} parent=51 // pred_check_branch
          %281 = sbr.rel (%p279) target = $region56
        $region55: #{preact_block_forward.1} parent=51 // pred_region
          %282 = dma.done [#allocation5], 9216
        $region56: #{preact_block_forward.1} parent=51 // pred_fallthru
          _
        %p283 = scmp.lt.s32.totalorder %s20, 1
        %s284 = scalar_select %p283, %s20, 1
        %s285 = smul.addr %s284, 32
        %s286 = smul.addr %s285, 8
        %s287 = scalar_lea.vmem %s0, %s286
        %p288 = pneg %p41
        %p289 = pneg %p38
        %p290 = pneg %p62
        %p291 = pneg %p59
        %p292 = pneg %p83
        %p293 = pneg %p80
        %p294 = pneg %p104
        %p295 = pneg %p101
        %p296 = pneg %p125
        %p297 = pneg %p122
        %p298 = pneg %p146
        %p299 = pneg %p143
        %p300 = pneg %p167
        %p301 = pneg %p164
        %p302 = pneg %p188
        %p303 = pneg %p185
        %p304 = pneg %p214
        %p305 = pneg %p211
        %p306 = scmp.lt.s32.totalorder %s20, 1
        %s307 = scalar_select %p306, %s20, 1
        %s308 = smul.addr %s307, 32
        %s309 = smul.addr %s308, 8
        %s310 = scalar_lea.vmem %s8, %s309
        %p311 = scmp.lt.s32.totalorder %s20, 1
        %s312 = scalar_select %p311, %s20, 1
        %s313 = smul.addr %s312, 32
        %s314 = smul.addr %s313, 8
        %s315 = scalar_lea.vmem %s0, %s314
        %p316 = scmp.lt.s32.totalorder %s20, 1
        %s317 = scalar_select %p316, %s20, 1
        %s318 = smul.addr %s317, 32
        %s319 = smul.addr %s318, 8
        %s320 = scalar_lea.vmem %s8, %s319
        %322 = vst [vmem:[#allocation2] sm:$0xff] 0.0
        %323 = vst [vmem:[#allocation2 + $0x8] sm:$0xff] 0.0
        %324 = vst [vmem:[#allocation2 + $0x10] sm:$0x3] 0.0
        %325 = vst [vmem:[#allocation2 + $0x18] sm:$0xff] 0.0
        %326 = vst [vmem:[#allocation2 + $0x20] sm:$0xff] 0.0
        %327 = vst [vmem:[#allocation2 + $0x28] sm:$0x3] 0.0
        %328 = vst [vmem:[#allocation2 + $0x30] sm:$0xff] 0.0
        %329 = vst [vmem:[#allocation2 + $0x38] sm:$0xff] 0.0
        %330 = vst [vmem:[#allocation2 + $0x40] sm:$0x3] 0.0
        %331 = vst [vmem:[#allocation2 + $0x48] sm:$0xff] 0.0
        %332 = vst [vmem:[#allocation2 + $0x50] sm:$0xff] 0.0
        %333 = vst [vmem:[#allocation2 + $0x58] sm:$0x3] 0.0
        %334 = vst [vmem:[#allocation2 + $0x60] sm:$0xff] 0.0
        %335 = vst [vmem:[#allocation2 + $0x68] sm:$0xff] 0.0
        %336 = vst [vmem:[#allocation2 + $0x70] sm:$0x3] 0.0
        %337 = vst [vmem:[#allocation2 + $0x78] sm:$0xff] 0.0
        %338 = vst [vmem:[#allocation2 + $0x80] sm:$0xff] 0.0
        %339 = vst [vmem:[#allocation2 + $0x88] sm:$0x3] 0.0
        %340 = vst [vmem:[#allocation2 + $0x90] sm:$0xff] 0.0
        %341 = vst [vmem:[#allocation2 + $0x98] sm:$0xff] 0.0
        %342 = vst [vmem:[#allocation2 + $0xa0] sm:$0x3] 0.0
        %343 = vst [vmem:[#allocation2 + $0xa8] sm:$0xff] 0.0
        %344 = vst [vmem:[#allocation2 + $0xb0] sm:$0xff] 0.0
        %345 = vst [vmem:[#allocation2 + $0xb8] sm:$0x3] 0.0
        %346 = vst [vmem:[#allocation2 + $0xc0] sm:$0xff] 0.0
        %347 = vst [vmem:[#allocation2 + $0xc8] sm:$0xff] 0.0
        %348 = vst [vmem:[#allocation2 + $0xd0] sm:$0x3] 0.0
        %349 = vst [vmem:[#allocation2 + $0xd8] sm:$0xff] 0.0
        %350 = vst [vmem:[#allocation2 + $0xe0] sm:$0xff] 0.0
        %351 = vst [vmem:[#allocation2 + $0xe8] sm:$0x3] 0.0
        %352 = vst [vmem:[#allocation2 + $0xf0] sm:$0xff] 0.0
        %353 = vst [vmem:[#allocation2 + $0xf8] sm:$0xff] 0.0
        %354 = vst [vmem:[#allocation2 + $0x100] sm:$0x3] 0.0
        %355 = vst [vmem:[#allocation2 + $0x108] sm:$0xff] 0.0
        %356 = vst [vmem:[#allocation2 + $0x110] sm:$0xff] 0.0
        %357 = vst [vmem:[#allocation2 + $0x118] sm:$0x3] 0.0
        %358 = vst [vmem:[#allocation2 + $0x120] sm:$0xff] 0.0
        %359 = vst [vmem:[#allocation2 + $0x128] sm:$0xff] 0.0
        %360 = vst [vmem:[#allocation2 + $0x130] sm:$0x3] 0.0
        %361 = vst [vmem:[#allocation2 + $0x138] sm:$0xff] 0.0
        %362 = vst [vmem:[#allocation2 + $0x140] sm:$0xff] 0.0
        %363 = vst [vmem:[#allocation2 + $0x148] sm:$0x3] 0.0
        %364 = vst [vmem:[#allocation2 + $0x150] sm:$0xff] 0.0
        %365 = vst [vmem:[#allocation2 + $0x158] sm:$0xff] 0.0
        %366 = vst [vmem:[#allocation2 + $0x160] sm:$0x3] 0.0
        %367 = vst [vmem:[#allocation2 + $0x168] sm:$0xff] 0.0
        %368 = vst [vmem:[#allocation2 + $0x170] sm:$0xff] 0.0
        %369 = vst [vmem:[#allocation2 + $0x178] sm:$0x3] 0.0
        %370 = vst [vmem:[#allocation2 + $0x180] sm:$0xff] 0.0
        %371 = vst [vmem:[#allocation2 + $0x188] sm:$0xff] 0.0
        %372 = vst [vmem:[#allocation2 + $0x190] sm:$0x3] 0.0
        %373 = vst [vmem:[#allocation2 + $0x198] sm:$0xff] 0.0
        %374 = vst [vmem:[#allocation2 + $0x1a0] sm:$0xff] 0.0
        %375 = vst [vmem:[#allocation2 + $0x1a8] sm:$0x3] 0.0
        %v376 = vld [vmem:[%s315] sm:$0xff]
        %v377 = vld [vmem:[%s315 + $0x8] sm:$0xff]
        %v378 = vld [vmem:[%s315 + $0x10] sm:$0xff]
        %v379 = vld [vmem:[%s315 + $0x18] sm:$0xff]
        %v380 = vld [vmem:[%s315 + $0x20] sm:$0xff]
        %v381 = vld [vmem:[%s315 + $0x28] sm:$0xff]
        %v382 = vld [vmem:[%s315 + $0x30] sm:$0xff]
        %v383 = vld [vmem:[%s315 + $0x38] sm:$0xff]
        %v384 = vld [vmem:[%s315 + $0x40] sm:$0xff]
        %v385 = vld [vmem:[%s315 + $0x48] sm:$0xff]
        %v386 = vld [vmem:[%s315 + $0x50] sm:$0xff]
        %v387 = vld [vmem:[%s315 + $0x58] sm:$0xff]
        %v388 = vld [vmem:[%s315 + $0x60] sm:$0xff]
        %v389 = vld [vmem:[%s315 + $0x68] sm:$0xff]
        %v390 = vld [vmem:[%s315 + $0x70] sm:$0xff]
        %v391 = vld [vmem:[%s315 + $0x78] sm:$0xff]
        %v392 = vld [vmem:[%s315 + $0x80] sm:$0xff]
        %v393 = vld [vmem:[%s315 + $0x88] sm:$0xff]
        %v394 = vld [vmem:[%s315 + $0x90] sm:$0xff]
        %v395 = vld [vmem:[%s315 + $0x98] sm:$0xff]
        %v396 = vld [vmem:[%s315 + $0xa0] sm:$0xff]
        %v397 = vld [vmem:[%s315 + $0xa8] sm:$0xff]
        %v398 = vld [vmem:[%s315 + $0xb0] sm:$0xff]
        %v399 = vld [vmem:[%s315 + $0xb8] sm:$0xff]
        %v400 = vld [vmem:[%s315 + $0xc0] sm:$0xff]
        %v401 = vld [vmem:[%s315 + $0xc8] sm:$0xff]
        %v402 = vld [vmem:[%s315 + $0xd0] sm:$0xff]
        %v403 = vld [vmem:[%s315 + $0xd8] sm:$0xff]
        %v404 = vld [vmem:[%s315 + $0xe0] sm:$0xff]
        %v405 = vld [vmem:[%s315 + $0xe8] sm:$0xff]
        %v406 = vld [vmem:[%s315 + $0xf0] sm:$0xff]
        %v407 = vld [vmem:[%s315 + $0xf8] sm:$0xff]
        %s408 = scalar_lea.vmem [#allocation2], 24
        %vm409 = vcmask 31744
        %410 = vst.msk [vmem:[%s408 + $0x1] sm:$0xff] %vm409, %v376
        %411 = vst.msk [vmem:[%s408 + $0x9] sm:$0xff] %vm409, %v377
        %412 = vst.msk [vmem:[%s408 + $0x19] sm:$0xff] %vm409, %v378
        %413 = vst.msk [vmem:[%s408 + $0x21] sm:$0xff] %vm409, %v379
        %414 = vst.msk [vmem:[%s408 + $0x31] sm:$0xff] %vm409, %v380
        %415 = vst.msk [vmem:[%s408 + $0x39] sm:$0xff] %vm409, %v381
        %416 = vst.msk [vmem:[%s408 + $0x49] sm:$0xff] %vm409, %v382
        %417 = vst.msk [vmem:[%s408 + $0x51] sm:$0xff] %vm409, %v383
        %418 = vst.msk [vmem:[%s408 + $0x61] sm:$0xff] %vm409, %v384
        %419 = vst.msk [vmem:[%s408 + $0x69] sm:$0xff] %vm409, %v385
        %420 = vst.msk [vmem:[%s408 + $0x79] sm:$0xff] %vm409, %v386
        %421 = vst.msk [vmem:[%s408 + $0x81] sm:$0xff] %vm409, %v387
        %422 = vst.msk [vmem:[%s408 + $0x91] sm:$0xff] %vm409, %v388
        %423 = vst.msk [vmem:[%s408 + $0x99] sm:$0xff] %vm409, %v389
        %424 = vst.msk [vmem:[%s408 + $0xa9] sm:$0xff] %vm409, %v390
        %425 = vst.msk [vmem:[%s408 + $0xb1] sm:$0xff] %vm409, %v391
        %426 = vst.msk [vmem:[%s408 + $0xc1] sm:$0xff] %vm409, %v392
        %427 = vst.msk [vmem:[%s408 + $0xc9] sm:$0xff] %vm409, %v393
        %428 = vst.msk [vmem:[%s408 + $0xd9] sm:$0xff] %vm409, %v394
        %429 = vst.msk [vmem:[%s408 + $0xe1] sm:$0xff] %vm409, %v395
        %430 = vst.msk [vmem:[%s408 + $0xf1] sm:$0xff] %vm409, %v396
        %431 = vst.msk [vmem:[%s408 + $0xf9] sm:$0xff] %vm409, %v397
        %432 = vst.msk [vmem:[%s408 + $0x109] sm:$0xff] %vm409, %v398
        %433 = vst.msk [vmem:[%s408 + $0x111] sm:$0xff] %vm409, %v399
        %434 = vst.msk [vmem:[%s408 + $0x121] sm:$0xff] %vm409, %v400
        %435 = vst.msk [vmem:[%s408 + $0x129] sm:$0xff] %vm409, %v401
        %436 = vst.msk [vmem:[%s408 + $0x139] sm:$0xff] %vm409, %v402
        %437 = vst.msk [vmem:[%s408 + $0x141] sm:$0xff] %vm409, %v403
        %438 = vst.msk [vmem:[%s408 + $0x151] sm:$0xff] %vm409, %v404
        %439 = vst.msk [vmem:[%s408 + $0x159] sm:$0xff] %vm409, %v405
        %440 = vst.msk [vmem:[%s408 + $0x169] sm:$0xff] %vm409, %v406
        %441 = vst.msk [vmem:[%s408 + $0x171] sm:$0xff] %vm409, %v407
        %v442 = vld [vmem:[#allocation2] sm:$0xff]
        %v443 = vld [vmem:[#allocation2 + $0x8] sm:$0xff]
        %v444 = vld [vmem:[#allocation2 + $0x18] sm:$0xff]
        %v445 = vld [vmem:[#allocation2 + $0x20] sm:$0xff]
        %v446 = vld [vmem:[#allocation2 + $0x30] sm:$0xff]
        %v447 = vld [vmem:[#allocation2 + $0x38] sm:$0xff]
        %v448 = vld [vmem:[#allocation2 + $0x48] sm:$0xff]
        %v449 = vld [vmem:[#allocation2 + $0x50] sm:$0xff]
        %v450 = vld [vmem:[#allocation2 + $0x60] sm:$0xff]
        %v451 = vld [vmem:[#allocation2 + $0x68] sm:$0xff]
        %v452 = vld [vmem:[#allocation2 + $0x78] sm:$0xff]
        %v453 = vld [vmem:[#allocation2 + $0x80] sm:$0xff]
        %v454 = vld [vmem:[#allocation2 + $0x90] sm:$0xff]
        %v455 = vld [vmem:[#allocation2 + $0x98] sm:$0xff]
        %v456 = vld [vmem:[#allocation2 + $0xa8] sm:$0xff]
        %v457 = vld [vmem:[#allocation2 + $0xb0] sm:$0xff]
        %v458 = vld [vmem:[#allocation2 + $0xc0] sm:$0xff]
        %v459 = vld [vmem:[#allocation2 + $0xc8] sm:$0xff]
        %v460 = vld [vmem:[#allocation2 + $0xd8] sm:$0xff]
        %v461 = vld [vmem:[#allocation2 + $0xe0] sm:$0xff]
        %v462 = vld [vmem:[#allocation2 + $0xf0] sm:$0xff]
        %v463 = vld [vmem:[#allocation2 + $0xf8] sm:$0xff]
        %v464 = vld [vmem:[#allocation2 + $0x108] sm:$0xff]
        %v465 = vld [vmem:[#allocation2 + $0x110] sm:$0xff]
        %v466 = vld [vmem:[#allocation2 + $0x120] sm:$0xff]
        %v467 = vld [vmem:[#allocation2 + $0x128] sm:$0xff]
        %v468 = vld [vmem:[#allocation2 + $0x138] sm:$0xff]
        %v469 = vld [vmem:[#allocation2 + $0x140] sm:$0xff]
        %v470 = vld [vmem:[#allocation2 + $0x150] sm:$0xff]
        %v471 = vld [vmem:[#allocation2 + $0x158] sm:$0xff]
        %v472 = vld [vmem:[#allocation2 + $0x168] sm:$0xff]
        %v473 = vld [vmem:[#allocation2 + $0x170] sm:$0xff]
        %v474 = vpack.c.bf16 %v443, %v442
        %v475 = vpack.c.bf16 %v445, %v444
        %v476 = vpack.c.bf16 %v447, %v446
        %v477 = vpack.c.bf16 %v449, %v448
        %v478 = vpack.c.bf16 %v451, %v450
        %v479 = vpack.c.bf16 %v453, %v452
        %v480 = vpack.c.bf16 %v455, %v454
        %v481 = vpack.c.bf16 %v457, %v456
        %v482 = vpack.c.bf16 %v459, %v458
        %v483 = vpack.c.bf16 %v461, %v460
        %v484 = vpack.c.bf16 %v463, %v462
        %v485 = vpack.c.bf16 %v465, %v464
        %v486 = vpack.c.bf16 %v467, %v466
        %v487 = vpack.c.bf16 %v469, %v468
        %v488 = vpack.c.bf16 %v471, %v470
        %v489 = vpack.c.bf16 %v473, %v472
        %v490 = vld [vmem:[%s1] sm:$0xf]
        %v491 = vld [vmem:[%s1 + $0x4] sm:$0xf]
        %v492 = vld [vmem:[%s1 + $0x8] sm:$0xf]
        %v493 = vld [vmem:[%s1 + $0xc] sm:$0xf]
        %v494 = vld [vmem:[%s1 + $0x10] sm:$0xf]
        %v495 = vld [vmem:[%s1 + $0x14] sm:$0xf]
        %v496 = vld [vmem:[%s1 + $0x18] sm:$0xf]
        %v497 = vld [vmem:[%s1 + $0x1c] sm:$0xf]
        %v498 = vld [vmem:[%s1 + $0x20] sm:$0xf]
        %v499 = vld [vmem:[%s1 + $0x24] sm:$0xf]
        %v500 = vld [vmem:[%s1 + $0x28] sm:$0xf]
        %v501 = vld [vmem:[%s1 + $0x2c] sm:$0xf]
        %v502 = vld [vmem:[%s1 + $0x30] sm:$0xf]
        %v503 = vld [vmem:[%s1 + $0x34] sm:$0xf]
        %v504 = vld [vmem:[%s1 + $0x38] sm:$0xf]
        %v505 = vld [vmem:[%s1 + $0x3c] sm:$0xf]
        %v506 = vld [vmem:[#allocation2 + $0x1] sm:$0xff]
        %v507 = vld [vmem:[#allocation2 + $0x9] sm:$0xff]
        %v508 = vld [vmem:[#allocation2 + $0x19] sm:$0xff]
        %v509 = vld [vmem:[#allocation2 + $0x21] sm:$0xff]
        %v510 = vld [vmem:[#allocation2 + $0x31] sm:$0xff]
        %v511 = vld [vmem:[#allocation2 + $0x39] sm:$0xff]
        %v512 = vld [vmem:[#allocation2 + $0x49] sm:$0xff]
        %v513 = vld [vmem:[#allocation2 + $0x51] sm:$0xff]
        %v514 = vld [vmem:[#allocation2 + $0x61] sm:$0xff]
        %v515 = vld [vmem:[#allocation2 + $0x69] sm:$0xff]
        %v516 = vld [vmem:[#allocation2 + $0x79] sm:$0xff]
        %v517 = vld [vmem:[#allocation2 + $0x81] sm:$0xff]
        %v518 = vld [vmem:[#allocation2 + $0x91] sm:$0xff]
        %v519 = vld [vmem:[#allocation2 + $0x99] sm:$0xff]
        %v520 = vld [vmem:[#allocation2 + $0xa9] sm:$0xff]
        %v521 = vld [vmem:[#allocation2 + $0xb1] sm:$0xff]
        %v522 = vld [vmem:[#allocation2 + $0xc1] sm:$0xff]
        %v523 = vld [vmem:[#allocation2 + $0xc9] sm:$0xff]
        %v524 = vld [vmem:[#allocation2 + $0xd9] sm:$0xff]
        %v525 = vld [vmem:[#allocation2 + $0xe1] sm:$0xff]
        %v526 = vld [vmem:[#allocation2 + $0xf1] sm:$0xff]
        %v527 = vld [vmem:[#allocation2 + $0xf9] sm:$0xff]
        %v528 = vld [vmem:[#allocation2 + $0x109] sm:$0xff]
        %v529 = vld [vmem:[#allocation2 + $0x111] sm:$0xff]
        %v530 = vld [vmem:[#allocation2 + $0x121] sm:$0xff]
        %v531 = vld [vmem:[#allocation2 + $0x129] sm:$0xff]
        %v532 = vld [vmem:[#allocation2 + $0x139] sm:$0xff]
        %v533 = vld [vmem:[#allocation2 + $0x141] sm:$0xff]
        %v534 = vld [vmem:[#allocation2 + $0x151] sm:$0xff]
        %v535 = vld [vmem:[#allocation2 + $0x159] sm:$0xff]
        %v536 = vld [vmem:[#allocation2 + $0x169] sm:$0xff]
        %v537 = vld [vmem:[#allocation2 + $0x171] sm:$0xff]
        %v538 = vpack.c.bf16 %v507, %v506
        %v539 = vpack.c.bf16 %v509, %v508
        %v540 = vpack.c.bf16 %v511, %v510
        %v541 = vpack.c.bf16 %v513, %v512
        %v542 = vpack.c.bf16 %v515, %v514
        %v543 = vpack.c.bf16 %v517, %v516
        %v544 = vpack.c.bf16 %v519, %v518
        %v545 = vpack.c.bf16 %v521, %v520
        %v546 = vpack.c.bf16 %v523, %v522
        %v547 = vpack.c.bf16 %v525, %v524
        %v548 = vpack.c.bf16 %v527, %v526
        %v549 = vpack.c.bf16 %v529, %v528
        %v550 = vpack.c.bf16 %v531, %v530
        %v551 = vpack.c.bf16 %v533, %v532
        %v552 = vpack.c.bf16 %v535, %v534
        %v553 = vpack.c.bf16 %v537, %v536
        %s554 = scalar_lea.vmem %s1, 64
        %v555 = vld [vmem:[%s554] sm:$0xf]
        %v556 = vld [vmem:[%s554 + $0x4] sm:$0xf]
        %v557 = vld [vmem:[%s554 + $0x8] sm:$0xf]
        %v558 = vld [vmem:[%s554 + $0xc] sm:$0xf]
        %v559 = vld [vmem:[%s554 + $0x10] sm:$0xf]
        %v560 = vld [vmem:[%s554 + $0x14] sm:$0xf]
        %v561 = vld [vmem:[%s554 + $0x18] sm:$0xf]
        %v562 = vld [vmem:[%s554 + $0x1c] sm:$0xf]
        %v563 = vld [vmem:[%s554 + $0x20] sm:$0xf]
        %v564 = vld [vmem:[%s554 + $0x24] sm:$0xf]
        %v565 = vld [vmem:[%s554 + $0x28] sm:$0xf]
        %v566 = vld [vmem:[%s554 + $0x2c] sm:$0xf]
        %v567 = vld [vmem:[%s554 + $0x30] sm:$0xf]
        %v568 = vld [vmem:[%s554 + $0x34] sm:$0xf]
        %v569 = vld [vmem:[%s554 + $0x38] sm:$0xf]
        %v570 = vld [vmem:[%s554 + $0x3c] sm:$0xf]
        %v587 = vunpack.c.l.b16 %v555
        %v588 = vunpack.c.l.b16 %v556
        %v589 = vunpack.c.l.b16 %v557
        %v590 = vunpack.c.l.b16 %v558
        %v591 = vunpack.c.l.b16 %v559
        %v592 = vunpack.c.l.b16 %v560
        %v593 = vunpack.c.l.b16 %v561
        %v594 = vunpack.c.l.b16 %v562
        %v595 = vunpack.c.l.b16 %v563
        %v596 = vunpack.c.l.b16 %v564
        %v597 = vunpack.c.l.b16 %v565
        %v598 = vunpack.c.l.b16 %v566
        %v599 = vunpack.c.l.b16 %v567
        %v600 = vunpack.c.l.b16 %v568
        %v601 = vunpack.c.l.b16 %v569
        %v602 = vunpack.c.l.b16 %v570
        %v603 = vpack.c.b16 %v588, %v587
        %v604 = vpack.c.b16 %v590, %v589
        %v605 = vpack.c.b16 %v592, %v591
        %v606 = vpack.c.b16 %v594, %v593
        %v607 = vpack.c.b16 %v596, %v595
        %v608 = vpack.c.b16 %v598, %v597
        %v609 = vpack.c.b16 %v600, %v599
        %v610 = vpack.c.b16 %v602, %v601
        %619 = vmatprep.subr.bf16.mxu0 0
        %620 = vmatpush1.bf16.msra.mxu0 %v603
        %621 = vmatprep.subr.bf16.mxu0 0
        %622 = vmatpush1.bf16.msra.mxu0 %v604
        %623 = vmatprep.subr.bf16.mxu0 0
        %624 = vmatpush1.bf16.msra.mxu0 %v605
        %625 = vmatprep.subr.bf16.mxu0 0
        %626 = vmatpush1.bf16.msra.mxu0 %v606
        %627 = vmatprep.subr.bf16.mxu0 0
        %628 = vmatpush1.bf16.msra.mxu0 %v607
        %629 = vmatprep.subr.bf16.mxu0 0
        %630 = vmatpush1.bf16.msra.mxu0 %v608
        %631 = vmatprep.subr.bf16.mxu0 0
        %632 = vmatpush1.bf16.msra.mxu0 %v609
        %633 = vmatprep.subr.bf16.mxu0 0
        %634 = vmatpush1.bf16.msra.mxu0 %v610
        %635 = vmatprep.subr.bf16.mxu0 0
        %636 = vmatpush1.bf16.msra.mxu0 0
        %637 = vmatprep.subr.bf16.mxu0 0
        %638 = vmatpush1.bf16.msra.mxu0 0
        %639 = vmatprep.subr.bf16.mxu0 0
        %640 = vmatpush1.bf16.msra.mxu0 0
        %641 = vmatprep.subr.bf16.mxu0 0
        %642 = vmatpush1.bf16.msra.mxu0 0
        %643 = vmatprep.subr.bf16.mxu0 0
        %644 = vmatpush1.bf16.msra.mxu0 0
        %645 = vmatprep.subr.bf16.mxu0 0
        %646 = vmatpush1.bf16.msra.mxu0 0
        %647 = vmatprep.subr.bf16.mxu0 0
        %648 = vmatpush1.bf16.msra.mxu0 0
        %649 = vmatprep.subr.bf16.mxu0 0
        %650 = vmatpush1.bf16.msra.mxu0 0
        %651 = vmatprep.mubr.bf16.mxu0 0
        %652 = vmatmul.mubr.bf16.gmra.mrb[0].mxu0 %v538
        %v653 = vpop.f32.mrb[0].mxu0
        %v654 = vadd.f32 0.0, %v653
        %v655 = vpop.f32.mrb[0].mxu0
        %v656 = vpop.f32.mrb[0].mxu0
        %v657 = vadd.f32 0.0, %v656
        %v658 = vpop.f32.mrb[0].mxu0
        %659 = vmatprep.mubr.bf16.mxu0 0
        %660 = vmatmul.mubr.bf16.gmra.mrb[0].mxu0 %v539
        %v661 = vpop.f32.mrb[0].mxu0
        %v662 = vadd.f32 0.0, %v661
        %v663 = vpop.f32.mrb[0].mxu0
        %v664 = vpop.f32.mrb[0].mxu0
        %v665 = vadd.f32 0.0, %v664
        %v666 = vpop.f32.mrb[0].mxu0
        %667 = vmatprep.mubr.bf16.mxu0 0
        %668 = vmatmul.mubr.bf16.gmra.mrb[0].mxu0 %v540
        %v669 = vpop.f32.mrb[0].mxu0
        %v670 = vadd.f32 0.0, %v669
        %v671 = vpop.f32.mrb[0].mxu0
        %v672 = vpop.f32.mrb[0].mxu0
        %v673 = vadd.f32 0.0, %v672
        %v674 = vpop.f32.mrb[0].mxu0
        %675 = vmatprep.mubr.bf16.mxu0 0
        %676 = vmatmul.mubr.bf16.gmra.mrb[0].mxu0 %v541
        %v677 = vpop.f32.mrb[0].mxu0
        %v678 = vadd.f32 0.0, %v677
        %v679 = vpop.f32.mrb[0].mxu0
        %v680 = vpop.f32.mrb[0].mxu0
        %v681 = vadd.f32 0.0, %v680
        %v682 = vpop.f32.mrb[0].mxu0
        %683 = vmatprep.mubr.bf16.mxu0 0
        %684 = vmatmul.mubr.bf16.gmra.mrb[0].mxu0 %v542
        %v685 = vpop.f32.mrb[0].mxu0
        %v686 = vadd.f32 0.0, %v685
        %v687 = vpop.f32.mrb[0].mxu0
        %v688 = vpop.f32.mrb[0].mxu0
        %v689 = vadd.f32 0.0, %v688
        %v690 = vpop.f32.mrb[0].mxu0
        %691 = vmatprep.mubr.bf16.mxu0 0
        %692 = vmatmul.mubr.bf16.gmra.mrb[0].mxu0 %v543
        %v693 = vpop.f32.mrb[0].mxu0
        %v694 = vadd.f32 0.0, %v693
        %v695 = vpop.f32.mrb[0].mxu0
        %v696 = vpop.f32.mrb[0].mxu0
        %v697 = vadd.f32 0.0, %v696
        %v698 = vpop.f32.mrb[0].mxu0
        %699 = vmatprep.mubr.bf16.mxu0 0
        %700 = vmatmul.mubr.bf16.gmra.mrb[0].mxu0 %v544
        %v701 = vpop.f32.mrb[0].mxu0
        %v702 = vadd.f32 0.0, %v701
        %v703 = vpop.f32.mrb[0].mxu0
        %v704 = vpop.f32.mrb[0].mxu0
        %v705 = vadd.f32 0.0, %v704
        %v706 = vpop.f32.mrb[0].mxu0
        %707 = vmatprep.mubr.bf16.mxu0 0
        %708 = vmatmul.mubr.bf16.gmra.mrb[0].mxu0 %v545
        %v709 = vpop.f32.mrb[0].mxu0
        %v710 = vadd.f32 0.0, %v709
        %v711 = vpop.f32.mrb[0].mxu0
        %v712 = vpop.f32.mrb[0].mxu0
        %v713 = vadd.f32 0.0, %v712
        %v714 = vpop.f32.mrb[0].mxu0
        %715 = vmatprep.mubr.bf16.mxu0 0
        %716 = vmatmul.mubr.bf16.gmra.mrb[0].mxu0 %v546
        %v717 = vpop.f32.mrb[0].mxu0
        %v718 = vadd.f32 0.0, %v717
        %v719 = vpop.f32.mrb[0].mxu0
        %v720 = vpop.f32.mrb[0].mxu0
        %v721 = vadd.f32 0.0, %v720
        %v722 = vpop.f32.mrb[0].mxu0
        %723 = vmatprep.mubr.bf16.mxu0 0
        %724 = vmatmul.mubr.bf16.gmra.mrb[0].mxu0 %v547
        %v725 = vpop.f32.mrb[0].mxu0
        %v726 = vadd.f32 0.0, %v725
        %v727 = vpop.f32.mrb[0].mxu0
        %v728 = vpop.f32.mrb[0].mxu0
        %v729 = vadd.f32 0.0, %v728
        %v730 = vpop.f32.mrb[0].mxu0
        %731 = vmatprep.mubr.bf16.mxu0 0
        %732 = vmatmul.mubr.bf16.gmra.mrb[0].mxu0 %v548
        %v733 = vpop.f32.mrb[0].mxu0
        %v734 = vadd.f32 0.0, %v733
        %v735 = vpop.f32.mrb[0].mxu0
        %v736 = vpop.f32.mrb[0].mxu0
        %v737 = vadd.f32 0.0, %v736
        %v738 = vpop.f32.mrb[0].mxu0
        %739 = vmatprep.mubr.bf16.mxu0 0
        %740 = vmatmul.mubr.bf16.gmra.mrb[0].mxu0 %v549
        %v741 = vpop.f32.mrb[0].mxu0
        %v742 = vadd.f32 0.0, %v741
        %v743 = vpop.f32.mrb[0].mxu0
        %v744 = vpop.f32.mrb[0].mxu0
        %v745 = vadd.f32 0.0, %v744
        %v746 = vpop.f32.mrb[0].mxu0
        %747 = vmatprep.mubr.bf16.mxu0 0
        %748 = vmatmul.mubr.bf16.gmra.mrb[0].mxu0 %v550
        %v749 = vpop.f32.mrb[0].mxu0
        %v750 = vadd.f32 0.0, %v749
        %v751 = vpop.f32.mrb[0].mxu0
        %v752 = vpop.f32.mrb[0].mxu0
        %v753 = vadd.f32 0.0, %v752
        %v754 = vpop.f32.mrb[0].mxu0
        %755 = vmatprep.mubr.bf16.mxu0 0
        %756 = vmatmul.mubr.bf16.gmra.mrb[0].mxu0 %v551
        %v757 = vpop.f32.mrb[0].mxu0
        %v758 = vadd.f32 0.0, %v757
        %v759 = vpop.f32.mrb[0].mxu0
        %v760 = vpop.f32.mrb[0].mxu0
        %v761 = vadd.f32 0.0, %v760
        %v762 = vpop.f32.mrb[0].mxu0
        %763 = vmatprep.mubr.bf16.mxu0 0
        %764 = vmatmul.mubr.bf16.gmra.mrb[0].mxu0 %v552
        %v765 = vpop.f32.mrb[0].mxu0
        %v766 = vadd.f32 0.0, %v765
        %v767 = vpop.f32.mrb[0].mxu0
        %v768 = vpop.f32.mrb[0].mxu0
        %v769 = vadd.f32 0.0, %v768
        %v770 = vpop.f32.mrb[0].mxu0
        %771 = vmatprep.mubr.bf16.mxu0 0
        %772 = vmatmul.mubr.bf16.gmra.mrb[0].mxu0 %v553
        %v773 = vpop.f32.mrb[0].mxu0
        %v774 = vadd.f32 0.0, %v773
        %v775 = vpop.f32.mrb[0].mxu0
        %v776 = vpop.f32.mrb[0].mxu0
        %v777 = vadd.f32 0.0, %v776
        %v778 = vpop.f32.mrb[0].mxu0
        %779 = vdwg.mxu0
        %v796 = vunpack.c.l.b16 %v490
        %v797 = vunpack.c.l.b16 %v491
        %v798 = vunpack.c.l.b16 %v492
        %v799 = vunpack.c.l.b16 %v493
        %v800 = vunpack.c.l.b16 %v494
        %v801 = vunpack.c.l.b16 %v495
        %v802 = vunpack.c.l.b16 %v496
        %v803 = vunpack.c.l.b16 %v497
        %v804 = vunpack.c.l.b16 %v498
        %v805 = vunpack.c.l.b16 %v499
        %v806 = vunpack.c.l.b16 %v500
        %v807 = vunpack.c.l.b16 %v501
        %v808 = vunpack.c.l.b16 %v502
        %v809 = vunpack.c.l.b16 %v503
        %v810 = vunpack.c.l.b16 %v504
        %v811 = vunpack.c.l.b16 %v505
        %v812 = vpack.c.b16 %v797, %v796
        %v813 = vpack.c.b16 %v799, %v798
        %v814 = vpack.c.b16 %v801, %v800
        %v815 = vpack.c.b16 %v803, %v802
        %v816 = vpack.c.b16 %v805, %v804
        %v817 = vpack.c.b16 %v807, %v806
        %v818 = vpack.c.b16 %v809, %v808
        %v819 = vpack.c.b16 %v811, %v810
        %828 = vmatprep.subr.bf16.mxu0 0
        %829 = vmatpush1.bf16.msra.mxu0 %v812
        %830 = vmatprep.subr.bf16.mxu0 0
        %831 = vmatpush1.bf16.msra.mxu0 %v813
        %832 = vmatprep.subr.bf16.mxu0 0
        %833 = vmatpush1.bf16.msra.mxu0 %v814
        %834 = vmatprep.subr.bf16.mxu0 0
        %835 = vmatpush1.bf16.msra.mxu0 %v815
        %836 = vmatprep.subr.bf16.mxu0 0
        %837 = vmatpush1.bf16.msra.mxu0 %v816
        %838 = vmatprep.subr.bf16.mxu0 0
        %839 = vmatpush1.bf16.msra.mxu0 %v817
        %840 = vmatprep.subr.bf16.mxu0 0
        %841 = vmatpush1.bf16.msra.mxu0 %v818
        %842 = vmatprep.subr.bf16.mxu0 0
        %843 = vmatpush1.bf16.msra.mxu0 %v819
        %844 = vmatprep.subr.bf16.mxu0 0
        %845 = vmatpush1.bf16.msra.mxu0 0
        %846 = vmatprep.subr.bf16.mxu0 0
        %847 = vmatpush1.bf16.msra.mxu0 0
        %848 = vmatprep.subr.bf16.mxu0 0
        %849 = vmatpush1.bf16.msra.mxu0 0
        %850 = vmatprep.subr.bf16.mxu0 0
        %851 = vmatpush1.bf16.msra.mxu0 0
        %852 = vmatprep.subr.bf16.mxu0 0
        %853 = vmatpush1.bf16.msra.mxu0 0
        %854 = vmatprep.subr.bf16.mxu0 0
        %855 = vmatpush1.bf16.msra.mxu0 0
        %856 = vmatprep.subr.bf16.mxu0 0
        %857 = vmatpush1.bf16.msra.mxu0 0
        %858 = vmatprep.subr.bf16.mxu0 0
        %859 = vmatpush1.bf16.msra.mxu0 0
        %860 = vmatprep.mubr.bf16.mxu0 0
        %861 = vmatmul.mubr.bf16.gmra.mrb[0].mxu0 %v474
        %v862 = vpop.f32.mrb[0].mxu0
        %v863 = vadd.f32 %v654, %v862
        %v864 = vpop.f32.mrb[0].mxu0
        %v865 = vpop.f32.mrb[0].mxu0
        %v866 = vadd.f32 %v657, %v865
        %v867 = vpop.f32.mrb[0].mxu0
        %868 = vmatprep.mubr.bf16.mxu0 0
        %869 = vmatmul.mubr.bf16.gmra.mrb[0].mxu0 %v475
        %v870 = vpop.f32.mrb[0].mxu0
        %v871 = vadd.f32 %v662, %v870
        %v872 = vpop.f32.mrb[0].mxu0
        %v873 = vpop.f32.mrb[0].mxu0
        %v874 = vadd.f32 %v665, %v873
        %v875 = vpop.f32.mrb[0].mxu0
        %876 = vmatprep.mubr.bf16.mxu0 0
        %877 = vmatmul.mubr.bf16.gmra.mrb[0].mxu0 %v476
        %v878 = vpop.f32.mrb[0].mxu0
        %v879 = vadd.f32 %v670, %v878
        %v880 = vpop.f32.mrb[0].mxu0
        %v881 = vpop.f32.mrb[0].mxu0
        %v882 = vadd.f32 %v673, %v881
        %v883 = vpop.f32.mrb[0].mxu0
        %884 = vmatprep.mubr.bf16.mxu0 0
        %885 = vmatmul.mubr.bf16.gmra.mrb[0].mxu0 %v477
        %v886 = vpop.f32.mrb[0].mxu0
        %v887 = vadd.f32 %v678, %v886
        %v888 = vpop.f32.mrb[0].mxu0
        %v889 = vpop.f32.mrb[0].mxu0
        %v890 = vadd.f32 %v681, %v889
        %v891 = vpop.f32.mrb[0].mxu0
        %892 = vmatprep.mubr.bf16.mxu0 0
        %893 = vmatmul.mubr.bf16.gmra.mrb[0].mxu0 %v478
        %v894 = vpop.f32.mrb[0].mxu0
        %v895 = vadd.f32 %v686, %v894
        %v896 = vpop.f32.mrb[0].mxu0
        %v897 = vpop.f32.mrb[0].mxu0
        %v898 = vadd.f32 %v689, %v897
        %v899 = vpop.f32.mrb[0].mxu0
        %900 = vmatprep.mubr.bf16.mxu0 0
        %901 = vmatmul.mubr.bf16.gmra.mrb[0].mxu0 %v479
        %v902 = vpop.f32.mrb[0].mxu0
        %v903 = vadd.f32 %v694, %v902
        %v904 = vpop.f32.mrb[0].mxu0
        %v905 = vpop.f32.mrb[0].mxu0
        %v906 = vadd.f32 %v697, %v905
        %v907 = vpop.f32.mrb[0].mxu0
        %908 = vmatprep.mubr.bf16.mxu0 0
        %909 = vmatmul.mubr.bf16.gmra.mrb[0].mxu0 %v480
        %v910 = vpop.f32.mrb[0].mxu0
        %v911 = vadd.f32 %v702, %v910
        %v912 = vpop.f32.mrb[0].mxu0
        %v913 = vpop.f32.mrb[0].mxu0
        %v914 = vadd.f32 %v705, %v913
        %v915 = vpop.f32.mrb[0].mxu0
        %916 = vmatprep.mubr.bf16.mxu0 0
        %917 = vmatmul.mubr.bf16.gmra.mrb[0].mxu0 %v481
        %v918 = vpop.f32.mrb[0].mxu0
        %v919 = vadd.f32 %v710, %v918
        %v920 = vpop.f32.mrb[0].mxu0
        %v921 = vpop.f32.mrb[0].mxu0
        %v922 = vadd.f32 %v713, %v921
        %v923 = vpop.f32.mrb[0].mxu0
        %924 = vmatprep.mubr.bf16.mxu0 0
        %925 = vmatmul.mubr.bf16.gmra.mrb[0].mxu0 %v482
        %v926 = vpop.f32.mrb[0].mxu0
        %v927 = vadd.f32 %v718, %v926
        %v928 = vpop.f32.mrb[0].mxu0
        %v929 = vpop.f32.mrb[0].mxu0
        %v930 = vadd.f32 %v721, %v929
        %v931 = vpop.f32.mrb[0].mxu0
        %932 = vmatprep.mubr.bf16.mxu0 0
        %933 = vmatmul.mubr.bf16.gmra.mrb[0].mxu0 %v483
        %v934 = vpop.f32.mrb[0].mxu0
        %v935 = vadd.f32 %v726, %v934
        %v936 = vpop.f32.mrb[0].mxu0
        %v937 = vpop.f32.mrb[0].mxu0
        %v938 = vadd.f32 %v729, %v937
        %v939 = vpop.f32.mrb[0].mxu0
        %940 = vmatprep.mubr.bf16.mxu0 0
        %941 = vmatmul.mubr.bf16.gmra.mrb[0].mxu0 %v484
        %v942 = vpop.f32.mrb[0].mxu0
        %v943 = vadd.f32 %v734, %v942
        %v944 = vpop.f32.mrb[0].mxu0
        %v945 = vpop.f32.mrb[0].mxu0
        %v946 = vadd.f32 %v737, %v945
        %v947 = vpop.f32.mrb[0].mxu0
        %948 = vmatprep.mubr.bf16.mxu0 0
        %949 = vmatmul.mubr.bf16.gmra.mrb[0].mxu0 %v485
        %v950 = vpop.f32.mrb[0].mxu0
        %v951 = vadd.f32 %v742, %v950
        %v952 = vpop.f32.mrb[0].mxu0
        %v953 = vpop.f32.mrb[0].mxu0
        %v954 = vadd.f32 %v745, %v953
        %v955 = vpop.f32.mrb[0].mxu0
        %956 = vmatprep.mubr.bf16.mxu0 0
        %957 = vmatmul.mubr.bf16.gmra.mrb[0].mxu0 %v486
        %v958 = vpop.f32.mrb[0].mxu0
        %v959 = vadd.f32 %v750, %v958
        %v960 = vpop.f32.mrb[0].mxu0
        %v961 = vpop.f32.mrb[0].mxu0
        %v962 = vadd.f32 %v753, %v961
        %v963 = vpop.f32.mrb[0].mxu0
        %964 = vmatprep.mubr.bf16.mxu0 0
        %965 = vmatmul.mubr.bf16.gmra.mrb[0].mxu0 %v487
        %v966 = vpop.f32.mrb[0].mxu0
        %v967 = vadd.f32 %v758, %v966
        %v968 = vpop.f32.mrb[0].mxu0
        %v969 = vpop.f32.mrb[0].mxu0
        %v970 = vadd.f32 %v761, %v969
        %v971 = vpop.f32.mrb[0].mxu0
        %972 = vmatprep.mubr.bf16.mxu0 0
        %973 = vmatmul.mubr.bf16.gmra.mrb[0].mxu0 %v488
        %v974 = vpop.f32.mrb[0].mxu0
        %v975 = vadd.f32 %v766, %v974
        %v976 = vpop.f32.mrb[0].mxu0
        %v977 = vpop.f32.mrb[0].mxu0
        %v978 = vadd.f32 %v769, %v977
        %v979 = vpop.f32.mrb[0].mxu0
        %980 = vmatprep.mubr.bf16.mxu0 0
        %981 = vmatmul.mubr.bf16.gmra.mrb[0].mxu0 %v489
        %v982 = vpop.f32.mrb[0].mxu0
        %v983 = vadd.f32 %v774, %v982
        %v984 = vpop.f32.mrb[0].mxu0
        %v985 = vpop.f32.mrb[0].mxu0
        %v986 = vadd.f32 %v777, %v985
        %v987 = vpop.f32.mrb[0].mxu0
        %988 = vdwg.mxu0
        %v989 = vld [vmem:[#allocation2 + $0x2] sm:$0xff]
        %v990 = vld [vmem:[#allocation2 + $0xa] sm:$0xff]
        %v991 = vld [vmem:[#allocation2 + $0x1a] sm:$0xff]
        %v992 = vld [vmem:[#allocation2 + $0x22] sm:$0xff]
        %v993 = vld [vmem:[#allocation2 + $0x32] sm:$0xff]
        %v994 = vld [vmem:[#allocation2 + $0x3a] sm:$0xff]
        %v995 = vld [vmem:[#allocation2 + $0x4a] sm:$0xff]
        %v996 = vld [vmem:[#allocation2 + $0x52] sm:$0xff]
        %v997 = vld [vmem:[#allocation2 + $0x62] sm:$0xff]
        %v998 = vld [vmem:[#allocation2 + $0x6a] sm:$0xff]
        %v999 = vld [vmem:[#allocation2 + $0x7a] sm:$0xff]
        %v1000 = vld [vmem:[#allocation2 + $0x82] sm:$0xff]
        %v1001 = vld [vmem:[#allocation2 + $0x92] sm:$0xff]
        %v1002 = vld [vmem:[#allocation2 + $0x9a] sm:$0xff]
        %v1003 = vld [vmem:[#allocation2 + $0xaa] sm:$0xff]
        %v1004 = vld [vmem:[#allocation2 + $0xb2] sm:$0xff]
        %v1005 = vld [vmem:[#allocation2 + $0xc2] sm:$0xff]
        %v1006 = vld [vmem:[#allocation2 + $0xca] sm:$0xff]
        %v1007 = vld [vmem:[#allocation2 + $0xda] sm:$0xff]
        %v1008 = vld [vmem:[#allocation2 + $0xe2] sm:$0xff]
        %v1009 = vld [vmem:[#allocation2 + $0xf2] sm:$0xff]
        %v1010 = vld [vmem:[#allocation2 + $0xfa] sm:$0xff]
        %v1011 = vld [vmem:[#allocation2 + $0x10a] sm:$0xff]
        %v1012 = vld [vmem:[#allocation2 + $0x112] sm:$0xff]
        %v1013 = vld [vmem:[#allocation2 + $0x122] sm:$0xff]
        %v1014 = vld [vmem:[#allocation2 + $0x12a] sm:$0xff]
        %v1015 = vld [vmem:[#allocation2 + $0x13a] sm:$0xff]
        %v1016 = vld [vmem:[#allocation2 + $0x142] sm:$0xff]
        %v1017 = vld [vmem:[#allocation2 + $0x152] sm:$0xff]
        %v1018 = vld [vmem:[#allocation2 + $0x15a] sm:$0xff]
        %v1019 = vld [vmem:[#allocation2 + $0x16a] sm:$0xff]
        %v1020 = vld [vmem:[#allocation2 + $0x172] sm:$0xff]
        %v1021 = vpack.c.bf16 %v990, %v989
        %v1022 = vpack.c.bf16 %v992, %v991
        %v1023 = vpack.c.bf16 %v994, %v993
        %v1024 = vpack.c.bf16 %v996, %v995
        %v1025 = vpack.c.bf16 %v998, %v997
        %v1026 = vpack.c.bf16 %v1000, %v999
        %v1027 = vpack.c.bf16 %v1002, %v1001
        %v1028 = vpack.c.bf16 %v1004, %v1003
        %v1029 = vpack.c.bf16 %v1006, %v1005
        %v1030 = vpack.c.bf16 %v1008, %v1007
        %v1031 = vpack.c.bf16 %v1010, %v1009
        %v1032 = vpack.c.bf16 %v1012, %v1011
        %v1033 = vpack.c.bf16 %v1014, %v1013
        %v1034 = vpack.c.bf16 %v1016, %v1015
        %v1035 = vpack.c.bf16 %v1018, %v1017
        %v1036 = vpack.c.bf16 %v1020, %v1019
        %s1037 = scalar_lea.vmem %s1, 128
        %v1038 = vld [vmem:[%s1037] sm:$0xf]
        %v1039 = vld [vmem:[%s1037 + $0x4] sm:$0xf]
        %v1040 = vld [vmem:[%s1037 + $0x8] sm:$0xf]
        %v1041 = vld [vmem:[%s1037 + $0xc] sm:$0xf]
        %v1042 = vld [vmem:[%s1037 + $0x10] sm:$0xf]
        %v1043 = vld [vmem:[%s1037 + $0x14] sm:$0xf]
        %v1044 = vld [vmem:[%s1037 + $0x18] sm:$0xf]
        %v1045 = vld [vmem:[%s1037 + $0x1c] sm:$0xf]
        %v1046 = vld [vmem:[%s1037 + $0x20] sm:$0xf]
        %v1047 = vld [vmem:[%s1037 + $0x24] sm:$0xf]
        %v1048 = vld [vmem:[%s1037 + $0x28] sm:$0xf]
        %v1049 = vld [vmem:[%s1037 + $0x2c] sm:$0xf]
        %v1050 = vld [vmem:[%s1037 + $0x30] sm:$0xf]
        %v1051 = vld [vmem:[%s1037 + $0x34] sm:$0xf]
        %v1052 = vld [vmem:[%s1037 + $0x38] sm:$0xf]
        %v1053 = vld [vmem:[%s1037 + $0x3c] sm:$0xf]
        %v1070 = vunpack.c.l.b16 %v1038
        %v1071 = vunpack.c.l.b16 %v1039
        %v1072 = vunpack.c.l.b16 %v1040
        %v1073 = vunpack.c.l.b16 %v1041
        %v1074 = vunpack.c.l.b16 %v1042
        %v1075 = vunpack.c.l.b16 %v1043
        %v1076 = vunpack.c.l.b16 %v1044
        %v1077 = vunpack.c.l.b16 %v1045
        %v1078 = vunpack.c.l.b16 %v1046
        %v1079 = vunpack.c.l.b16 %v1047
        %v1080 = vunpack.c.l.b16 %v1048
        %v1081 = vunpack.c.l.b16 %v1049
        %v1082 = vunpack.c.l.b16 %v1050
        %v1083 = vunpack.c.l.b16 %v1051
        %v1084 = vunpack.c.l.b16 %v1052
        %v1085 = vunpack.c.l.b16 %v1053
        %v1086 = vpack.c.b16 %v1071, %v1070
        %v1087 = vpack.c.b16 %v1073, %v1072
        %v1088 = vpack.c.b16 %v1075, %v1074
        %v1089 = vpack.c.b16 %v1077, %v1076
        %v1090 = vpack.c.b16 %v1079, %v1078
        %v1091 = vpack.c.b16 %v1081, %v1080
        %v1092 = vpack.c.b16 %v1083, %v1082
        %v1093 = vpack.c.b16 %v1085, %v1084
        %1102 = vmatprep.subr.bf16.mxu0 0
        %1103 = vmatpush1.bf16.msra.mxu0 %v1086
        %1104 = vmatprep.subr.bf16.mxu0 0
        %1105 = vmatpush1.bf16.msra.mxu0 %v1087
        %1106 = vmatprep.subr.bf16.mxu0 0
        %1107 = vmatpush1.bf16.msra.mxu0 %v1088
        %1108 = vmatprep.subr.bf16.mxu0 0
        %1109 = vmatpush1.bf16.msra.mxu0 %v1089
        %1110 = vmatprep.subr.bf16.mxu0 0
        %1111 = vmatpush1.bf16.msra.mxu0 %v1090
        %1112 = vmatprep.subr.bf16.mxu0 0
        %1113 = vmatpush1.bf16.msra.mxu0 %v1091
        %1114 = vmatprep.subr.bf16.mxu0 0
        %1115 = vmatpush1.bf16.msra.mxu0 %v1092
        %1116 = vmatprep.subr.bf16.mxu0 0
        %1117 = vmatpush1.bf16.msra.mxu0 %v1093
        %1118 = vmatprep.subr.bf16.mxu0 0
        %1119 = vmatpush1.bf16.msra.mxu0 0
        %1120 = vmatprep.subr.bf16.mxu0 0
        %1121 = vmatpush1.bf16.msra.mxu0 0
        %1122 = vmatprep.subr.bf16.mxu0 0
        %1123 = vmatpush1.bf16.msra.mxu0 0
        %1124 = vmatprep.subr.bf16.mxu0 0
        %1125 = vmatpush1.bf16.msra.mxu0 0
        %1126 = vmatprep.subr.bf16.mxu0 0
        %1127 = vmatpush1.bf16.msra.mxu0 0
        %1128 = vmatprep.subr.bf16.mxu0 0
        %1129 = vmatpush1.bf16.msra.mxu0 0
        %1130 = vmatprep.subr.bf16.mxu0 0
        %1131 = vmatpush1.bf16.msra.mxu0 0
        %1132 = vmatprep.subr.bf16.mxu0 0
        %1133 = vmatpush1.bf16.msra.mxu0 0
        %1134 = vmatprep.mubr.bf16.mxu0 0
        %1135 = vmatmul.mubr.bf16.gmra.mrb[0].mxu0 %v1021
        %v1136 = vpop.f32.mrb[0].mxu0
        %v1137 = vadd.f32 0.0, %v1136
        %v1138 = vpop.f32.mrb[0].mxu0
        %v1139 = vpop.f32.mrb[0].mxu0
        %v1140 = vadd.f32 0.0, %v1139
        %v1141 = vpop.f32.mrb[0].mxu0
        %1142 = vmatprep.mubr.bf16.mxu0 0
        %1143 = vmatmul.mubr.bf16.gmra.mrb[0].mxu0 %v1022
        %v1144 = vpop.f32.mrb[0].mxu0
        %v1145 = vadd.f32 0.0, %v1144
        %v1146 = vpop.f32.mrb[0].mxu0
        %v1147 = vpop.f32.mrb[0].mxu0
        %v1148 = vadd.f32 0.0, %v1147
        %v1149 = vpop.f32.mrb[0].mxu0
        %1150 = vmatprep.mubr.bf16.mxu0 0
        %1151 = vmatmul.mubr.bf16.gmra.mrb[0].mxu0 %v1023
        %v1152 = vpop.f32.mrb[0].mxu0
        %v1153 = vadd.f32 0.0, %v1152
        %v1154 = vpop.f32.mrb[0].mxu0
        %v1155 = vpop.f32.mrb[0].mxu0
        %v1156 = vadd.f32 0.0, %v1155
        %v1157 = vpop.f32.mrb[0].mxu0
        %1158 = vmatprep.mubr.bf16.mxu0 0
        %1159 = vmatmul.mubr.bf16.gmra.mrb[0].mxu0 %v1024
        %v1160 = vpop.f32.mrb[0].mxu0
        %v1161 = vadd.f32 0.0, %v1160
        %v1162 = vpop.f32.mrb[0].mxu0
        %v1163 = vpop.f32.mrb[0].mxu0
        %v1164 = vadd.f32 0.0, %v1163
        %v1165 = vpop.f32.mrb[0].mxu0
        %1166 = vmatprep.mubr.bf16.mxu0 0
        %1167 = vmatmul.mubr.bf16.gmra.mrb[0].mxu0 %v1025
        %v1168 = vpop.f32.mrb[0].mxu0
        %v1169 = vadd.f32 0.0, %v1168
        %v1170 = vpop.f32.mrb[0].mxu0
        %v1171 = vpop.f32.mrb[0].mxu0
        %v1172 = vadd.f32 0.0, %v1171
        %v1173 = vpop.f32.mrb[0].mxu0
        %1174 = vmatprep.mubr.bf16.mxu0 0
        %1175 = vmatmul.mubr.bf16.gmra.mrb[0].mxu0 %v1026
        %v1176 = vpop.f32.mrb[0].mxu0
        %v1177 = vadd.f32 0.0, %v1176
        %v1178 = vpop.f32.mrb[0].mxu0
        %v1179 = vpop.f32.mrb[0].mxu0
        %v1180 = vadd.f32 0.0, %v1179
        %v1181 = vpop.f32.mrb[0].mxu0
        %1182 = vmatprep.mubr.bf16.mxu0 0
        %1183 = vmatmul.mubr.bf16.gmra.mrb[0].mxu0 %v1027
        %v1184 = vpop.f32.mrb[0].mxu0
        %v1185 = vadd.f32 0.0, %v1184
        %v1186 = vpop.f32.mrb[0].mxu0
        %v1187 = vpop.f32.mrb[0].mxu0
        %v1188 = vadd.f32 0.0, %v1187
        %v1189 = vpop.f32.mrb[0].mxu0
        %1190 = vmatprep.mubr.bf16.mxu0 0
        %1191 = vmatmul.mubr.bf16.gmra.mrb[0].mxu0 %v1028
        %v1192 = vpop.f32.mrb[0].mxu0
        %v1193 = vadd.f32 0.0, %v1192
        %v1194 = vpop.f32.mrb[0].mxu0
        %v1195 = vpop.f32.mrb[0].mxu0
        %v1196 = vadd.f32 0.0, %v1195
        %v1197 = vpop.f32.mrb[0].mxu0
        %1198 = vmatprep.mubr.bf16.mxu0 0
        %1199 = vmatmul.mubr.bf16.gmra.mrb[0].mxu0 %v1029
        %v1200 = vpop.f32.mrb[0].mxu0
        %v1201 = vadd.f32 0.0, %v1200
        %v1202 = vpop.f32.mrb[0].mxu0
        %v1203 = vpop.f32.mrb[0].mxu0
        %v1204 = vadd.f32 0.0, %v1203
        %v1205 = vpop.f32.mrb[0].mxu0
        %1206 = vmatprep.mubr.bf16.mxu0 0
        %1207 = vmatmul.mubr.bf16.gmra.mrb[0].mxu0 %v1030
        %v1208 = vpop.f32.mrb[0].mxu0
        %v1209 = vadd.f32 0.0, %v1208
        %v1210 = vpop.f32.mrb[0].mxu0
        %v1211 = vpop.f32.mrb[0].mxu0
        %v1212 = vadd.f32 0.0, %v1211
        %v1213 = vpop.f32.mrb[0].mxu0
        %1214 = vmatprep.mubr.bf16.mxu0 0
        %1215 = vmatmul.mubr.bf16.gmra.mrb[0].mxu0 %v1031
        %v1216 = vpop.f32.mrb[0].mxu0
        %v1217 = vadd.f32 0.0, %v1216
        %v1218 = vpop.f32.mrb[0].mxu0
        %v1219 = vpop.f32.mrb[0].mxu0
        %v1220 = vadd.f32 0.0, %v1219
        %v1221 = vpop.f32.mrb[0].mxu0
        %1222 = vmatprep.mubr.bf16.mxu0 0
        %1223 = vmatmul.mubr.bf16.gmra.mrb[0].mxu0 %v1032
        %v1224 = vpop.f32.mrb[0].mxu0
        %v1225 = vadd.f32 0.0, %v1224
        %v1226 = vpop.f32.mrb[0].mxu0
        %v1227 = vpop.f32.mrb[0].mxu0
        %v1228 = vadd.f32 0.0, %v1227
        %v1229 = vpop.f32.mrb[0].mxu0
        %1230 = vmatprep.mubr.bf16.mxu0 0
        %1231 = vmatmul.mubr.bf16.gmra.mrb[0].mxu0 %v1033
        %v1232 = vpop.f32.mrb[0].mxu0
        %v1233 = vadd.f32 0.0, %v1232
        %v1234 = vpop.f32.mrb[0].mxu0
        %v1235 = vpop.f32.mrb[0].mxu0
        %v1236 = vadd.f32 0.0, %v1235
        %v1237 = vpop.f32.mrb[0].mxu0
        %1238 = vmatprep.mubr.bf16.mxu0 0
        %1239 = vmatmul.mubr.bf16.gmra.mrb[0].mxu0 %v1034
        %v1240 = vpop.f32.mrb[0].mxu0
        %v1241 = vadd.f32 0.0, %v1240
        %v1242 = vpop.f32.mrb[0].mxu0
        %v1243 = vpop.f32.mrb[0].mxu0
        %v1244 = vadd.f32 0.0, %v1243
        %v1245 = vpop.f32.mrb[0].mxu0
        %1246 = vmatprep.mubr.bf16.mxu0 0
        %1247 = vmatmul.mubr.bf16.gmra.mrb[0].mxu0 %v1035
        %v1248 = vpop.f32.mrb[0].mxu0
        %v1249 = vadd.f32 0.0, %v1248
        %v1250 = vpop.f32.mrb[0].mxu0
        %v1251 = vpop.f32.mrb[0].mxu0
        %v1252 = vadd.f32 0.0, %v1251
        %v1253 = vpop.f32.mrb[0].mxu0
        %1254 = vmatprep.mubr.bf16.mxu0 0
        %1255 = vmatmul.mubr.bf16.gmra.mrb[0].mxu0 %v1036
        %v1256 = vpop.f32.mrb[0].mxu0
        %v1257 = vadd.f32 0.0, %v1256
        %v1258 = vpop.f32.mrb[0].mxu0
        %v1259 = vpop.f32.mrb[0].mxu0
        %v1260 = vadd.f32 0.0, %v1259
        %v1261 = vpop.f32.mrb[0].mxu0
        %1262 = vdwg.mxu0
        %v1263 = vadd.f32 %v863, %v1137
        %v1264 = vadd.f32 %v866, %v1140
        %v1265 = vadd.f32 %v871, %v1145
        %v1266 = vadd.f32 %v874, %v1148
        %v1267 = vadd.f32 %v879, %v1153
        %v1268 = vadd.f32 %v882, %v1156
        %v1269 = vadd.f32 %v887, %v1161
        %v1270 = vadd.f32 %v890, %v1164
        %v1271 = vadd.f32 %v895, %v1169
        %v1272 = vadd.f32 %v898, %v1172
        %v1273 = vadd.f32 %v903, %v1177
        %v1274 = vadd.f32 %v906, %v1180
        %v1275 = vadd.f32 %v911, %v1185
        %v1276 = vadd.f32 %v914, %v1188
        %v1277 = vadd.f32 %v919, %v1193
        %v1278 = vadd.f32 %v922, %v1196
        %v1279 = vadd.f32 %v927, %v1201
        %v1280 = vadd.f32 %v930, %v1204
        %v1281 = vadd.f32 %v935, %v1209
        %v1282 = vadd.f32 %v938, %v1212
        %v1283 = vadd.f32 %v943, %v1217
        %v1284 = vadd.f32 %v946, %v1220
        %v1285 = vadd.f32 %v951, %v1225
        %v1286 = vadd.f32 %v954, %v1228
        %v1287 = vadd.f32 %v959, %v1233
        %v1288 = vadd.f32 %v962, %v1236
        %v1289 = vadd.f32 %v967, %v1241
        %v1290 = vadd.f32 %v970, %v1244
        %v1291 = vadd.f32 %v975, %v1249
        %v1292 = vadd.f32 %v978, %v1252
        %v1293 = vadd.f32 %v983, %v1257
        %v1294 = vadd.f32 %v986, %v1260
        %v1295 = vld [vmem:[%s408] sm:$0xff]
        %v1296 = vld [vmem:[%s408 + $0x8] sm:$0xff]
        %v1297 = vld [vmem:[%s408 + $0x18] sm:$0xff]
        %v1298 = vld [vmem:[%s408 + $0x20] sm:$0xff]
        %v1299 = vld [vmem:[%s408 + $0x30] sm:$0xff]
        %v1300 = vld [vmem:[%s408 + $0x38] sm:$0xff]
        %v1301 = vld [vmem:[%s408 + $0x48] sm:$0xff]
        %v1302 = vld [vmem:[%s408 + $0x50] sm:$0xff]
        %v1303 = vld [vmem:[%s408 + $0x60] sm:$0xff]
        %v1304 = vld [vmem:[%s408 + $0x68] sm:$0xff]
        %v1305 = vld [vmem:[%s408 + $0x78] sm:$0xff]
        %v1306 = vld [vmem:[%s408 + $0x80] sm:$0xff]
        %v1307 = vld [vmem:[%s408 + $0x90] sm:$0xff]
        %v1308 = vld [vmem:[%s408 + $0x98] sm:$0xff]
        %v1309 = vld [vmem:[%s408 + $0xa8] sm:$0xff]
        %v1310 = vld [vmem:[%s408 + $0xb0] sm:$0xff]
        %v1311 = vld [vmem:[%s408 + $0xc0] sm:$0xff]
        %v1312 = vld [vmem:[%s408 + $0xc8] sm:$0xff]
        %v1313 = vld [vmem:[%s408 + $0xd8] sm:$0xff]
        %v1314 = vld [vmem:[%s408 + $0xe0] sm:$0xff]
        %v1315 = vld [vmem:[%s408 + $0xf0] sm:$0xff]
        %v1316 = vld [vmem:[%s408 + $0xf8] sm:$0xff]
        %v1317 = vld [vmem:[%s408 + $0x108] sm:$0xff]
        %v1318 = vld [vmem:[%s408 + $0x110] sm:$0xff]
        %v1319 = vld [vmem:[%s408 + $0x120] sm:$0xff]
        %v1320 = vld [vmem:[%s408 + $0x128] sm:$0xff]
        %v1321 = vld [vmem:[%s408 + $0x138] sm:$0xff]
        %v1322 = vld [vmem:[%s408 + $0x140] sm:$0xff]
        %v1323 = vld [vmem:[%s408 + $0x150] sm:$0xff]
        %v1324 = vld [vmem:[%s408 + $0x158] sm:$0xff]
        %v1325 = vld [vmem:[%s408 + $0x168] sm:$0xff]
        %v1326 = vld [vmem:[%s408 + $0x170] sm:$0xff]
        %v1327 = vpack.c.bf16 %v1296, %v1295
        %v1328 = vpack.c.bf16 %v1298, %v1297
        %v1329 = vpack.c.bf16 %v1300, %v1299
        %v1330 = vpack.c.bf16 %v1302, %v1301
        %v1331 = vpack.c.bf16 %v1304, %v1303
        %v1332 = vpack.c.bf16 %v1306, %v1305
        %v1333 = vpack.c.bf16 %v1308, %v1307
        %v1334 = vpack.c.bf16 %v1310, %v1309
        %v1335 = vpack.c.bf16 %v1312, %v1311
        %v1336 = vpack.c.bf16 %v1314, %v1313
        %v1337 = vpack.c.bf16 %v1316, %v1315
        %v1338 = vpack.c.bf16 %v1318, %v1317
        %v1339 = vpack.c.bf16 %v1320, %v1319
        %v1340 = vpack.c.bf16 %v1322, %v1321
        %v1341 = vpack.c.bf16 %v1324, %v1323
        %v1342 = vpack.c.bf16 %v1326, %v1325
        %s1343 = scalar_lea.vmem %s1, 192
        %v1344 = vld [vmem:[%s1343] sm:$0xf]
        %v1345 = vld [vmem:[%s1343 + $0x4] sm:$0xf]
        %v1346 = vld [vmem:[%s1343 + $0x8] sm:$0xf]
        %v1347 = vld [vmem:[%s1343 + $0xc] sm:$0xf]
        %v1348 = vld [vmem:[%s1343 + $0x10] sm:$0xf]
        %v1349 = vld [vmem:[%s1343 + $0x14] sm:$0xf]
        %v1350 = vld [vmem:[%s1343 + $0x18] sm:$0xf]
        %v1351 = vld [vmem:[%s1343 + $0x1c] sm:$0xf]
        %v1352 = vld [vmem:[%s1343 + $0x20] sm:$0xf]
        %v1353 = vld [vmem:[%s1343 + $0x24] sm:$0xf]
        %v1354 = vld [vmem:[%s1343 + $0x28] sm:$0xf]
        %v1355 = vld [vmem:[%s1343 + $0x2c] sm:$0xf]
        %v1356 = vld [vmem:[%s1343 + $0x30] sm:$0xf]
        %v1357 = vld [vmem:[%s1343 + $0x34] sm:$0xf]
        %v1358 = vld [vmem:[%s1343 + $0x38] sm:$0xf]
        %v1359 = vld [vmem:[%s1343 + $0x3c] sm:$0xf]
        %v1376 = vunpack.c.l.b16 %v1344
        %v1377 = vunpack.c.l.b16 %v1345
        %v1378 = vunpack.c.l.b16 %v1346
        %v1379 = vunpack.c.l.b16 %v1347
        %v1380 = vunpack.c.l.b16 %v1348
        %v1381 = vunpack.c.l.b16 %v1349
        %v1382 = vunpack.c.l.b16 %v1350
        %v1383 = vunpack.c.l.b16 %v1351
        %v1384 = vunpack.c.l.b16 %v1352
        %v1385 = vunpack.c.l.b16 %v1353
        %v1386 = vunpack.c.l.b16 %v1354
        %v1387 = vunpack.c.l.b16 %v1355
        %v1388 = vunpack.c.l.b16 %v1356
        %v1389 = vunpack.c.l.b16 %v1357
        %v1390 = vunpack.c.l.b16 %v1358
        %v1391 = vunpack.c.l.b16 %v1359
        %v1392 = vpack.c.b16 %v1377, %v1376
        %v1393 = vpack.c.b16 %v1379, %v1378
        %v1394 = vpack.c.b16 %v1381, %v1380
        %v1395 = vpack.c.b16 %v1383, %v1382
        %v1396 = vpack.c.b16 %v1385, %v1384
        %v1397 = vpack.c.b16 %v1387, %v1386
        %v1398 = vpack.c.b16 %v1389, %v1388
        %v1399 = vpack.c.b16 %v1391, %v1390
        %1408 = vmatprep.subr.bf16.mxu0 0
        %1409 = vmatpush1.bf16.msra.mxu0 %v1392
        %1410 = vmatprep.subr.bf16.mxu0 0
        %1411 = vmatpush1.bf16.msra.mxu0 %v1393
        %1412 = vmatprep.subr.bf16.mxu0 0
        %1413 = vmatpush1.bf16.msra.mxu0 %v1394
        %1414 = vmatprep.subr.bf16.mxu0 0
        %1415 = vmatpush1.bf16.msra.mxu0 %v1395
        %1416 = vmatprep.subr.bf16.mxu0 0
        %1417 = vmatpush1.bf16.msra.mxu0 %v1396
        %1418 = vmatprep.subr.bf16.mxu0 0
        %1419 = vmatpush1.bf16.msra.mxu0 %v1397
        %1420 = vmatprep.subr.bf16.mxu0 0
        %1421 = vmatpush1.bf16.msra.mxu0 %v1398
        %1422 = vmatprep.subr.bf16.mxu0 0
        %1423 = vmatpush1.bf16.msra.mxu0 %v1399
        %1424 = vmatprep.subr.bf16.mxu0 0
        %1425 = vmatpush1.bf16.msra.mxu0 0
        %1426 = vmatprep.subr.bf16.mxu0 0
        %1427 = vmatpush1.bf16.msra.mxu0 0
        %1428 = vmatprep.subr.bf16.mxu0 0
        %1429 = vmatpush1.bf16.msra.mxu0 0
        %1430 = vmatprep.subr.bf16.mxu0 0
        %1431 = vmatpush1.bf16.msra.mxu0 0
        %1432 = vmatprep.subr.bf16.mxu0 0
        %1433 = vmatpush1.bf16.msra.mxu0 0
        %1434 = vmatprep.subr.bf16.mxu0 0
        %1435 = vmatpush1.bf16.msra.mxu0 0
        %1436 = vmatprep.subr.bf16.mxu0 0
        %1437 = vmatpush1.bf16.msra.mxu0 0
        %1438 = vmatprep.subr.bf16.mxu0 0
        %1439 = vmatpush1.bf16.msra.mxu0 0
        %1440 = vmatprep.mubr.bf16.mxu0 0
        %1441 = vmatmul.mubr.bf16.gmra.mrb[0].mxu0 %v1327
        %v1442 = vpop.f32.mrb[0].mxu0
        %v1443 = vadd.f32 0.0, %v1442
        %v1444 = vpop.f32.mrb[0].mxu0
        %v1445 = vpop.f32.mrb[0].mxu0
        %v1446 = vadd.f32 0.0, %v1445
        %v1447 = vpop.f32.mrb[0].mxu0
        %1448 = vmatprep.mubr.bf16.mxu0 0
        %1449 = vmatmul.mubr.bf16.gmra.mrb[0].mxu0 %v1328
        %v1450 = vpop.f32.mrb[0].mxu0
        %v1451 = vadd.f32 0.0, %v1450
        %v1452 = vpop.f32.mrb[0].mxu0
        %v1453 = vpop.f32.mrb[0].mxu0
        %v1454 = vadd.f32 0.0, %v1453
        %v1455 = vpop.f32.mrb[0].mxu0
        %1456 = vmatprep.mubr.bf16.mxu0 0
        %1457 = vmatmul.mubr.bf16.gmra.mrb[0].mxu0 %v1329
        %v1458 = vpop.f32.mrb[0].mxu0
        %v1459 = vadd.f32 0.0, %v1458
        %v1460 = vpop.f32.mrb[0].mxu0
        %v1461 = vpop.f32.mrb[0].mxu0
        %v1462 = vadd.f32 0.0, %v1461
        %v1463 = vpop.f32.mrb[0].mxu0
        %1464 = vmatprep.mubr.bf16.mxu0 0
        %1465 = vmatmul.mubr.bf16.gmra.mrb[0].mxu0 %v1330
        %v1466 = vpop.f32.mrb[0].mxu0
        %v1467 = vadd.f32 0.0, %v1466
        %v1468 = vpop.f32.mrb[0].mxu0
        %v1469 = vpop.f32.mrb[0].mxu0
        %v1470 = vadd.f32 0.0, %v1469
        %v1471 = vpop.f32.mrb[0].mxu0
        %1472 = vmatprep.mubr.bf16.mxu0 0
        %1473 = vmatmul.mubr.bf16.gmra.mrb[0].mxu0 %v1331
        %v1474 = vpop.f32.mrb[0].mxu0
        %v1475 = vadd.f32 0.0, %v1474
        %v1476 = vpop.f32.mrb[0].mxu0
        %v1477 = vpop.f32.mrb[0].mxu0
        %v1478 = vadd.f32 0.0, %v1477
        %v1479 = vpop.f32.mrb[0].mxu0
        %1480 = vmatprep.mubr.bf16.mxu0 0
        %1481 = vmatmul.mubr.bf16.gmra.mrb[0].mxu0 %v1332
        %v1482 = vpop.f32.mrb[0].mxu0
        %v1483 = vadd.f32 0.0, %v1482
        %v1484 = vpop.f32.mrb[0].mxu0
        %v1485 = vpop.f32.mrb[0].mxu0
        %v1486 = vadd.f32 0.0, %v1485
        %v1487 = vpop.f32.mrb[0].mxu0
        %1488 = vmatprep.mubr.bf16.mxu0 0
        %1489 = vmatmul.mubr.bf16.gmra.mrb[0].mxu0 %v1333
        %v1490 = vpop.f32.mrb[0].mxu0
        %v1491 = vadd.f32 0.0, %v1490
        %v1492 = vpop.f32.mrb[0].mxu0
        %v1493 = vpop.f32.mrb[0].mxu0
        %v1494 = vadd.f32 0.0, %v1493
        %v1495 = vpop.f32.mrb[0].mxu0
        %1496 = vmatprep.mubr.bf16.mxu0 0
        %1497 = vmatmul.mubr.bf16.gmra.mrb[0].mxu0 %v1334
        %v1498 = vpop.f32.mrb[0].mxu0
        %v1499 = vadd.f32 0.0, %v1498
        %v1500 = vpop.f32.mrb[0].mxu0
        %v1501 = vpop.f32.mrb[0].mxu0
        %v1502 = vadd.f32 0.0, %v1501
        %v1503 = vpop.f32.mrb[0].mxu0
        %1504 = vmatprep.mubr.bf16.mxu0 0
        %1505 = vmatmul.mubr.bf16.gmra.mrb[0].mxu0 %v1335
        %v1506 = vpop.f32.mrb[0].mxu0
        %v1507 = vadd.f32 0.0, %v1506
        %v1508 = vpop.f32.mrb[0].mxu0
        %v1509 = vpop.f32.mrb[0].mxu0
        %v1510 = vadd.f32 0.0, %v1509
        %v1511 = vpop.f32.mrb[0].mxu0
        %1512 = vmatprep.mubr.bf16.mxu0 0
        %1513 = vmatmul.mubr.bf16.gmra.mrb[0].mxu0 %v1336
        %v1514 = vpop.f32.mrb[0].mxu0
        %v1515 = vadd.f32 0.0, %v1514
        %v1516 = vpop.f32.mrb[0].mxu0
        %v1517 = vpop.f32.mrb[0].mxu0
        %v1518 = vadd.f32 0.0, %v1517
        %v1519 = vpop.f32.mrb[0].mxu0
        %1520 = vmatprep.mubr.bf16.mxu0 0
        %1521 = vmatmul.mubr.bf16.gmra.mrb[0].mxu0 %v1337
        %v1522 = vpop.f32.mrb[0].mxu0
        %v1523 = vadd.f32 0.0, %v1522
        %v1524 = vpop.f32.mrb[0].mxu0
        %v1525 = vpop.f32.mrb[0].mxu0
        %v1526 = vadd.f32 0.0, %v1525
        %v1527 = vpop.f32.mrb[0].mxu0
        %1528 = vmatprep.mubr.bf16.mxu0 0
        %1529 = vmatmul.mubr.bf16.gmra.mrb[0].mxu0 %v1338
        %v1530 = vpop.f32.mrb[0].mxu0
        %v1531 = vadd.f32 0.0, %v1530
        %v1532 = vpop.f32.mrb[0].mxu0
        %v1533 = vpop.f32.mrb[0].mxu0
        %v1534 = vadd.f32 0.0, %v1533
        %v1535 = vpop.f32.mrb[0].mxu0
        %1536 = vmatprep.mubr.bf16.mxu0 0
        %1537 = vmatmul.mubr.bf16.gmra.mrb[0].mxu0 %v1339
        %v1538 = vpop.f32.mrb[0].mxu0
        %v1539 = vadd.f32 0.0, %v1538
        %v1540 = vpop.f32.mrb[0].mxu0
        %v1541 = vpop.f32.mrb[0].mxu0
        %v1542 = vadd.f32 0.0, %v1541
        %v1543 = vpop.f32.mrb[0].mxu0
        %1544 = vmatprep.mubr.bf16.mxu0 0
        %1545 = vmatmul.mubr.bf16.gmra.mrb[0].mxu0 %v1340
        %v1546 = vpop.f32.mrb[0].mxu0
        %v1547 = vadd.f32 0.0, %v1546
        %v1548 = vpop.f32.mrb[0].mxu0
        %v1549 = vpop.f32.mrb[0].mxu0
        %v1550 = vadd.f32 0.0, %v1549
        %v1551 = vpop.f32.mrb[0].mxu0
        %1552 = vmatprep.mubr.bf16.mxu0 0
        %1553 = vmatmul.mubr.bf16.gmra.mrb[0].mxu0 %v1341
        %v1554 = vpop.f32.mrb[0].mxu0
        %v1555 = vadd.f32 0.0, %v1554
        %v1556 = vpop.f32.mrb[0].mxu0
        %v1557 = vpop.f32.mrb[0].mxu0
        %v1558 = vadd.f32 0.0, %v1557
        %v1559 = vpop.f32.mrb[0].mxu0
        %1560 = vmatprep.mubr.bf16.mxu0 0
        %1561 = vmatmul.mubr.bf16.gmra.mrb[0].mxu0 %v1342
        %v1562 = vpop.f32.mrb[0].mxu0
        %v1563 = vadd.f32 0.0, %v1562
        %v1564 = vpop.f32.mrb[0].mxu0
        %v1565 = vpop.f32.mrb[0].mxu0
        %v1566 = vadd.f32 0.0, %v1565
        %v1567 = vpop.f32.mrb[0].mxu0
        %1568 = vdwg.mxu0
        %v1569 = vadd.f32 %v1263, %v1443
        %v1570 = vadd.f32 %v1264, %v1446
        %v1571 = vadd.f32 %v1265, %v1451
        %v1572 = vadd.f32 %v1266, %v1454
        %v1573 = vadd.f32 %v1267, %v1459
        %v1574 = vadd.f32 %v1268, %v1462
        %v1575 = vadd.f32 %v1269, %v1467
        %v1576 = vadd.f32 %v1270, %v1470
        %v1577 = vadd.f32 %v1271, %v1475
        %v1578 = vadd.f32 %v1272, %v1478
        %v1579 = vadd.f32 %v1273, %v1483
        %v1580 = vadd.f32 %v1274, %v1486
        %v1581 = vadd.f32 %v1275, %v1491
        %v1582 = vadd.f32 %v1276, %v1494
        %v1583 = vadd.f32 %v1277, %v1499
        %v1584 = vadd.f32 %v1278, %v1502
        %v1585 = vadd.f32 %v1279, %v1507
        %v1586 = vadd.f32 %v1280, %v1510
        %v1587 = vadd.f32 %v1281, %v1515
        %v1588 = vadd.f32 %v1282, %v1518
        %v1589 = vadd.f32 %v1283, %v1523
        %v1590 = vadd.f32 %v1284, %v1526
        %v1591 = vadd.f32 %v1285, %v1531
        %v1592 = vadd.f32 %v1286, %v1534
        %v1593 = vadd.f32 %v1287, %v1539
        %v1594 = vadd.f32 %v1288, %v1542
        %v1595 = vadd.f32 %v1289, %v1547
        %v1596 = vadd.f32 %v1290, %v1550
        %v1597 = vadd.f32 %v1291, %v1555
        %v1598 = vadd.f32 %v1292, %v1558
        %v1599 = vadd.f32 %v1293, %v1563
        %v1600 = vadd.f32 %v1294, %v1566
        %v1601 = vld [vmem:[%s408 + $0x1] sm:$0xff]
        %v1602 = vld [vmem:[%s408 + $0x9] sm:$0xff]
        %v1603 = vld [vmem:[%s408 + $0x19] sm:$0xff]
        %v1604 = vld [vmem:[%s408 + $0x21] sm:$0xff]
        %v1605 = vld [vmem:[%s408 + $0x31] sm:$0xff]
        %v1606 = vld [vmem:[%s408 + $0x39] sm:$0xff]
        %v1607 = vld [vmem:[%s408 + $0x49] sm:$0xff]
        %v1608 = vld [vmem:[%s408 + $0x51] sm:$0xff]
        %v1609 = vld [vmem:[%s408 + $0x61] sm:$0xff]
        %v1610 = vld [vmem:[%s408 + $0x69] sm:$0xff]
        %v1611 = vld [vmem:[%s408 + $0x79] sm:$0xff]
        %v1612 = vld [vmem:[%s408 + $0x81] sm:$0xff]
        %v1613 = vld [vmem:[%s408 + $0x91] sm:$0xff]
        %v1614 = vld [vmem:[%s408 + $0x99] sm:$0xff]
        %v1615 = vld [vmem:[%s408 + $0xa9] sm:$0xff]
        %v1616 = vld [vmem:[%s408 + $0xb1] sm:$0xff]
        %v1617 = vld [vmem:[%s408 + $0xc1] sm:$0xff]
        %v1618 = vld [vmem:[%s408 + $0xc9] sm:$0xff]
        %v1619 = vld [vmem:[%s408 + $0xd9] sm:$0xff]
        %v1620 = vld [vmem:[%s408 + $0xe1] sm:$0xff]
        %v1621 = vld [vmem:[%s408 + $0xf1] sm:$0xff]
        %v1622 = vld [vmem:[%s408 + $0xf9] sm:$0xff]
        %v1623 = vld [vmem:[%s408 + $0x109] sm:$0xff]
        %v1624 = vld [vmem:[%s408 + $0x111] sm:$0xff]
        %v1625 = vld [vmem:[%s408 + $0x121] sm:$0xff]
        %v1626 = vld [vmem:[%s408 + $0x129] sm:$0xff]
        %v1627 = vld [vmem:[%s408 + $0x139] sm:$0xff]
        %v1628 = vld [vmem:[%s408 + $0x141] sm:$0xff]
        %v1629 = vld [vmem:[%s408 + $0x151] sm:$0xff]
        %v1630 = vld [vmem:[%s408 + $0x159] sm:$0xff]
        %v1631 = vld [vmem:[%s408 + $0x169] sm:$0xff]
        %v1632 = vld [vmem:[%s408 + $0x171] sm:$0xff]
        %v1633 = vpack.c.bf16 %v1602, %v1601
        %v1634 = vpack.c.bf16 %v1604, %v1603
        %v1635 = vpack.c.bf16 %v1606, %v1605
        %v1636 = vpack.c.bf16 %v1608, %v1607
        %v1637 = vpack.c.bf16 %v1610, %v1609
        %v1638 = vpack.c.bf16 %v1612, %v1611
        %v1639 = vpack.c.bf16 %v1614, %v1613
        %v1640 = vpack.c.bf16 %v1616, %v1615
        %v1641 = vpack.c.bf16 %v1618, %v1617
        %v1642 = vpack.c.bf16 %v1620, %v1619
        %v1643 = vpack.c.bf16 %v1622, %v1621
        %v1644 = vpack.c.bf16 %v1624, %v1623
        %v1645 = vpack.c.bf16 %v1626, %v1625
        %v1646 = vpack.c.bf16 %v1628, %v1627
        %v1647 = vpack.c.bf16 %v1630, %v1629
        %v1648 = vpack.c.bf16 %v1632, %v1631
        %s1649 = scalar_lea.vmem %s1, 256
        %v1650 = vld [vmem:[%s1649] sm:$0xf]
        %v1651 = vld [vmem:[%s1649 + $0x4] sm:$0xf]
        %v1652 = vld [vmem:[%s1649 + $0x8] sm:$0xf]
        %v1653 = vld [vmem:[%s1649 + $0xc] sm:$0xf]
        %v1654 = vld [vmem:[%s1649 + $0x10] sm:$0xf]
        %v1655 = vld [vmem:[%s1649 + $0x14] sm:$0xf]
        %v1656 = vld [vmem:[%s1649 + $0x18] sm:$0xf]
        %v1657 = vld [vmem:[%s1649 + $0x1c] sm:$0xf]
        %v1658 = vld [vmem:[%s1649 + $0x20] sm:$0xf]
        %v1659 = vld [vmem:[%s1649 + $0x24] sm:$0xf]
        %v1660 = vld [vmem:[%s1649 + $0x28] sm:$0xf]
        %v1661 = vld [vmem:[%s1649 + $0x2c] sm:$0xf]
        %v1662 = vld [vmem:[%s1649 + $0x30] sm:$0xf]
        %v1663 = vld [vmem:[%s1649 + $0x34] sm:$0xf]
        %v1664 = vld [vmem:[%s1649 + $0x38] sm:$0xf]
        %v1665 = vld [vmem:[%s1649 + $0x3c] sm:$0xf]
        %v1682 = vunpack.c.l.b16 %v1650
        %v1683 = vunpack.c.l.b16 %v1651
        %v1684 = vunpack.c.l.b16 %v1652
        %v1685 = vunpack.c.l.b16 %v1653
        %v1686 = vunpack.c.l.b16 %v1654
        %v1687 = vunpack.c.l.b16 %v1655
        %v1688 = vunpack.c.l.b16 %v1656
        %v1689 = vunpack.c.l.b16 %v1657
        %v1690 = vunpack.c.l.b16 %v1658
        %v1691 = vunpack.c.l.b16 %v1659
        %v1692 = vunpack.c.l.b16 %v1660
        %v1693 = vunpack.c.l.b16 %v1661
        %v1694 = vunpack.c.l.b16 %v1662
        %v1695 = vunpack.c.l.b16 %v1663
        %v1696 = vunpack.c.l.b16 %v1664
        %v1697 = vunpack.c.l.b16 %v1665
        %v1698 = vpack.c.b16 %v1683, %v1682
        %v1699 = vpack.c.b16 %v1685, %v1684
        %v1700 = vpack.c.b16 %v1687, %v1686
        %v1701 = vpack.c.b16 %v1689, %v1688
        %v1702 = vpack.c.b16 %v1691, %v1690
        %v1703 = vpack.c.b16 %v1693, %v1692
        %v1704 = vpack.c.b16 %v1695, %v1694
        %v1705 = vpack.c.b16 %v1697, %v1696
        %1714 = vmatprep.subr.bf16.mxu0 0
        %1715 = vmatpush1.bf16.msra.mxu0 %v1698
        %1716 = vmatprep.subr.bf16.mxu0 0
        %1717 = vmatpush1.bf16.msra.mxu0 %v1699
        %1718 = vmatprep.subr.bf16.mxu0 0
        %1719 = vmatpush1.bf16.msra.mxu0 %v1700
        %1720 = vmatprep.subr.bf16.mxu0 0
        %1721 = vmatpush1.bf16.msra.mxu0 %v1701
        %1722 = vmatprep.subr.bf16.mxu0 0
        %1723 = vmatpush1.bf16.msra.mxu0 %v1702
        %1724 = vmatprep.subr.bf16.mxu0 0
        %1725 = vmatpush1.bf16.msra.mxu0 %v1703
        %1726 = vmatprep.subr.bf16.mxu0 0
        %1727 = vmatpush1.bf16.msra.mxu0 %v1704
        %1728 = vmatprep.subr.bf16.mxu0 0
        %1729 = vmatpush1.bf16.msra.mxu0 %v1705
        %1730 = vmatprep.subr.bf16.mxu0 0
        %1731 = vmatpush1.bf16.msra.mxu0 0
        %1732 = vmatprep.subr.bf16.mxu0 0
        %1733 = vmatpush1.bf16.msra.mxu0 0
        %1734 = vmatprep.subr.bf16.mxu0 0
        %1735 = vmatpush1.bf16.msra.mxu0 0
        %1736 = vmatprep.subr.bf16.mxu0 0
        %1737 = vmatpush1.bf16.msra.mxu0 0
        %1738 = vmatprep.subr.bf16.mxu0 0
        %1739 = vmatpush1.bf16.msra.mxu0 0
        %1740 = vmatprep.subr.bf16.mxu0 0
        %1741 = vmatpush1.bf16.msra.mxu0 0
        %1742 = vmatprep.subr.bf16.mxu0 0
        %1743 = vmatpush1.bf16.msra.mxu0 0
        %1744 = vmatprep.subr.bf16.mxu0 0
        %1745 = vmatpush1.bf16.msra.mxu0 0
        %1746 = vmatprep.mubr.bf16.mxu0 0
        %1747 = vmatmul.mubr.bf16.gmra.mrb[0].mxu0 %v1633
        %v1748 = vpop.f32.mrb[0].mxu0
        %v1749 = vadd.f32 0.0, %v1748
        %v1750 = vpop.f32.mrb[0].mxu0
        %v1751 = vpop.f32.mrb[0].mxu0
        %v1752 = vadd.f32 0.0, %v1751
        %v1753 = vpop.f32.mrb[0].mxu0
        %1754 = vmatprep.mubr.bf16.mxu0 0
        %1755 = vmatmul.mubr.bf16.gmra.mrb[0].mxu0 %v1634
        %v1756 = vpop.f32.mrb[0].mxu0
        %v1757 = vadd.f32 0.0, %v1756
        %v1758 = vpop.f32.mrb[0].mxu0
        %v1759 = vpop.f32.mrb[0].mxu0
        %v1760 = vadd.f32 0.0, %v1759
        %v1761 = vpop.f32.mrb[0].mxu0
        %1762 = vmatprep.mubr.bf16.mxu0 0
        %1763 = vmatmul.mubr.bf16.gmra.mrb[0].mxu0 %v1635
        %v1764 = vpop.f32.mrb[0].mxu0
        %v1765 = vadd.f32 0.0, %v1764
        %v1766 = vpop.f32.mrb[0].mxu0
        %v1767 = vpop.f32.mrb[0].mxu0
        %v1768 = vadd.f32 0.0, %v1767
        %v1769 = vpop.f32.mrb[0].mxu0
        %1770 = vmatprep.mubr.bf16.mxu0 0
        %1771 = vmatmul.mubr.bf16.gmra.mrb[0].mxu0 %v1636
        %v1772 = vpop.f32.mrb[0].mxu0
        %v1773 = vadd.f32 0.0, %v1772
        %v1774 = vpop.f32.mrb[0].mxu0
        %v1775 = vpop.f32.mrb[0].mxu0
        %v1776 = vadd.f32 0.0, %v1775
        %v1777 = vpop.f32.mrb[0].mxu0
        %1778 = vmatprep.mubr.bf16.mxu0 0
        %1779 = vmatmul.mubr.bf16.gmra.mrb[0].mxu0 %v1637
        %v1780 = vpop.f32.mrb[0].mxu0
        %v1781 = vadd.f32 0.0, %v1780
        %v1782 = vpop.f32.mrb[0].mxu0
        %v1783 = vpop.f32.mrb[0].mxu0
        %v1784 = vadd.f32 0.0, %v1783
        %v1785 = vpop.f32.mrb[0].mxu0
        %1786 = vmatprep.mubr.bf16.mxu0 0
        %1787 = vmatmul.mubr.bf16.gmra.mrb[0].mxu0 %v1638
        %v1788 = vpop.f32.mrb[0].mxu0
        %v1789 = vadd.f32 0.0, %v1788
        %v1790 = vpop.f32.mrb[0].mxu0
        %v1791 = vpop.f32.mrb[0].mxu0
        %v1792 = vadd.f32 0.0, %v1791
        %v1793 = vpop.f32.mrb[0].mxu0
        %1794 = vmatprep.mubr.bf16.mxu0 0
        %1795 = vmatmul.mubr.bf16.gmra.mrb[0].mxu0 %v1639
        %v1796 = vpop.f32.mrb[0].mxu0
        %v1797 = vadd.f32 0.0, %v1796
        %v1798 = vpop.f32.mrb[0].mxu0
        %v1799 = vpop.f32.mrb[0].mxu0
        %v1800 = vadd.f32 0.0, %v1799
        %v1801 = vpop.f32.mrb[0].mxu0
        %1802 = vmatprep.mubr.bf16.mxu0 0
        %1803 = vmatmul.mubr.bf16.gmra.mrb[0].mxu0 %v1640
        %v1804 = vpop.f32.mrb[0].mxu0
        %v1805 = vadd.f32 0.0, %v1804
        %v1806 = vpop.f32.mrb[0].mxu0
        %v1807 = vpop.f32.mrb[0].mxu0
        %v1808 = vadd.f32 0.0, %v1807
        %v1809 = vpop.f32.mrb[0].mxu0
        %1810 = vmatprep.mubr.bf16.mxu0 0
        %1811 = vmatmul.mubr.bf16.gmra.mrb[0].mxu0 %v1641
        %v1812 = vpop.f32.mrb[0].mxu0
        %v1813 = vadd.f32 0.0, %v1812
        %v1814 = vpop.f32.mrb[0].mxu0
        %v1815 = vpop.f32.mrb[0].mxu0
        %v1816 = vadd.f32 0.0, %v1815
        %v1817 = vpop.f32.mrb[0].mxu0
        %1818 = vmatprep.mubr.bf16.mxu0 0
        %1819 = vmatmul.mubr.bf16.gmra.mrb[0].mxu0 %v1642
        %v1820 = vpop.f32.mrb[0].mxu0
        %v1821 = vadd.f32 0.0, %v1820
        %v1822 = vpop.f32.mrb[0].mxu0
        %v1823 = vpop.f32.mrb[0].mxu0
        %v1824 = vadd.f32 0.0, %v1823
        %v1825 = vpop.f32.mrb[0].mxu0
        %1826 = vmatprep.mubr.bf16.mxu0 0
        %1827 = vmatmul.mubr.bf16.gmra.mrb[0].mxu0 %v1643
        %v1828 = vpop.f32.mrb[0].mxu0
        %v1829 = vadd.f32 0.0, %v1828
        %v1830 = vpop.f32.mrb[0].mxu0
        %v1831 = vpop.f32.mrb[0].mxu0
        %v1832 = vadd.f32 0.0, %v1831
        %v1833 = vpop.f32.mrb[0].mxu0
        %1834 = vmatprep.mubr.bf16.mxu0 0
        %1835 = vmatmul.mubr.bf16.gmra.mrb[0].mxu0 %v1644
        %v1836 = vpop.f32.mrb[0].mxu0
        %v1837 = vadd.f32 0.0, %v1836
        %v1838 = vpop.f32.mrb[0].mxu0
        %v1839 = vpop.f32.mrb[0].mxu0
        %v1840 = vadd.f32 0.0, %v1839
        %v1841 = vpop.f32.mrb[0].mxu0
        %1842 = vmatprep.mubr.bf16.mxu0 0
        %1843 = vmatmul.mubr.bf16.gmra.mrb[0].mxu0 %v1645
        %v1844 = vpop.f32.mrb[0].mxu0
        %v1845 = vadd.f32 0.0, %v1844
        %v1846 = vpop.f32.mrb[0].mxu0
        %v1847 = vpop.f32.mrb[0].mxu0
        %v1848 = vadd.f32 0.0, %v1847
        %v1849 = vpop.f32.mrb[0].mxu0
        %1850 = vmatprep.mubr.bf16.mxu0 0
        %1851 = vmatmul.mubr.bf16.gmra.mrb[0].mxu0 %v1646
        %v1852 = vpop.f32.mrb[0].mxu0
        %v1853 = vadd.f32 0.0, %v1852
        %v1854 = vpop.f32.mrb[0].mxu0
        %v1855 = vpop.f32.mrb[0].mxu0
        %v1856 = vadd.f32 0.0, %v1855
        %v1857 = vpop.f32.mrb[0].mxu0
        %1858 = vmatprep.mubr.bf16.mxu0 0
        %1859 = vmatmul.mubr.bf16.gmra.mrb[0].mxu0 %v1647
        %v1860 = vpop.f32.mrb[0].mxu0
        %v1861 = vadd.f32 0.0, %v1860
        %v1862 = vpop.f32.mrb[0].mxu0
        %v1863 = vpop.f32.mrb[0].mxu0
        %v1864 = vadd.f32 0.0, %v1863
        %v1865 = vpop.f32.mrb[0].mxu0
        %1866 = vmatprep.mubr.bf16.mxu0 0
        %1867 = vmatmul.mubr.bf16.gmra.mrb[0].mxu0 %v1648
        %v1868 = vpop.f32.mrb[0].mxu0
        %v1869 = vadd.f32 0.0, %v1868
        %v1870 = vpop.f32.mrb[0].mxu0
        %v1871 = vpop.f32.mrb[0].mxu0
        %v1872 = vadd.f32 0.0, %v1871
        %v1873 = vpop.f32.mrb[0].mxu0
        %1874 = vdwg.mxu0
        %v1875 = vadd.f32 %v1569, %v1749
        %v1876 = vadd.f32 %v1570, %v1752
        %v1877 = vadd.f32 %v1571, %v1757
        %v1878 = vadd.f32 %v1572, %v1760
        %v1879 = vadd.f32 %v1573, %v1765
        %v1880 = vadd.f32 %v1574, %v1768
        %v1881 = vadd.f32 %v1575, %v1773
        %v1882 = vadd.f32 %v1576, %v1776
        %v1883 = vadd.f32 %v1577, %v1781
        %v1884 = vadd.f32 %v1578, %v1784
        %v1885 = vadd.f32 %v1579, %v1789
        %v1886 = vadd.f32 %v1580, %v1792
        %v1887 = vadd.f32 %v1581, %v1797
        %v1888 = vadd.f32 %v1582, %v1800
        %v1889 = vadd.f32 %v1583, %v1805
        %v1890 = vadd.f32 %v1584, %v1808
        %v1891 = vadd.f32 %v1585, %v1813
        %v1892 = vadd.f32 %v1586, %v1816
        %v1893 = vadd.f32 %v1587, %v1821
        %v1894 = vadd.f32 %v1588, %v1824
        %v1895 = vadd.f32 %v1589, %v1829
        %v1896 = vadd.f32 %v1590, %v1832
        %v1897 = vadd.f32 %v1591, %v1837
        %v1898 = vadd.f32 %v1592, %v1840
        %v1899 = vadd.f32 %v1593, %v1845
        %v1900 = vadd.f32 %v1594, %v1848
        %v1901 = vadd.f32 %v1595, %v1853
        %v1902 = vadd.f32 %v1596, %v1856
        %v1903 = vadd.f32 %v1597, %v1861
        %v1904 = vadd.f32 %v1598, %v1864
        %v1905 = vadd.f32 %v1599, %v1869
        %v1906 = vadd.f32 %v1600, %v1872
        %v1907 = vld [vmem:[%s408 + $0x2] sm:$0xff]
        %v1908 = vld [vmem:[%s408 + $0xa] sm:$0xff]
        %v1909 = vld [vmem:[%s408 + $0x1a] sm:$0xff]
        %v1910 = vld [vmem:[%s408 + $0x22] sm:$0xff]
        %v1911 = vld [vmem:[%s408 + $0x32] sm:$0xff]
        %v1912 = vld [vmem:[%s408 + $0x3a] sm:$0xff]
        %v1913 = vld [vmem:[%s408 + $0x4a] sm:$0xff]
        %v1914 = vld [vmem:[%s408 + $0x52] sm:$0xff]
        %v1915 = vld [vmem:[%s408 + $0x62] sm:$0xff]
        %v1916 = vld [vmem:[%s408 + $0x6a] sm:$0xff]
        %v1917 = vld [vmem:[%s408 + $0x7a] sm:$0xff]
        %v1918 = vld [vmem:[%s408 + $0x82] sm:$0xff]
        %v1919 = vld [vmem:[%s408 + $0x92] sm:$0xff]
        %v1920 = vld [vmem:[%s408 + $0x9a] sm:$0xff]
        %v1921 = vld [vmem:[%s408 + $0xaa] sm:$0xff]
        %v1922 = vld [vmem:[%s408 + $0xb2] sm:$0xff]
        %v1923 = vld [vmem:[%s408 + $0xc2] sm:$0xff]
        %v1924 = vld [vmem:[%s408 + $0xca] sm:$0xff]
        %v1925 = vld [vmem:[%s408 + $0xda] sm:$0xff]
        %v1926 = vld [vmem:[%s408 + $0xe2] sm:$0xff]
        %v1927 = vld [vmem:[%s408 + $0xf2] sm:$0xff]
        %v1928 = vld [vmem:[%s408 + $0xfa] sm:$0xff]
        %v1929 = vld [vmem:[%s408 + $0x10a] sm:$0xff]
        %v1930 = vld [vmem:[%s408 + $0x112] sm:$0xff]
        %v1931 = vld [vmem:[%s408 + $0x122] sm:$0xff]
        %v1932 = vld [vmem:[%s408 + $0x12a] sm:$0xff]
        %v1933 = vld [vmem:[%s408 + $0x13a] sm:$0xff]
        %v1934 = vld [vmem:[%s408 + $0x142] sm:$0xff]
        %v1935 = vld [vmem:[%s408 + $0x152] sm:$0xff]
        %v1936 = vld [vmem:[%s408 + $0x15a] sm:$0xff]
        %v1937 = vld [vmem:[%s408 + $0x16a] sm:$0xff]
        %v1938 = vld [vmem:[%s408 + $0x172] sm:$0xff]
        %v1939 = vpack.c.bf16 %v1908, %v1907
        %v1940 = vpack.c.bf16 %v1910, %v1909
        %v1941 = vpack.c.bf16 %v1912, %v1911
        %v1942 = vpack.c.bf16 %v1914, %v1913
        %v1943 = vpack.c.bf16 %v1916, %v1915
        %v1944 = vpack.c.bf16 %v1918, %v1917
        %v1945 = vpack.c.bf16 %v1920, %v1919
        %v1946 = vpack.c.bf16 %v1922, %v1921
        %v1947 = vpack.c.bf16 %v1924, %v1923
        %v1948 = vpack.c.bf16 %v1926, %v1925
        %v1949 = vpack.c.bf16 %v1928, %v1927
        %v1950 = vpack.c.bf16 %v1930, %v1929
        %v1951 = vpack.c.bf16 %v1932, %v1931
        %v1952 = vpack.c.bf16 %v1934, %v1933
        %v1953 = vpack.c.bf16 %v1936, %v1935
        %v1954 = vpack.c.bf16 %v1938, %v1937
        %s1955 = scalar_lea.vmem %s1, 320
        %v1956 = vld [vmem:[%s1955] sm:$0xf]
        %v1957 = vld [vmem:[%s1955 + $0x4] sm:$0xf]
        %v1958 = vld [vmem:[%s1955 + $0x8] sm:$0xf]
        %v1959 = vld [vmem:[%s1955 + $0xc] sm:$0xf]
        %v1960 = vld [vmem:[%s1955 + $0x10] sm:$0xf]
        %v1961 = vld [vmem:[%s1955 + $0x14] sm:$0xf]
        %v1962 = vld [vmem:[%s1955 + $0x18] sm:$0xf]
        %v1963 = vld [vmem:[%s1955 + $0x1c] sm:$0xf]
        %v1964 = vld [vmem:[%s1955 + $0x20] sm:$0xf]
        %v1965 = vld [vmem:[%s1955 + $0x24] sm:$0xf]
        %v1966 = vld [vmem:[%s1955 + $0x28] sm:$0xf]
        %v1967 = vld [vmem:[%s1955 + $0x2c] sm:$0xf]
        %v1968 = vld [vmem:[%s1955 + $0x30] sm:$0xf]
        %v1969 = vld [vmem:[%s1955 + $0x34] sm:$0xf]
        %v1970 = vld [vmem:[%s1955 + $0x38] sm:$0xf]
        %v1971 = vld [vmem:[%s1955 + $0x3c] sm:$0xf]
        %v1988 = vunpack.c.l.b16 %v1956
        %v1989 = vunpack.c.l.b16 %v1957
        %v1990 = vunpack.c.l.b16 %v1958
        %v1991 = vunpack.c.l.b16 %v1959
        %v1992 = vunpack.c.l.b16 %v1960
        %v1993 = vunpack.c.l.b16 %v1961
        %v1994 = vunpack.c.l.b16 %v1962
        %v1995 = vunpack.c.l.b16 %v1963
        %v1996 = vunpack.c.l.b16 %v1964
        %v1997 = vunpack.c.l.b16 %v1965
        %v1998 = vunpack.c.l.b16 %v1966
        %v1999 = vunpack.c.l.b16 %v1967
        %v2000 = vunpack.c.l.b16 %v1968
        %v2001 = vunpack.c.l.b16 %v1969
        %v2002 = vunpack.c.l.b16 %v1970
        %v2003 = vunpack.c.l.b16 %v1971
        %v2004 = vpack.c.b16 %v1989, %v1988
        %v2005 = vpack.c.b16 %v1991, %v1990
        %v2006 = vpack.c.b16 %v1993, %v1992
        %v2007 = vpack.c.b16 %v1995, %v1994
        %v2008 = vpack.c.b16 %v1997, %v1996
        %v2009 = vpack.c.b16 %v1999, %v1998
        %v2010 = vpack.c.b16 %v2001, %v2000
        %v2011 = vpack.c.b16 %v2003, %v2002
        %2020 = vmatprep.subr.bf16.mxu0 0
        %2021 = vmatpush1.bf16.msra.mxu0 %v2004
        %2022 = vmatprep.subr.bf16.mxu0 0
        %2023 = vmatpush1.bf16.msra.mxu0 %v2005
        %2024 = vmatprep.subr.bf16.mxu0 0
        %2025 = vmatpush1.bf16.msra.mxu0 %v2006
        %2026 = vmatprep.subr.bf16.mxu0 0
        %2027 = vmatpush1.bf16.msra.mxu0 %v2007
        %2028 = vmatprep.subr.bf16.mxu0 0
        %2029 = vmatpush1.bf16.msra.mxu0 %v2008
        %2030 = vmatprep.subr.bf16.mxu0 0
        %2031 = vmatpush1.bf16.msra.mxu0 %v2009
        %2032 = vmatprep.subr.bf16.mxu0 0
        %2033 = vmatpush1.bf16.msra.mxu0 %v2010
        %2034 = vmatprep.subr.bf16.mxu0 0
        %2035 = vmatpush1.bf16.msra.mxu0 %v2011
        %2036 = vmatprep.subr.bf16.mxu0 0
        %2037 = vmatpush1.bf16.msra.mxu0 0
        %2038 = vmatprep.subr.bf16.mxu0 0
        %2039 = vmatpush1.bf16.msra.mxu0 0
        %2040 = vmatprep.subr.bf16.mxu0 0
        %2041 = vmatpush1.bf16.msra.mxu0 0
        %2042 = vmatprep.subr.bf16.mxu0 0
        %2043 = vmatpush1.bf16.msra.mxu0 0
        %2044 = vmatprep.subr.bf16.mxu0 0
        %2045 = vmatpush1.bf16.msra.mxu0 0
        %2046 = vmatprep.subr.bf16.mxu0 0
        %2047 = vmatpush1.bf16.msra.mxu0 0
        %2048 = vmatprep.subr.bf16.mxu0 0
        %2049 = vmatpush1.bf16.msra.mxu0 0
        %2050 = vmatprep.subr.bf16.mxu0 0
        %2051 = vmatpush1.bf16.msra.mxu0 0
        %2052 = vmatprep.mubr.bf16.mxu0 0
        %2053 = vmatmul.mubr.bf16.gmra.mrb[0].mxu0 %v1939
        %v2054 = vpop.f32.mrb[0].mxu0
        %v2055 = vadd.f32 0.0, %v2054
        %v2056 = vpop.f32.mrb[0].mxu0
        %v2057 = vpop.f32.mrb[0].mxu0
        %v2058 = vadd.f32 0.0, %v2057
        %v2059 = vpop.f32.mrb[0].mxu0
        %2060 = vmatprep.mubr.bf16.mxu0 0
        %2061 = vmatmul.mubr.bf16.gmra.mrb[0].mxu0 %v1940
        %v2062 = vpop.f32.mrb[0].mxu0
        %v2063 = vadd.f32 0.0, %v2062
        %v2064 = vpop.f32.mrb[0].mxu0
        %v2065 = vpop.f32.mrb[0].mxu0
        %v2066 = vadd.f32 0.0, %v2065
        %v2067 = vpop.f32.mrb[0].mxu0
        %2068 = vmatprep.mubr.bf16.mxu0 0
        %2069 = vmatmul.mubr.bf16.gmra.mrb[0].mxu0 %v1941
        %v2070 = vpop.f32.mrb[0].mxu0
        %v2071 = vadd.f32 0.0, %v2070
        %v2072 = vpop.f32.mrb[0].mxu0
        %v2073 = vpop.f32.mrb[0].mxu0
        %v2074 = vadd.f32 0.0, %v2073
        %v2075 = vpop.f32.mrb[0].mxu0
        %2076 = vmatprep.mubr.bf16.mxu0 0
        %2077 = vmatmul.mubr.bf16.gmra.mrb[0].mxu0 %v1942
        %v2078 = vpop.f32.mrb[0].mxu0
        %v2079 = vadd.f32 0.0, %v2078
        %v2080 = vpop.f32.mrb[0].mxu0
        %v2081 = vpop.f32.mrb[0].mxu0
        %v2082 = vadd.f32 0.0, %v2081
        %v2083 = vpop.f32.mrb[0].mxu0
        %2084 = vmatprep.mubr.bf16.mxu0 0
        %2085 = vmatmul.mubr.bf16.gmra.mrb[0].mxu0 %v1943
        %v2086 = vpop.f32.mrb[0].mxu0
        %v2087 = vadd.f32 0.0, %v2086
        %v2088 = vpop.f32.mrb[0].mxu0
        %v2089 = vpop.f32.mrb[0].mxu0
        %v2090 = vadd.f32 0.0, %v2089
        %v2091 = vpop.f32.mrb[0].mxu0
        %2092 = vmatprep.mubr.bf16.mxu0 0
        %2093 = vmatmul.mubr.bf16.gmra.mrb[0].mxu0 %v1944
        %v2094 = vpop.f32.mrb[0].mxu0
        %v2095 = vadd.f32 0.0, %v2094
        %v2096 = vpop.f32.mrb[0].mxu0
        %v2097 = vpop.f32.mrb[0].mxu0
        %v2098 = vadd.f32 0.0, %v2097
        %v2099 = vpop.f32.mrb[0].mxu0
        %2100 = vmatprep.mubr.bf16.mxu0 0
        %2101 = vmatmul.mubr.bf16.gmra.mrb[0].mxu0 %v1945
        %v2102 = vpop.f32.mrb[0].mxu0
        %v2103 = vadd.f32 0.0, %v2102
        %v2104 = vpop.f32.mrb[0].mxu0
        %v2105 = vpop.f32.mrb[0].mxu0
        %v2106 = vadd.f32 0.0, %v2105
        %v2107 = vpop.f32.mrb[0].mxu0
        %2108 = vmatprep.mubr.bf16.mxu0 0
        %2109 = vmatmul.mubr.bf16.gmra.mrb[0].mxu0 %v1946
        %v2110 = vpop.f32.mrb[0].mxu0
        %v2111 = vadd.f32 0.0, %v2110
        %v2112 = vpop.f32.mrb[0].mxu0
        %v2113 = vpop.f32.mrb[0].mxu0
        %v2114 = vadd.f32 0.0, %v2113
        %v2115 = vpop.f32.mrb[0].mxu0
        %2116 = vmatprep.mubr.bf16.mxu0 0
        %2117 = vmatmul.mubr.bf16.gmra.mrb[0].mxu0 %v1947
        %v2118 = vpop.f32.mrb[0].mxu0
        %v2119 = vadd.f32 0.0, %v2118
        %v2120 = vpop.f32.mrb[0].mxu0
        %v2121 = vpop.f32.mrb[0].mxu0
        %v2122 = vadd.f32 0.0, %v2121
        %v2123 = vpop.f32.mrb[0].mxu0
        %2124 = vmatprep.mubr.bf16.mxu0 0
        %2125 = vmatmul.mubr.bf16.gmra.mrb[0].mxu0 %v1948
        %v2126 = vpop.f32.mrb[0].mxu0
        %v2127 = vadd.f32 0.0, %v2126
        %v2128 = vpop.f32.mrb[0].mxu0
        %v2129 = vpop.f32.mrb[0].mxu0
        %v2130 = vadd.f32 0.0, %v2129
        %v2131 = vpop.f32.mrb[0].mxu0
        %2132 = vmatprep.mubr.bf16.mxu0 0
        %2133 = vmatmul.mubr.bf16.gmra.mrb[0].mxu0 %v1949
        %v2134 = vpop.f32.mrb[0].mxu0
        %v2135 = vadd.f32 0.0, %v2134
        %v2136 = vpop.f32.mrb[0].mxu0
        %v2137 = vpop.f32.mrb[0].mxu0
        %v2138 = vadd.f32 0.0, %v2137
        %v2139 = vpop.f32.mrb[0].mxu0
        %2140 = vmatprep.mubr.bf16.mxu0 0
        %2141 = vmatmul.mubr.bf16.gmra.mrb[0].mxu0 %v1950
        %v2142 = vpop.f32.mrb[0].mxu0
        %v2143 = vadd.f32 0.0, %v2142
        %v2144 = vpop.f32.mrb[0].mxu0
        %v2145 = vpop.f32.mrb[0].mxu0
        %v2146 = vadd.f32 0.0, %v2145
        %v2147 = vpop.f32.mrb[0].mxu0
        %2148 = vmatprep.mubr.bf16.mxu0 0
        %2149 = vmatmul.mubr.bf16.gmra.mrb[0].mxu0 %v1951
        %v2150 = vpop.f32.mrb[0].mxu0
        %v2151 = vadd.f32 0.0, %v2150
        %v2152 = vpop.f32.mrb[0].mxu0
        %v2153 = vpop.f32.mrb[0].mxu0
        %v2154 = vadd.f32 0.0, %v2153
        %v2155 = vpop.f32.mrb[0].mxu0
        %2156 = vmatprep.mubr.bf16.mxu0 0
        %2157 = vmatmul.mubr.bf16.gmra.mrb[0].mxu0 %v1952
        %v2158 = vpop.f32.mrb[0].mxu0
        %v2159 = vadd.f32 0.0, %v2158
        %v2160 = vpop.f32.mrb[0].mxu0
        %v2161 = vpop.f32.mrb[0].mxu0
        %v2162 = vadd.f32 0.0, %v2161
        %v2163 = vpop.f32.mrb[0].mxu0
        %2164 = vmatprep.mubr.bf16.mxu0 0
        %2165 = vmatmul.mubr.bf16.gmra.mrb[0].mxu0 %v1953
        %v2166 = vpop.f32.mrb[0].mxu0
        %v2167 = vadd.f32 0.0, %v2166
        %v2168 = vpop.f32.mrb[0].mxu0
        %v2169 = vpop.f32.mrb[0].mxu0
        %v2170 = vadd.f32 0.0, %v2169
        %v2171 = vpop.f32.mrb[0].mxu0
        %2172 = vmatprep.mubr.bf16.mxu0 0
        %2173 = vmatmul.mubr.bf16.gmra.mrb[0].mxu0 %v1954
        %v2174 = vpop.f32.mrb[0].mxu0
        %v2175 = vadd.f32 0.0, %v2174
        %v2176 = vpop.f32.mrb[0].mxu0
        %v2177 = vpop.f32.mrb[0].mxu0
        %v2178 = vadd.f32 0.0, %v2177
        %v2179 = vpop.f32.mrb[0].mxu0
        %2180 = vdwg.mxu0
        %v2181 = vadd.f32 %v1875, %v2055
        %v2182 = vadd.f32 %v1876, %v2058
        %v2183 = vadd.f32 %v1877, %v2063
        %v2184 = vadd.f32 %v1878, %v2066
        %v2185 = vadd.f32 %v1879, %v2071
        %v2186 = vadd.f32 %v1880, %v2074
        %v2187 = vadd.f32 %v1881, %v2079
        %v2188 = vadd.f32 %v1882, %v2082
        %v2189 = vadd.f32 %v1883, %v2087
        %v2190 = vadd.f32 %v1884, %v2090
        %v2191 = vadd.f32 %v1885, %v2095
        %v2192 = vadd.f32 %v1886, %v2098
        %v2193 = vadd.f32 %v1887, %v2103
        %v2194 = vadd.f32 %v1888, %v2106
        %v2195 = vadd.f32 %v1889, %v2111
        %v2196 = vadd.f32 %v1890, %v2114
        %v2197 = vadd.f32 %v1891, %v2119
        %v2198 = vadd.f32 %v1892, %v2122
        %v2199 = vadd.f32 %v1893, %v2127
        %v2200 = vadd.f32 %v1894, %v2130
        %v2201 = vadd.f32 %v1895, %v2135
        %v2202 = vadd.f32 %v1896, %v2138
        %v2203 = vadd.f32 %v1897, %v2143
        %v2204 = vadd.f32 %v1898, %v2146
        %v2205 = vadd.f32 %v1899, %v2151
        %v2206 = vadd.f32 %v1900, %v2154
        %v2207 = vadd.f32 %v1901, %v2159
        %v2208 = vadd.f32 %v1902, %v2162
        %v2209 = vadd.f32 %v1903, %v2167
        %v2210 = vadd.f32 %v1904, %v2170
        %v2211 = vadd.f32 %v1905, %v2175
        %v2212 = vadd.f32 %v1906, %v2178
        %s2213 = scalar_lea.vmem [#allocation2], 48
        %v2214 = vld [vmem:[%s2213] sm:$0xff]
        %v2215 = vld [vmem:[%s2213 + $0x8] sm:$0xff]
        %v2216 = vld [vmem:[%s2213 + $0x18] sm:$0xff]
        %v2217 = vld [vmem:[%s2213 + $0x20] sm:$0xff]
        %v2218 = vld [vmem:[%s2213 + $0x30] sm:$0xff]
        %v2219 = vld [vmem:[%s2213 + $0x38] sm:$0xff]
        %v2220 = vld [vmem:[%s2213 + $0x48] sm:$0xff]
        %v2221 = vld [vmem:[%s2213 + $0x50] sm:$0xff]
        %v2222 = vld [vmem:[%s2213 + $0x60] sm:$0xff]
        %v2223 = vld [vmem:[%s2213 + $0x68] sm:$0xff]
        %v2224 = vld [vmem:[%s2213 + $0x78] sm:$0xff]
        %v2225 = vld [vmem:[%s2213 + $0x80] sm:$0xff]
        %v2226 = vld [vmem:[%s2213 + $0x90] sm:$0xff]
        %v2227 = vld [vmem:[%s2213 + $0x98] sm:$0xff]
        %v2228 = vld [vmem:[%s2213 + $0xa8] sm:$0xff]
        %v2229 = vld [vmem:[%s2213 + $0xb0] sm:$0xff]
        %v2230 = vld [vmem:[%s2213 + $0xc0] sm:$0xff]
        %v2231 = vld [vmem:[%s2213 + $0xc8] sm:$0xff]
        %v2232 = vld [vmem:[%s2213 + $0xd8] sm:$0xff]
        %v2233 = vld [vmem:[%s2213 + $0xe0] sm:$0xff]
        %v2234 = vld [vmem:[%s2213 + $0xf0] sm:$0xff]
        %v2235 = vld [vmem:[%s2213 + $0xf8] sm:$0xff]
        %v2236 = vld [vmem:[%s2213 + $0x108] sm:$0xff]
        %v2237 = vld [vmem:[%s2213 + $0x110] sm:$0xff]
        %v2238 = vld [vmem:[%s2213 + $0x120] sm:$0xff]
        %v2239 = vld [vmem:[%s2213 + $0x128] sm:$0xff]
        %v2240 = vld [vmem:[%s2213 + $0x138] sm:$0xff]
        %v2241 = vld [vmem:[%s2213 + $0x140] sm:$0xff]
        %v2242 = vld [vmem:[%s2213 + $0x150] sm:$0xff]
        %v2243 = vld [vmem:[%s2213 + $0x158] sm:$0xff]
        %v2244 = vld [vmem:[%s2213 + $0x168] sm:$0xff]
        %v2245 = vld [vmem:[%s2213 + $0x170] sm:$0xff]
        %v2246 = vpack.c.bf16 %v2215, %v2214
        %v2247 = vpack.c.bf16 %v2217, %v2216
        %v2248 = vpack.c.bf16 %v2219, %v2218
        %v2249 = vpack.c.bf16 %v2221, %v2220
        %v2250 = vpack.c.bf16 %v2223, %v2222
        %v2251 = vpack.c.bf16 %v2225, %v2224
        %v2252 = vpack.c.bf16 %v2227, %v2226
        %v2253 = vpack.c.bf16 %v2229, %v2228
        %v2254 = vpack.c.bf16 %v2231, %v2230
        %v2255 = vpack.c.bf16 %v2233, %v2232
        %v2256 = vpack.c.bf16 %v2235, %v2234
        %v2257 = vpack.c.bf16 %v2237, %v2236
        %v2258 = vpack.c.bf16 %v2239, %v2238
        %v2259 = vpack.c.bf16 %v2241, %v2240
        %v2260 = vpack.c.bf16 %v2243, %v2242
        %v2261 = vpack.c.bf16 %v2245, %v2244
        %s2262 = scalar_lea.vmem %s1, 384
        %v2263 = vld [vmem:[%s2262] sm:$0xf]
        %v2264 = vld [vmem:[%s2262 + $0x4] sm:$0xf]
        %v2265 = vld [vmem:[%s2262 + $0x8] sm:$0xf]
        %v2266 = vld [vmem:[%s2262 + $0xc] sm:$0xf]
        %v2267 = vld [vmem:[%s2262 + $0x10] sm:$0xf]
        %v2268 = vld [vmem:[%s2262 + $0x14] sm:$0xf]
        %v2269 = vld [vmem:[%s2262 + $0x18] sm:$0xf]
        %v2270 = vld [vmem:[%s2262 + $0x1c] sm:$0xf]
        %v2271 = vld [vmem:[%s2262 + $0x20] sm:$0xf]
        %v2272 = vld [vmem:[%s2262 + $0x24] sm:$0xf]
        %v2273 = vld [vmem:[%s2262 + $0x28] sm:$0xf]
        %v2274 = vld [vmem:[%s2262 + $0x2c] sm:$0xf]
        %v2275 = vld [vmem:[%s2262 + $0x30] sm:$0xf]
        %v2276 = vld [vmem:[%s2262 + $0x34] sm:$0xf]
        %v2277 = vld [vmem:[%s2262 + $0x38] sm:$0xf]
        %v2278 = vld [vmem:[%s2262 + $0x3c] sm:$0xf]
        %v2295 = vunpack.c.l.b16 %v2263
        %v2296 = vunpack.c.l.b16 %v2264
        %v2297 = vunpack.c.l.b16 %v2265
        %v2298 = vunpack.c.l.b16 %v2266
        %v2299 = vunpack.c.l.b16 %v2267
        %v2300 = vunpack.c.l.b16 %v2268
        %v2301 = vunpack.c.l.b16 %v2269
        %v2302 = vunpack.c.l.b16 %v2270
        %v2303 = vunpack.c.l.b16 %v2271
        %v2304 = vunpack.c.l.b16 %v2272
        %v2305 = vunpack.c.l.b16 %v2273
        %v2306 = vunpack.c.l.b16 %v2274
        %v2307 = vunpack.c.l.b16 %v2275
        %v2308 = vunpack.c.l.b16 %v2276
        %v2309 = vunpack.c.l.b16 %v2277
        %v2310 = vunpack.c.l.b16 %v2278
        %v2311 = vpack.c.b16 %v2296, %v2295
        %v2312 = vpack.c.b16 %v2298, %v2297
        %v2313 = vpack.c.b16 %v2300, %v2299
        %v2314 = vpack.c.b16 %v2302, %v2301
        %v2315 = vpack.c.b16 %v2304, %v2303
        %v2316 = vpack.c.b16 %v2306, %v2305
        %v2317 = vpack.c.b16 %v2308, %v2307
        %v2318 = vpack.c.b16 %v2310, %v2309
        %2327 = vmatprep.subr.bf16.mxu0 0
        %2328 = vmatpush1.bf16.msra.mxu0 %v2311
        %2329 = vmatprep.subr.bf16.mxu0 0
        %2330 = vmatpush1.bf16.msra.mxu0 %v2312
        %2331 = vmatprep.subr.bf16.mxu0 0
        %2332 = vmatpush1.bf16.msra.mxu0 %v2313
        %2333 = vmatprep.subr.bf16.mxu0 0
        %2334 = vmatpush1.bf16.msra.mxu0 %v2314
        %2335 = vmatprep.subr.bf16.mxu0 0
        %2336 = vmatpush1.bf16.msra.mxu0 %v2315
        %2337 = vmatprep.subr.bf16.mxu0 0
        %2338 = vmatpush1.bf16.msra.mxu0 %v2316
        %2339 = vmatprep.subr.bf16.mxu0 0
        %2340 = vmatpush1.bf16.msra.mxu0 %v2317
        %2341 = vmatprep.subr.bf16.mxu0 0
        %2342 = vmatpush1.bf16.msra.mxu0 %v2318
        %2343 = vmatprep.subr.bf16.mxu0 0
        %2344 = vmatpush1.bf16.msra.mxu0 0
        %2345 = vmatprep.subr.bf16.mxu0 0
        %2346 = vmatpush1.bf16.msra.mxu0 0
        %2347 = vmatprep.subr.bf16.mxu0 0
        %2348 = vmatpush1.bf16.msra.mxu0 0
        %2349 = vmatprep.subr.bf16.mxu0 0
        %2350 = vmatpush1.bf16.msra.mxu0 0
        %2351 = vmatprep.subr.bf16.mxu0 0
        %2352 = vmatpush1.bf16.msra.mxu0 0
        %2353 = vmatprep.subr.bf16.mxu0 0
        %2354 = vmatpush1.bf16.msra.mxu0 0
        %2355 = vmatprep.subr.bf16.mxu0 0
        %2356 = vmatpush1.bf16.msra.mxu0 0
        %2357 = vmatprep.subr.bf16.mxu0 0
        %2358 = vmatpush1.bf16.msra.mxu0 0
        %2359 = vmatprep.mubr.bf16.mxu0 0
        %2360 = vmatmul.mubr.bf16.gmra.mrb[0].mxu0 %v2246
        %v2361 = vpop.f32.mrb[0].mxu0
        %v2362 = vadd.f32 0.0, %v2361
        %v2363 = vpop.f32.mrb[0].mxu0
        %v2364 = vpop.f32.mrb[0].mxu0
        %v2365 = vadd.f32 0.0, %v2364
        %v2366 = vpop.f32.mrb[0].mxu0
        %2367 = vmatprep.mubr.bf16.mxu0 0
        %2368 = vmatmul.mubr.bf16.gmra.mrb[0].mxu0 %v2247
        %v2369 = vpop.f32.mrb[0].mxu0
        %v2370 = vadd.f32 0.0, %v2369
        %v2371 = vpop.f32.mrb[0].mxu0
        %v2372 = vpop.f32.mrb[0].mxu0
        %v2373 = vadd.f32 0.0, %v2372
        %v2374 = vpop.f32.mrb[0].mxu0
        %2375 = vmatprep.mubr.bf16.mxu0 0
        %2376 = vmatmul.mubr.bf16.gmra.mrb[0].mxu0 %v2248
        %v2377 = vpop.f32.mrb[0].mxu0
        %v2378 = vadd.f32 0.0, %v2377
        %v2379 = vpop.f32.mrb[0].mxu0
        %v2380 = vpop.f32.mrb[0].mxu0
        %v2381 = vadd.f32 0.0, %v2380
        %v2382 = vpop.f32.mrb[0].mxu0
        %2383 = vmatprep.mubr.bf16.mxu0 0
        %2384 = vmatmul.mubr.bf16.gmra.mrb[0].mxu0 %v2249
        %v2385 = vpop.f32.mrb[0].mxu0
        %v2386 = vadd.f32 0.0, %v2385
        %v2387 = vpop.f32.mrb[0].mxu0
        %v2388 = vpop.f32.mrb[0].mxu0
        %v2389 = vadd.f32 0.0, %v2388
        %v2390 = vpop.f32.mrb[0].mxu0
        %2391 = vmatprep.mubr.bf16.mxu0 0
        %2392 = vmatmul.mubr.bf16.gmra.mrb[0].mxu0 %v2250
        %v2393 = vpop.f32.mrb[0].mxu0
        %v2394 = vadd.f32 0.0, %v2393
        %v2395 = vpop.f32.mrb[0].mxu0
        %v2396 = vpop.f32.mrb[0].mxu0
        %v2397 = vadd.f32 0.0, %v2396
        %v2398 = vpop.f32.mrb[0].mxu0
        %2399 = vmatprep.mubr.bf16.mxu0 0
        %2400 = vmatmul.mubr.bf16.gmra.mrb[0].mxu0 %v2251
        %v2401 = vpop.f32.mrb[0].mxu0
        %v2402 = vadd.f32 0.0, %v2401
        %v2403 = vpop.f32.mrb[0].mxu0
        %v2404 = vpop.f32.mrb[0].mxu0
        %v2405 = vadd.f32 0.0, %v2404
        %v2406 = vpop.f32.mrb[0].mxu0
        %2407 = vmatprep.mubr.bf16.mxu0 0
        %2408 = vmatmul.mubr.bf16.gmra.mrb[0].mxu0 %v2252
        %v2409 = vpop.f32.mrb[0].mxu0
        %v2410 = vadd.f32 0.0, %v2409
        %v2411 = vpop.f32.mrb[0].mxu0
        %v2412 = vpop.f32.mrb[0].mxu0
        %v2413 = vadd.f32 0.0, %v2412
        %v2414 = vpop.f32.mrb[0].mxu0
        %2415 = vmatprep.mubr.bf16.mxu0 0
        %2416 = vmatmul.mubr.bf16.gmra.mrb[0].mxu0 %v2253
        %v2417 = vpop.f32.mrb[0].mxu0
        %v2418 = vadd.f32 0.0, %v2417
        %v2419 = vpop.f32.mrb[0].mxu0
        %v2420 = vpop.f32.mrb[0].mxu0
        %v2421 = vadd.f32 0.0, %v2420
        %v2422 = vpop.f32.mrb[0].mxu0
        %2423 = vmatprep.mubr.bf16.mxu0 0
        %2424 = vmatmul.mubr.bf16.gmra.mrb[0].mxu0 %v2254
        %v2425 = vpop.f32.mrb[0].mxu0
        %v2426 = vadd.f32 0.0, %v2425
        %v2427 = vpop.f32.mrb[0].mxu0
        %v2428 = vpop.f32.mrb[0].mxu0
        %v2429 = vadd.f32 0.0, %v2428
        %v2430 = vpop.f32.mrb[0].mxu0
        %2431 = vmatprep.mubr.bf16.mxu0 0
        %2432 = vmatmul.mubr.bf16.gmra.mrb[0].mxu0 %v2255
        %v2433 = vpop.f32.mrb[0].mxu0
        %v2434 = vadd.f32 0.0, %v2433
        %v2435 = vpop.f32.mrb[0].mxu0
        %v2436 = vpop.f32.mrb[0].mxu0
        %v2437 = vadd.f32 0.0, %v2436
        %v2438 = vpop.f32.mrb[0].mxu0
        %2439 = vmatprep.mubr.bf16.mxu0 0
        %2440 = vmatmul.mubr.bf16.gmra.mrb[0].mxu0 %v2256
        %v2441 = vpop.f32.mrb[0].mxu0
        %v2442 = vadd.f32 0.0, %v2441
        %v2443 = vpop.f32.mrb[0].mxu0
        %v2444 = vpop.f32.mrb[0].mxu0
        %v2445 = vadd.f32 0.0, %v2444
        %v2446 = vpop.f32.mrb[0].mxu0
        %2447 = vmatprep.mubr.bf16.mxu0 0
        %2448 = vmatmul.mubr.bf16.gmra.mrb[0].mxu0 %v2257
        %v2449 = vpop.f32.mrb[0].mxu0
        %v2450 = vadd.f32 0.0, %v2449
        %v2451 = vpop.f32.mrb[0].mxu0
        %v2452 = vpop.f32.mrb[0].mxu0
        %v2453 = vadd.f32 0.0, %v2452
        %v2454 = vpop.f32.mrb[0].mxu0
        %2455 = vmatprep.mubr.bf16.mxu0 0
        %2456 = vmatmul.mubr.bf16.gmra.mrb[0].mxu0 %v2258
        %v2457 = vpop.f32.mrb[0].mxu0
        %v2458 = vadd.f32 0.0, %v2457
        %v2459 = vpop.f32.mrb[0].mxu0
        %v2460 = vpop.f32.mrb[0].mxu0
        %v2461 = vadd.f32 0.0, %v2460
        %v2462 = vpop.f32.mrb[0].mxu0
        %2463 = vmatprep.mubr.bf16.mxu0 0
        %2464 = vmatmul.mubr.bf16.gmra.mrb[0].mxu0 %v2259
        %v2465 = vpop.f32.mrb[0].mxu0
        %v2466 = vadd.f32 0.0, %v2465
        %v2467 = vpop.f32.mrb[0].mxu0
        %v2468 = vpop.f32.mrb[0].mxu0
        %v2469 = vadd.f32 0.0, %v2468
        %v2470 = vpop.f32.mrb[0].mxu0
        %2471 = vmatprep.mubr.bf16.mxu0 0
        %2472 = vmatmul.mubr.bf16.gmra.mrb[0].mxu0 %v2260
        %v2473 = vpop.f32.mrb[0].mxu0
        %v2474 = vadd.f32 0.0, %v2473
        %v2475 = vpop.f32.mrb[0].mxu0
        %v2476 = vpop.f32.mrb[0].mxu0
        %v2477 = vadd.f32 0.0, %v2476
        %v2478 = vpop.f32.mrb[0].mxu0
        %2479 = vmatprep.mubr.bf16.mxu0 0
        %2480 = vmatmul.mubr.bf16.gmra.mrb[0].mxu0 %v2261
        %v2481 = vpop.f32.mrb[0].mxu0
        %v2482 = vadd.f32 0.0, %v2481
        %v2483 = vpop.f32.mrb[0].mxu0
        %v2484 = vpop.f32.mrb[0].mxu0
        %v2485 = vadd.f32 0.0, %v2484
        %v2486 = vpop.f32.mrb[0].mxu0
        %2487 = vdwg.mxu0
        %v2488 = vadd.f32 %v2181, %v2362
        %v2489 = vadd.f32 %v2182, %v2365
        %v2490 = vadd.f32 %v2183, %v2370
        %v2491 = vadd.f32 %v2184, %v2373
        %v2492 = vadd.f32 %v2185, %v2378
        %v2493 = vadd.f32 %v2186, %v2381
        %v2494 = vadd.f32 %v2187, %v2386
        %v2495 = vadd.f32 %v2188, %v2389
        %v2496 = vadd.f32 %v2189, %v2394
        %v2497 = vadd.f32 %v2190, %v2397
        %v2498 = vadd.f32 %v2191, %v2402
        %v2499 = vadd.f32 %v2192, %v2405
        %v2500 = vadd.f32 %v2193, %v2410
        %v2501 = vadd.f32 %v2194, %v2413
        %v2502 = vadd.f32 %v2195, %v2418
        %v2503 = vadd.f32 %v2196, %v2421
        %v2504 = vadd.f32 %v2197, %v2426
        %v2505 = vadd.f32 %v2198, %v2429
        %v2506 = vadd.f32 %v2199, %v2434
        %v2507 = vadd.f32 %v2200, %v2437
        %v2508 = vadd.f32 %v2201, %v2442
        %v2509 = vadd.f32 %v2202, %v2445
        %v2510 = vadd.f32 %v2203, %v2450
        %v2511 = vadd.f32 %v2204, %v2453
        %v2512 = vadd.f32 %v2205, %v2458
        %v2513 = vadd.f32 %v2206, %v2461
        %v2514 = vadd.f32 %v2207, %v2466
        %v2515 = vadd.f32 %v2208, %v2469
        %v2516 = vadd.f32 %v2209, %v2474
        %v2517 = vadd.f32 %v2210, %v2477
        %v2518 = vadd.f32 %v2211, %v2482
        %v2519 = vadd.f32 %v2212, %v2485
        %v2520 = vld [vmem:[%s2213 + $0x1] sm:$0xff]
        %v2521 = vld [vmem:[%s2213 + $0x9] sm:$0xff]
        %v2522 = vld [vmem:[%s2213 + $0x19] sm:$0xff]
        %v2523 = vld [vmem:[%s2213 + $0x21] sm:$0xff]
        %v2524 = vld [vmem:[%s2213 + $0x31] sm:$0xff]
        %v2525 = vld [vmem:[%s2213 + $0x39] sm:$0xff]
        %v2526 = vld [vmem:[%s2213 + $0x49] sm:$0xff]
        %v2527 = vld [vmem:[%s2213 + $0x51] sm:$0xff]
        %v2528 = vld [vmem:[%s2213 + $0x61] sm:$0xff]
        %v2529 = vld [vmem:[%s2213 + $0x69] sm:$0xff]
        %v2530 = vld [vmem:[%s2213 + $0x79] sm:$0xff]
        %v2531 = vld [vmem:[%s2213 + $0x81] sm:$0xff]
        %v2532 = vld [vmem:[%s2213 + $0x91] sm:$0xff]
        %v2533 = vld [vmem:[%s2213 + $0x99] sm:$0xff]
        %v2534 = vld [vmem:[%s2213 + $0xa9] sm:$0xff]
        %v2535 = vld [vmem:[%s2213 + $0xb1] sm:$0xff]
        %v2536 = vld [vmem:[%s2213 + $0xc1] sm:$0xff]
        %v2537 = vld [vmem:[%s2213 + $0xc9] sm:$0xff]
        %v2538 = vld [vmem:[%s2213 + $0xd9] sm:$0xff]
        %v2539 = vld [vmem:[%s2213 + $0xe1] sm:$0xff]
        %v2540 = vld [vmem:[%s2213 + $0xf1] sm:$0xff]
        %v2541 = vld [vmem:[%s2213 + $0xf9] sm:$0xff]
        %v2542 = vld [vmem:[%s2213 + $0x109] sm:$0xff]
        %v2543 = vld [vmem:[%s2213 + $0x111] sm:$0xff]
        %v2544 = vld [vmem:[%s2213 + $0x121] sm:$0xff]
        %v2545 = vld [vmem:[%s2213 + $0x129] sm:$0xff]
        %v2546 = vld [vmem:[%s2213 + $0x139] sm:$0xff]
        %v2547 = vld [vmem:[%s2213 + $0x141] sm:$0xff]
        %v2548 = vld [vmem:[%s2213 + $0x151] sm:$0xff]
        %v2549 = vld [vmem:[%s2213 + $0x159] sm:$0xff]
        %v2550 = vld [vmem:[%s2213 + $0x169] sm:$0xff]
        %v2551 = vld [vmem:[%s2213 + $0x171] sm:$0xff]
        %v2552 = vpack.c.bf16 %v2521, %v2520
        %v2553 = vpack.c.bf16 %v2523, %v2522
        %v2554 = vpack.c.bf16 %v2525, %v2524
        %v2555 = vpack.c.bf16 %v2527, %v2526
        %v2556 = vpack.c.bf16 %v2529, %v2528
        %v2557 = vpack.c.bf16 %v2531, %v2530
        %v2558 = vpack.c.bf16 %v2533, %v2532
        %v2559 = vpack.c.bf16 %v2535, %v2534
        %v2560 = vpack.c.bf16 %v2537, %v2536
        %v2561 = vpack.c.bf16 %v2539, %v2538
        %v2562 = vpack.c.bf16 %v2541, %v2540
        %v2563 = vpack.c.bf16 %v2543, %v2542
        %v2564 = vpack.c.bf16 %v2545, %v2544
        %v2565 = vpack.c.bf16 %v2547, %v2546
        %v2566 = vpack.c.bf16 %v2549, %v2548
        %v2567 = vpack.c.bf16 %v2551, %v2550
        %s2568 = scalar_lea.vmem %s1, 448
        %v2569 = vld [vmem:[%s2568] sm:$0xf]
        %v2570 = vld [vmem:[%s2568 + $0x4] sm:$0xf]
        %v2571 = vld [vmem:[%s2568 + $0x8] sm:$0xf]
        %v2572 = vld [vmem:[%s2568 + $0xc] sm:$0xf]
        %v2573 = vld [vmem:[%s2568 + $0x10] sm:$0xf]
        %v2574 = vld [vmem:[%s2568 + $0x14] sm:$0xf]
        %v2575 = vld [vmem:[%s2568 + $0x18] sm:$0xf]
        %v2576 = vld [vmem:[%s2568 + $0x1c] sm:$0xf]
        %v2577 = vld [vmem:[%s2568 + $0x20] sm:$0xf]
        %v2578 = vld [vmem:[%s2568 + $0x24] sm:$0xf]
        %v2579 = vld [vmem:[%s2568 + $0x28] sm:$0xf]
        %v2580 = vld [vmem:[%s2568 + $0x2c] sm:$0xf]
        %v2581 = vld [vmem:[%s2568 + $0x30] sm:$0xf]
        %v2582 = vld [vmem:[%s2568 + $0x34] sm:$0xf]
        %v2583 = vld [vmem:[%s2568 + $0x38] sm:$0xf]
        %v2584 = vld [vmem:[%s2568 + $0x3c] sm:$0xf]
        %v2601 = vunpack.c.l.b16 %v2569
        %v2602 = vunpack.c.l.b16 %v2570
        %v2603 = vunpack.c.l.b16 %v2571
        %v2604 = vunpack.c.l.b16 %v2572
        %v2605 = vunpack.c.l.b16 %v2573
        %v2606 = vunpack.c.l.b16 %v2574
        %v2607 = vunpack.c.l.b16 %v2575
        %v2608 = vunpack.c.l.b16 %v2576
        %v2609 = vunpack.c.l.b16 %v2577
        %v2610 = vunpack.c.l.b16 %v2578
        %v2611 = vunpack.c.l.b16 %v2579
        %v2612 = vunpack.c.l.b16 %v2580
        %v2613 = vunpack.c.l.b16 %v2581
        %v2614 = vunpack.c.l.b16 %v2582
        %v2615 = vunpack.c.l.b16 %v2583
        %v2616 = vunpack.c.l.b16 %v2584
        %v2617 = vpack.c.b16 %v2602, %v2601
        %v2618 = vpack.c.b16 %v2604, %v2603
        %v2619 = vpack.c.b16 %v2606, %v2605
        %v2620 = vpack.c.b16 %v2608, %v2607
        %v2621 = vpack.c.b16 %v2610, %v2609
        %v2622 = vpack.c.b16 %v2612, %v2611
        %v2623 = vpack.c.b16 %v2614, %v2613
        %v2624 = vpack.c.b16 %v2616, %v2615
        %2633 = vmatprep.subr.bf16.mxu0 0
        %2634 = vmatpush1.bf16.msra.mxu0 %v2617
        %2635 = vmatprep.subr.bf16.mxu0 0
        %2636 = vmatpush1.bf16.msra.mxu0 %v2618
        %2637 = vmatprep.subr.bf16.mxu0 0
        %2638 = vmatpush1.bf16.msra.mxu0 %v2619
        %2639 = vmatprep.subr.bf16.mxu0 0
        %2640 = vmatpush1.bf16.msra.mxu0 %v2620
        %2641 = vmatprep.subr.bf16.mxu0 0
        %2642 = vmatpush1.bf16.msra.mxu0 %v2621
        %2643 = vmatprep.subr.bf16.mxu0 0
        %2644 = vmatpush1.bf16.msra.mxu0 %v2622
        %2645 = vmatprep.subr.bf16.mxu0 0
        %2646 = vmatpush1.bf16.msra.mxu0 %v2623
        %2647 = vmatprep.subr.bf16.mxu0 0
        %2648 = vmatpush1.bf16.msra.mxu0 %v2624
        %2649 = vmatprep.subr.bf16.mxu0 0
        %2650 = vmatpush1.bf16.msra.mxu0 0
        %2651 = vmatprep.subr.bf16.mxu0 0
        %2652 = vmatpush1.bf16.msra.mxu0 0
        %2653 = vmatprep.subr.bf16.mxu0 0
        %2654 = vmatpush1.bf16.msra.mxu0 0
        %2655 = vmatprep.subr.bf16.mxu0 0
        %2656 = vmatpush1.bf16.msra.mxu0 0
        %2657 = vmatprep.subr.bf16.mxu0 0
        %2658 = vmatpush1.bf16.msra.mxu0 0
        %2659 = vmatprep.subr.bf16.mxu0 0
        %2660 = vmatpush1.bf16.msra.mxu0 0
        %2661 = vmatprep.subr.bf16.mxu0 0
        %2662 = vmatpush1.bf16.msra.mxu0 0
        %2663 = vmatprep.subr.bf16.mxu0 0
        %2664 = vmatpush1.bf16.msra.mxu0 0
        %2665 = vmatprep.mubr.bf16.mxu0 0
        %2666 = vmatmul.mubr.bf16.gmra.mrb[0].mxu0 %v2552
        %v2667 = vpop.f32.mrb[0].mxu0
        %v2668 = vadd.f32 0.0, %v2667
        %v2669 = vpop.f32.mrb[0].mxu0
        %v2670 = vpop.f32.mrb[0].mxu0
        %v2671 = vadd.f32 0.0, %v2670
        %v2672 = vpop.f32.mrb[0].mxu0
        %2673 = vmatprep.mubr.bf16.mxu0 0
        %2674 = vmatmul.mubr.bf16.gmra.mrb[0].mxu0 %v2553
        %v2675 = vpop.f32.mrb[0].mxu0
        %v2676 = vadd.f32 0.0, %v2675
        %v2677 = vpop.f32.mrb[0].mxu0
        %v2678 = vpop.f32.mrb[0].mxu0
        %v2679 = vadd.f32 0.0, %v2678
        %v2680 = vpop.f32.mrb[0].mxu0
        %2681 = vmatprep.mubr.bf16.mxu0 0
        %2682 = vmatmul.mubr.bf16.gmra.mrb[0].mxu0 %v2554
        %v2683 = vpop.f32.mrb[0].mxu0
        %v2684 = vadd.f32 0.0, %v2683
        %v2685 = vpop.f32.mrb[0].mxu0
        %v2686 = vpop.f32.mrb[0].mxu0
        %v2687 = vadd.f32 0.0, %v2686
        %v2688 = vpop.f32.mrb[0].mxu0
        %2689 = vmatprep.mubr.bf16.mxu0 0
        %2690 = vmatmul.mubr.bf16.gmra.mrb[0].mxu0 %v2555
        %v2691 = vpop.f32.mrb[0].mxu0
        %v2692 = vadd.f32 0.0, %v2691
        %v2693 = vpop.f32.mrb[0].mxu0
        %v2694 = vpop.f32.mrb[0].mxu0
        %v2695 = vadd.f32 0.0, %v2694
        %v2696 = vpop.f32.mrb[0].mxu0
        %2697 = vmatprep.mubr.bf16.mxu0 0
        %2698 = vmatmul.mubr.bf16.gmra.mrb[0].mxu0 %v2556
        %v2699 = vpop.f32.mrb[0].mxu0
        %v2700 = vadd.f32 0.0, %v2699
        %v2701 = vpop.f32.mrb[0].mxu0
        %v2702 = vpop.f32.mrb[0].mxu0
        %v2703 = vadd.f32 0.0, %v2702
        %v2704 = vpop.f32.mrb[0].mxu0
        %2705 = vmatprep.mubr.bf16.mxu0 0
        %2706 = vmatmul.mubr.bf16.gmra.mrb[0].mxu0 %v2557
        %v2707 = vpop.f32.mrb[0].mxu0
        %v2708 = vadd.f32 0.0, %v2707
        %v2709 = vpop.f32.mrb[0].mxu0
        %v2710 = vpop.f32.mrb[0].mxu0
        %v2711 = vadd.f32 0.0, %v2710
        %v2712 = vpop.f32.mrb[0].mxu0
        %2713 = vmatprep.mubr.bf16.mxu0 0
        %2714 = vmatmul.mubr.bf16.gmra.mrb[0].mxu0 %v2558
        %v2715 = vpop.f32.mrb[0].mxu0
        %v2716 = vadd.f32 0.0, %v2715
        %v2717 = vpop.f32.mrb[0].mxu0
        %v2718 = vpop.f32.mrb[0].mxu0
        %v2719 = vadd.f32 0.0, %v2718
        %v2720 = vpop.f32.mrb[0].mxu0
        %2721 = vmatprep.mubr.bf16.mxu0 0
        %2722 = vmatmul.mubr.bf16.gmra.mrb[0].mxu0 %v2559
        %v2723 = vpop.f32.mrb[0].mxu0
        %v2724 = vadd.f32 0.0, %v2723
        %v2725 = vpop.f32.mrb[0].mxu0
        %v2726 = vpop.f32.mrb[0].mxu0
        %v2727 = vadd.f32 0.0, %v2726
        %v2728 = vpop.f32.mrb[0].mxu0
        %2729 = vmatprep.mubr.bf16.mxu0 0
        %2730 = vmatmul.mubr.bf16.gmra.mrb[0].mxu0 %v2560
        %v2731 = vpop.f32.mrb[0].mxu0
        %v2732 = vadd.f32 0.0, %v2731
        %v2733 = vpop.f32.mrb[0].mxu0
        %v2734 = vpop.f32.mrb[0].mxu0
        %v2735 = vadd.f32 0.0, %v2734
        %v2736 = vpop.f32.mrb[0].mxu0
        %2737 = vmatprep.mubr.bf16.mxu0 0
        %2738 = vmatmul.mubr.bf16.gmra.mrb[0].mxu0 %v2561
        %v2739 = vpop.f32.mrb[0].mxu0
        %v2740 = vadd.f32 0.0, %v2739
        %v2741 = vpop.f32.mrb[0].mxu0
        %v2742 = vpop.f32.mrb[0].mxu0
        %v2743 = vadd.f32 0.0, %v2742
        %v2744 = vpop.f32.mrb[0].mxu0
        %2745 = vmatprep.mubr.bf16.mxu0 0
        %2746 = vmatmul.mubr.bf16.gmra.mrb[0].mxu0 %v2562
        %v2747 = vpop.f32.mrb[0].mxu0
        %v2748 = vadd.f32 0.0, %v2747
        %v2749 = vpop.f32.mrb[0].mxu0
        %v2750 = vpop.f32.mrb[0].mxu0
        %v2751 = vadd.f32 0.0, %v2750
        %v2752 = vpop.f32.mrb[0].mxu0
        %2753 = vmatprep.mubr.bf16.mxu0 0
        %2754 = vmatmul.mubr.bf16.gmra.mrb[0].mxu0 %v2563
        %v2755 = vpop.f32.mrb[0].mxu0
        %v2756 = vadd.f32 0.0, %v2755
        %v2757 = vpop.f32.mrb[0].mxu0
        %v2758 = vpop.f32.mrb[0].mxu0
        %v2759 = vadd.f32 0.0, %v2758
        %v2760 = vpop.f32.mrb[0].mxu0
        %2761 = vmatprep.mubr.bf16.mxu0 0
        %2762 = vmatmul.mubr.bf16.gmra.mrb[0].mxu0 %v2564
        %v2763 = vpop.f32.mrb[0].mxu0
        %v2764 = vadd.f32 0.0, %v2763
        %v2765 = vpop.f32.mrb[0].mxu0
        %v2766 = vpop.f32.mrb[0].mxu0
        %v2767 = vadd.f32 0.0, %v2766
        %v2768 = vpop.f32.mrb[0].mxu0
        %2769 = vmatprep.mubr.bf16.mxu0 0
        %2770 = vmatmul.mubr.bf16.gmra.mrb[0].mxu0 %v2565
        %v2771 = vpop.f32.mrb[0].mxu0
        %v2772 = vadd.f32 0.0, %v2771
        %v2773 = vpop.f32.mrb[0].mxu0
        %v2774 = vpop.f32.mrb[0].mxu0
        %v2775 = vadd.f32 0.0, %v2774
        %v2776 = vpop.f32.mrb[0].mxu0
        %2777 = vmatprep.mubr.bf16.mxu0 0
        %2778 = vmatmul.mubr.bf16.gmra.mrb[0].mxu0 %v2566
        %v2779 = vpop.f32.mrb[0].mxu0
        %v2780 = vadd.f32 0.0, %v2779
        %v2781 = vpop.f32.mrb[0].mxu0
        %v2782 = vpop.f32.mrb[0].mxu0
        %v2783 = vadd.f32 0.0, %v2782
        %v2784 = vpop.f32.mrb[0].mxu0
        %2785 = vmatprep.mubr.bf16.mxu0 0
        %2786 = vmatmul.mubr.bf16.gmra.mrb[0].mxu0 %v2567
        %v2787 = vpop.f32.mrb[0].mxu0
        %v2788 = vadd.f32 0.0, %v2787
        %v2789 = vpop.f32.mrb[0].mxu0
        %v2790 = vpop.f32.mrb[0].mxu0
        %v2791 = vadd.f32 0.0, %v2790
        %v2792 = vpop.f32.mrb[0].mxu0
        %2793 = vdwg.mxu0
        %v2794 = vadd.f32 %v2488, %v2668
        %v2795 = vadd.f32 %v2489, %v2671
        %v2796 = vadd.f32 %v2490, %v2676
        %v2797 = vadd.f32 %v2491, %v2679
        %v2798 = vadd.f32 %v2492, %v2684
        %v2799 = vadd.f32 %v2493, %v2687
        %v2800 = vadd.f32 %v2494, %v2692
        %v2801 = vadd.f32 %v2495, %v2695
        %v2802 = vadd.f32 %v2496, %v2700
        %v2803 = vadd.f32 %v2497, %v2703
        %v2804 = vadd.f32 %v2498, %v2708
        %v2805 = vadd.f32 %v2499, %v2711
        %v2806 = vadd.f32 %v2500, %v2716
        %v2807 = vadd.f32 %v2501, %v2719
        %v2808 = vadd.f32 %v2502, %v2724
        %v2809 = vadd.f32 %v2503, %v2727
        %v2810 = vadd.f32 %v2504, %v2732
        %v2811 = vadd.f32 %v2505, %v2735
        %v2812 = vadd.f32 %v2506, %v2740
        %v2813 = vadd.f32 %v2507, %v2743
        %v2814 = vadd.f32 %v2508, %v2748
        %v2815 = vadd.f32 %v2509, %v2751
        %v2816 = vadd.f32 %v2510, %v2756
        %v2817 = vadd.f32 %v2511, %v2759
        %v2818 = vadd.f32 %v2512, %v2764
        %v2819 = vadd.f32 %v2513, %v2767
        %v2820 = vadd.f32 %v2514, %v2772
        %v2821 = vadd.f32 %v2515, %v2775
        %v2822 = vadd.f32 %v2516, %v2780
        %v2823 = vadd.f32 %v2517, %v2783
        %v2824 = vadd.f32 %v2518, %v2788
        %v2825 = vadd.f32 %v2519, %v2791
        %v2826 = vld [vmem:[%s2213 + $0x2] sm:$0xff]
        %v2827 = vld [vmem:[%s2213 + $0xa] sm:$0xff]
        %v2828 = vld [vmem:[%s2213 + $0x1a] sm:$0xff]
        %v2829 = vld [vmem:[%s2213 + $0x22] sm:$0xff]
        %v2830 = vld [vmem:[%s2213 + $0x32] sm:$0xff]
        %v2831 = vld [vmem:[%s2213 + $0x3a] sm:$0xff]
        %v2832 = vld [vmem:[%s2213 + $0x4a] sm:$0xff]
        %v2833 = vld [vmem:[%s2213 + $0x52] sm:$0xff]
        %v2834 = vld [vmem:[%s2213 + $0x62] sm:$0xff]
        %v2835 = vld [vmem:[%s2213 + $0x6a] sm:$0xff]
        %v2836 = vld [vmem:[%s2213 + $0x7a] sm:$0xff]
        %v2837 = vld [vmem:[%s2213 + $0x82] sm:$0xff]
        %v2838 = vld [vmem:[%s2213 + $0x92] sm:$0xff]
        %v2839 = vld [vmem:[%s2213 + $0x9a] sm:$0xff]
        %v2840 = vld [vmem:[%s2213 + $0xaa] sm:$0xff]
        %v2841 = vld [vmem:[%s2213 + $0xb2] sm:$0xff]
        %v2842 = vld [vmem:[%s2213 + $0xc2] sm:$0xff]
        %v2843 = vld [vmem:[%s2213 + $0xca] sm:$0xff]
        %v2844 = vld [vmem:[%s2213 + $0xda] sm:$0xff]
        %v2845 = vld [vmem:[%s2213 + $0xe2] sm:$0xff]
        %v2846 = vld [vmem:[%s2213 + $0xf2] sm:$0xff]
        %v2847 = vld [vmem:[%s2213 + $0xfa] sm:$0xff]
        %v2848 = vld [vmem:[%s2213 + $0x10a] sm:$0xff]
        %v2849 = vld [vmem:[%s2213 + $0x112] sm:$0xff]
        %v2850 = vld [vmem:[%s2213 + $0x122] sm:$0xff]
        %v2851 = vld [vmem:[%s2213 + $0x12a] sm:$0xff]
        %v2852 = vld [vmem:[%s2213 + $0x13a] sm:$0xff]
        %v2853 = vld [vmem:[%s2213 + $0x142] sm:$0xff]
        %v2854 = vld [vmem:[%s2213 + $0x152] sm:$0xff]
        %v2855 = vld [vmem:[%s2213 + $0x15a] sm:$0xff]
        %v2856 = vld [vmem:[%s2213 + $0x16a] sm:$0xff]
        %v2857 = vld [vmem:[%s2213 + $0x172] sm:$0xff]
        %v2858 = vpack.c.bf16 %v2827, %v2826
        %v2859 = vpack.c.bf16 %v2829, %v2828
        %v2860 = vpack.c.bf16 %v2831, %v2830
        %v2861 = vpack.c.bf16 %v2833, %v2832
        %v2862 = vpack.c.bf16 %v2835, %v2834
        %v2863 = vpack.c.bf16 %v2837, %v2836
        %v2864 = vpack.c.bf16 %v2839, %v2838
        %v2865 = vpack.c.bf16 %v2841, %v2840
        %v2866 = vpack.c.bf16 %v2843, %v2842
        %v2867 = vpack.c.bf16 %v2845, %v2844
        %v2868 = vpack.c.bf16 %v2847, %v2846
        %v2869 = vpack.c.bf16 %v2849, %v2848
        %v2870 = vpack.c.bf16 %v2851, %v2850
        %v2871 = vpack.c.bf16 %v2853, %v2852
        %v2872 = vpack.c.bf16 %v2855, %v2854
        %v2873 = vpack.c.bf16 %v2857, %v2856
        %s2874 = scalar_lea.vmem %s1, 512
        %v2875 = vld [vmem:[%s2874] sm:$0xf]
        %v2876 = vld [vmem:[%s2874 + $0x4] sm:$0xf]
        %v2877 = vld [vmem:[%s2874 + $0x8] sm:$0xf]
        %v2878 = vld [vmem:[%s2874 + $0xc] sm:$0xf]
        %v2879 = vld [vmem:[%s2874 + $0x10] sm:$0xf]
        %v2880 = vld [vmem:[%s2874 + $0x14] sm:$0xf]
        %v2881 = vld [vmem:[%s2874 + $0x18] sm:$0xf]
        %v2882 = vld [vmem:[%s2874 + $0x1c] sm:$0xf]
        %v2883 = vld [vmem:[%s2874 + $0x20] sm:$0xf]
        %v2884 = vld [vmem:[%s2874 + $0x24] sm:$0xf]
        %v2885 = vld [vmem:[%s2874 + $0x28] sm:$0xf]
        %v2886 = vld [vmem:[%s2874 + $0x2c] sm:$0xf]
        %v2887 = vld [vmem:[%s2874 + $0x30] sm:$0xf]
        %v2888 = vld [vmem:[%s2874 + $0x34] sm:$0xf]
        %v2889 = vld [vmem:[%s2874 + $0x38] sm:$0xf]
        %v2890 = vld [vmem:[%s2874 + $0x3c] sm:$0xf]
        %v2907 = vunpack.c.l.b16 %v2875
        %v2908 = vunpack.c.l.b16 %v2876
        %v2909 = vunpack.c.l.b16 %v2877
        %v2910 = vunpack.c.l.b16 %v2878
        %v2911 = vunpack.c.l.b16 %v2879
        %v2912 = vunpack.c.l.b16 %v2880
        %v2913 = vunpack.c.l.b16 %v2881
        %v2914 = vunpack.c.l.b16 %v2882
        %v2915 = vunpack.c.l.b16 %v2883
        %v2916 = vunpack.c.l.b16 %v2884
        %v2917 = vunpack.c.l.b16 %v2885
        %v2918 = vunpack.c.l.b16 %v2886
        %v2919 = vunpack.c.l.b16 %v2887
        %v2920 = vunpack.c.l.b16 %v2888
        %v2921 = vunpack.c.l.b16 %v2889
        %v2922 = vunpack.c.l.b16 %v2890
        %v2923 = vpack.c.b16 %v2908, %v2907
        %v2924 = vpack.c.b16 %v2910, %v2909
        %v2925 = vpack.c.b16 %v2912, %v2911
        %v2926 = vpack.c.b16 %v2914, %v2913
        %v2927 = vpack.c.b16 %v2916, %v2915
        %v2928 = vpack.c.b16 %v2918, %v2917
        %v2929 = vpack.c.b16 %v2920, %v2919
        %v2930 = vpack.c.b16 %v2922, %v2921
        %2939 = vmatprep.subr.bf16.mxu0 0
        %2940 = vmatpush1.bf16.msra.mxu0 %v2923
        %2941 = vmatprep.subr.bf16.mxu0 0
        %2942 = vmatpush1.bf16.msra.mxu0 %v2924
        %2943 = vmatprep.subr.bf16.mxu0 0
        %2944 = vmatpush1.bf16.msra.mxu0 %v2925
        %2945 = vmatprep.subr.bf16.mxu0 0
        %2946 = vmatpush1.bf16.msra.mxu0 %v2926
        %2947 = vmatprep.subr.bf16.mxu0 0
        %2948 = vmatpush1.bf16.msra.mxu0 %v2927
        %2949 = vmatprep.subr.bf16.mxu0 0
        %2950 = vmatpush1.bf16.msra.mxu0 %v2928
        %2951 = vmatprep.subr.bf16.mxu0 0
        %2952 = vmatpush1.bf16.msra.mxu0 %v2929
        %2953 = vmatprep.subr.bf16.mxu0 0
        %2954 = vmatpush1.bf16.msra.mxu0 %v2930
        %2955 = vmatprep.subr.bf16.mxu0 0
        %2956 = vmatpush1.bf16.msra.mxu0 0
        %2957 = vmatprep.subr.bf16.mxu0 0
        %2958 = vmatpush1.bf16.msra.mxu0 0
        %2959 = vmatprep.subr.bf16.mxu0 0
        %2960 = vmatpush1.bf16.msra.mxu0 0
        %2961 = vmatprep.subr.bf16.mxu0 0
        %2962 = vmatpush1.bf16.msra.mxu0 0
        %2963 = vmatprep.subr.bf16.mxu0 0
        %2964 = vmatpush1.bf16.msra.mxu0 0
        %2965 = vmatprep.subr.bf16.mxu0 0
        %2966 = vmatpush1.bf16.msra.mxu0 0
        %2967 = vmatprep.subr.bf16.mxu0 0
        %2968 = vmatpush1.bf16.msra.mxu0 0
        %2969 = vmatprep.subr.bf16.mxu0 0
        %2970 = vmatpush1.bf16.msra.mxu0 0
        %2971 = vmatprep.mubr.bf16.mxu0 0
        %2972 = vmatmul.mubr.bf16.gmra.mrb[0].mxu0 %v2858
        %v2973 = vpop.f32.mrb[0].mxu0
        %v2974 = vadd.f32 0.0, %v2973
        %v2975 = vpop.f32.mrb[0].mxu0
        %v2976 = vpop.f32.mrb[0].mxu0
        %v2977 = vadd.f32 0.0, %v2976
        %v2978 = vpop.f32.mrb[0].mxu0
        %2979 = vmatprep.mubr.bf16.mxu0 0
        %2980 = vmatmul.mubr.bf16.gmra.mrb[0].mxu0 %v2859
        %v2981 = vpop.f32.mrb[0].mxu0
        %v2982 = vadd.f32 0.0, %v2981
        %v2983 = vpop.f32.mrb[0].mxu0
        %v2984 = vpop.f32.mrb[0].mxu0
        %v2985 = vadd.f32 0.0, %v2984
        %v2986 = vpop.f32.mrb[0].mxu0
        %2987 = vmatprep.mubr.bf16.mxu0 0
        %2988 = vmatmul.mubr.bf16.gmra.mrb[0].mxu0 %v2860
        %v2989 = vpop.f32.mrb[0].mxu0
        %v2990 = vadd.f32 0.0, %v2989
        %v2991 = vpop.f32.mrb[0].mxu0
        %v2992 = vpop.f32.mrb[0].mxu0
        %v2993 = vadd.f32 0.0, %v2992
        %v2994 = vpop.f32.mrb[0].mxu0
        %2995 = vmatprep.mubr.bf16.mxu0 0
        %2996 = vmatmul.mubr.bf16.gmra.mrb[0].mxu0 %v2861
        %v2997 = vpop.f32.mrb[0].mxu0
        %v2998 = vadd.f32 0.0, %v2997
        %v2999 = vpop.f32.mrb[0].mxu0
        %v3000 = vpop.f32.mrb[0].mxu0
        %v3001 = vadd.f32 0.0, %v3000
        %v3002 = vpop.f32.mrb[0].mxu0
        %3003 = vmatprep.mubr.bf16.mxu0 0
        %3004 = vmatmul.mubr.bf16.gmra.mrb[0].mxu0 %v2862
        %v3005 = vpop.f32.mrb[0].mxu0
        %v3006 = vadd.f32 0.0, %v3005
        %v3007 = vpop.f32.mrb[0].mxu0
        %v3008 = vpop.f32.mrb[0].mxu0
        %v3009 = vadd.f32 0.0, %v3008
        %v3010 = vpop.f32.mrb[0].mxu0
        %3011 = vmatprep.mubr.bf16.mxu0 0
        %3012 = vmatmul.mubr.bf16.gmra.mrb[0].mxu0 %v2863
        %v3013 = vpop.f32.mrb[0].mxu0
        %v3014 = vadd.f32 0.0, %v3013
        %v3015 = vpop.f32.mrb[0].mxu0
        %v3016 = vpop.f32.mrb[0].mxu0
        %v3017 = vadd.f32 0.0, %v3016
        %v3018 = vpop.f32.mrb[0].mxu0
        %3019 = vmatprep.mubr.bf16.mxu0 0
        %3020 = vmatmul.mubr.bf16.gmra.mrb[0].mxu0 %v2864
        %v3021 = vpop.f32.mrb[0].mxu0
        %v3022 = vadd.f32 0.0, %v3021
        %v3023 = vpop.f32.mrb[0].mxu0
        %v3024 = vpop.f32.mrb[0].mxu0
        %v3025 = vadd.f32 0.0, %v3024
        %v3026 = vpop.f32.mrb[0].mxu0
        %3027 = vmatprep.mubr.bf16.mxu0 0
        %3028 = vmatmul.mubr.bf16.gmra.mrb[0].mxu0 %v2865
        %v3029 = vpop.f32.mrb[0].mxu0
        %v3030 = vadd.f32 0.0, %v3029
        %v3031 = vpop.f32.mrb[0].mxu0
        %v3032 = vpop.f32.mrb[0].mxu0
        %v3033 = vadd.f32 0.0, %v3032
        %v3034 = vpop.f32.mrb[0].mxu0
        %3035 = vmatprep.mubr.bf16.mxu0 0
        %3036 = vmatmul.mubr.bf16.gmra.mrb[0].mxu0 %v2866
        %v3037 = vpop.f32.mrb[0].mxu0
        %v3038 = vadd.f32 0.0, %v3037
        %v3039 = vpop.f32.mrb[0].mxu0
        %v3040 = vpop.f32.mrb[0].mxu0
        %v3041 = vadd.f32 0.0, %v3040
        %v3042 = vpop.f32.mrb[0].mxu0
        %3043 = vmatprep.mubr.bf16.mxu0 0
        %3044 = vmatmul.mubr.bf16.gmra.mrb[0].mxu0 %v2867
        %v3045 = vpop.f32.mrb[0].mxu0
        %v3046 = vadd.f32 0.0, %v3045
        %v3047 = vpop.f32.mrb[0].mxu0
        %v3048 = vpop.f32.mrb[0].mxu0
        %v3049 = vadd.f32 0.0, %v3048
        %v3050 = vpop.f32.mrb[0].mxu0
        %3051 = vmatprep.mubr.bf16.mxu0 0
        %3052 = vmatmul.mubr.bf16.gmra.mrb[0].mxu0 %v2868
        %v3053 = vpop.f32.mrb[0].mxu0
        %v3054 = vadd.f32 0.0, %v3053
        %v3055 = vpop.f32.mrb[0].mxu0
        %v3056 = vpop.f32.mrb[0].mxu0
        %v3057 = vadd.f32 0.0, %v3056
        %v3058 = vpop.f32.mrb[0].mxu0
        %3059 = vmatprep.mubr.bf16.mxu0 0
        %3060 = vmatmul.mubr.bf16.gmra.mrb[0].mxu0 %v2869
        %v3061 = vpop.f32.mrb[0].mxu0
        %v3062 = vadd.f32 0.0, %v3061
        %v3063 = vpop.f32.mrb[0].mxu0
        %v3064 = vpop.f32.mrb[0].mxu0
        %v3065 = vadd.f32 0.0, %v3064
        %v3066 = vpop.f32.mrb[0].mxu0
        %3067 = vmatprep.mubr.bf16.mxu0 0
        %3068 = vmatmul.mubr.bf16.gmra.mrb[0].mxu0 %v2870
        %v3069 = vpop.f32.mrb[0].mxu0
        %v3070 = vadd.f32 0.0, %v3069
        %v3071 = vpop.f32.mrb[0].mxu0
        %v3072 = vpop.f32.mrb[0].mxu0
        %v3073 = vadd.f32 0.0, %v3072
        %v3074 = vpop.f32.mrb[0].mxu0
        %3075 = vmatprep.mubr.bf16.mxu0 0
        %3076 = vmatmul.mubr.bf16.gmra.mrb[0].mxu0 %v2871
        %v3077 = vpop.f32.mrb[0].mxu0
        %v3078 = vadd.f32 0.0, %v3077
        %v3079 = vpop.f32.mrb[0].mxu0
        %v3080 = vpop.f32.mrb[0].mxu0
        %v3081 = vadd.f32 0.0, %v3080
        %v3082 = vpop.f32.mrb[0].mxu0
        %3083 = vmatprep.mubr.bf16.mxu0 0
        %3084 = vmatmul.mubr.bf16.gmra.mrb[0].mxu0 %v2872
        %v3085 = vpop.f32.mrb[0].mxu0
        %v3086 = vadd.f32 0.0, %v3085
        %v3087 = vpop.f32.mrb[0].mxu0
        %v3088 = vpop.f32.mrb[0].mxu0
        %v3089 = vadd.f32 0.0, %v3088
        %v3090 = vpop.f32.mrb[0].mxu0
        %3091 = vmatprep.mubr.bf16.mxu0 0
        %3092 = vmatmul.mubr.bf16.gmra.mrb[0].mxu0 %v2873
        %v3093 = vpop.f32.mrb[0].mxu0
        %v3094 = vadd.f32 0.0, %v3093
        %v3095 = vpop.f32.mrb[0].mxu0
        %v3096 = vpop.f32.mrb[0].mxu0
        %v3097 = vadd.f32 0.0, %v3096
        %v3098 = vpop.f32.mrb[0].mxu0
        %3099 = vdwg.mxu0
        %v3100 = vadd.f32 %v2794, %v2974
        %v3101 = vadd.f32 %v2795, %v2977
        %v3102 = vadd.f32 %v2796, %v2982
        %v3103 = vadd.f32 %v2797, %v2985
        %v3104 = vadd.f32 %v2798, %v2990
        %v3105 = vadd.f32 %v2799, %v2993
        %v3106 = vadd.f32 %v2800, %v2998
        %v3107 = vadd.f32 %v2801, %v3001
        %v3108 = vadd.f32 %v2802, %v3006
        %v3109 = vadd.f32 %v2803, %v3009
        %v3110 = vadd.f32 %v2804, %v3014
        %v3111 = vadd.f32 %v2805, %v3017
        %v3112 = vadd.f32 %v2806, %v3022
        %v3113 = vadd.f32 %v2807, %v3025
        %v3114 = vadd.f32 %v2808, %v3030
        %v3115 = vadd.f32 %v2809, %v3033
        %v3116 = vadd.f32 %v2810, %v3038
        %v3117 = vadd.f32 %v2811, %v3041
        %v3118 = vadd.f32 %v2812, %v3046
        %v3119 = vadd.f32 %v2813, %v3049
        %v3120 = vadd.f32 %v2814, %v3054
        %v3121 = vadd.f32 %v2815, %v3057
        %v3122 = vadd.f32 %v2816, %v3062
        %v3123 = vadd.f32 %v2817, %v3065
        %v3124 = vadd.f32 %v2818, %v3070
        %v3125 = vadd.f32 %v2819, %v3073
        %v3126 = vadd.f32 %v2820, %v3078
        %v3127 = vadd.f32 %v2821, %v3081
        %v3128 = vadd.f32 %v2822, %v3086
        %v3129 = vadd.f32 %v2823, %v3089
        %v3130 = vadd.f32 %v2824, %v3094
        %v3131 = vadd.f32 %v2825, %v3097
        %v3132 = vld [vmem:[%s2] sm:$0x1]
        %v3134 = vlaneseq
        %v3135 = vshrl.u32 %v3134, 7
        %v3136 = vsub.s32 0, %v3135
        %v3137 = vrot.slane %v3132, %v3136
        %v3139 = vmul.f32 %v3100, %v3137
        %v3140 = vmul.f32 %v3101, %v3137
        %v3141 = vmul.f32 %v3102, %v3137
        %v3142 = vmul.f32 %v3103, %v3137
        %v3143 = vmul.f32 %v3104, %v3137
        %v3144 = vmul.f32 %v3105, %v3137
        %v3145 = vmul.f32 %v3106, %v3137
        %v3146 = vmul.f32 %v3107, %v3137
        %v3147 = vmul.f32 %v3108, %v3137
        %v3148 = vmul.f32 %v3109, %v3137
        %v3149 = vmul.f32 %v3110, %v3137
        %v3150 = vmul.f32 %v3111, %v3137
        %v3151 = vmul.f32 %v3112, %v3137
        %v3152 = vmul.f32 %v3113, %v3137
        %v3153 = vmul.f32 %v3114, %v3137
        %v3154 = vmul.f32 %v3115, %v3137
        %v3155 = vmul.f32 %v3116, %v3137
        %v3156 = vmul.f32 %v3117, %v3137
        %v3157 = vmul.f32 %v3118, %v3137
        %v3158 = vmul.f32 %v3119, %v3137
        %v3159 = vmul.f32 %v3120, %v3137
        %v3160 = vmul.f32 %v3121, %v3137
        %v3161 = vmul.f32 %v3122, %v3137
        %v3162 = vmul.f32 %v3123, %v3137
        %v3163 = vmul.f32 %v3124, %v3137
        %v3164 = vmul.f32 %v3125, %v3137
        %v3165 = vmul.f32 %v3126, %v3137
        %v3166 = vmul.f32 %v3127, %v3137
        %v3167 = vmul.f32 %v3128, %v3137
        %v3168 = vmul.f32 %v3129, %v3137
        %v3169 = vmul.f32 %v3130, %v3137
        %v3170 = vmul.f32 %v3131, %v3137
        %v3171 = vld [vmem:[%s3] sm:$0x1]
        %v3173 = vlaneseq
        %v3174 = vshrl.u32 %v3173, 7
        %v3175 = vsub.s32 0, %v3174
        %v3176 = vrot.slane %v3171, %v3175
        %v3178 = vadd.f32 %v3139, %v3176
        %v3179 = vadd.f32 %v3140, %v3176
        %v3180 = vadd.f32 %v3141, %v3176
        %v3181 = vadd.f32 %v3142, %v3176
        %v3182 = vadd.f32 %v3143, %v3176
        %v3183 = vadd.f32 %v3144, %v3176
        %v3184 = vadd.f32 %v3145, %v3176
        %v3185 = vadd.f32 %v3146, %v3176
        %v3186 = vadd.f32 %v3147, %v3176
        %v3187 = vadd.f32 %v3148, %v3176
        %v3188 = vadd.f32 %v3149, %v3176
        %v3189 = vadd.f32 %v3150, %v3176
        %v3190 = vadd.f32 %v3151, %v3176
        %v3191 = vadd.f32 %v3152, %v3176
        %v3192 = vadd.f32 %v3153, %v3176
        %v3193 = vadd.f32 %v3154, %v3176
        %v3194 = vadd.f32 %v3155, %v3176
        %v3195 = vadd.f32 %v3156, %v3176
        %v3196 = vadd.f32 %v3157, %v3176
        %v3197 = vadd.f32 %v3158, %v3176
        %v3198 = vadd.f32 %v3159, %v3176
        %v3199 = vadd.f32 %v3160, %v3176
        %v3200 = vadd.f32 %v3161, %v3176
        %v3201 = vadd.f32 %v3162, %v3176
        %v3202 = vadd.f32 %v3163, %v3176
        %v3203 = vadd.f32 %v3164, %v3176
        %v3204 = vadd.f32 %v3165, %v3176
        %v3205 = vadd.f32 %v3166, %v3176
        %v3206 = vadd.f32 %v3167, %v3176
        %v3207 = vadd.f32 %v3168, %v3176
        %v3208 = vadd.f32 %v3169, %v3176
        %v3209 = vadd.f32 %v3170, %v3176
        %v3210 = vmax.f32 %v3178, 0.0
        %v3211 = vmax.f32 %v3179, 0.0
        %v3212 = vmax.f32 %v3180, 0.0
        %v3213 = vmax.f32 %v3181, 0.0
        %v3214 = vmax.f32 %v3182, 0.0
        %v3215 = vmax.f32 %v3183, 0.0
        %v3216 = vmax.f32 %v3184, 0.0
        %v3217 = vmax.f32 %v3185, 0.0
        %v3218 = vmax.f32 %v3186, 0.0
        %v3219 = vmax.f32 %v3187, 0.0
        %v3220 = vmax.f32 %v3188, 0.0
        %v3221 = vmax.f32 %v3189, 0.0
        %v3222 = vmax.f32 %v3190, 0.0
        %v3223 = vmax.f32 %v3191, 0.0
        %v3224 = vmax.f32 %v3192, 0.0
        %v3225 = vmax.f32 %v3193, 0.0
        %v3226 = vmax.f32 %v3194, 0.0
        %v3227 = vmax.f32 %v3195, 0.0
        %v3228 = vmax.f32 %v3196, 0.0
        %v3229 = vmax.f32 %v3197, 0.0
        %v3230 = vmax.f32 %v3198, 0.0
        %v3231 = vmax.f32 %v3199, 0.0
        %v3232 = vmax.f32 %v3200, 0.0
        %v3233 = vmax.f32 %v3201, 0.0
        %v3234 = vmax.f32 %v3202, 0.0
        %v3235 = vmax.f32 %v3203, 0.0
        %v3236 = vmax.f32 %v3204, 0.0
        %v3237 = vmax.f32 %v3205, 0.0
        %v3238 = vmax.f32 %v3206, 0.0
        %v3239 = vmax.f32 %v3207, 0.0
        %v3240 = vmax.f32 %v3208, 0.0
        %v3241 = vmax.f32 %v3209, 0.0
        %3242 = vst [vmem:[#allocation3] sm:$0xff] 0.0
        %3243 = vst [vmem:[#allocation3 + $0x8] sm:$0xff] 0.0
        %3244 = vst [vmem:[#allocation3 + $0x10] sm:$0x3] 0.0
        %3245 = vst [vmem:[#allocation3 + $0x18] sm:$0xff] 0.0
        %3246 = vst [vmem:[#allocation3 + $0x20] sm:$0xff] 0.0
        %3247 = vst [vmem:[#allocation3 + $0x28] sm:$0x3] 0.0
        %3248 = vst [vmem:[#allocation3 + $0x30] sm:$0xff] 0.0
        %3249 = vst [vmem:[#allocation3 + $0x38] sm:$0xff] 0.0
        %3250 = vst [vmem:[#allocation3 + $0x40] sm:$0x3] 0.0
        %3251 = vst [vmem:[#allocation3 + $0x48] sm:$0xff] 0.0
        %3252 = vst [vmem:[#allocation3 + $0x50] sm:$0xff] 0.0
        %3253 = vst [vmem:[#allocation3 + $0x58] sm:$0x3] 0.0
        %3254 = vst [vmem:[#allocation3 + $0x60] sm:$0xff] 0.0
        %3255 = vst [vmem:[#allocation3 + $0x68] sm:$0xff] 0.0
        %3256 = vst [vmem:[#allocation3 + $0x70] sm:$0x3] 0.0
        %3257 = vst [vmem:[#allocation3 + $0x78] sm:$0xff] 0.0
        %3258 = vst [vmem:[#allocation3 + $0x80] sm:$0xff] 0.0
        %3259 = vst [vmem:[#allocation3 + $0x88] sm:$0x3] 0.0
        %3260 = vst [vmem:[#allocation3 + $0x90] sm:$0xff] 0.0
        %3261 = vst [vmem:[#allocation3 + $0x98] sm:$0xff] 0.0
        %3262 = vst [vmem:[#allocation3 + $0xa0] sm:$0x3] 0.0
        %3263 = vst [vmem:[#allocation3 + $0xa8] sm:$0xff] 0.0
        %3264 = vst [vmem:[#allocation3 + $0xb0] sm:$0xff] 0.0
        %3265 = vst [vmem:[#allocation3 + $0xb8] sm:$0x3] 0.0
        %3266 = vst [vmem:[#allocation3 + $0xc0] sm:$0xff] 0.0
        %3267 = vst [vmem:[#allocation3 + $0xc8] sm:$0xff] 0.0
        %3268 = vst [vmem:[#allocation3 + $0xd0] sm:$0x3] 0.0
        %3269 = vst [vmem:[#allocation3 + $0xd8] sm:$0xff] 0.0
        %3270 = vst [vmem:[#allocation3 + $0xe0] sm:$0xff] 0.0
        %3271 = vst [vmem:[#allocation3 + $0xe8] sm:$0x3] 0.0
        %3272 = vst [vmem:[#allocation3 + $0xf0] sm:$0xff] 0.0
        %3273 = vst [vmem:[#allocation3 + $0xf8] sm:$0xff] 0.0
        %3274 = vst [vmem:[#allocation3 + $0x100] sm:$0x3] 0.0
        %3275 = vst [vmem:[#allocation3 + $0x108] sm:$0xff] 0.0
        %3276 = vst [vmem:[#allocation3 + $0x110] sm:$0xff] 0.0
        %3277 = vst [vmem:[#allocation3 + $0x118] sm:$0x3] 0.0
        %3278 = vst [vmem:[#allocation3 + $0x120] sm:$0xff] 0.0
        %3279 = vst [vmem:[#allocation3 + $0x128] sm:$0xff] 0.0
        %3280 = vst [vmem:[#allocation3 + $0x130] sm:$0x3] 0.0
        %3281 = vst [vmem:[#allocation3 + $0x138] sm:$0xff] 0.0
        %3282 = vst [vmem:[#allocation3 + $0x140] sm:$0xff] 0.0
        %3283 = vst [vmem:[#allocation3 + $0x148] sm:$0x3] 0.0
        %3284 = vst [vmem:[#allocation3 + $0x150] sm:$0xff] 0.0
        %3285 = vst [vmem:[#allocation3 + $0x158] sm:$0xff] 0.0
        %3286 = vst [vmem:[#allocation3 + $0x160] sm:$0x3] 0.0
        %3287 = vst [vmem:[#allocation3 + $0x168] sm:$0xff] 0.0
        %3288 = vst [vmem:[#allocation3 + $0x170] sm:$0xff] 0.0
        %3289 = vst [vmem:[#allocation3 + $0x178] sm:$0x3] 0.0
        %3290 = vst [vmem:[#allocation3 + $0x180] sm:$0xff] 0.0
        %3291 = vst [vmem:[#allocation3 + $0x188] sm:$0xff] 0.0
        %3292 = vst [vmem:[#allocation3 + $0x190] sm:$0x3] 0.0
        %3293 = vst [vmem:[#allocation3 + $0x198] sm:$0xff] 0.0
        %3294 = vst [vmem:[#allocation3 + $0x1a0] sm:$0xff] 0.0
        %3295 = vst [vmem:[#allocation3 + $0x1a8] sm:$0x3] 0.0
        %s3296 = scalar_lea.vmem [#allocation3], 24
        %3297 = vst [vmem:[%s3296 + $0x1] sm:$0xff] %v3210
        %3298 = vst [vmem:[%s3296 + $0x9] sm:$0xff] %v3211
        %3299 = vst [vmem:[%s3296 + $0x19] sm:$0xff] %v3212
        %3300 = vst [vmem:[%s3296 + $0x21] sm:$0xff] %v3213
        %3301 = vst [vmem:[%s3296 + $0x31] sm:$0xff] %v3214
        %3302 = vst [vmem:[%s3296 + $0x39] sm:$0xff] %v3215
        %3303 = vst [vmem:[%s3296 + $0x49] sm:$0xff] %v3216
        %3304 = vst [vmem:[%s3296 + $0x51] sm:$0xff] %v3217
        %3305 = vst [vmem:[%s3296 + $0x61] sm:$0xff] %v3218
        %3306 = vst [vmem:[%s3296 + $0x69] sm:$0xff] %v3219
        %3307 = vst [vmem:[%s3296 + $0x79] sm:$0xff] %v3220
        %3308 = vst [vmem:[%s3296 + $0x81] sm:$0xff] %v3221
        %3309 = vst [vmem:[%s3296 + $0x91] sm:$0xff] %v3222
        %3310 = vst [vmem:[%s3296 + $0x99] sm:$0xff] %v3223
        %3311 = vst [vmem:[%s3296 + $0xa9] sm:$0xff] %v3224
        %3312 = vst [vmem:[%s3296 + $0xb1] sm:$0xff] %v3225
        %3313 = vst [vmem:[%s3296 + $0xc1] sm:$0xff] %v3226
        %3314 = vst [vmem:[%s3296 + $0xc9] sm:$0xff] %v3227
        %3315 = vst [vmem:[%s3296 + $0xd9] sm:$0xff] %v3228
        %3316 = vst [vmem:[%s3296 + $0xe1] sm:$0xff] %v3229
        %3317 = vst [vmem:[%s3296 + $0xf1] sm:$0xff] %v3230
        %3318 = vst [vmem:[%s3296 + $0xf9] sm:$0xff] %v3231
        %3319 = vst [vmem:[%s3296 + $0x109] sm:$0xff] %v3232
        %3320 = vst [vmem:[%s3296 + $0x111] sm:$0xff] %v3233
        %3321 = vst [vmem:[%s3296 + $0x121] sm:$0xff] %v3234
        %3322 = vst [vmem:[%s3296 + $0x129] sm:$0xff] %v3235
        %3323 = vst [vmem:[%s3296 + $0x139] sm:$0xff] %v3236
        %3324 = vst [vmem:[%s3296 + $0x141] sm:$0xff] %v3237
        %3325 = vst [vmem:[%s3296 + $0x151] sm:$0xff] %v3238
        %3326 = vst [vmem:[%s3296 + $0x159] sm:$0xff] %v3239
        %3327 = vst [vmem:[%s3296 + $0x169] sm:$0xff] %v3240
        %3328 = vst [vmem:[%s3296 + $0x171] sm:$0xff] %v3241
        %v3329 = vld [vmem:[#allocation3] sm:$0xff]
        %v3330 = vld [vmem:[#allocation3 + $0x8] sm:$0xff]
        %v3331 = vld [vmem:[#allocation3 + $0x18] sm:$0xff]
        %v3332 = vld [vmem:[#allocation3 + $0x20] sm:$0xff]
        %v3333 = vld [vmem:[#allocation3 + $0x30] sm:$0xff]
        %v3334 = vld [vmem:[#allocation3 + $0x38] sm:$0xff]
        %v3335 = vld [vmem:[#allocation3 + $0x48] sm:$0xff]
        %v3336 = vld [vmem:[#allocation3 + $0x50] sm:$0xff]
        %v3337 = vld [vmem:[#allocation3 + $0x60] sm:$0xff]
        %v3338 = vld [vmem:[#allocation3 + $0x68] sm:$0xff]
        %v3339 = vld [vmem:[#allocation3 + $0x78] sm:$0xff]
        %v3340 = vld [vmem:[#allocation3 + $0x80] sm:$0xff]
        %v3341 = vld [vmem:[#allocation3 + $0x90] sm:$0xff]
        %v3342 = vld [vmem:[#allocation3 + $0x98] sm:$0xff]
        %v3343 = vld [vmem:[#allocation3 + $0xa8] sm:$0xff]
        %v3344 = vld [vmem:[#allocation3 + $0xb0] sm:$0xff]
        %v3345 = vld [vmem:[#allocation3 + $0xc0] sm:$0xff]
        %v3346 = vld [vmem:[#allocation3 + $0xc8] sm:$0xff]
        %v3347 = vld [vmem:[#allocation3 + $0xd8] sm:$0xff]
        %v3348 = vld [vmem:[#allocation3 + $0xe0] sm:$0xff]
        %v3349 = vld [vmem:[#allocation3 + $0xf0] sm:$0xff]
        %v3350 = vld [vmem:[#allocation3 + $0xf8] sm:$0xff]
        %v3351 = vld [vmem:[#allocation3 + $0x108] sm:$0xff]
        %v3352 = vld [vmem:[#allocation3 + $0x110] sm:$0xff]
        %v3353 = vld [vmem:[#allocation3 + $0x120] sm:$0xff]
        %v3354 = vld [vmem:[#allocation3 + $0x128] sm:$0xff]
        %v3355 = vld [vmem:[#allocation3 + $0x138] sm:$0xff]
        %v3356 = vld [vmem:[#allocation3 + $0x140] sm:$0xff]
        %v3357 = vld [vmem:[#allocation3 + $0x150] sm:$0xff]
        %v3358 = vld [vmem:[#allocation3 + $0x158] sm:$0xff]
        %v3359 = vld [vmem:[#allocation3 + $0x168] sm:$0xff]
        %v3360 = vld [vmem:[#allocation3 + $0x170] sm:$0xff]
        %v3361 = vpack.c.bf16 %v3330, %v3329
        %v3362 = vpack.c.bf16 %v3332, %v3331
        %v3363 = vpack.c.bf16 %v3334, %v3333
        %v3364 = vpack.c.bf16 %v3336, %v3335
        %v3365 = vpack.c.bf16 %v3338, %v3337
        %v3366 = vpack.c.bf16 %v3340, %v3339
        %v3367 = vpack.c.bf16 %v3342, %v3341
        %v3368 = vpack.c.bf16 %v3344, %v3343
        %v3369 = vpack.c.bf16 %v3346, %v3345
        %v3370 = vpack.c.bf16 %v3348, %v3347
        %v3371 = vpack.c.bf16 %v3350, %v3349
        %v3372 = vpack.c.bf16 %v3352, %v3351
        %v3373 = vpack.c.bf16 %v3354, %v3353
        %v3374 = vpack.c.bf16 %v3356, %v3355
        %v3375 = vpack.c.bf16 %v3358, %v3357
        %v3376 = vpack.c.bf16 %v3360, %v3359
        %v3377 = vld [vmem:[#allocation4] sm:$0xf]
        %v3378 = vld [vmem:[#allocation4 + $0x4] sm:$0xf]
        %v3379 = vld [vmem:[#allocation4 + $0x8] sm:$0xf]
        %v3380 = vld [vmem:[#allocation4 + $0xc] sm:$0xf]
        %v3381 = vld [vmem:[#allocation4 + $0x10] sm:$0xf]
        %v3382 = vld [vmem:[#allocation4 + $0x14] sm:$0xf]
        %v3383 = vld [vmem:[#allocation4 + $0x18] sm:$0xf]
        %v3384 = vld [vmem:[#allocation4 + $0x1c] sm:$0xf]
        %v3385 = vld [vmem:[#allocation4 + $0x20] sm:$0xf]
        %v3386 = vld [vmem:[#allocation4 + $0x24] sm:$0xf]
        %v3387 = vld [vmem:[#allocation4 + $0x28] sm:$0xf]
        %v3388 = vld [vmem:[#allocation4 + $0x2c] sm:$0xf]
        %v3389 = vld [vmem:[#allocation4 + $0x30] sm:$0xf]
        %v3390 = vld [vmem:[#allocation4 + $0x34] sm:$0xf]
        %v3391 = vld [vmem:[#allocation4 + $0x38] sm:$0xf]
        %v3392 = vld [vmem:[#allocation4 + $0x3c] sm:$0xf]
        %v3393 = vld [vmem:[#allocation3 + $0x1] sm:$0xff]
        %v3394 = vld [vmem:[#allocation3 + $0x9] sm:$0xff]
        %v3395 = vld [vmem:[#allocation3 + $0x19] sm:$0xff]
        %v3396 = vld [vmem:[#allocation3 + $0x21] sm:$0xff]
        %v3397 = vld [vmem:[#allocation3 + $0x31] sm:$0xff]
        %v3398 = vld [vmem:[#allocation3 + $0x39] sm:$0xff]
        %v3399 = vld [vmem:[#allocation3 + $0x49] sm:$0xff]
        %v3400 = vld [vmem:[#allocation3 + $0x51] sm:$0xff]
        %v3401 = vld [vmem:[#allocation3 + $0x61] sm:$0xff]
        %v3402 = vld [vmem:[#allocation3 + $0x69] sm:$0xff]
        %v3403 = vld [vmem:[#allocation3 + $0x79] sm:$0xff]
        %v3404 = vld [vmem:[#allocation3 + $0x81] sm:$0xff]
        %v3405 = vld [vmem:[#allocation3 + $0x91] sm:$0xff]
        %v3406 = vld [vmem:[#allocation3 + $0x99] sm:$0xff]
        %v3407 = vld [vmem:[#allocation3 + $0xa9] sm:$0xff]
        %v3408 = vld [vmem:[#allocation3 + $0xb1] sm:$0xff]
        %v3409 = vld [vmem:[#allocation3 + $0xc1] sm:$0xff]
        %v3410 = vld [vmem:[#allocation3 + $0xc9] sm:$0xff]
        %v3411 = vld [vmem:[#allocation3 + $0xd9] sm:$0xff]
        %v3412 = vld [vmem:[#allocation3 + $0xe1] sm:$0xff]
        %v3413 = vld [vmem:[#allocation3 + $0xf1] sm:$0xff]
        %v3414 = vld [vmem:[#allocation3 + $0xf9] sm:$0xff]
        %v3415 = vld [vmem:[#allocation3 + $0x109] sm:$0xff]
        %v3416 = vld [vmem:[#allocation3 + $0x111] sm:$0xff]
        %v3417 = vld [vmem:[#allocation3 + $0x121] sm:$0xff]
        %v3418 = vld [vmem:[#allocation3 + $0x129] sm:$0xff]
        %v3419 = vld [vmem:[#allocation3 + $0x139] sm:$0xff]
        %v3420 = vld [vmem:[#allocation3 + $0x141] sm:$0xff]
        %v3421 = vld [vmem:[#allocation3 + $0x151] sm:$0xff]
        %v3422 = vld [vmem:[#allocation3 + $0x159] sm:$0xff]
        %v3423 = vld [vmem:[#allocation3 + $0x169] sm:$0xff]
        %v3424 = vld [vmem:[#allocation3 + $0x171] sm:$0xff]
        %v3425 = vpack.c.bf16 %v3394, %v3393
        %v3426 = vpack.c.bf16 %v3396, %v3395
        %v3427 = vpack.c.bf16 %v3398, %v3397
        %v3428 = vpack.c.bf16 %v3400, %v3399
        %v3429 = vpack.c.bf16 %v3402, %v3401
        %v3430 = vpack.c.bf16 %v3404, %v3403
        %v3431 = vpack.c.bf16 %v3406, %v3405
        %v3432 = vpack.c.bf16 %v3408, %v3407
        %v3433 = vpack.c.bf16 %v3410, %v3409
        %v3434 = vpack.c.bf16 %v3412, %v3411
        %v3435 = vpack.c.bf16 %v3414, %v3413
        %v3436 = vpack.c.bf16 %v3416, %v3415
        %v3437 = vpack.c.bf16 %v3418, %v3417
        %v3438 = vpack.c.bf16 %v3420, %v3419
        %v3439 = vpack.c.bf16 %v3422, %v3421
        %v3440 = vpack.c.bf16 %v3424, %v3423
        %s3441 = scalar_lea.vmem [#allocation4], 64
        %v3442 = vld [vmem:[%s3441] sm:$0xf]
        %v3443 = vld [vmem:[%s3441 + $0x4] sm:$0xf]
        %v3444 = vld [vmem:[%s3441 + $0x8] sm:$0xf]
        %v3445 = vld [vmem:[%s3441 + $0xc] sm:$0xf]
        %v3446 = vld [vmem:[%s3441 + $0x10] sm:$0xf]
        %v3447 = vld [vmem:[%s3441 + $0x14] sm:$0xf]
        %v3448 = vld [vmem:[%s3441 + $0x18] sm:$0xf]
        %v3449 = vld [vmem:[%s3441 + $0x1c] sm:$0xf]
        %v3450 = vld [vmem:[%s3441 + $0x20] sm:$0xf]
        %v3451 = vld [vmem:[%s3441 + $0x24] sm:$0xf]
        %v3452 = vld [vmem:[%s3441 + $0x28] sm:$0xf]
        %v3453 = vld [vmem:[%s3441 + $0x2c] sm:$0xf]
        %v3454 = vld [vmem:[%s3441 + $0x30] sm:$0xf]
        %v3455 = vld [vmem:[%s3441 + $0x34] sm:$0xf]
        %v3456 = vld [vmem:[%s3441 + $0x38] sm:$0xf]
        %v3457 = vld [vmem:[%s3441 + $0x3c] sm:$0xf]
        %v3474 = vunpack.c.l.b16 %v3442
        %v3475 = vunpack.c.l.b16 %v3443
        %v3476 = vunpack.c.l.b16 %v3444
        %v3477 = vunpack.c.l.b16 %v3445
        %v3478 = vunpack.c.l.b16 %v3446
        %v3479 = vunpack.c.l.b16 %v3447
        %v3480 = vunpack.c.l.b16 %v3448
        %v3481 = vunpack.c.l.b16 %v3449
        %v3482 = vunpack.c.l.b16 %v3450
        %v3483 = vunpack.c.l.b16 %v3451
        %v3484 = vunpack.c.l.b16 %v3452
        %v3485 = vunpack.c.l.b16 %v3453
        %v3486 = vunpack.c.l.b16 %v3454
        %v3487 = vunpack.c.l.b16 %v3455
        %v3488 = vunpack.c.l.b16 %v3456
        %v3489 = vunpack.c.l.b16 %v3457
        %v3490 = vpack.c.b16 %v3475, %v3474
        %v3491 = vpack.c.b16 %v3477, %v3476
        %v3492 = vpack.c.b16 %v3479, %v3478
        %v3493 = vpack.c.b16 %v3481, %v3480
        %v3494 = vpack.c.b16 %v3483, %v3482
        %v3495 = vpack.c.b16 %v3485, %v3484
        %v3496 = vpack.c.b16 %v3487, %v3486
        %v3497 = vpack.c.b16 %v3489, %v3488
        %3506 = vmatprep.subr.bf16.mxu0 0
        %3507 = vmatpush1.bf16.msra.mxu0 %v3490
        %3508 = vmatprep.subr.bf16.mxu0 0
        %3509 = vmatpush1.bf16.msra.mxu0 %v3491
        %3510 = vmatprep.subr.bf16.mxu0 0
        %3511 = vmatpush1.bf16.msra.mxu0 %v3492
        %3512 = vmatprep.subr.bf16.mxu0 0
        %3513 = vmatpush1.bf16.msra.mxu0 %v3493
        %3514 = vmatprep.subr.bf16.mxu0 0
        %3515 = vmatpush1.bf16.msra.mxu0 %v3494
        %3516 = vmatprep.subr.bf16.mxu0 0
        %3517 = vmatpush1.bf16.msra.mxu0 %v3495
        %3518 = vmatprep.subr.bf16.mxu0 0
        %3519 = vmatpush1.bf16.msra.mxu0 %v3496
        %3520 = vmatprep.subr.bf16.mxu0 0
        %3521 = vmatpush1.bf16.msra.mxu0 %v3497
        %3522 = vmatprep.subr.bf16.mxu0 0
        %3523 = vmatpush1.bf16.msra.mxu0 0
        %3524 = vmatprep.subr.bf16.mxu0 0
        %3525 = vmatpush1.bf16.msra.mxu0 0
        %3526 = vmatprep.subr.bf16.mxu0 0
        %3527 = vmatpush1.bf16.msra.mxu0 0
        %3528 = vmatprep.subr.bf16.mxu0 0
        %3529 = vmatpush1.bf16.msra.mxu0 0
        %3530 = vmatprep.subr.bf16.mxu0 0
        %3531 = vmatpush1.bf16.msra.mxu0 0
        %3532 = vmatprep.subr.bf16.mxu0 0
        %3533 = vmatpush1.bf16.msra.mxu0 0
        %3534 = vmatprep.subr.bf16.mxu0 0
        %3535 = vmatpush1.bf16.msra.mxu0 0
        %3536 = vmatprep.subr.bf16.mxu0 0
        %3537 = vmatpush1.bf16.msra.mxu0 0
        %3538 = vmatprep.mubr.bf16.mxu0 0
        %3539 = vmatmul.mubr.bf16.gmra.mrb[0].mxu0 %v3425
        %v3540 = vpop.f32.mrb[0].mxu0
        %v3541 = vadd.f32 0.0, %v3540
        %v3542 = vpop.f32.mrb[0].mxu0
        %v3543 = vpop.f32.mrb[0].mxu0
        %v3544 = vadd.f32 0.0, %v3543
        %v3545 = vpop.f32.mrb[0].mxu0
        %3546 = vmatprep.mubr.bf16.mxu0 0
        %3547 = vmatmul.mubr.bf16.gmra.mrb[0].mxu0 %v3426
        %v3548 = vpop.f32.mrb[0].mxu0
        %v3549 = vadd.f32 0.0, %v3548
        %v3550 = vpop.f32.mrb[0].mxu0
        %v3551 = vpop.f32.mrb[0].mxu0
        %v3552 = vadd.f32 0.0, %v3551
        %v3553 = vpop.f32.mrb[0].mxu0
        %3554 = vmatprep.mubr.bf16.mxu0 0
        %3555 = vmatmul.mubr.bf16.gmra.mrb[0].mxu0 %v3427
        %v3556 = vpop.f32.mrb[0].mxu0
        %v3557 = vadd.f32 0.0, %v3556
        %v3558 = vpop.f32.mrb[0].mxu0
        %v3559 = vpop.f32.mrb[0].mxu0
        %v3560 = vadd.f32 0.0, %v3559
        %v3561 = vpop.f32.mrb[0].mxu0
        %3562 = vmatprep.mubr.bf16.mxu0 0
        %3563 = vmatmul.mubr.bf16.gmra.mrb[0].mxu0 %v3428
        %v3564 = vpop.f32.mrb[0].mxu0
        %v3565 = vadd.f32 0.0, %v3564
        %v3566 = vpop.f32.mrb[0].mxu0
        %v3567 = vpop.f32.mrb[0].mxu0
        %v3568 = vadd.f32 0.0, %v3567
        %v3569 = vpop.f32.mrb[0].mxu0
        %3570 = vmatprep.mubr.bf16.mxu0 0
        %3571 = vmatmul.mubr.bf16.gmra.mrb[0].mxu0 %v3429
        %v3572 = vpop.f32.mrb[0].mxu0
        %v3573 = vadd.f32 0.0, %v3572
        %v3574 = vpop.f32.mrb[0].mxu0
        %v3575 = vpop.f32.mrb[0].mxu0
        %v3576 = vadd.f32 0.0, %v3575
        %v3577 = vpop.f32.mrb[0].mxu0
        %3578 = vmatprep.mubr.bf16.mxu0 0
        %3579 = vmatmul.mubr.bf16.gmra.mrb[0].mxu0 %v3430
        %v3580 = vpop.f32.mrb[0].mxu0
        %v3581 = vadd.f32 0.0, %v3580
        %v3582 = vpop.f32.mrb[0].mxu0
        %v3583 = vpop.f32.mrb[0].mxu0
        %v3584 = vadd.f32 0.0, %v3583
        %v3585 = vpop.f32.mrb[0].mxu0
        %3586 = vmatprep.mubr.bf16.mxu0 0
        %3587 = vmatmul.mubr.bf16.gmra.mrb[0].mxu0 %v3431
        %v3588 = vpop.f32.mrb[0].mxu0
        %v3589 = vadd.f32 0.0, %v3588
        %v3590 = vpop.f32.mrb[0].mxu0
        %v3591 = vpop.f32.mrb[0].mxu0
        %v3592 = vadd.f32 0.0, %v3591
        %v3593 = vpop.f32.mrb[0].mxu0
        %3594 = vmatprep.mubr.bf16.mxu0 0
        %3595 = vmatmul.mubr.bf16.gmra.mrb[0].mxu0 %v3432
        %v3596 = vpop.f32.mrb[0].mxu0
        %v3597 = vadd.f32 0.0, %v3596
        %v3598 = vpop.f32.mrb[0].mxu0
        %v3599 = vpop.f32.mrb[0].mxu0
        %v3600 = vadd.f32 0.0, %v3599
        %v3601 = vpop.f32.mrb[0].mxu0
        %3602 = vmatprep.mubr.bf16.mxu0 0
        %3603 = vmatmul.mubr.bf16.gmra.mrb[0].mxu0 %v3433
        %v3604 = vpop.f32.mrb[0].mxu0
        %v3605 = vadd.f32 0.0, %v3604
        %v3606 = vpop.f32.mrb[0].mxu0
        %v3607 = vpop.f32.mrb[0].mxu0
        %v3608 = vadd.f32 0.0, %v3607
        %v3609 = vpop.f32.mrb[0].mxu0
        %3610 = vmatprep.mubr.bf16.mxu0 0
        %3611 = vmatmul.mubr.bf16.gmra.mrb[0].mxu0 %v3434
        %v3612 = vpop.f32.mrb[0].mxu0
        %v3613 = vadd.f32 0.0, %v3612
        %v3614 = vpop.f32.mrb[0].mxu0
        %v3615 = vpop.f32.mrb[0].mxu0
        %v3616 = vadd.f32 0.0, %v3615
        %v3617 = vpop.f32.mrb[0].mxu0
        %3618 = vmatprep.mubr.bf16.mxu0 0
        %3619 = vmatmul.mubr.bf16.gmra.mrb[0].mxu0 %v3435
        %v3620 = vpop.f32.mrb[0].mxu0
        %v3621 = vadd.f32 0.0, %v3620
        %v3622 = vpop.f32.mrb[0].mxu0
        %v3623 = vpop.f32.mrb[0].mxu0
        %v3624 = vadd.f32 0.0, %v3623
        %v3625 = vpop.f32.mrb[0].mxu0
        %3626 = vmatprep.mubr.bf16.mxu0 0
        %3627 = vmatmul.mubr.bf16.gmra.mrb[0].mxu0 %v3436
        %v3628 = vpop.f32.mrb[0].mxu0
        %v3629 = vadd.f32 0.0, %v3628
        %v3630 = vpop.f32.mrb[0].mxu0
        %v3631 = vpop.f32.mrb[0].mxu0
        %v3632 = vadd.f32 0.0, %v3631
        %v3633 = vpop.f32.mrb[0].mxu0
        %3634 = vmatprep.mubr.bf16.mxu0 0
        %3635 = vmatmul.mubr.bf16.gmra.mrb[0].mxu0 %v3437
        %v3636 = vpop.f32.mrb[0].mxu0
        %v3637 = vadd.f32 0.0, %v3636
        %v3638 = vpop.f32.mrb[0].mxu0
        %v3639 = vpop.f32.mrb[0].mxu0
        %v3640 = vadd.f32 0.0, %v3639
        %v3641 = vpop.f32.mrb[0].mxu0
        %3642 = vmatprep.mubr.bf16.mxu0 0
        %3643 = vmatmul.mubr.bf16.gmra.mrb[0].mxu0 %v3438
        %v3644 = vpop.f32.mrb[0].mxu0
        %v3645 = vadd.f32 0.0, %v3644
        %v3646 = vpop.f32.mrb[0].mxu0
        %v3647 = vpop.f32.mrb[0].mxu0
        %v3648 = vadd.f32 0.0, %v3647
        %v3649 = vpop.f32.mrb[0].mxu0
        %3650 = vmatprep.mubr.bf16.mxu0 0
        %3651 = vmatmul.mubr.bf16.gmra.mrb[0].mxu0 %v3439
        %v3652 = vpop.f32.mrb[0].mxu0
        %v3653 = vadd.f32 0.0, %v3652
        %v3654 = vpop.f32.mrb[0].mxu0
        %v3655 = vpop.f32.mrb[0].mxu0
        %v3656 = vadd.f32 0.0, %v3655
        %v3657 = vpop.f32.mrb[0].mxu0
        %3658 = vmatprep.mubr.bf16.mxu0 0
        %3659 = vmatmul.mubr.bf16.gmra.mrb[0].mxu0 %v3440
        %v3660 = vpop.f32.mrb[0].mxu0
        %v3661 = vadd.f32 0.0, %v3660
        %v3662 = vpop.f32.mrb[0].mxu0
        %v3663 = vpop.f32.mrb[0].mxu0
        %v3664 = vadd.f32 0.0, %v3663
        %v3665 = vpop.f32.mrb[0].mxu0
        %3666 = vdwg.mxu0
        %v3683 = vunpack.c.l.b16 %v3377
        %v3684 = vunpack.c.l.b16 %v3378
        %v3685 = vunpack.c.l.b16 %v3379
        %v3686 = vunpack.c.l.b16 %v3380
        %v3687 = vunpack.c.l.b16 %v3381
        %v3688 = vunpack.c.l.b16 %v3382
        %v3689 = vunpack.c.l.b16 %v3383
        %v3690 = vunpack.c.l.b16 %v3384
        %v3691 = vunpack.c.l.b16 %v3385
        %v3692 = vunpack.c.l.b16 %v3386
        %v3693 = vunpack.c.l.b16 %v3387
        %v3694 = vunpack.c.l.b16 %v3388
        %v3695 = vunpack.c.l.b16 %v3389
        %v3696 = vunpack.c.l.b16 %v3390
        %v3697 = vunpack.c.l.b16 %v3391
        %v3698 = vunpack.c.l.b16 %v3392
        %v3699 = vpack.c.b16 %v3684, %v3683
        %v3700 = vpack.c.b16 %v3686, %v3685
        %v3701 = vpack.c.b16 %v3688, %v3687
        %v3702 = vpack.c.b16 %v3690, %v3689
        %v3703 = vpack.c.b16 %v3692, %v3691
        %v3704 = vpack.c.b16 %v3694, %v3693
        %v3705 = vpack.c.b16 %v3696, %v3695
        %v3706 = vpack.c.b16 %v3698, %v3697
        %3715 = vmatprep.subr.bf16.mxu0 0
        %3716 = vmatpush1.bf16.msra.mxu0 %v3699
        %3717 = vmatprep.subr.bf16.mxu0 0
        %3718 = vmatpush1.bf16.msra.mxu0 %v3700
        %3719 = vmatprep.subr.bf16.mxu0 0
        %3720 = vmatpush1.bf16.msra.mxu0 %v3701
        %3721 = vmatprep.subr.bf16.mxu0 0
        %3722 = vmatpush1.bf16.msra.mxu0 %v3702
        %3723 = vmatprep.subr.bf16.mxu0 0
        %3724 = vmatpush1.bf16.msra.mxu0 %v3703
        %3725 = vmatprep.subr.bf16.mxu0 0
        %3726 = vmatpush1.bf16.msra.mxu0 %v3704
        %3727 = vmatprep.subr.bf16.mxu0 0
        %3728 = vmatpush1.bf16.msra.mxu0 %v3705
        %3729 = vmatprep.subr.bf16.mxu0 0
        %3730 = vmatpush1.bf16.msra.mxu0 %v3706
        %3731 = vmatprep.subr.bf16.mxu0 0
        %3732 = vmatpush1.bf16.msra.mxu0 0
        %3733 = vmatprep.subr.bf16.mxu0 0
        %3734 = vmatpush1.bf16.msra.mxu0 0
        %3735 = vmatprep.subr.bf16.mxu0 0
        %3736 = vmatpush1.bf16.msra.mxu0 0
        %3737 = vmatprep.subr.bf16.mxu0 0
        %3738 = vmatpush1.bf16.msra.mxu0 0
        %3739 = vmatprep.subr.bf16.mxu0 0
        %3740 = vmatpush1.bf16.msra.mxu0 0
        %3741 = vmatprep.subr.bf16.mxu0 0
        %3742 = vmatpush1.bf16.msra.mxu0 0
        %3743 = vmatprep.subr.bf16.mxu0 0
        %3744 = vmatpush1.bf16.msra.mxu0 0
        %3745 = vmatprep.subr.bf16.mxu0 0
        %3746 = vmatpush1.bf16.msra.mxu0 0
        %3747 = vmatprep.mubr.bf16.mxu0 0
        %3748 = vmatmul.mubr.bf16.gmra.mrb[0].mxu0 %v3361
        %v3749 = vpop.f32.mrb[0].mxu0
        %v3750 = vadd.f32 %v3541, %v3749
        %v3751 = vpop.f32.mrb[0].mxu0
        %v3752 = vpop.f32.mrb[0].mxu0
        %v3753 = vadd.f32 %v3544, %v3752
        %v3754 = vpop.f32.mrb[0].mxu0
        %3755 = vmatprep.mubr.bf16.mxu0 0
        %3756 = vmatmul.mubr.bf16.gmra.mrb[0].mxu0 %v3362
        %v3757 = vpop.f32.mrb[0].mxu0
        %v3758 = vadd.f32 %v3549, %v3757
        %v3759 = vpop.f32.mrb[0].mxu0
        %v3760 = vpop.f32.mrb[0].mxu0
        %v3761 = vadd.f32 %v3552, %v3760
        %v3762 = vpop.f32.mrb[0].mxu0
        %3763 = vmatprep.mubr.bf16.mxu0 0
        %3764 = vmatmul.mubr.bf16.gmra.mrb[0].mxu0 %v3363
        %v3765 = vpop.f32.mrb[0].mxu0
        %v3766 = vadd.f32 %v3557, %v3765
        %v3767 = vpop.f32.mrb[0].mxu0
        %v3768 = vpop.f32.mrb[0].mxu0
        %v3769 = vadd.f32 %v3560, %v3768
        %v3770 = vpop.f32.mrb[0].mxu0
        %3771 = vmatprep.mubr.bf16.mxu0 0
        %3772 = vmatmul.mubr.bf16.gmra.mrb[0].mxu0 %v3364
        %v3773 = vpop.f32.mrb[0].mxu0
        %v3774 = vadd.f32 %v3565, %v3773
        %v3775 = vpop.f32.mrb[0].mxu0
        %v3776 = vpop.f32.mrb[0].mxu0
        %v3777 = vadd.f32 %v3568, %v3776
        %v3778 = vpop.f32.mrb[0].mxu0
        %3779 = vmatprep.mubr.bf16.mxu0 0
        %3780 = vmatmul.mubr.bf16.gmra.mrb[0].mxu0 %v3365
        %v3781 = vpop.f32.mrb[0].mxu0
        %v3782 = vadd.f32 %v3573, %v3781
        %v3783 = vpop.f32.mrb[0].mxu0
        %v3784 = vpop.f32.mrb[0].mxu0
        %v3785 = vadd.f32 %v3576, %v3784
        %v3786 = vpop.f32.mrb[0].mxu0
        %3787 = vmatprep.mubr.bf16.mxu0 0
        %3788 = vmatmul.mubr.bf16.gmra.mrb[0].mxu0 %v3366
        %v3789 = vpop.f32.mrb[0].mxu0
        %v3790 = vadd.f32 %v3581, %v3789
        %v3791 = vpop.f32.mrb[0].mxu0
        %v3792 = vpop.f32.mrb[0].mxu0
        %v3793 = vadd.f32 %v3584, %v3792
        %v3794 = vpop.f32.mrb[0].mxu0
        %3795 = vmatprep.mubr.bf16.mxu0 0
        %3796 = vmatmul.mubr.bf16.gmra.mrb[0].mxu0 %v3367
        %v3797 = vpop.f32.mrb[0].mxu0
        %v3798 = vadd.f32 %v3589, %v3797
        %v3799 = vpop.f32.mrb[0].mxu0
        %v3800 = vpop.f32.mrb[0].mxu0
        %v3801 = vadd.f32 %v3592, %v3800
        %v3802 = vpop.f32.mrb[0].mxu0
        %3803 = vmatprep.mubr.bf16.mxu0 0
        %3804 = vmatmul.mubr.bf16.gmra.mrb[0].mxu0 %v3368
        %v3805 = vpop.f32.mrb[0].mxu0
        %v3806 = vadd.f32 %v3597, %v3805
        %v3807 = vpop.f32.mrb[0].mxu0
        %v3808 = vpop.f32.mrb[0].mxu0
        %v3809 = vadd.f32 %v3600, %v3808
        %v3810 = vpop.f32.mrb[0].mxu0
        %3811 = vmatprep.mubr.bf16.mxu0 0
        %3812 = vmatmul.mubr.bf16.gmra.mrb[0].mxu0 %v3369
        %v3813 = vpop.f32.mrb[0].mxu0
        %v3814 = vadd.f32 %v3605, %v3813
        %v3815 = vpop.f32.mrb[0].mxu0
        %v3816 = vpop.f32.mrb[0].mxu0
        %v3817 = vadd.f32 %v3608, %v3816
        %v3818 = vpop.f32.mrb[0].mxu0
        %3819 = vmatprep.mubr.bf16.mxu0 0
        %3820 = vmatmul.mubr.bf16.gmra.mrb[0].mxu0 %v3370
        %v3821 = vpop.f32.mrb[0].mxu0
        %v3822 = vadd.f32 %v3613, %v3821
        %v3823 = vpop.f32.mrb[0].mxu0
        %v3824 = vpop.f32.mrb[0].mxu0
        %v3825 = vadd.f32 %v3616, %v3824
        %v3826 = vpop.f32.mrb[0].mxu0
        %3827 = vmatprep.mubr.bf16.mxu0 0
        %3828 = vmatmul.mubr.bf16.gmra.mrb[0].mxu0 %v3371
        %v3829 = vpop.f32.mrb[0].mxu0
        %v3830 = vadd.f32 %v3621, %v3829
        %v3831 = vpop.f32.mrb[0].mxu0
        %v3832 = vpop.f32.mrb[0].mxu0
        %v3833 = vadd.f32 %v3624, %v3832
        %v3834 = vpop.f32.mrb[0].mxu0
        %3835 = vmatprep.mubr.bf16.mxu0 0
        %3836 = vmatmul.mubr.bf16.gmra.mrb[0].mxu0 %v3372
        %v3837 = vpop.f32.mrb[0].mxu0
        %v3838 = vadd.f32 %v3629, %v3837
        %v3839 = vpop.f32.mrb[0].mxu0
        %v3840 = vpop.f32.mrb[0].mxu0
        %v3841 = vadd.f32 %v3632, %v3840
        %v3842 = vpop.f32.mrb[0].mxu0
        %3843 = vmatprep.mubr.bf16.mxu0 0
        %3844 = vmatmul.mubr.bf16.gmra.mrb[0].mxu0 %v3373
        %v3845 = vpop.f32.mrb[0].mxu0
        %v3846 = vadd.f32 %v3637, %v3845
        %v3847 = vpop.f32.mrb[0].mxu0
        %v3848 = vpop.f32.mrb[0].mxu0
        %v3849 = vadd.f32 %v3640, %v3848
        %v3850 = vpop.f32.mrb[0].mxu0
        %3851 = vmatprep.mubr.bf16.mxu0 0
        %3852 = vmatmul.mubr.bf16.gmra.mrb[0].mxu0 %v3374
        %v3853 = vpop.f32.mrb[0].mxu0
        %v3854 = vadd.f32 %v3645, %v3853
        %v3855 = vpop.f32.mrb[0].mxu0
        %v3856 = vpop.f32.mrb[0].mxu0
        %v3857 = vadd.f32 %v3648, %v3856
        %v3858 = vpop.f32.mrb[0].mxu0
        %3859 = vmatprep.mubr.bf16.mxu0 0
        %3860 = vmatmul.mubr.bf16.gmra.mrb[0].mxu0 %v3375
        %v3861 = vpop.f32.mrb[0].mxu0
        %v3862 = vadd.f32 %v3653, %v3861
        %v3863 = vpop.f32.mrb[0].mxu0
        %v3864 = vpop.f32.mrb[0].mxu0
        %v3865 = vadd.f32 %v3656, %v3864
        %v3866 = vpop.f32.mrb[0].mxu0
        %3867 = vmatprep.mubr.bf16.mxu0 0
        %3868 = vmatmul.mubr.bf16.gmra.mrb[0].mxu0 %v3376
        %v3869 = vpop.f32.mrb[0].mxu0
        %v3870 = vadd.f32 %v3661, %v3869
        %v3871 = vpop.f32.mrb[0].mxu0
        %v3872 = vpop.f32.mrb[0].mxu0
        %v3873 = vadd.f32 %v3664, %v3872
        %v3874 = vpop.f32.mrb[0].mxu0
        %3875 = vdwg.mxu0
        %v3876 = vld [vmem:[#allocation3 + $0x2] sm:$0xff]
        %v3877 = vld [vmem:[#allocation3 + $0xa] sm:$0xff]
        %v3878 = vld [vmem:[#allocation3 + $0x1a] sm:$0xff]
        %v3879 = vld [vmem:[#allocation3 + $0x22] sm:$0xff]
        %v3880 = vld [vmem:[#allocation3 + $0x32] sm:$0xff]
        %v3881 = vld [vmem:[#allocation3 + $0x3a] sm:$0xff]
        %v3882 = vld [vmem:[#allocation3 + $0x4a] sm:$0xff]
        %v3883 = vld [vmem:[#allocation3 + $0x52] sm:$0xff]
        %v3884 = vld [vmem:[#allocation3 + $0x62] sm:$0xff]
        %v3885 = vld [vmem:[#allocation3 + $0x6a] sm:$0xff]
        %v3886 = vld [vmem:[#allocation3 + $0x7a] sm:$0xff]
        %v3887 = vld [vmem:[#allocation3 + $0x82] sm:$0xff]
        %v3888 = vld [vmem:[#allocation3 + $0x92] sm:$0xff]
        %v3889 = vld [vmem:[#allocation3 + $0x9a] sm:$0xff]
        %v3890 = vld [vmem:[#allocation3 + $0xaa] sm:$0xff]
        %v3891 = vld [vmem:[#allocation3 + $0xb2] sm:$0xff]
        %v3892 = vld [vmem:[#allocation3 + $0xc2] sm:$0xff]
        %v3893 = vld [vmem:[#allocation3 + $0xca] sm:$0xff]
        %v3894 = vld [vmem:[#allocation3 + $0xda] sm:$0xff]
        %v3895 = vld [vmem:[#allocation3 + $0xe2] sm:$0xff]
        %v3896 = vld [vmem:[#allocation3 + $0xf2] sm:$0xff]
        %v3897 = vld [vmem:[#allocation3 + $0xfa] sm:$0xff]
        %v3898 = vld [vmem:[#allocation3 + $0x10a] sm:$0xff]
        %v3899 = vld [vmem:[#allocation3 + $0x112] sm:$0xff]
        %v3900 = vld [vmem:[#allocation3 + $0x122] sm:$0xff]
        %v3901 = vld [vmem:[#allocation3 + $0x12a] sm:$0xff]
        %v3902 = vld [vmem:[#allocation3 + $0x13a] sm:$0xff]
        %v3903 = vld [vmem:[#allocation3 + $0x142] sm:$0xff]
        %v3904 = vld [vmem:[#allocation3 + $0x152] sm:$0xff]
        %v3905 = vld [vmem:[#allocation3 + $0x15a] sm:$0xff]
        %v3906 = vld [vmem:[#allocation3 + $0x16a] sm:$0xff]
        %v3907 = vld [vmem:[#allocation3 + $0x172] sm:$0xff]
        %v3908 = vpack.c.bf16 %v3877, %v3876
        %v3909 = vpack.c.bf16 %v3879, %v3878
        %v3910 = vpack.c.bf16 %v3881, %v3880
        %v3911 = vpack.c.bf16 %v3883, %v3882
        %v3912 = vpack.c.bf16 %v3885, %v3884
        %v3913 = vpack.c.bf16 %v3887, %v3886
        %v3914 = vpack.c.bf16 %v3889, %v3888
        %v3915 = vpack.c.bf16 %v3891, %v3890
        %v3916 = vpack.c.bf16 %v3893, %v3892
        %v3917 = vpack.c.bf16 %v3895, %v3894
        %v3918 = vpack.c.bf16 %v3897, %v3896
        %v3919 = vpack.c.bf16 %v3899, %v3898
        %v3920 = vpack.c.bf16 %v3901, %v3900
        %v3921 = vpack.c.bf16 %v3903, %v3902
        %v3922 = vpack.c.bf16 %v3905, %v3904
        %v3923 = vpack.c.bf16 %v3907, %v3906
        %s3924 = scalar_lea.vmem [#allocation4], 128
        %v3925 = vld [vmem:[%s3924] sm:$0xf]
        %v3926 = vld [vmem:[%s3924 + $0x4] sm:$0xf]
        %v3927 = vld [vmem:[%s3924 + $0x8] sm:$0xf]
        %v3928 = vld [vmem:[%s3924 + $0xc] sm:$0xf]
        %v3929 = vld [vmem:[%s3924 + $0x10] sm:$0xf]
        %v3930 = vld [vmem:[%s3924 + $0x14] sm:$0xf]
        %v3931 = vld [vmem:[%s3924 + $0x18] sm:$0xf]
        %v3932 = vld [vmem:[%s3924 + $0x1c] sm:$0xf]
        %v3933 = vld [vmem:[%s3924 + $0x20] sm:$0xf]
        %v3934 = vld [vmem:[%s3924 + $0x24] sm:$0xf]
        %v3935 = vld [vmem:[%s3924 + $0x28] sm:$0xf]
        %v3936 = vld [vmem:[%s3924 + $0x2c] sm:$0xf]
        %v3937 = vld [vmem:[%s3924 + $0x30] sm:$0xf]
        %v3938 = vld [vmem:[%s3924 + $0x34] sm:$0xf]
        %v3939 = vld [vmem:[%s3924 + $0x38] sm:$0xf]
        %v3940 = vld [vmem:[%s3924 + $0x3c] sm:$0xf]
        %v3957 = vunpack.c.l.b16 %v3925
        %v3958 = vunpack.c.l.b16 %v3926
        %v3959 = vunpack.c.l.b16 %v3927
        %v3960 = vunpack.c.l.b16 %v3928
        %v3961 = vunpack.c.l.b16 %v3929
        %v3962 = vunpack.c.l.b16 %v3930
        %v3963 = vunpack.c.l.b16 %v3931
        %v3964 = vunpack.c.l.b16 %v3932
        %v3965 = vunpack.c.l.b16 %v3933
        %v3966 = vunpack.c.l.b16 %v3934
        %v3967 = vunpack.c.l.b16 %v3935
        %v3968 = vunpack.c.l.b16 %v3936
        %v3969 = vunpack.c.l.b16 %v3937
        %v3970 = vunpack.c.l.b16 %v3938
        %v3971 = vunpack.c.l.b16 %v3939
        %v3972 = vunpack.c.l.b16 %v3940
        %v3973 = vpack.c.b16 %v3958, %v3957
        %v3974 = vpack.c.b16 %v3960, %v3959
        %v3975 = vpack.c.b16 %v3962, %v3961
        %v3976 = vpack.c.b16 %v3964, %v3963
        %v3977 = vpack.c.b16 %v3966, %v3965
        %v3978 = vpack.c.b16 %v3968, %v3967
        %v3979 = vpack.c.b16 %v3970, %v3969
        %v3980 = vpack.c.b16 %v3972, %v3971
        %3989 = vmatprep.subr.bf16.mxu0 0
        %3990 = vmatpush1.bf16.msra.mxu0 %v3973
        %3991 = vmatprep.subr.bf16.mxu0 0
        %3992 = vmatpush1.bf16.msra.mxu0 %v3974
        %3993 = vmatprep.subr.bf16.mxu0 0
        %3994 = vmatpush1.bf16.msra.mxu0 %v3975
        %3995 = vmatprep.subr.bf16.mxu0 0
        %3996 = vmatpush1.bf16.msra.mxu0 %v3976
        %3997 = vmatprep.subr.bf16.mxu0 0
        %3998 = vmatpush1.bf16.msra.mxu0 %v3977
        %3999 = vmatprep.subr.bf16.mxu0 0
        %4000 = vmatpush1.bf16.msra.mxu0 %v3978
        %4001 = vmatprep.subr.bf16.mxu0 0
        %4002 = vmatpush1.bf16.msra.mxu0 %v3979
        %4003 = vmatprep.subr.bf16.mxu0 0
        %4004 = vmatpush1.bf16.msra.mxu0 %v3980
        %4005 = vmatprep.subr.bf16.mxu0 0
        %4006 = vmatpush1.bf16.msra.mxu0 0
        %4007 = vmatprep.subr.bf16.mxu0 0
        %4008 = vmatpush1.bf16.msra.mxu0 0
        %4009 = vmatprep.subr.bf16.mxu0 0
        %4010 = vmatpush1.bf16.msra.mxu0 0
        %4011 = vmatprep.subr.bf16.mxu0 0
        %4012 = vmatpush1.bf16.msra.mxu0 0
        %4013 = vmatprep.subr.bf16.mxu0 0
        %4014 = vmatpush1.bf16.msra.mxu0 0
        %4015 = vmatprep.subr.bf16.mxu0 0
        %4016 = vmatpush1.bf16.msra.mxu0 0
        %4017 = vmatprep.subr.bf16.mxu0 0
        %4018 = vmatpush1.bf16.msra.mxu0 0
        %4019 = vmatprep.subr.bf16.mxu0 0
        %4020 = vmatpush1.bf16.msra.mxu0 0
        %4021 = vmatprep.mubr.bf16.mxu0 0
        %4022 = vmatmul.mubr.bf16.gmra.mrb[0].mxu0 %v3908
        %v4023 = vpop.f32.mrb[0].mxu0
        %v4024 = vadd.f32 0.0, %v4023
        %v4025 = vpop.f32.mrb[0].mxu0
        %v4026 = vpop.f32.mrb[0].mxu0
        %v4027 = vadd.f32 0.0, %v4026
        %v4028 = vpop.f32.mrb[0].mxu0
        %4029 = vmatprep.mubr.bf16.mxu0 0
        %4030 = vmatmul.mubr.bf16.gmra.mrb[0].mxu0 %v3909
        %v4031 = vpop.f32.mrb[0].mxu0
        %v4032 = vadd.f32 0.0, %v4031
        %v4033 = vpop.f32.mrb[0].mxu0
        %v4034 = vpop.f32.mrb[0].mxu0
        %v4035 = vadd.f32 0.0, %v4034
        %v4036 = vpop.f32.mrb[0].mxu0
        %4037 = vmatprep.mubr.bf16.mxu0 0
        %4038 = vmatmul.mubr.bf16.gmra.mrb[0].mxu0 %v3910
        %v4039 = vpop.f32.mrb[0].mxu0
        %v4040 = vadd.f32 0.0, %v4039
        %v4041 = vpop.f32.mrb[0].mxu0
        %v4042 = vpop.f32.mrb[0].mxu0
        %v4043 = vadd.f32 0.0, %v4042
        %v4044 = vpop.f32.mrb[0].mxu0
        %4045 = vmatprep.mubr.bf16.mxu0 0
        %4046 = vmatmul.mubr.bf16.gmra.mrb[0].mxu0 %v3911
        %v4047 = vpop.f32.mrb[0].mxu0
        %v4048 = vadd.f32 0.0, %v4047
        %v4049 = vpop.f32.mrb[0].mxu0
        %v4050 = vpop.f32.mrb[0].mxu0
        %v4051 = vadd.f32 0.0, %v4050
        %v4052 = vpop.f32.mrb[0].mxu0
        %4053 = vmatprep.mubr.bf16.mxu0 0
        %4054 = vmatmul.mubr.bf16.gmra.mrb[0].mxu0 %v3912
        %v4055 = vpop.f32.mrb[0].mxu0
        %v4056 = vadd.f32 0.0, %v4055
        %v4057 = vpop.f32.mrb[0].mxu0
        %v4058 = vpop.f32.mrb[0].mxu0
        %v4059 = vadd.f32 0.0, %v4058
        %v4060 = vpop.f32.mrb[0].mxu0
        %4061 = vmatprep.mubr.bf16.mxu0 0
        %4062 = vmatmul.mubr.bf16.gmra.mrb[0].mxu0 %v3913
        %v4063 = vpop.f32.mrb[0].mxu0
        %v4064 = vadd.f32 0.0, %v4063
        %v4065 = vpop.f32.mrb[0].mxu0
        %v4066 = vpop.f32.mrb[0].mxu0
        %v4067 = vadd.f32 0.0, %v4066
        %v4068 = vpop.f32.mrb[0].mxu0
        %4069 = vmatprep.mubr.bf16.mxu0 0
        %4070 = vmatmul.mubr.bf16.gmra.mrb[0].mxu0 %v3914
        %v4071 = vpop.f32.mrb[0].mxu0
        %v4072 = vadd.f32 0.0, %v4071
        %v4073 = vpop.f32.mrb[0].mxu0
        %v4074 = vpop.f32.mrb[0].mxu0
        %v4075 = vadd.f32 0.0, %v4074
        %v4076 = vpop.f32.mrb[0].mxu0
        %4077 = vmatprep.mubr.bf16.mxu0 0
        %4078 = vmatmul.mubr.bf16.gmra.mrb[0].mxu0 %v3915
        %v4079 = vpop.f32.mrb[0].mxu0
        %v4080 = vadd.f32 0.0, %v4079
        %v4081 = vpop.f32.mrb[0].mxu0
        %v4082 = vpop.f32.mrb[0].mxu0
        %v4083 = vadd.f32 0.0, %v4082
        %v4084 = vpop.f32.mrb[0].mxu0
        %4085 = vmatprep.mubr.bf16.mxu0 0
        %4086 = vmatmul.mubr.bf16.gmra.mrb[0].mxu0 %v3916
        %v4087 = vpop.f32.mrb[0].mxu0
        %v4088 = vadd.f32 0.0, %v4087
        %v4089 = vpop.f32.mrb[0].mxu0
        %v4090 = vpop.f32.mrb[0].mxu0
        %v4091 = vadd.f32 0.0, %v4090
        %v4092 = vpop.f32.mrb[0].mxu0
        %4093 = vmatprep.mubr.bf16.mxu0 0
        %4094 = vmatmul.mubr.bf16.gmra.mrb[0].mxu0 %v3917
        %v4095 = vpop.f32.mrb[0].mxu0
        %v4096 = vadd.f32 0.0, %v4095
        %v4097 = vpop.f32.mrb[0].mxu0
        %v4098 = vpop.f32.mrb[0].mxu0
        %v4099 = vadd.f32 0.0, %v4098
        %v4100 = vpop.f32.mrb[0].mxu0
        %4101 = vmatprep.mubr.bf16.mxu0 0
        %4102 = vmatmul.mubr.bf16.gmra.mrb[0].mxu0 %v3918
        %v4103 = vpop.f32.mrb[0].mxu0
        %v4104 = vadd.f32 0.0, %v4103
        %v4105 = vpop.f32.mrb[0].mxu0
        %v4106 = vpop.f32.mrb[0].mxu0
        %v4107 = vadd.f32 0.0, %v4106
        %v4108 = vpop.f32.mrb[0].mxu0
        %4109 = vmatprep.mubr.bf16.mxu0 0
        %4110 = vmatmul.mubr.bf16.gmra.mrb[0].mxu0 %v3919
        %v4111 = vpop.f32.mrb[0].mxu0
        %v4112 = vadd.f32 0.0, %v4111
        %v4113 = vpop.f32.mrb[0].mxu0
        %v4114 = vpop.f32.mrb[0].mxu0
        %v4115 = vadd.f32 0.0, %v4114
        %v4116 = vpop.f32.mrb[0].mxu0
        %4117 = vmatprep.mubr.bf16.mxu0 0
        %4118 = vmatmul.mubr.bf16.gmra.mrb[0].mxu0 %v3920
        %v4119 = vpop.f32.mrb[0].mxu0
        %v4120 = vadd.f32 0.0, %v4119
        %v4121 = vpop.f32.mrb[0].mxu0
        %v4122 = vpop.f32.mrb[0].mxu0
        %v4123 = vadd.f32 0.0, %v4122
        %v4124 = vpop.f32.mrb[0].mxu0
        %4125 = vmatprep.mubr.bf16.mxu0 0
        %4126 = vmatmul.mubr.bf16.gmra.mrb[0].mxu0 %v3921
        %v4127 = vpop.f32.mrb[0].mxu0
        %v4128 = vadd.f32 0.0, %v4127
        %v4129 = vpop.f32.mrb[0].mxu0
        %v4130 = vpop.f32.mrb[0].mxu0
        %v4131 = vadd.f32 0.0, %v4130
        %v4132 = vpop.f32.mrb[0].mxu0
        %4133 = vmatprep.mubr.bf16.mxu0 0
        %4134 = vmatmul.mubr.bf16.gmra.mrb[0].mxu0 %v3922
        %v4135 = vpop.f32.mrb[0].mxu0
        %v4136 = vadd.f32 0.0, %v4135
        %v4137 = vpop.f32.mrb[0].mxu0
        %v4138 = vpop.f32.mrb[0].mxu0
        %v4139 = vadd.f32 0.0, %v4138
        %v4140 = vpop.f32.mrb[0].mxu0
        %4141 = vmatprep.mubr.bf16.mxu0 0
        %4142 = vmatmul.mubr.bf16.gmra.mrb[0].mxu0 %v3923
        %v4143 = vpop.f32.mrb[0].mxu0
        %v4144 = vadd.f32 0.0, %v4143
        %v4145 = vpop.f32.mrb[0].mxu0
        %v4146 = vpop.f32.mrb[0].mxu0
        %v4147 = vadd.f32 0.0, %v4146
        %v4148 = vpop.f32.mrb[0].mxu0
        %4149 = vdwg.mxu0
        %v4150 = vadd.f32 %v3750, %v4024
        %v4151 = vadd.f32 %v3753, %v4027
        %v4152 = vadd.f32 %v3758, %v4032
        %v4153 = vadd.f32 %v3761, %v4035
        %v4154 = vadd.f32 %v3766, %v4040
        %v4155 = vadd.f32 %v3769, %v4043
        %v4156 = vadd.f32 %v3774, %v4048
        %v4157 = vadd.f32 %v3777, %v4051
        %v4158 = vadd.f32 %v3782, %v4056
        %v4159 = vadd.f32 %v3785, %v4059
        %v4160 = vadd.f32 %v3790, %v4064
        %v4161 = vadd.f32 %v3793, %v4067
        %v4162 = vadd.f32 %v3798, %v4072
        %v4163 = vadd.f32 %v3801, %v4075
        %v4164 = vadd.f32 %v3806, %v4080
        %v4165 = vadd.f32 %v3809, %v4083
        %v4166 = vadd.f32 %v3814, %v4088
        %v4167 = vadd.f32 %v3817, %v4091
        %v4168 = vadd.f32 %v3822, %v4096
        %v4169 = vadd.f32 %v3825, %v4099
        %v4170 = vadd.f32 %v3830, %v4104
        %v4171 = vadd.f32 %v3833, %v4107
        %v4172 = vadd.f32 %v3838, %v4112
        %v4173 = vadd.f32 %v3841, %v4115
        %v4174 = vadd.f32 %v3846, %v4120
        %v4175 = vadd.f32 %v3849, %v4123
        %v4176 = vadd.f32 %v3854, %v4128
        %v4177 = vadd.f32 %v3857, %v4131
        %v4178 = vadd.f32 %v3862, %v4136
        %v4179 = vadd.f32 %v3865, %v4139
        %v4180 = vadd.f32 %v3870, %v4144
        %v4181 = vadd.f32 %v3873, %v4147
        %v4182 = vld [vmem:[%s3296] sm:$0xff]
        %v4183 = vld [vmem:[%s3296 + $0x8] sm:$0xff]
        %v4184 = vld [vmem:[%s3296 + $0x18] sm:$0xff]
        %v4185 = vld [vmem:[%s3296 + $0x20] sm:$0xff]
        %v4186 = vld [vmem:[%s3296 + $0x30] sm:$0xff]
        %v4187 = vld [vmem:[%s3296 + $0x38] sm:$0xff]
        %v4188 = vld [vmem:[%s3296 + $0x48] sm:$0xff]
        %v4189 = vld [vmem:[%s3296 + $0x50] sm:$0xff]
        %v4190 = vld [vmem:[%s3296 + $0x60] sm:$0xff]
        %v4191 = vld [vmem:[%s3296 + $0x68] sm:$0xff]
        %v4192 = vld [vmem:[%s3296 + $0x78] sm:$0xff]
        %v4193 = vld [vmem:[%s3296 + $0x80] sm:$0xff]
        %v4194 = vld [vmem:[%s3296 + $0x90] sm:$0xff]
        %v4195 = vld [vmem:[%s3296 + $0x98] sm:$0xff]
        %v4196 = vld [vmem:[%s3296 + $0xa8] sm:$0xff]
        %v4197 = vld [vmem:[%s3296 + $0xb0] sm:$0xff]
        %v4198 = vld [vmem:[%s3296 + $0xc0] sm:$0xff]
        %v4199 = vld [vmem:[%s3296 + $0xc8] sm:$0xff]
        %v4200 = vld [vmem:[%s3296 + $0xd8] sm:$0xff]
        %v4201 = vld [vmem:[%s3296 + $0xe0] sm:$0xff]
        %v4202 = vld [vmem:[%s3296 + $0xf0] sm:$0xff]
        %v4203 = vld [vmem:[%s3296 + $0xf8] sm:$0xff]
        %v4204 = vld [vmem:[%s3296 + $0x108] sm:$0xff]
        %v4205 = vld [vmem:[%s3296 + $0x110] sm:$0xff]
        %v4206 = vld [vmem:[%s3296 + $0x120] sm:$0xff]
        %v4207 = vld [vmem:[%s3296 + $0x128] sm:$0xff]
        %v4208 = vld [vmem:[%s3296 + $0x138] sm:$0xff]
        %v4209 = vld [vmem:[%s3296 + $0x140] sm:$0xff]
        %v4210 = vld [vmem:[%s3296 + $0x150] sm:$0xff]
        %v4211 = vld [vmem:[%s3296 + $0x158] sm:$0xff]
        %v4212 = vld [vmem:[%s3296 + $0x168] sm:$0xff]
        %v4213 = vld [vmem:[%s3296 + $0x170] sm:$0xff]
        %v4214 = vpack.c.bf16 %v4183, %v4182
        %v4215 = vpack.c.bf16 %v4185, %v4184
        %v4216 = vpack.c.bf16 %v4187, %v4186
        %v4217 = vpack.c.bf16 %v4189, %v4188
        %v4218 = vpack.c.bf16 %v4191, %v4190
        %v4219 = vpack.c.bf16 %v4193, %v4192
        %v4220 = vpack.c.bf16 %v4195, %v4194
        %v4221 = vpack.c.bf16 %v4197, %v4196
        %v4222 = vpack.c.bf16 %v4199, %v4198
        %v4223 = vpack.c.bf16 %v4201, %v4200
        %v4224 = vpack.c.bf16 %v4203, %v4202
        %v4225 = vpack.c.bf16 %v4205, %v4204
        %v4226 = vpack.c.bf16 %v4207, %v4206
        %v4227 = vpack.c.bf16 %v4209, %v4208
        %v4228 = vpack.c.bf16 %v4211, %v4210
        %v4229 = vpack.c.bf16 %v4213, %v4212
        %s4230 = scalar_lea.vmem [#allocation4], 192
        %v4231 = vld [vmem:[%s4230] sm:$0xf]
        %v4232 = vld [vmem:[%s4230 + $0x4] sm:$0xf]
        %v4233 = vld [vmem:[%s4230 + $0x8] sm:$0xf]
        %v4234 = vld [vmem:[%s4230 + $0xc] sm:$0xf]
        %v4235 = vld [vmem:[%s4230 + $0x10] sm:$0xf]
        %v4236 = vld [vmem:[%s4230 + $0x14] sm:$0xf]
        %v4237 = vld [vmem:[%s4230 + $0x18] sm:$0xf]
        %v4238 = vld [vmem:[%s4230 + $0x1c] sm:$0xf]
        %v4239 = vld [vmem:[%s4230 + $0x20] sm:$0xf]
        %v4240 = vld [vmem:[%s4230 + $0x24] sm:$0xf]
        %v4241 = vld [vmem:[%s4230 + $0x28] sm:$0xf]
        %v4242 = vld [vmem:[%s4230 + $0x2c] sm:$0xf]
        %v4243 = vld [vmem:[%s4230 + $0x30] sm:$0xf]
        %v4244 = vld [vmem:[%s4230 + $0x34] sm:$0xf]
        %v4245 = vld [vmem:[%s4230 + $0x38] sm:$0xf]
        %v4246 = vld [vmem:[%s4230 + $0x3c] sm:$0xf]
        %v4263 = vunpack.c.l.b16 %v4231
        %v4264 = vunpack.c.l.b16 %v4232
        %v4265 = vunpack.c.l.b16 %v4233
        %v4266 = vunpack.c.l.b16 %v4234
        %v4267 = vunpack.c.l.b16 %v4235
        %v4268 = vunpack.c.l.b16 %v4236
        %v4269 = vunpack.c.l.b16 %v4237
        %v4270 = vunpack.c.l.b16 %v4238
        %v4271 = vunpack.c.l.b16 %v4239
        %v4272 = vunpack.c.l.b16 %v4240
        %v4273 = vunpack.c.l.b16 %v4241
        %v4274 = vunpack.c.l.b16 %v4242
        %v4275 = vunpack.c.l.b16 %v4243
        %v4276 = vunpack.c.l.b16 %v4244
        %v4277 = vunpack.c.l.b16 %v4245
        %v4278 = vunpack.c.l.b16 %v4246
        %v4279 = vpack.c.b16 %v4264, %v4263
        %v4280 = vpack.c.b16 %v4266, %v4265
        %v4281 = vpack.c.b16 %v4268, %v4267
        %v4282 = vpack.c.b16 %v4270, %v4269
        %v4283 = vpack.c.b16 %v4272, %v4271
        %v4284 = vpack.c.b16 %v4274, %v4273
        %v4285 = vpack.c.b16 %v4276, %v4275
        %v4286 = vpack.c.b16 %v4278, %v4277
        %4295 = vmatprep.subr.bf16.mxu0 0
        %4296 = vmatpush1.bf16.msra.mxu0 %v4279
        %4297 = vmatprep.subr.bf16.mxu0 0
        %4298 = vmatpush1.bf16.msra.mxu0 %v4280
        %4299 = vmatprep.subr.bf16.mxu0 0
        %4300 = vmatpush1.bf16.msra.mxu0 %v4281
        %4301 = vmatprep.subr.bf16.mxu0 0
        %4302 = vmatpush1.bf16.msra.mxu0 %v4282
        %4303 = vmatprep.subr.bf16.mxu0 0
        %4304 = vmatpush1.bf16.msra.mxu0 %v4283
        %4305 = vmatprep.subr.bf16.mxu0 0
        %4306 = vmatpush1.bf16.msra.mxu0 %v4284
        %4307 = vmatprep.subr.bf16.mxu0 0
        %4308 = vmatpush1.bf16.msra.mxu0 %v4285
        %4309 = vmatprep.subr.bf16.mxu0 0
        %4310 = vmatpush1.bf16.msra.mxu0 %v4286
        %4311 = vmatprep.subr.bf16.mxu0 0
        %4312 = vmatpush1.bf16.msra.mxu0 0
        %4313 = vmatprep.subr.bf16.mxu0 0
        %4314 = vmatpush1.bf16.msra.mxu0 0
        %4315 = vmatprep.subr.bf16.mxu0 0
        %4316 = vmatpush1.bf16.msra.mxu0 0
        %4317 = vmatprep.subr.bf16.mxu0 0
        %4318 = vmatpush1.bf16.msra.mxu0 0
        %4319 = vmatprep.subr.bf16.mxu0 0
        %4320 = vmatpush1.bf16.msra.mxu0 0
        %4321 = vmatprep.subr.bf16.mxu0 0
        %4322 = vmatpush1.bf16.msra.mxu0 0
        %4323 = vmatprep.subr.bf16.mxu0 0
        %4324 = vmatpush1.bf16.msra.mxu0 0
        %4325 = vmatprep.subr.bf16.mxu0 0
        %4326 = vmatpush1.bf16.msra.mxu0 0
        %4327 = vmatprep.mubr.bf16.mxu0 0
        %4328 = vmatmul.mubr.bf16.gmra.mrb[0].mxu0 %v4214
        %v4329 = vpop.f32.mrb[0].mxu0
        %v4330 = vadd.f32 0.0, %v4329
        %v4331 = vpop.f32.mrb[0].mxu0
        %v4332 = vpop.f32.mrb[0].mxu0
        %v4333 = vadd.f32 0.0, %v4332
        %v4334 = vpop.f32.mrb[0].mxu0
        %4335 = vmatprep.mubr.bf16.mxu0 0
        %4336 = vmatmul.mubr.bf16.gmra.mrb[0].mxu0 %v4215
        %v4337 = vpop.f32.mrb[0].mxu0
        %v4338 = vadd.f32 0.0, %v4337
        %v4339 = vpop.f32.mrb[0].mxu0
        %v4340 = vpop.f32.mrb[0].mxu0
        %v4341 = vadd.f32 0.0, %v4340
        %v4342 = vpop.f32.mrb[0].mxu0
        %4343 = vmatprep.mubr.bf16.mxu0 0
        %4344 = vmatmul.mubr.bf16.gmra.mrb[0].mxu0 %v4216
        %v4345 = vpop.f32.mrb[0].mxu0
        %v4346 = vadd.f32 0.0, %v4345
        %v4347 = vpop.f32.mrb[0].mxu0
        %v4348 = vpop.f32.mrb[0].mxu0
        %v4349 = vadd.f32 0.0, %v4348
        %v4350 = vpop.f32.mrb[0].mxu0
        %4351 = vmatprep.mubr.bf16.mxu0 0
        %4352 = vmatmul.mubr.bf16.gmra.mrb[0].mxu0 %v4217
        %v4353 = vpop.f32.mrb[0].mxu0
        %v4354 = vadd.f32 0.0, %v4353
        %v4355 = vpop.f32.mrb[0].mxu0
        %v4356 = vpop.f32.mrb[0].mxu0
        %v4357 = vadd.f32 0.0, %v4356
        %v4358 = vpop.f32.mrb[0].mxu0
        %4359 = vmatprep.mubr.bf16.mxu0 0
        %4360 = vmatmul.mubr.bf16.gmra.mrb[0].mxu0 %v4218
        %v4361 = vpop.f32.mrb[0].mxu0
        %v4362 = vadd.f32 0.0, %v4361
        %v4363 = vpop.f32.mrb[0].mxu0
        %v4364 = vpop.f32.mrb[0].mxu0
        %v4365 = vadd.f32 0.0, %v4364
        %v4366 = vpop.f32.mrb[0].mxu0
        %4367 = vmatprep.mubr.bf16.mxu0 0
        %4368 = vmatmul.mubr.bf16.gmra.mrb[0].mxu0 %v4219
        %v4369 = vpop.f32.mrb[0].mxu0
        %v4370 = vadd.f32 0.0, %v4369
        %v4371 = vpop.f32.mrb[0].mxu0
        %v4372 = vpop.f32.mrb[0].mxu0
        %v4373 = vadd.f32 0.0, %v4372
        %v4374 = vpop.f32.mrb[0].mxu0
        %4375 = vmatprep.mubr.bf16.mxu0 0
        %4376 = vmatmul.mubr.bf16.gmra.mrb[0].mxu0 %v4220
        %v4377 = vpop.f32.mrb[0].mxu0
        %v4378 = vadd.f32 0.0, %v4377
        %v4379 = vpop.f32.mrb[0].mxu0
        %v4380 = vpop.f32.mrb[0].mxu0
        %v4381 = vadd.f32 0.0, %v4380
        %v4382 = vpop.f32.mrb[0].mxu0
        %4383 = vmatprep.mubr.bf16.mxu0 0
        %4384 = vmatmul.mubr.bf16.gmra.mrb[0].mxu0 %v4221
        %v4385 = vpop.f32.mrb[0].mxu0
        %v4386 = vadd.f32 0.0, %v4385
        %v4387 = vpop.f32.mrb[0].mxu0
        %v4388 = vpop.f32.mrb[0].mxu0
        %v4389 = vadd.f32 0.0, %v4388
        %v4390 = vpop.f32.mrb[0].mxu0
        %4391 = vmatprep.mubr.bf16.mxu0 0
        %4392 = vmatmul.mubr.bf16.gmra.mrb[0].mxu0 %v4222
        %v4393 = vpop.f32.mrb[0].mxu0
        %v4394 = vadd.f32 0.0, %v4393
        %v4395 = vpop.f32.mrb[0].mxu0
        %v4396 = vpop.f32.mrb[0].mxu0
        %v4397 = vadd.f32 0.0, %v4396
        %v4398 = vpop.f32.mrb[0].mxu0
        %4399 = vmatprep.mubr.bf16.mxu0 0
        %4400 = vmatmul.mubr.bf16.gmra.mrb[0].mxu0 %v4223
        %v4401 = vpop.f32.mrb[0].mxu0
        %v4402 = vadd.f32 0.0, %v4401
        %v4403 = vpop.f32.mrb[0].mxu0
        %v4404 = vpop.f32.mrb[0].mxu0
        %v4405 = vadd.f32 0.0, %v4404
        %v4406 = vpop.f32.mrb[0].mxu0
        %4407 = vmatprep.mubr.bf16.mxu0 0
        %4408 = vmatmul.mubr.bf16.gmra.mrb[0].mxu0 %v4224
        %v4409 = vpop.f32.mrb[0].mxu0
        %v4410 = vadd.f32 0.0, %v4409
        %v4411 = vpop.f32.mrb[0].mxu0
        %v4412 = vpop.f32.mrb[0].mxu0
        %v4413 = vadd.f32 0.0, %v4412
        %v4414 = vpop.f32.mrb[0].mxu0
        %4415 = vmatprep.mubr.bf16.mxu0 0
        %4416 = vmatmul.mubr.bf16.gmra.mrb[0].mxu0 %v4225
        %v4417 = vpop.f32.mrb[0].mxu0
        %v4418 = vadd.f32 0.0, %v4417
        %v4419 = vpop.f32.mrb[0].mxu0
        %v4420 = vpop.f32.mrb[0].mxu0
        %v4421 = vadd.f32 0.0, %v4420
        %v4422 = vpop.f32.mrb[0].mxu0
        %4423 = vmatprep.mubr.bf16.mxu0 0
        %4424 = vmatmul.mubr.bf16.gmra.mrb[0].mxu0 %v4226
        %v4425 = vpop.f32.mrb[0].mxu0
        %v4426 = vadd.f32 0.0, %v4425
        %v4427 = vpop.f32.mrb[0].mxu0
        %v4428 = vpop.f32.mrb[0].mxu0
        %v4429 = vadd.f32 0.0, %v4428
        %v4430 = vpop.f32.mrb[0].mxu0
        %4431 = vmatprep.mubr.bf16.mxu0 0
        %4432 = vmatmul.mubr.bf16.gmra.mrb[0].mxu0 %v4227
        %v4433 = vpop.f32.mrb[0].mxu0
        %v4434 = vadd.f32 0.0, %v4433
        %v4435 = vpop.f32.mrb[0].mxu0
        %v4436 = vpop.f32.mrb[0].mxu0
        %v4437 = vadd.f32 0.0, %v4436
        %v4438 = vpop.f32.mrb[0].mxu0
        %4439 = vmatprep.mubr.bf16.mxu0 0
        %4440 = vmatmul.mubr.bf16.gmra.mrb[0].mxu0 %v4228
        %v4441 = vpop.f32.mrb[0].mxu0
        %v4442 = vadd.f32 0.0, %v4441
        %v4443 = vpop.f32.mrb[0].mxu0
        %v4444 = vpop.f32.mrb[0].mxu0
        %v4445 = vadd.f32 0.0, %v4444
        %v4446 = vpop.f32.mrb[0].mxu0
        %4447 = vmatprep.mubr.bf16.mxu0 0
        %4448 = vmatmul.mubr.bf16.gmra.mrb[0].mxu0 %v4229
        %v4449 = vpop.f32.mrb[0].mxu0
        %v4450 = vadd.f32 0.0, %v4449
        %v4451 = vpop.f32.mrb[0].mxu0
        %v4452 = vpop.f32.mrb[0].mxu0
        %v4453 = vadd.f32 0.0, %v4452
        %v4454 = vpop.f32.mrb[0].mxu0
        %4455 = vdwg.mxu0
        %v4456 = vadd.f32 %v4150, %v4330
        %v4457 = vadd.f32 %v4151, %v4333
        %v4458 = vadd.f32 %v4152, %v4338
        %v4459 = vadd.f32 %v4153, %v4341
        %v4460 = vadd.f32 %v4154, %v4346
        %v4461 = vadd.f32 %v4155, %v4349
        %v4462 = vadd.f32 %v4156, %v4354
        %v4463 = vadd.f32 %v4157, %v4357
        %v4464 = vadd.f32 %v4158, %v4362
        %v4465 = vadd.f32 %v4159, %v4365
        %v4466 = vadd.f32 %v4160, %v4370
        %v4467 = vadd.f32 %v4161, %v4373
        %v4468 = vadd.f32 %v4162, %v4378
        %v4469 = vadd.f32 %v4163, %v4381
        %v4470 = vadd.f32 %v4164, %v4386
        %v4471 = vadd.f32 %v4165, %v4389
        %v4472 = vadd.f32 %v4166, %v4394
        %v4473 = vadd.f32 %v4167, %v4397
        %v4474 = vadd.f32 %v4168, %v4402
        %v4475 = vadd.f32 %v4169, %v4405
        %v4476 = vadd.f32 %v4170, %v4410
        %v4477 = vadd.f32 %v4171, %v4413
        %v4478 = vadd.f32 %v4172, %v4418
        %v4479 = vadd.f32 %v4173, %v4421
        %v4480 = vadd.f32 %v4174, %v4426
        %v4481 = vadd.f32 %v4175, %v4429
        %v4482 = vadd.f32 %v4176, %v4434
        %v4483 = vadd.f32 %v4177, %v4437
        %v4484 = vadd.f32 %v4178, %v4442
        %v4485 = vadd.f32 %v4179, %v4445
        %v4486 = vadd.f32 %v4180, %v4450
        %v4487 = vadd.f32 %v4181, %v4453
        %v4488 = vld [vmem:[%s3296 + $0x1] sm:$0xff]
        %v4489 = vld [vmem:[%s3296 + $0x9] sm:$0xff]
        %v4490 = vld [vmem:[%s3296 + $0x19] sm:$0xff]
        %v4491 = vld [vmem:[%s3296 + $0x21] sm:$0xff]
        %v4492 = vld [vmem:[%s3296 + $0x31] sm:$0xff]
        %v4493 = vld [vmem:[%s3296 + $0x39] sm:$0xff]
        %v4494 = vld [vmem:[%s3296 + $0x49] sm:$0xff]
        %v4495 = vld [vmem:[%s3296 + $0x51] sm:$0xff]
        %v4496 = vld [vmem:[%s3296 + $0x61] sm:$0xff]
        %v4497 = vld [vmem:[%s3296 + $0x69] sm:$0xff]
        %v4498 = vld [vmem:[%s3296 + $0x79] sm:$0xff]
        %v4499 = vld [vmem:[%s3296 + $0x81] sm:$0xff]
        %v4500 = vld [vmem:[%s3296 + $0x91] sm:$0xff]
        %v4501 = vld [vmem:[%s3296 + $0x99] sm:$0xff]
        %v4502 = vld [vmem:[%s3296 + $0xa9] sm:$0xff]
        %v4503 = vld [vmem:[%s3296 + $0xb1] sm:$0xff]
        %v4504 = vld [vmem:[%s3296 + $0xc1] sm:$0xff]
        %v4505 = vld [vmem:[%s3296 + $0xc9] sm:$0xff]
        %v4506 = vld [vmem:[%s3296 + $0xd9] sm:$0xff]
        %v4507 = vld [vmem:[%s3296 + $0xe1] sm:$0xff]
        %v4508 = vld [vmem:[%s3296 + $0xf1] sm:$0xff]
        %v4509 = vld [vmem:[%s3296 + $0xf9] sm:$0xff]
        %v4510 = vld [vmem:[%s3296 + $0x109] sm:$0xff]
        %v4511 = vld [vmem:[%s3296 + $0x111] sm:$0xff]
        %v4512 = vld [vmem:[%s3296 + $0x121] sm:$0xff]
        %v4513 = vld [vmem:[%s3296 + $0x129] sm:$0xff]
        %v4514 = vld [vmem:[%s3296 + $0x139] sm:$0xff]
        %v4515 = vld [vmem:[%s3296 + $0x141] sm:$0xff]
        %v4516 = vld [vmem:[%s3296 + $0x151] sm:$0xff]
        %v4517 = vld [vmem:[%s3296 + $0x159] sm:$0xff]
        %v4518 = vld [vmem:[%s3296 + $0x169] sm:$0xff]
        %v4519 = vld [vmem:[%s3296 + $0x171] sm:$0xff]
        %v4520 = vpack.c.bf16 %v4489, %v4488
        %v4521 = vpack.c.bf16 %v4491, %v4490
        %v4522 = vpack.c.bf16 %v4493, %v4492
        %v4523 = vpack.c.bf16 %v4495, %v4494
        %v4524 = vpack.c.bf16 %v4497, %v4496
        %v4525 = vpack.c.bf16 %v4499, %v4498
        %v4526 = vpack.c.bf16 %v4501, %v4500
        %v4527 = vpack.c.bf16 %v4503, %v4502
        %v4528 = vpack.c.bf16 %v4505, %v4504
        %v4529 = vpack.c.bf16 %v4507, %v4506
        %v4530 = vpack.c.bf16 %v4509, %v4508
        %v4531 = vpack.c.bf16 %v4511, %v4510
        %v4532 = vpack.c.bf16 %v4513, %v4512
        %v4533 = vpack.c.bf16 %v4515, %v4514
        %v4534 = vpack.c.bf16 %v4517, %v4516
        %v4535 = vpack.c.bf16 %v4519, %v4518
        %s4536 = scalar_lea.vmem [#allocation4], 256
        %v4537 = vld [vmem:[%s4536] sm:$0xf]
        %v4538 = vld [vmem:[%s4536 + $0x4] sm:$0xf]
        %v4539 = vld [vmem:[%s4536 + $0x8] sm:$0xf]
        %v4540 = vld [vmem:[%s4536 + $0xc] sm:$0xf]
        %v4541 = vld [vmem:[%s4536 + $0x10] sm:$0xf]
        %v4542 = vld [vmem:[%s4536 + $0x14] sm:$0xf]
        %v4543 = vld [vmem:[%s4536 + $0x18] sm:$0xf]
        %v4544 = vld [vmem:[%s4536 + $0x1c] sm:$0xf]
        %v4545 = vld [vmem:[%s4536 + $0x20] sm:$0xf]
        %v4546 = vld [vmem:[%s4536 + $0x24] sm:$0xf]
        %v4547 = vld [vmem:[%s4536 + $0x28] sm:$0xf]
        %v4548 = vld [vmem:[%s4536 + $0x2c] sm:$0xf]
        %v4549 = vld [vmem:[%s4536 + $0x30] sm:$0xf]
        %v4550 = vld [vmem:[%s4536 + $0x34] sm:$0xf]
        %v4551 = vld [vmem:[%s4536 + $0x38] sm:$0xf]
        %v4552 = vld [vmem:[%s4536 + $0x3c] sm:$0xf]
        %v4569 = vunpack.c.l.b16 %v4537
        %v4570 = vunpack.c.l.b16 %v4538
        %v4571 = vunpack.c.l.b16 %v4539
        %v4572 = vunpack.c.l.b16 %v4540
        %v4573 = vunpack.c.l.b16 %v4541
        %v4574 = vunpack.c.l.b16 %v4542
        %v4575 = vunpack.c.l.b16 %v4543
        %v4576 = vunpack.c.l.b16 %v4544
        %v4577 = vunpack.c.l.b16 %v4545
        %v4578 = vunpack.c.l.b16 %v4546
        %v4579 = vunpack.c.l.b16 %v4547
        %v4580 = vunpack.c.l.b16 %v4548
        %v4581 = vunpack.c.l.b16 %v4549
        %v4582 = vunpack.c.l.b16 %v4550
        %v4583 = vunpack.c.l.b16 %v4551
        %v4584 = vunpack.c.l.b16 %v4552
        %v4585 = vpack.c.b16 %v4570, %v4569
        %v4586 = vpack.c.b16 %v4572, %v4571
        %v4587 = vpack.c.b16 %v4574, %v4573
        %v4588 = vpack.c.b16 %v4576, %v4575
        %v4589 = vpack.c.b16 %v4578, %v4577
        %v4590 = vpack.c.b16 %v4580, %v4579
        %v4591 = vpack.c.b16 %v4582, %v4581
        %v4592 = vpack.c.b16 %v4584, %v4583
        %4601 = vmatprep.subr.bf16.mxu0 0
        %4602 = vmatpush1.bf16.msra.mxu0 %v4585
        %4603 = vmatprep.subr.bf16.mxu0 0
        %4604 = vmatpush1.bf16.msra.mxu0 %v4586
        %4605 = vmatprep.subr.bf16.mxu0 0
        %4606 = vmatpush1.bf16.msra.mxu0 %v4587
        %4607 = vmatprep.subr.bf16.mxu0 0
        %4608 = vmatpush1.bf16.msra.mxu0 %v4588
        %4609 = vmatprep.subr.bf16.mxu0 0
        %4610 = vmatpush1.bf16.msra.mxu0 %v4589
        %4611 = vmatprep.subr.bf16.mxu0 0
        %4612 = vmatpush1.bf16.msra.mxu0 %v4590
        %4613 = vmatprep.subr.bf16.mxu0 0
        %4614 = vmatpush1.bf16.msra.mxu0 %v4591
        %4615 = vmatprep.subr.bf16.mxu0 0
        %4616 = vmatpush1.bf16.msra.mxu0 %v4592
        %4617 = vmatprep.subr.bf16.mxu0 0
        %4618 = vmatpush1.bf16.msra.mxu0 0
        %4619 = vmatprep.subr.bf16.mxu0 0
        %4620 = vmatpush1.bf16.msra.mxu0 0
        %4621 = vmatprep.subr.bf16.mxu0 0
        %4622 = vmatpush1.bf16.msra.mxu0 0
        %4623 = vmatprep.subr.bf16.mxu0 0
        %4624 = vmatpush1.bf16.msra.mxu0 0
        %4625 = vmatprep.subr.bf16.mxu0 0
        %4626 = vmatpush1.bf16.msra.mxu0 0
        %4627 = vmatprep.subr.bf16.mxu0 0
        %4628 = vmatpush1.bf16.msra.mxu0 0
        %4629 = vmatprep.subr.bf16.mxu0 0
        %4630 = vmatpush1.bf16.msra.mxu0 0
        %4631 = vmatprep.subr.bf16.mxu0 0
        %4632 = vmatpush1.bf16.msra.mxu0 0
        %4633 = vmatprep.mubr.bf16.mxu0 0
        %4634 = vmatmul.mubr.bf16.gmra.mrb[0].mxu0 %v4520
        %v4635 = vpop.f32.mrb[0].mxu0
        %v4636 = vadd.f32 0.0, %v4635
        %v4637 = vpop.f32.mrb[0].mxu0
        %v4638 = vpop.f32.mrb[0].mxu0
        %v4639 = vadd.f32 0.0, %v4638
        %v4640 = vpop.f32.mrb[0].mxu0
        %4641 = vmatprep.mubr.bf16.mxu0 0
        %4642 = vmatmul.mubr.bf16.gmra.mrb[0].mxu0 %v4521
        %v4643 = vpop.f32.mrb[0].mxu0
        %v4644 = vadd.f32 0.0, %v4643
        %v4645 = vpop.f32.mrb[0].mxu0
        %v4646 = vpop.f32.mrb[0].mxu0
        %v4647 = vadd.f32 0.0, %v4646
        %v4648 = vpop.f32.mrb[0].mxu0
        %4649 = vmatprep.mubr.bf16.mxu0 0
        %4650 = vmatmul.mubr.bf16.gmra.mrb[0].mxu0 %v4522
        %v4651 = vpop.f32.mrb[0].mxu0
        %v4652 = vadd.f32 0.0, %v4651
        %v4653 = vpop.f32.mrb[0].mxu0
        %v4654 = vpop.f32.mrb[0].mxu0
        %v4655 = vadd.f32 0.0, %v4654
        %v4656 = vpop.f32.mrb[0].mxu0
        %4657 = vmatprep.mubr.bf16.mxu0 0
        %4658 = vmatmul.mubr.bf16.gmra.mrb[0].mxu0 %v4523
        %v4659 = vpop.f32.mrb[0].mxu0
        %v4660 = vadd.f32 0.0, %v4659
        %v4661 = vpop.f32.mrb[0].mxu0
        %v4662 = vpop.f32.mrb[0].mxu0
        %v4663 = vadd.f32 0.0, %v4662
        %v4664 = vpop.f32.mrb[0].mxu0
        %4665 = vmatprep.mubr.bf16.mxu0 0
        %4666 = vmatmul.mubr.bf16.gmra.mrb[0].mxu0 %v4524
        %v4667 = vpop.f32.mrb[0].mxu0
        %v4668 = vadd.f32 0.0, %v4667
        %v4669 = vpop.f32.mrb[0].mxu0
        %v4670 = vpop.f32.mrb[0].mxu0
        %v4671 = vadd.f32 0.0, %v4670
        %v4672 = vpop.f32.mrb[0].mxu0
        %4673 = vmatprep.mubr.bf16.mxu0 0
        %4674 = vmatmul.mubr.bf16.gmra.mrb[0].mxu0 %v4525
        %v4675 = vpop.f32.mrb[0].mxu0
        %v4676 = vadd.f32 0.0, %v4675
        %v4677 = vpop.f32.mrb[0].mxu0
        %v4678 = vpop.f32.mrb[0].mxu0
        %v4679 = vadd.f32 0.0, %v4678
        %v4680 = vpop.f32.mrb[0].mxu0
        %4681 = vmatprep.mubr.bf16.mxu0 0
        %4682 = vmatmul.mubr.bf16.gmra.mrb[0].mxu0 %v4526
        %v4683 = vpop.f32.mrb[0].mxu0
        %v4684 = vadd.f32 0.0, %v4683
        %v4685 = vpop.f32.mrb[0].mxu0
        %v4686 = vpop.f32.mrb[0].mxu0
        %v4687 = vadd.f32 0.0, %v4686
        %v4688 = vpop.f32.mrb[0].mxu0
        %4689 = vmatprep.mubr.bf16.mxu0 0
        %4690 = vmatmul.mubr.bf16.gmra.mrb[0].mxu0 %v4527
        %v4691 = vpop.f32.mrb[0].mxu0
        %v4692 = vadd.f32 0.0, %v4691
        %v4693 = vpop.f32.mrb[0].mxu0
        %v4694 = vpop.f32.mrb[0].mxu0
        %v4695 = vadd.f32 0.0, %v4694
        %v4696 = vpop.f32.mrb[0].mxu0
        %4697 = vmatprep.mubr.bf16.mxu0 0
        %4698 = vmatmul.mubr.bf16.gmra.mrb[0].mxu0 %v4528
        %v4699 = vpop.f32.mrb[0].mxu0
        %v4700 = vadd.f32 0.0, %v4699
        %v4701 = vpop.f32.mrb[0].mxu0
        %v4702 = vpop.f32.mrb[0].mxu0
        %v4703 = vadd.f32 0.0, %v4702
        %v4704 = vpop.f32.mrb[0].mxu0
        %4705 = vmatprep.mubr.bf16.mxu0 0
        %4706 = vmatmul.mubr.bf16.gmra.mrb[0].mxu0 %v4529
        %v4707 = vpop.f32.mrb[0].mxu0
        %v4708 = vadd.f32 0.0, %v4707
        %v4709 = vpop.f32.mrb[0].mxu0
        %v4710 = vpop.f32.mrb[0].mxu0
        %v4711 = vadd.f32 0.0, %v4710
        %v4712 = vpop.f32.mrb[0].mxu0
        %4713 = vmatprep.mubr.bf16.mxu0 0
        %4714 = vmatmul.mubr.bf16.gmra.mrb[0].mxu0 %v4530
        %v4715 = vpop.f32.mrb[0].mxu0
        %v4716 = vadd.f32 0.0, %v4715
        %v4717 = vpop.f32.mrb[0].mxu0
        %v4718 = vpop.f32.mrb[0].mxu0
        %v4719 = vadd.f32 0.0, %v4718
        %v4720 = vpop.f32.mrb[0].mxu0
        %4721 = vmatprep.mubr.bf16.mxu0 0
        %4722 = vmatmul.mubr.bf16.gmra.mrb[0].mxu0 %v4531
        %v4723 = vpop.f32.mrb[0].mxu0
        %v4724 = vadd.f32 0.0, %v4723
        %v4725 = vpop.f32.mrb[0].mxu0
        %v4726 = vpop.f32.mrb[0].mxu0
        %v4727 = vadd.f32 0.0, %v4726
        %v4728 = vpop.f32.mrb[0].mxu0
        %4729 = vmatprep.mubr.bf16.mxu0 0
        %4730 = vmatmul.mubr.bf16.gmra.mrb[0].mxu0 %v4532
        %v4731 = vpop.f32.mrb[0].mxu0
        %v4732 = vadd.f32 0.0, %v4731
        %v4733 = vpop.f32.mrb[0].mxu0
        %v4734 = vpop.f32.mrb[0].mxu0
        %v4735 = vadd.f32 0.0, %v4734
        %v4736 = vpop.f32.mrb[0].mxu0
        %4737 = vmatprep.mubr.bf16.mxu0 0
        %4738 = vmatmul.mubr.bf16.gmra.mrb[0].mxu0 %v4533
        %v4739 = vpop.f32.mrb[0].mxu0
        %v4740 = vadd.f32 0.0, %v4739
        %v4741 = vpop.f32.mrb[0].mxu0
        %v4742 = vpop.f32.mrb[0].mxu0
        %v4743 = vadd.f32 0.0, %v4742
        %v4744 = vpop.f32.mrb[0].mxu0
        %4745 = vmatprep.mubr.bf16.mxu0 0
        %4746 = vmatmul.mubr.bf16.gmra.mrb[0].mxu0 %v4534
        %v4747 = vpop.f32.mrb[0].mxu0
        %v4748 = vadd.f32 0.0, %v4747
        %v4749 = vpop.f32.mrb[0].mxu0
        %v4750 = vpop.f32.mrb[0].mxu0
        %v4751 = vadd.f32 0.0, %v4750
        %v4752 = vpop.f32.mrb[0].mxu0
        %4753 = vmatprep.mubr.bf16.mxu0 0
        %4754 = vmatmul.mubr.bf16.gmra.mrb[0].mxu0 %v4535
        %v4755 = vpop.f32.mrb[0].mxu0
        %v4756 = vadd.f32 0.0, %v4755
        %v4757 = vpop.f32.mrb[0].mxu0
        %v4758 = vpop.f32.mrb[0].mxu0
        %v4759 = vadd.f32 0.0, %v4758
        %v4760 = vpop.f32.mrb[0].mxu0
        %4761 = vdwg.mxu0
        %v4762 = vadd.f32 %v4456, %v4636
        %v4763 = vadd.f32 %v4457, %v4639
        %v4764 = vadd.f32 %v4458, %v4644
        %v4765 = vadd.f32 %v4459, %v4647
        %v4766 = vadd.f32 %v4460, %v4652
        %v4767 = vadd.f32 %v4461, %v4655
        %v4768 = vadd.f32 %v4462, %v4660
        %v4769 = vadd.f32 %v4463, %v4663
        %v4770 = vadd.f32 %v4464, %v4668
        %v4771 = vadd.f32 %v4465, %v4671
        %v4772 = vadd.f32 %v4466, %v4676
        %v4773 = vadd.f32 %v4467, %v4679
        %v4774 = vadd.f32 %v4468, %v4684
        %v4775 = vadd.f32 %v4469, %v4687
        %v4776 = vadd.f32 %v4470, %v4692
        %v4777 = vadd.f32 %v4471, %v4695
        %v4778 = vadd.f32 %v4472, %v4700
        %v4779 = vadd.f32 %v4473, %v4703
        %v4780 = vadd.f32 %v4474, %v4708
        %v4781 = vadd.f32 %v4475, %v4711
        %v4782 = vadd.f32 %v4476, %v4716
        %v4783 = vadd.f32 %v4477, %v4719
        %v4784 = vadd.f32 %v4478, %v4724
        %v4785 = vadd.f32 %v4479, %v4727
        %v4786 = vadd.f32 %v4480, %v4732
        %v4787 = vadd.f32 %v4481, %v4735
        %v4788 = vadd.f32 %v4482, %v4740
        %v4789 = vadd.f32 %v4483, %v4743
        %v4790 = vadd.f32 %v4484, %v4748
        %v4791 = vadd.f32 %v4485, %v4751
        %v4792 = vadd.f32 %v4486, %v4756
        %v4793 = vadd.f32 %v4487, %v4759
        %v4794 = vld [vmem:[%s3296 + $0x2] sm:$0xff]
        %v4795 = vld [vmem:[%s3296 + $0xa] sm:$0xff]
        %v4796 = vld [vmem:[%s3296 + $0x1a] sm:$0xff]
        %v4797 = vld [vmem:[%s3296 + $0x22] sm:$0xff]
        %v4798 = vld [vmem:[%s3296 + $0x32] sm:$0xff]
        %v4799 = vld [vmem:[%s3296 + $0x3a] sm:$0xff]
        %v4800 = vld [vmem:[%s3296 + $0x4a] sm:$0xff]
        %v4801 = vld [vmem:[%s3296 + $0x52] sm:$0xff]
        %v4802 = vld [vmem:[%s3296 + $0x62] sm:$0xff]
        %v4803 = vld [vmem:[%s3296 + $0x6a] sm:$0xff]
        %v4804 = vld [vmem:[%s3296 + $0x7a] sm:$0xff]
        %v4805 = vld [vmem:[%s3296 + $0x82] sm:$0xff]
        %v4806 = vld [vmem:[%s3296 + $0x92] sm:$0xff]
        %v4807 = vld [vmem:[%s3296 + $0x9a] sm:$0xff]
        %v4808 = vld [vmem:[%s3296 + $0xaa] sm:$0xff]
        %v4809 = vld [vmem:[%s3296 + $0xb2] sm:$0xff]
        %v4810 = vld [vmem:[%s3296 + $0xc2] sm:$0xff]
        %v4811 = vld [vmem:[%s3296 + $0xca] sm:$0xff]
        %v4812 = vld [vmem:[%s3296 + $0xda] sm:$0xff]
        %v4813 = vld [vmem:[%s3296 + $0xe2] sm:$0xff]
        %v4814 = vld [vmem:[%s3296 + $0xf2] sm:$0xff]
        %v4815 = vld [vmem:[%s3296 + $0xfa] sm:$0xff]
        %v4816 = vld [vmem:[%s3296 + $0x10a] sm:$0xff]
        %v4817 = vld [vmem:[%s3296 + $0x112] sm:$0xff]
        %v4818 = vld [vmem:[%s3296 + $0x122] sm:$0xff]
        %v4819 = vld [vmem:[%s3296 + $0x12a] sm:$0xff]
        %v4820 = vld [vmem:[%s3296 + $0x13a] sm:$0xff]
        %v4821 = vld [vmem:[%s3296 + $0x142] sm:$0xff]
        %v4822 = vld [vmem:[%s3296 + $0x152] sm:$0xff]
        %v4823 = vld [vmem:[%s3296 + $0x15a] sm:$0xff]
        %v4824 = vld [vmem:[%s3296 + $0x16a] sm:$0xff]
        %v4825 = vld [vmem:[%s3296 + $0x172] sm:$0xff]
        %v4826 = vpack.c.bf16 %v4795, %v4794
        %v4827 = vpack.c.bf16 %v4797, %v4796
        %v4828 = vpack.c.bf16 %v4799, %v4798
        %v4829 = vpack.c.bf16 %v4801, %v4800
        %v4830 = vpack.c.bf16 %v4803, %v4802
        %v4831 = vpack.c.bf16 %v4805, %v4804
        %v4832 = vpack.c.bf16 %v4807, %v4806
        %v4833 = vpack.c.bf16 %v4809, %v4808
        %v4834 = vpack.c.bf16 %v4811, %v4810
        %v4835 = vpack.c.bf16 %v4813, %v4812
        %v4836 = vpack.c.bf16 %v4815, %v4814
        %v4837 = vpack.c.bf16 %v4817, %v4816
        %v4838 = vpack.c.bf16 %v4819, %v4818
        %v4839 = vpack.c.bf16 %v4821, %v4820
        %v4840 = vpack.c.bf16 %v4823, %v4822
        %v4841 = vpack.c.bf16 %v4825, %v4824
        %s4842 = scalar_lea.vmem [#allocation4], 320
        %v4843 = vld [vmem:[%s4842] sm:$0xf]
        %v4844 = vld [vmem:[%s4842 + $0x4] sm:$0xf]
        %v4845 = vld [vmem:[%s4842 + $0x8] sm:$0xf]
        %v4846 = vld [vmem:[%s4842 + $0xc] sm:$0xf]
        %v4847 = vld [vmem:[%s4842 + $0x10] sm:$0xf]
        %v4848 = vld [vmem:[%s4842 + $0x14] sm:$0xf]
        %v4849 = vld [vmem:[%s4842 + $0x18] sm:$0xf]
        %v4850 = vld [vmem:[%s4842 + $0x1c] sm:$0xf]
        %v4851 = vld [vmem:[%s4842 + $0x20] sm:$0xf]
        %v4852 = vld [vmem:[%s4842 + $0x24] sm:$0xf]
        %v4853 = vld [vmem:[%s4842 + $0x28] sm:$0xf]
        %v4854 = vld [vmem:[%s4842 + $0x2c] sm:$0xf]
        %v4855 = vld [vmem:[%s4842 + $0x30] sm:$0xf]
        %v4856 = vld [vmem:[%s4842 + $0x34] sm:$0xf]
        %v4857 = vld [vmem:[%s4842 + $0x38] sm:$0xf]
        %v4858 = vld [vmem:[%s4842 + $0x3c] sm:$0xf]
        %v4875 = vunpack.c.l.b16 %v4843
        %v4876 = vunpack.c.l.b16 %v4844
        %v4877 = vunpack.c.l.b16 %v4845
        %v4878 = vunpack.c.l.b16 %v4846
        %v4879 = vunpack.c.l.b16 %v4847
        %v4880 = vunpack.c.l.b16 %v4848
        %v4881 = vunpack.c.l.b16 %v4849
        %v4882 = vunpack.c.l.b16 %v4850
        %v4883 = vunpack.c.l.b16 %v4851
        %v4884 = vunpack.c.l.b16 %v4852
        %v4885 = vunpack.c.l.b16 %v4853
        %v4886 = vunpack.c.l.b16 %v4854
        %v4887 = vunpack.c.l.b16 %v4855
        %v4888 = vunpack.c.l.b16 %v4856
        %v4889 = vunpack.c.l.b16 %v4857
        %v4890 = vunpack.c.l.b16 %v4858
        %v4891 = vpack.c.b16 %v4876, %v4875
        %v4892 = vpack.c.b16 %v4878, %v4877
        %v4893 = vpack.c.b16 %v4880, %v4879
        %v4894 = vpack.c.b16 %v4882, %v4881
        %v4895 = vpack.c.b16 %v4884, %v4883
        %v4896 = vpack.c.b16 %v4886, %v4885
        %v4897 = vpack.c.b16 %v4888, %v4887
        %v4898 = vpack.c.b16 %v4890, %v4889
        %4907 = vmatprep.subr.bf16.mxu0 0
        %4908 = vmatpush1.bf16.msra.mxu0 %v4891
        %4909 = vmatprep.subr.bf16.mxu0 0
        %4910 = vmatpush1.bf16.msra.mxu0 %v4892
        %4911 = vmatprep.subr.bf16.mxu0 0
        %4912 = vmatpush1.bf16.msra.mxu0 %v4893
        %4913 = vmatprep.subr.bf16.mxu0 0
        %4914 = vmatpush1.bf16.msra.mxu0 %v4894
        %4915 = vmatprep.subr.bf16.mxu0 0
        %4916 = vmatpush1.bf16.msra.mxu0 %v4895
        %4917 = vmatprep.subr.bf16.mxu0 0
        %4918 = vmatpush1.bf16.msra.mxu0 %v4896
        %4919 = vmatprep.subr.bf16.mxu0 0
        %4920 = vmatpush1.bf16.msra.mxu0 %v4897
        %4921 = vmatprep.subr.bf16.mxu0 0
        %4922 = vmatpush1.bf16.msra.mxu0 %v4898
        %4923 = vmatprep.subr.bf16.mxu0 0
        %4924 = vmatpush1.bf16.msra.mxu0 0
        %4925 = vmatprep.subr.bf16.mxu0 0
        %4926 = vmatpush1.bf16.msra.mxu0 0
        %4927 = vmatprep.subr.bf16.mxu0 0
        %4928 = vmatpush1.bf16.msra.mxu0 0
        %4929 = vmatprep.subr.bf16.mxu0 0
        %4930 = vmatpush1.bf16.msra.mxu0 0
        %4931 = vmatprep.subr.bf16.mxu0 0
        %4932 = vmatpush1.bf16.msra.mxu0 0
        %4933 = vmatprep.subr.bf16.mxu0 0
        %4934 = vmatpush1.bf16.msra.mxu0 0
        %4935 = vmatprep.subr.bf16.mxu0 0
        %4936 = vmatpush1.bf16.msra.mxu0 0
        %4937 = vmatprep.subr.bf16.mxu0 0
        %4938 = vmatpush1.bf16.msra.mxu0 0
        %4939 = vmatprep.mubr.bf16.mxu0 0
        %4940 = vmatmul.mubr.bf16.gmra.mrb[0].mxu0 %v4826
        %v4941 = vpop.f32.mrb[0].mxu0
        %v4942 = vadd.f32 0.0, %v4941
        %v4943 = vpop.f32.mrb[0].mxu0
        %v4944 = vpop.f32.mrb[0].mxu0
        %v4945 = vadd.f32 0.0, %v4944
        %v4946 = vpop.f32.mrb[0].mxu0
        %4947 = vmatprep.mubr.bf16.mxu0 0
        %4948 = vmatmul.mubr.bf16.gmra.mrb[0].mxu0 %v4827
        %v4949 = vpop.f32.mrb[0].mxu0
        %v4950 = vadd.f32 0.0, %v4949
        %v4951 = vpop.f32.mrb[0].mxu0
        %v4952 = vpop.f32.mrb[0].mxu0
        %v4953 = vadd.f32 0.0, %v4952
        %v4954 = vpop.f32.mrb[0].mxu0
        %4955 = vmatprep.mubr.bf16.mxu0 0
        %4956 = vmatmul.mubr.bf16.gmra.mrb[0].mxu0 %v4828
        %v4957 = vpop.f32.mrb[0].mxu0
        %v4958 = vadd.f32 0.0, %v4957
        %v4959 = vpop.f32.mrb[0].mxu0
        %v4960 = vpop.f32.mrb[0].mxu0
        %v4961 = vadd.f32 0.0, %v4960
        %v4962 = vpop.f32.mrb[0].mxu0
        %4963 = vmatprep.mubr.bf16.mxu0 0
        %4964 = vmatmul.mubr.bf16.gmra.mrb[0].mxu0 %v4829
        %v4965 = vpop.f32.mrb[0].mxu0
        %v4966 = vadd.f32 0.0, %v4965
        %v4967 = vpop.f32.mrb[0].mxu0
        %v4968 = vpop.f32.mrb[0].mxu0
        %v4969 = vadd.f32 0.0, %v4968
        %v4970 = vpop.f32.mrb[0].mxu0
        %4971 = vmatprep.mubr.bf16.mxu0 0
        %4972 = vmatmul.mubr.bf16.gmra.mrb[0].mxu0 %v4830
        %v4973 = vpop.f32.mrb[0].mxu0
        %v4974 = vadd.f32 0.0, %v4973
        %v4975 = vpop.f32.mrb[0].mxu0
        %v4976 = vpop.f32.mrb[0].mxu0
        %v4977 = vadd.f32 0.0, %v4976
        %v4978 = vpop.f32.mrb[0].mxu0
        %4979 = vmatprep.mubr.bf16.mxu0 0
        %4980 = vmatmul.mubr.bf16.gmra.mrb[0].mxu0 %v4831
        %v4981 = vpop.f32.mrb[0].mxu0
        %v4982 = vadd.f32 0.0, %v4981
        %v4983 = vpop.f32.mrb[0].mxu0
        %v4984 = vpop.f32.mrb[0].mxu0
        %v4985 = vadd.f32 0.0, %v4984
        %v4986 = vpop.f32.mrb[0].mxu0
        %4987 = vmatprep.mubr.bf16.mxu0 0
        %4988 = vmatmul.mubr.bf16.gmra.mrb[0].mxu0 %v4832
        %v4989 = vpop.f32.mrb[0].mxu0
        %v4990 = vadd.f32 0.0, %v4989
        %v4991 = vpop.f32.mrb[0].mxu0
        %v4992 = vpop.f32.mrb[0].mxu0
        %v4993 = vadd.f32 0.0, %v4992
        %v4994 = vpop.f32.mrb[0].mxu0
        %4995 = vmatprep.mubr.bf16.mxu0 0
        %4996 = vmatmul.mubr.bf16.gmra.mrb[0].mxu0 %v4833
        %v4997 = vpop.f32.mrb[0].mxu0
        %v4998 = vadd.f32 0.0, %v4997
        %v4999 = vpop.f32.mrb[0].mxu0
        %v5000 = vpop.f32.mrb[0].mxu0
        %v5001 = vadd.f32 0.0, %v5000
        %v5002 = vpop.f32.mrb[0].mxu0
        %5003 = vmatprep.mubr.bf16.mxu0 0
        %5004 = vmatmul.mubr.bf16.gmra.mrb[0].mxu0 %v4834
        %v5005 = vpop.f32.mrb[0].mxu0
        %v5006 = vadd.f32 0.0, %v5005
        %v5007 = vpop.f32.mrb[0].mxu0
        %v5008 = vpop.f32.mrb[0].mxu0
        %v5009 = vadd.f32 0.0, %v5008
        %v5010 = vpop.f32.mrb[0].mxu0
        %5011 = vmatprep.mubr.bf16.mxu0 0
        %5012 = vmatmul.mubr.bf16.gmra.mrb[0].mxu0 %v4835
        %v5013 = vpop.f32.mrb[0].mxu0
        %v5014 = vadd.f32 0.0, %v5013
        %v5015 = vpop.f32.mrb[0].mxu0
        %v5016 = vpop.f32.mrb[0].mxu0
        %v5017 = vadd.f32 0.0, %v5016
        %v5018 = vpop.f32.mrb[0].mxu0
        %5019 = vmatprep.mubr.bf16.mxu0 0
        %5020 = vmatmul.mubr.bf16.gmra.mrb[0].mxu0 %v4836
        %v5021 = vpop.f32.mrb[0].mxu0
        %v5022 = vadd.f32 0.0, %v5021
        %v5023 = vpop.f32.mrb[0].mxu0
        %v5024 = vpop.f32.mrb[0].mxu0
        %v5025 = vadd.f32 0.0, %v5024
        %v5026 = vpop.f32.mrb[0].mxu0
        %5027 = vmatprep.mubr.bf16.mxu0 0
        %5028 = vmatmul.mubr.bf16.gmra.mrb[0].mxu0 %v4837
        %v5029 = vpop.f32.mrb[0].mxu0
        %v5030 = vadd.f32 0.0, %v5029
        %v5031 = vpop.f32.mrb[0].mxu0
        %v5032 = vpop.f32.mrb[0].mxu0
        %v5033 = vadd.f32 0.0, %v5032
        %v5034 = vpop.f32.mrb[0].mxu0
        %5035 = vmatprep.mubr.bf16.mxu0 0
        %5036 = vmatmul.mubr.bf16.gmra.mrb[0].mxu0 %v4838
        %v5037 = vpop.f32.mrb[0].mxu0
        %v5038 = vadd.f32 0.0, %v5037
        %v5039 = vpop.f32.mrb[0].mxu0
        %v5040 = vpop.f32.mrb[0].mxu0
        %v5041 = vadd.f32 0.0, %v5040
        %v5042 = vpop.f32.mrb[0].mxu0
        %5043 = vmatprep.mubr.bf16.mxu0 0
        %5044 = vmatmul.mubr.bf16.gmra.mrb[0].mxu0 %v4839
        %v5045 = vpop.f32.mrb[0].mxu0
        %v5046 = vadd.f32 0.0, %v5045
        %v5047 = vpop.f32.mrb[0].mxu0
        %v5048 = vpop.f32.mrb[0].mxu0
        %v5049 = vadd.f32 0.0, %v5048
        %v5050 = vpop.f32.mrb[0].mxu0
        %5051 = vmatprep.mubr.bf16.mxu0 0
        %5052 = vmatmul.mubr.bf16.gmra.mrb[0].mxu0 %v4840
        %v5053 = vpop.f32.mrb[0].mxu0
        %v5054 = vadd.f32 0.0, %v5053
        %v5055 = vpop.f32.mrb[0].mxu0
        %v5056 = vpop.f32.mrb[0].mxu0
        %v5057 = vadd.f32 0.0, %v5056
        %v5058 = vpop.f32.mrb[0].mxu0
        %5059 = vmatprep.mubr.bf16.mxu0 0
        %5060 = vmatmul.mubr.bf16.gmra.mrb[0].mxu0 %v4841
        %v5061 = vpop.f32.mrb[0].mxu0
        %v5062 = vadd.f32 0.0, %v5061
        %v5063 = vpop.f32.mrb[0].mxu0
        %v5064 = vpop.f32.mrb[0].mxu0
        %v5065 = vadd.f32 0.0, %v5064
        %v5066 = vpop.f32.mrb[0].mxu0
        %5067 = vdwg.mxu0
        %v5068 = vadd.f32 %v4762, %v4942
        %v5069 = vadd.f32 %v4763, %v4945
        %v5070 = vadd.f32 %v4764, %v4950
        %v5071 = vadd.f32 %v4765, %v4953
        %v5072 = vadd.f32 %v4766, %v4958
        %v5073 = vadd.f32 %v4767, %v4961
        %v5074 = vadd.f32 %v4768, %v4966
        %v5075 = vadd.f32 %v4769, %v4969
        %v5076 = vadd.f32 %v4770, %v4974
        %v5077 = vadd.f32 %v4771, %v4977
        %v5078 = vadd.f32 %v4772, %v4982
        %v5079 = vadd.f32 %v4773, %v4985
        %v5080 = vadd.f32 %v4774, %v4990
        %v5081 = vadd.f32 %v4775, %v4993
        %v5082 = vadd.f32 %v4776, %v4998
        %v5083 = vadd.f32 %v4777, %v5001
        %v5084 = vadd.f32 %v4778, %v5006
        %v5085 = vadd.f32 %v4779, %v5009
        %v5086 = vadd.f32 %v4780, %v5014
        %v5087 = vadd.f32 %v4781, %v5017
        %v5088 = vadd.f32 %v4782, %v5022
        %v5089 = vadd.f32 %v4783, %v5025
        %v5090 = vadd.f32 %v4784, %v5030
        %v5091 = vadd.f32 %v4785, %v5033
        %v5092 = vadd.f32 %v4786, %v5038
        %v5093 = vadd.f32 %v4787, %v5041
        %v5094 = vadd.f32 %v4788, %v5046
        %v5095 = vadd.f32 %v4789, %v5049
        %v5096 = vadd.f32 %v4790, %v5054
        %v5097 = vadd.f32 %v4791, %v5057
        %v5098 = vadd.f32 %v4792, %v5062
        %v5099 = vadd.f32 %v4793, %v5065
        %s5100 = scalar_lea.vmem [#allocation3], 48
        %v5101 = vld [vmem:[%s5100] sm:$0xff]
        %v5102 = vld [vmem:[%s5100 + $0x8] sm:$0xff]
        %v5103 = vld [vmem:[%s5100 + $0x18] sm:$0xff]
        %v5104 = vld [vmem:[%s5100 + $0x20] sm:$0xff]
        %v5105 = vld [vmem:[%s5100 + $0x30] sm:$0xff]
        %v5106 = vld [vmem:[%s5100 + $0x38] sm:$0xff]
        %v5107 = vld [vmem:[%s5100 + $0x48] sm:$0xff]
        %v5108 = vld [vmem:[%s5100 + $0x50] sm:$0xff]
        %v5109 = vld [vmem:[%s5100 + $0x60] sm:$0xff]
        %v5110 = vld [vmem:[%s5100 + $0x68] sm:$0xff]
        %v5111 = vld [vmem:[%s5100 + $0x78] sm:$0xff]
        %v5112 = vld [vmem:[%s5100 + $0x80] sm:$0xff]
        %v5113 = vld [vmem:[%s5100 + $0x90] sm:$0xff]
        %v5114 = vld [vmem:[%s5100 + $0x98] sm:$0xff]
        %v5115 = vld [vmem:[%s5100 + $0xa8] sm:$0xff]
        %v5116 = vld [vmem:[%s5100 + $0xb0] sm:$0xff]
        %v5117 = vld [vmem:[%s5100 + $0xc0] sm:$0xff]
        %v5118 = vld [vmem:[%s5100 + $0xc8] sm:$0xff]
        %v5119 = vld [vmem:[%s5100 + $0xd8] sm:$0xff]
        %v5120 = vld [vmem:[%s5100 + $0xe0] sm:$0xff]
        %v5121 = vld [vmem:[%s5100 + $0xf0] sm:$0xff]
        %v5122 = vld [vmem:[%s5100 + $0xf8] sm:$0xff]
        %v5123 = vld [vmem:[%s5100 + $0x108] sm:$0xff]
        %v5124 = vld [vmem:[%s5100 + $0x110] sm:$0xff]
        %v5125 = vld [vmem:[%s5100 + $0x120] sm:$0xff]
        %v5126 = vld [vmem:[%s5100 + $0x128] sm:$0xff]
        %v5127 = vld [vmem:[%s5100 + $0x138] sm:$0xff]
        %v5128 = vld [vmem:[%s5100 + $0x140] sm:$0xff]
        %v5129 = vld [vmem:[%s5100 + $0x150] sm:$0xff]
        %v5130 = vld [vmem:[%s5100 + $0x158] sm:$0xff]
        %v5131 = vld [vmem:[%s5100 + $0x168] sm:$0xff]
        %v5132 = vld [vmem:[%s5100 + $0x170] sm:$0xff]
        %v5133 = vpack.c.bf16 %v5102, %v5101
        %v5134 = vpack.c.bf16 %v5104, %v5103
        %v5135 = vpack.c.bf16 %v5106, %v5105
        %v5136 = vpack.c.bf16 %v5108, %v5107
        %v5137 = vpack.c.bf16 %v5110, %v5109
        %v5138 = vpack.c.bf16 %v5112, %v5111
        %v5139 = vpack.c.bf16 %v5114, %v5113
        %v5140 = vpack.c.bf16 %v5116, %v5115
        %v5141 = vpack.c.bf16 %v5118, %v5117
        %v5142 = vpack.c.bf16 %v5120, %v5119
        %v5143 = vpack.c.bf16 %v5122, %v5121
        %v5144 = vpack.c.bf16 %v5124, %v5123
        %v5145 = vpack.c.bf16 %v5126, %v5125
        %v5146 = vpack.c.bf16 %v5128, %v5127
        %v5147 = vpack.c.bf16 %v5130, %v5129
        %v5148 = vpack.c.bf16 %v5132, %v5131
        %s5149 = scalar_lea.vmem [#allocation4], 384
        %v5150 = vld [vmem:[%s5149] sm:$0xf]
        %v5151 = vld [vmem:[%s5149 + $0x4] sm:$0xf]
        %v5152 = vld [vmem:[%s5149 + $0x8] sm:$0xf]
        %v5153 = vld [vmem:[%s5149 + $0xc] sm:$0xf]
        %v5154 = vld [vmem:[%s5149 + $0x10] sm:$0xf]
        %v5155 = vld [vmem:[%s5149 + $0x14] sm:$0xf]
        %v5156 = vld [vmem:[%s5149 + $0x18] sm:$0xf]
        %v5157 = vld [vmem:[%s5149 + $0x1c] sm:$0xf]
        %v5158 = vld [vmem:[%s5149 + $0x20] sm:$0xf]
        %v5159 = vld [vmem:[%s5149 + $0x24] sm:$0xf]
        %v5160 = vld [vmem:[%s5149 + $0x28] sm:$0xf]
        %v5161 = vld [vmem:[%s5149 + $0x2c] sm:$0xf]
        %v5162 = vld [vmem:[%s5149 + $0x30] sm:$0xf]
        %v5163 = vld [vmem:[%s5149 + $0x34] sm:$0xf]
        %v5164 = vld [vmem:[%s5149 + $0x38] sm:$0xf]
        %v5165 = vld [vmem:[%s5149 + $0x3c] sm:$0xf]
        %v5182 = vunpack.c.l.b16 %v5150
        %v5183 = vunpack.c.l.b16 %v5151
        %v5184 = vunpack.c.l.b16 %v5152
        %v5185 = vunpack.c.l.b16 %v5153
        %v5186 = vunpack.c.l.b16 %v5154
        %v5187 = vunpack.c.l.b16 %v5155
        %v5188 = vunpack.c.l.b16 %v5156
        %v5189 = vunpack.c.l.b16 %v5157
        %v5190 = vunpack.c.l.b16 %v5158
        %v5191 = vunpack.c.l.b16 %v5159
        %v5192 = vunpack.c.l.b16 %v5160
        %v5193 = vunpack.c.l.b16 %v5161
        %v5194 = vunpack.c.l.b16 %v5162
        %v5195 = vunpack.c.l.b16 %v5163
        %v5196 = vunpack.c.l.b16 %v5164
        %v5197 = vunpack.c.l.b16 %v5165
        %v5198 = vpack.c.b16 %v5183, %v5182
        %v5199 = vpack.c.b16 %v5185, %v5184
        %v5200 = vpack.c.b16 %v5187, %v5186
        %v5201 = vpack.c.b16 %v5189, %v5188
        %v5202 = vpack.c.b16 %v5191, %v5190
        %v5203 = vpack.c.b16 %v5193, %v5192
        %v5204 = vpack.c.b16 %v5195, %v5194
        %v5205 = vpack.c.b16 %v5197, %v5196
        %5214 = vmatprep.subr.bf16.mxu0 0
        %5215 = vmatpush1.bf16.msra.mxu0 %v5198
        %5216 = vmatprep.subr.bf16.mxu0 0
        %5217 = vmatpush1.bf16.msra.mxu0 %v5199
        %5218 = vmatprep.subr.bf16.mxu0 0
        %5219 = vmatpush1.bf16.msra.mxu0 %v5200
        %5220 = vmatprep.subr.bf16.mxu0 0
        %5221 = vmatpush1.bf16.msra.mxu0 %v5201
        %5222 = vmatprep.subr.bf16.mxu0 0
        %5223 = vmatpush1.bf16.msra.mxu0 %v5202
        %5224 = vmatprep.subr.bf16.mxu0 0
        %5225 = vmatpush1.bf16.msra.mxu0 %v5203
        %5226 = vmatprep.subr.bf16.mxu0 0
        %5227 = vmatpush1.bf16.msra.mxu0 %v5204
        %5228 = vmatprep.subr.bf16.mxu0 0
        %5229 = vmatpush1.bf16.msra.mxu0 %v5205
        %5230 = vmatprep.subr.bf16.mxu0 0
        %5231 = vmatpush1.bf16.msra.mxu0 0
        %5232 = vmatprep.subr.bf16.mxu0 0
        %5233 = vmatpush1.bf16.msra.mxu0 0
        %5234 = vmatprep.subr.bf16.mxu0 0
        %5235 = vmatpush1.bf16.msra.mxu0 0
        %5236 = vmatprep.subr.bf16.mxu0 0
        %5237 = vmatpush1.bf16.msra.mxu0 0
        %5238 = vmatprep.subr.bf16.mxu0 0
        %5239 = vmatpush1.bf16.msra.mxu0 0
        %5240 = vmatprep.subr.bf16.mxu0 0
        %5241 = vmatpush1.bf16.msra.mxu0 0
        %5242 = vmatprep.subr.bf16.mxu0 0
        %5243 = vmatpush1.bf16.msra.mxu0 0
        %5244 = vmatprep.subr.bf16.mxu0 0
        %5245 = vmatpush1.bf16.msra.mxu0 0
        %5246 = vmatprep.mubr.bf16.mxu0 0
        %5247 = vmatmul.mubr.bf16.gmra.mrb[0].mxu0 %v5133
        %v5248 = vpop.f32.mrb[0].mxu0
        %v5249 = vadd.f32 0.0, %v5248
        %v5250 = vpop.f32.mrb[0].mxu0
        %v5251 = vpop.f32.mrb[0].mxu0
        %v5252 = vadd.f32 0.0, %v5251
        %v5253 = vpop.f32.mrb[0].mxu0
        %5254 = vmatprep.mubr.bf16.mxu0 0
        %5255 = vmatmul.mubr.bf16.gmra.mrb[0].mxu0 %v5134
        %v5256 = vpop.f32.mrb[0].mxu0
        %v5257 = vadd.f32 0.0, %v5256
        %v5258 = vpop.f32.mrb[0].mxu0
        %v5259 = vpop.f32.mrb[0].mxu0
        %v5260 = vadd.f32 0.0, %v5259
        %v5261 = vpop.f32.mrb[0].mxu0
        %5262 = vmatprep.mubr.bf16.mxu0 0
        %5263 = vmatmul.mubr.bf16.gmra.mrb[0].mxu0 %v5135
        %v5264 = vpop.f32.mrb[0].mxu0
        %v5265 = vadd.f32 0.0, %v5264
        %v5266 = vpop.f32.mrb[0].mxu0
        %v5267 = vpop.f32.mrb[0].mxu0
        %v5268 = vadd.f32 0.0, %v5267
        %v5269 = vpop.f32.mrb[0].mxu0
        %5270 = vmatprep.mubr.bf16.mxu0 0
        %5271 = vmatmul.mubr.bf16.gmra.mrb[0].mxu0 %v5136
        %v5272 = vpop.f32.mrb[0].mxu0
        %v5273 = vadd.f32 0.0, %v5272
        %v5274 = vpop.f32.mrb[0].mxu0
        %v5275 = vpop.f32.mrb[0].mxu0
        %v5276 = vadd.f32 0.0, %v5275
        %v5277 = vpop.f32.mrb[0].mxu0
        %5278 = vmatprep.mubr.bf16.mxu0 0
        %5279 = vmatmul.mubr.bf16.gmra.mrb[0].mxu0 %v5137
        %v5280 = vpop.f32.mrb[0].mxu0
        %v5281 = vadd.f32 0.0, %v5280
        %v5282 = vpop.f32.mrb[0].mxu0
        %v5283 = vpop.f32.mrb[0].mxu0
        %v5284 = vadd.f32 0.0, %v5283
        %v5285 = vpop.f32.mrb[0].mxu0
        %5286 = vmatprep.mubr.bf16.mxu0 0
        %5287 = vmatmul.mubr.bf16.gmra.mrb[0].mxu0 %v5138
        %v5288 = vpop.f32.mrb[0].mxu0
        %v5289 = vadd.f32 0.0, %v5288
        %v5290 = vpop.f32.mrb[0].mxu0
        %v5291 = vpop.f32.mrb[0].mxu0
        %v5292 = vadd.f32 0.0, %v5291
        %v5293 = vpop.f32.mrb[0].mxu0
        %5294 = vmatprep.mubr.bf16.mxu0 0
        %5295 = vmatmul.mubr.bf16.gmra.mrb[0].mxu0 %v5139
        %v5296 = vpop.f32.mrb[0].mxu0
        %v5297 = vadd.f32 0.0, %v5296
        %v5298 = vpop.f32.mrb[0].mxu0
        %v5299 = vpop.f32.mrb[0].mxu0
        %v5300 = vadd.f32 0.0, %v5299
        %v5301 = vpop.f32.mrb[0].mxu0
        %5302 = vmatprep.mubr.bf16.mxu0 0
        %5303 = vmatmul.mubr.bf16.gmra.mrb[0].mxu0 %v5140
        %v5304 = vpop.f32.mrb[0].mxu0
        %v5305 = vadd.f32 0.0, %v5304
        %v5306 = vpop.f32.mrb[0].mxu0
        %v5307 = vpop.f32.mrb[0].mxu0
        %v5308 = vadd.f32 0.0, %v5307
        %v5309 = vpop.f32.mrb[0].mxu0
        %5310 = vmatprep.mubr.bf16.mxu0 0
        %5311 = vmatmul.mubr.bf16.gmra.mrb[0].mxu0 %v5141
        %v5312 = vpop.f32.mrb[0].mxu0
        %v5313 = vadd.f32 0.0, %v5312
        %v5314 = vpop.f32.mrb[0].mxu0
        %v5315 = vpop.f32.mrb[0].mxu0
        %v5316 = vadd.f32 0.0, %v5315
        %v5317 = vpop.f32.mrb[0].mxu0
        %5318 = vmatprep.mubr.bf16.mxu0 0
        %5319 = vmatmul.mubr.bf16.gmra.mrb[0].mxu0 %v5142
        %v5320 = vpop.f32.mrb[0].mxu0
        %v5321 = vadd.f32 0.0, %v5320
        %v5322 = vpop.f32.mrb[0].mxu0
        %v5323 = vpop.f32.mrb[0].mxu0
        %v5324 = vadd.f32 0.0, %v5323
        %v5325 = vpop.f32.mrb[0].mxu0
        %5326 = vmatprep.mubr.bf16.mxu0 0
        %5327 = vmatmul.mubr.bf16.gmra.mrb[0].mxu0 %v5143
        %v5328 = vpop.f32.mrb[0].mxu0
        %v5329 = vadd.f32 0.0, %v5328
        %v5330 = vpop.f32.mrb[0].mxu0
        %v5331 = vpop.f32.mrb[0].mxu0
        %v5332 = vadd.f32 0.0, %v5331
        %v5333 = vpop.f32.mrb[0].mxu0
        %5334 = vmatprep.mubr.bf16.mxu0 0
        %5335 = vmatmul.mubr.bf16.gmra.mrb[0].mxu0 %v5144
        %v5336 = vpop.f32.mrb[0].mxu0
        %v5337 = vadd.f32 0.0, %v5336
        %v5338 = vpop.f32.mrb[0].mxu0
        %v5339 = vpop.f32.mrb[0].mxu0
        %v5340 = vadd.f32 0.0, %v5339
        %v5341 = vpop.f32.mrb[0].mxu0
        %5342 = vmatprep.mubr.bf16.mxu0 0
        %5343 = vmatmul.mubr.bf16.gmra.mrb[0].mxu0 %v5145
        %v5344 = vpop.f32.mrb[0].mxu0
        %v5345 = vadd.f32 0.0, %v5344
        %v5346 = vpop.f32.mrb[0].mxu0
        %v5347 = vpop.f32.mrb[0].mxu0
        %v5348 = vadd.f32 0.0, %v5347
        %v5349 = vpop.f32.mrb[0].mxu0
        %5350 = vmatprep.mubr.bf16.mxu0 0
        %5351 = vmatmul.mubr.bf16.gmra.mrb[0].mxu0 %v5146
        %v5352 = vpop.f32.mrb[0].mxu0
        %v5353 = vadd.f32 0.0, %v5352
        %v5354 = vpop.f32.mrb[0].mxu0
        %v5355 = vpop.f32.mrb[0].mxu0
        %v5356 = vadd.f32 0.0, %v5355
        %v5357 = vpop.f32.mrb[0].mxu0
        %5358 = vmatprep.mubr.bf16.mxu0 0
        %5359 = vmatmul.mubr.bf16.gmra.mrb[0].mxu0 %v5147
        %v5360 = vpop.f32.mrb[0].mxu0
        %v5361 = vadd.f32 0.0, %v5360
        %v5362 = vpop.f32.mrb[0].mxu0
        %v5363 = vpop.f32.mrb[0].mxu0
        %v5364 = vadd.f32 0.0, %v5363
        %v5365 = vpop.f32.mrb[0].mxu0
        %5366 = vmatprep.mubr.bf16.mxu0 0
        %5367 = vmatmul.mubr.bf16.gmra.mrb[0].mxu0 %v5148
        %v5368 = vpop.f32.mrb[0].mxu0
        %v5369 = vadd.f32 0.0, %v5368
        %v5370 = vpop.f32.mrb[0].mxu0
        %v5371 = vpop.f32.mrb[0].mxu0
        %v5372 = vadd.f32 0.0, %v5371
        %v5373 = vpop.f32.mrb[0].mxu0
        %5374 = vdwg.mxu0
        %v5375 = vadd.f32 %v5068, %v5249
        %v5376 = vadd.f32 %v5069, %v5252
        %v5377 = vadd.f32 %v5070, %v5257
        %v5378 = vadd.f32 %v5071, %v5260
        %v5379 = vadd.f32 %v5072, %v5265
        %v5380 = vadd.f32 %v5073, %v5268
        %v5381 = vadd.f32 %v5074, %v5273
        %v5382 = vadd.f32 %v5075, %v5276
        %v5383 = vadd.f32 %v5076, %v5281
        %v5384 = vadd.f32 %v5077, %v5284
        %v5385 = vadd.f32 %v5078, %v5289
        %v5386 = vadd.f32 %v5079, %v5292
        %v5387 = vadd.f32 %v5080, %v5297
        %v5388 = vadd.f32 %v5081, %v5300
        %v5389 = vadd.f32 %v5082, %v5305
        %v5390 = vadd.f32 %v5083, %v5308
        %v5391 = vadd.f32 %v5084, %v5313
        %v5392 = vadd.f32 %v5085, %v5316
        %v5393 = vadd.f32 %v5086, %v5321
        %v5394 = vadd.f32 %v5087, %v5324
        %v5395 = vadd.f32 %v5088, %v5329
        %v5396 = vadd.f32 %v5089, %v5332
        %v5397 = vadd.f32 %v5090, %v5337
        %v5398 = vadd.f32 %v5091, %v5340
        %v5399 = vadd.f32 %v5092, %v5345
        %v5400 = vadd.f32 %v5093, %v5348
        %v5401 = vadd.f32 %v5094, %v5353
        %v5402 = vadd.f32 %v5095, %v5356
        %v5403 = vadd.f32 %v5096, %v5361
        %v5404 = vadd.f32 %v5097, %v5364
        %v5405 = vadd.f32 %v5098, %v5369
        %v5406 = vadd.f32 %v5099, %v5372
        %v5407 = vld [vmem:[%s5100 + $0x1] sm:$0xff]
        %v5408 = vld [vmem:[%s5100 + $0x9] sm:$0xff]
        %v5409 = vld [vmem:[%s5100 + $0x19] sm:$0xff]
        %v5410 = vld [vmem:[%s5100 + $0x21] sm:$0xff]
        %v5411 = vld [vmem:[%s5100 + $0x31] sm:$0xff]
        %v5412 = vld [vmem:[%s5100 + $0x39] sm:$0xff]
        %v5413 = vld [vmem:[%s5100 + $0x49] sm:$0xff]
        %v5414 = vld [vmem:[%s5100 + $0x51] sm:$0xff]
        %v5415 = vld [vmem:[%s5100 + $0x61] sm:$0xff]
        %v5416 = vld [vmem:[%s5100 + $0x69] sm:$0xff]
        %v5417 = vld [vmem:[%s5100 + $0x79] sm:$0xff]
        %v5418 = vld [vmem:[%s5100 + $0x81] sm:$0xff]
        %v5419 = vld [vmem:[%s5100 + $0x91] sm:$0xff]
        %v5420 = vld [vmem:[%s5100 + $0x99] sm:$0xff]
        %v5421 = vld [vmem:[%s5100 + $0xa9] sm:$0xff]
        %v5422 = vld [vmem:[%s5100 + $0xb1] sm:$0xff]
        %v5423 = vld [vmem:[%s5100 + $0xc1] sm:$0xff]
        %v5424 = vld [vmem:[%s5100 + $0xc9] sm:$0xff]
        %v5425 = vld [vmem:[%s5100 + $0xd9] sm:$0xff]
        %v5426 = vld [vmem:[%s5100 + $0xe1] sm:$0xff]
        %v5427 = vld [vmem:[%s5100 + $0xf1] sm:$0xff]
        %v5428 = vld [vmem:[%s5100 + $0xf9] sm:$0xff]
        %v5429 = vld [vmem:[%s5100 + $0x109] sm:$0xff]
        %v5430 = vld [vmem:[%s5100 + $0x111] sm:$0xff]
        %v5431 = vld [vmem:[%s5100 + $0x121] sm:$0xff]
        %v5432 = vld [vmem:[%s5100 + $0x129] sm:$0xff]
        %v5433 = vld [vmem:[%s5100 + $0x139] sm:$0xff]
        %v5434 = vld [vmem:[%s5100 + $0x141] sm:$0xff]
        %v5435 = vld [vmem:[%s5100 + $0x151] sm:$0xff]
        %v5436 = vld [vmem:[%s5100 + $0x159] sm:$0xff]
        %v5437 = vld [vmem:[%s5100 + $0x169] sm:$0xff]
        %v5438 = vld [vmem:[%s5100 + $0x171] sm:$0xff]
        %v5439 = vpack.c.bf16 %v5408, %v5407
        %v5440 = vpack.c.bf16 %v5410, %v5409
        %v5441 = vpack.c.bf16 %v5412, %v5411
        %v5442 = vpack.c.bf16 %v5414, %v5413
        %v5443 = vpack.c.bf16 %v5416, %v5415
        %v5444 = vpack.c.bf16 %v5418, %v5417
        %v5445 = vpack.c.bf16 %v5420, %v5419
        %v5446 = vpack.c.bf16 %v5422, %v5421
        %v5447 = vpack.c.bf16 %v5424, %v5423
        %v5448 = vpack.c.bf16 %v5426, %v5425
        %v5449 = vpack.c.bf16 %v5428, %v5427
        %v5450 = vpack.c.bf16 %v5430, %v5429
        %v5451 = vpack.c.bf16 %v5432, %v5431
        %v5452 = vpack.c.bf16 %v5434, %v5433
        %v5453 = vpack.c.bf16 %v5436, %v5435
        %v5454 = vpack.c.bf16 %v5438, %v5437
        %s5455 = scalar_lea.vmem [#allocation4], 448
        %v5456 = vld [vmem:[%s5455] sm:$0xf]
        %v5457 = vld [vmem:[%s5455 + $0x4] sm:$0xf]
        %v5458 = vld [vmem:[%s5455 + $0x8] sm:$0xf]
        %v5459 = vld [vmem:[%s5455 + $0xc] sm:$0xf]
        %v5460 = vld [vmem:[%s5455 + $0x10] sm:$0xf]
        %v5461 = vld [vmem:[%s5455 + $0x14] sm:$0xf]
        %v5462 = vld [vmem:[%s5455 + $0x18] sm:$0xf]
        %v5463 = vld [vmem:[%s5455 + $0x1c] sm:$0xf]
        %v5464 = vld [vmem:[%s5455 + $0x20] sm:$0xf]
        %v5465 = vld [vmem:[%s5455 + $0x24] sm:$0xf]
        %v5466 = vld [vmem:[%s5455 + $0x28] sm:$0xf]
        %v5467 = vld [vmem:[%s5455 + $0x2c] sm:$0xf]
        %v5468 = vld [vmem:[%s5455 + $0x30] sm:$0xf]
        %v5469 = vld [vmem:[%s5455 + $0x34] sm:$0xf]
        %v5470 = vld [vmem:[%s5455 + $0x38] sm:$0xf]
        %v5471 = vld [vmem:[%s5455 + $0x3c] sm:$0xf]
        %v5488 = vunpack.c.l.b16 %v5456
        %v5489 = vunpack.c.l.b16 %v5457
        %v5490 = vunpack.c.l.b16 %v5458
        %v5491 = vunpack.c.l.b16 %v5459
        %v5492 = vunpack.c.l.b16 %v5460
        %v5493 = vunpack.c.l.b16 %v5461
        %v5494 = vunpack.c.l.b16 %v5462
        %v5495 = vunpack.c.l.b16 %v5463
        %v5496 = vunpack.c.l.b16 %v5464
        %v5497 = vunpack.c.l.b16 %v5465
        %v5498 = vunpack.c.l.b16 %v5466
        %v5499 = vunpack.c.l.b16 %v5467
        %v5500 = vunpack.c.l.b16 %v5468
        %v5501 = vunpack.c.l.b16 %v5469
        %v5502 = vunpack.c.l.b16 %v5470
        %v5503 = vunpack.c.l.b16 %v5471
        %v5504 = vpack.c.b16 %v5489, %v5488
        %v5505 = vpack.c.b16 %v5491, %v5490
        %v5506 = vpack.c.b16 %v5493, %v5492
        %v5507 = vpack.c.b16 %v5495, %v5494
        %v5508 = vpack.c.b16 %v5497, %v5496
        %v5509 = vpack.c.b16 %v5499, %v5498
        %v5510 = vpack.c.b16 %v5501, %v5500
        %v5511 = vpack.c.b16 %v5503, %v5502
        %5520 = vmatprep.subr.bf16.mxu0 0
        %5521 = vmatpush1.bf16.msra.mxu0 %v5504
        %5522 = vmatprep.subr.bf16.mxu0 0
        %5523 = vmatpush1.bf16.msra.mxu0 %v5505
        %5524 = vmatprep.subr.bf16.mxu0 0
        %5525 = vmatpush1.bf16.msra.mxu0 %v5506
        %5526 = vmatprep.subr.bf16.mxu0 0
        %5527 = vmatpush1.bf16.msra.mxu0 %v5507
        %5528 = vmatprep.subr.bf16.mxu0 0
        %5529 = vmatpush1.bf16.msra.mxu0 %v5508
        %5530 = vmatprep.subr.bf16.mxu0 0
        %5531 = vmatpush1.bf16.msra.mxu0 %v5509
        %5532 = vmatprep.subr.bf16.mxu0 0
        %5533 = vmatpush1.bf16.msra.mxu0 %v5510
        %5534 = vmatprep.subr.bf16.mxu0 0
        %5535 = vmatpush1.bf16.msra.mxu0 %v5511
        %5536 = vmatprep.subr.bf16.mxu0 0
        %5537 = vmatpush1.bf16.msra.mxu0 0
        %5538 = vmatprep.subr.bf16.mxu0 0
        %5539 = vmatpush1.bf16.msra.mxu0 0
        %5540 = vmatprep.subr.bf16.mxu0 0
        %5541 = vmatpush1.bf16.msra.mxu0 0
        %5542 = vmatprep.subr.bf16.mxu0 0
        %5543 = vmatpush1.bf16.msra.mxu0 0
        %5544 = vmatprep.subr.bf16.mxu0 0
        %5545 = vmatpush1.bf16.msra.mxu0 0
        %5546 = vmatprep.subr.bf16.mxu0 0
        %5547 = vmatpush1.bf16.msra.mxu0 0
        %5548 = vmatprep.subr.bf16.mxu0 0
        %5549 = vmatpush1.bf16.msra.mxu0 0
        %5550 = vmatprep.subr.bf16.mxu0 0
        %5551 = vmatpush1.bf16.msra.mxu0 0
        %5552 = vmatprep.mubr.bf16.mxu0 0
        %5553 = vmatmul.mubr.bf16.gmra.mrb[0].mxu0 %v5439
        %v5554 = vpop.f32.mrb[0].mxu0
        %v5555 = vadd.f32 0.0, %v5554
        %v5556 = vpop.f32.mrb[0].mxu0
        %v5557 = vpop.f32.mrb[0].mxu0
        %v5558 = vadd.f32 0.0, %v5557
        %v5559 = vpop.f32.mrb[0].mxu0
        %5560 = vmatprep.mubr.bf16.mxu0 0
        %5561 = vmatmul.mubr.bf16.gmra.mrb[0].mxu0 %v5440
        %v5562 = vpop.f32.mrb[0].mxu0
        %v5563 = vadd.f32 0.0, %v5562
        %v5564 = vpop.f32.mrb[0].mxu0
        %v5565 = vpop.f32.mrb[0].mxu0
        %v5566 = vadd.f32 0.0, %v5565
        %v5567 = vpop.f32.mrb[0].mxu0
        %5568 = vmatprep.mubr.bf16.mxu0 0
        %5569 = vmatmul.mubr.bf16.gmra.mrb[0].mxu0 %v5441
        %v5570 = vpop.f32.mrb[0].mxu0
        %v5571 = vadd.f32 0.0, %v5570
        %v5572 = vpop.f32.mrb[0].mxu0
        %v5573 = vpop.f32.mrb[0].mxu0
        %v5574 = vadd.f32 0.0, %v5573
        %v5575 = vpop.f32.mrb[0].mxu0
        %5576 = vmatprep.mubr.bf16.mxu0 0
        %5577 = vmatmul.mubr.bf16.gmra.mrb[0].mxu0 %v5442
        %v5578 = vpop.f32.mrb[0].mxu0
        %v5579 = vadd.f32 0.0, %v5578
        %v5580 = vpop.f32.mrb[0].mxu0
        %v5581 = vpop.f32.mrb[0].mxu0
        %v5582 = vadd.f32 0.0, %v5581
        %v5583 = vpop.f32.mrb[0].mxu0
        %5584 = vmatprep.mubr.bf16.mxu0 0
        %5585 = vmatmul.mubr.bf16.gmra.mrb[0].mxu0 %v5443
        %v5586 = vpop.f32.mrb[0].mxu0
        %v5587 = vadd.f32 0.0, %v5586
        %v5588 = vpop.f32.mrb[0].mxu0
        %v5589 = vpop.f32.mrb[0].mxu0
        %v5590 = vadd.f32 0.0, %v5589
        %v5591 = vpop.f32.mrb[0].mxu0
        %5592 = vmatprep.mubr.bf16.mxu0 0
        %5593 = vmatmul.mubr.bf16.gmra.mrb[0].mxu0 %v5444
        %v5594 = vpop.f32.mrb[0].mxu0
        %v5595 = vadd.f32 0.0, %v5594
        %v5596 = vpop.f32.mrb[0].mxu0
        %v5597 = vpop.f32.mrb[0].mxu0
        %v5598 = vadd.f32 0.0, %v5597
        %v5599 = vpop.f32.mrb[0].mxu0
        %5600 = vmatprep.mubr.bf16.mxu0 0
        %5601 = vmatmul.mubr.bf16.gmra.mrb[0].mxu0 %v5445
        %v5602 = vpop.f32.mrb[0].mxu0
        %v5603 = vadd.f32 0.0, %v5602
        %v5604 = vpop.f32.mrb[0].mxu0
        %v5605 = vpop.f32.mrb[0].mxu0
        %v5606 = vadd.f32 0.0, %v5605
        %v5607 = vpop.f32.mrb[0].mxu0
        %5608 = vmatprep.mubr.bf16.mxu0 0
        %5609 = vmatmul.mubr.bf16.gmra.mrb[0].mxu0 %v5446
        %v5610 = vpop.f32.mrb[0].mxu0
        %v5611 = vadd.f32 0.0, %v5610
        %v5612 = vpop.f32.mrb[0].mxu0
        %v5613 = vpop.f32.mrb[0].mxu0
        %v5614 = vadd.f32 0.0, %v5613
        %v5615 = vpop.f32.mrb[0].mxu0
        %5616 = vmatprep.mubr.bf16.mxu0 0
        %5617 = vmatmul.mubr.bf16.gmra.mrb[0].mxu0 %v5447
        %v5618 = vpop.f32.mrb[0].mxu0
        %v5619 = vadd.f32 0.0, %v5618
        %v5620 = vpop.f32.mrb[0].mxu0
        %v5621 = vpop.f32.mrb[0].mxu0
        %v5622 = vadd.f32 0.0, %v5621
        %v5623 = vpop.f32.mrb[0].mxu0
        %5624 = vmatprep.mubr.bf16.mxu0 0
        %5625 = vmatmul.mubr.bf16.gmra.mrb[0].mxu0 %v5448
        %v5626 = vpop.f32.mrb[0].mxu0
        %v5627 = vadd.f32 0.0, %v5626
        %v5628 = vpop.f32.mrb[0].mxu0
        %v5629 = vpop.f32.mrb[0].mxu0
        %v5630 = vadd.f32 0.0, %v5629
        %v5631 = vpop.f32.mrb[0].mxu0
        %5632 = vmatprep.mubr.bf16.mxu0 0
        %5633 = vmatmul.mubr.bf16.gmra.mrb[0].mxu0 %v5449
        %v5634 = vpop.f32.mrb[0].mxu0
        %v5635 = vadd.f32 0.0, %v5634
        %v5636 = vpop.f32.mrb[0].mxu0
        %v5637 = vpop.f32.mrb[0].mxu0
        %v5638 = vadd.f32 0.0, %v5637
        %v5639 = vpop.f32.mrb[0].mxu0
        %5640 = vmatprep.mubr.bf16.mxu0 0
        %5641 = vmatmul.mubr.bf16.gmra.mrb[0].mxu0 %v5450
        %v5642 = vpop.f32.mrb[0].mxu0
        %v5643 = vadd.f32 0.0, %v5642
        %v5644 = vpop.f32.mrb[0].mxu0
        %v5645 = vpop.f32.mrb[0].mxu0
        %v5646 = vadd.f32 0.0, %v5645
        %v5647 = vpop.f32.mrb[0].mxu0
        %5648 = vmatprep.mubr.bf16.mxu0 0
        %5649 = vmatmul.mubr.bf16.gmra.mrb[0].mxu0 %v5451
        %v5650 = vpop.f32.mrb[0].mxu0
        %v5651 = vadd.f32 0.0, %v5650
        %v5652 = vpop.f32.mrb[0].mxu0
        %v5653 = vpop.f32.mrb[0].mxu0
        %v5654 = vadd.f32 0.0, %v5653
        %v5655 = vpop.f32.mrb[0].mxu0
        %5656 = vmatprep.mubr.bf16.mxu0 0
        %5657 = vmatmul.mubr.bf16.gmra.mrb[0].mxu0 %v5452
        %v5658 = vpop.f32.mrb[0].mxu0
        %v5659 = vadd.f32 0.0, %v5658
        %v5660 = vpop.f32.mrb[0].mxu0
        %v5661 = vpop.f32.mrb[0].mxu0
        %v5662 = vadd.f32 0.0, %v5661
        %v5663 = vpop.f32.mrb[0].mxu0
        %5664 = vmatprep.mubr.bf16.mxu0 0
        %5665 = vmatmul.mubr.bf16.gmra.mrb[0].mxu0 %v5453
        %v5666 = vpop.f32.mrb[0].mxu0
        %v5667 = vadd.f32 0.0, %v5666
        %v5668 = vpop.f32.mrb[0].mxu0
        %v5669 = vpop.f32.mrb[0].mxu0
        %v5670 = vadd.f32 0.0, %v5669
        %v5671 = vpop.f32.mrb[0].mxu0
        %5672 = vmatprep.mubr.bf16.mxu0 0
        %5673 = vmatmul.mubr.bf16.gmra.mrb[0].mxu0 %v5454
        %v5674 = vpop.f32.mrb[0].mxu0
        %v5675 = vadd.f32 0.0, %v5674
        %v5676 = vpop.f32.mrb[0].mxu0
        %v5677 = vpop.f32.mrb[0].mxu0
        %v5678 = vadd.f32 0.0, %v5677
        %v5679 = vpop.f32.mrb[0].mxu0
        %5680 = vdwg.mxu0
        %v5681 = vadd.f32 %v5375, %v5555
        %v5682 = vadd.f32 %v5376, %v5558
        %v5683 = vadd.f32 %v5377, %v5563
        %v5684 = vadd.f32 %v5378, %v5566
        %v5685 = vadd.f32 %v5379, %v5571
        %v5686 = vadd.f32 %v5380, %v5574
        %v5687 = vadd.f32 %v5381, %v5579
        %v5688 = vadd.f32 %v5382, %v5582
        %v5689 = vadd.f32 %v5383, %v5587
        %v5690 = vadd.f32 %v5384, %v5590
        %v5691 = vadd.f32 %v5385, %v5595
        %v5692 = vadd.f32 %v5386, %v5598
        %v5693 = vadd.f32 %v5387, %v5603
        %v5694 = vadd.f32 %v5388, %v5606
        %v5695 = vadd.f32 %v5389, %v5611
        %v5696 = vadd.f32 %v5390, %v5614
        %v5697 = vadd.f32 %v5391, %v5619
        %v5698 = vadd.f32 %v5392, %v5622
        %v5699 = vadd.f32 %v5393, %v5627
        %v5700 = vadd.f32 %v5394, %v5630
        %v5701 = vadd.f32 %v5395, %v5635
        %v5702 = vadd.f32 %v5396, %v5638
        %v5703 = vadd.f32 %v5397, %v5643
        %v5704 = vadd.f32 %v5398, %v5646
        %v5705 = vadd.f32 %v5399, %v5651
        %v5706 = vadd.f32 %v5400, %v5654
        %v5707 = vadd.f32 %v5401, %v5659
        %v5708 = vadd.f32 %v5402, %v5662
        %v5709 = vadd.f32 %v5403, %v5667
        %v5710 = vadd.f32 %v5404, %v5670
        %v5711 = vadd.f32 %v5405, %v5675
        %v5712 = vadd.f32 %v5406, %v5678
        %v5713 = vld [vmem:[%s5100 + $0x2] sm:$0xff]
        %v5714 = vld [vmem:[%s5100 + $0xa] sm:$0xff]
        %v5715 = vld [vmem:[%s5100 + $0x1a] sm:$0xff]
        %v5716 = vld [vmem:[%s5100 + $0x22] sm:$0xff]
        %v5717 = vld [vmem:[%s5100 + $0x32] sm:$0xff]
        %v5718 = vld [vmem:[%s5100 + $0x3a] sm:$0xff]
        %v5719 = vld [vmem:[%s5100 + $0x4a] sm:$0xff]
        %v5720 = vld [vmem:[%s5100 + $0x52] sm:$0xff]
        %v5721 = vld [vmem:[%s5100 + $0x62] sm:$0xff]
        %v5722 = vld [vmem:[%s5100 + $0x6a] sm:$0xff]
        %v5723 = vld [vmem:[%s5100 + $0x7a] sm:$0xff]
        %v5724 = vld [vmem:[%s5100 + $0x82] sm:$0xff]
        %v5725 = vld [vmem:[%s5100 + $0x92] sm:$0xff]
        %v5726 = vld [vmem:[%s5100 + $0x9a] sm:$0xff]
        %v5727 = vld [vmem:[%s5100 + $0xaa] sm:$0xff]
        %v5728 = vld [vmem:[%s5100 + $0xb2] sm:$0xff]
        %v5729 = vld [vmem:[%s5100 + $0xc2] sm:$0xff]
        %v5730 = vld [vmem:[%s5100 + $0xca] sm:$0xff]
        %v5731 = vld [vmem:[%s5100 + $0xda] sm:$0xff]
        %v5732 = vld [vmem:[%s5100 + $0xe2] sm:$0xff]
        %v5733 = vld [vmem:[%s5100 + $0xf2] sm:$0xff]
        %v5734 = vld [vmem:[%s5100 + $0xfa] sm:$0xff]
        %v5735 = vld [vmem:[%s5100 + $0x10a] sm:$0xff]
        %v5736 = vld [vmem:[%s5100 + $0x112] sm:$0xff]
        %v5737 = vld [vmem:[%s5100 + $0x122] sm:$0xff]
        %v5738 = vld [vmem:[%s5100 + $0x12a] sm:$0xff]
        %v5739 = vld [vmem:[%s5100 + $0x13a] sm:$0xff]
        %v5740 = vld [vmem:[%s5100 + $0x142] sm:$0xff]
        %v5741 = vld [vmem:[%s5100 + $0x152] sm:$0xff]
        %v5742 = vld [vmem:[%s5100 + $0x15a] sm:$0xff]
        %v5743 = vld [vmem:[%s5100 + $0x16a] sm:$0xff]
        %v5744 = vld [vmem:[%s5100 + $0x172] sm:$0xff]
        %v5745 = vpack.c.bf16 %v5714, %v5713
        %v5746 = vpack.c.bf16 %v5716, %v5715
        %v5747 = vpack.c.bf16 %v5718, %v5717
        %v5748 = vpack.c.bf16 %v5720, %v5719
        %v5749 = vpack.c.bf16 %v5722, %v5721
        %v5750 = vpack.c.bf16 %v5724, %v5723
        %v5751 = vpack.c.bf16 %v5726, %v5725
        %v5752 = vpack.c.bf16 %v5728, %v5727
        %v5753 = vpack.c.bf16 %v5730, %v5729
        %v5754 = vpack.c.bf16 %v5732, %v5731
        %v5755 = vpack.c.bf16 %v5734, %v5733
        %v5756 = vpack.c.bf16 %v5736, %v5735
        %v5757 = vpack.c.bf16 %v5738, %v5737
        %v5758 = vpack.c.bf16 %v5740, %v5739
        %v5759 = vpack.c.bf16 %v5742, %v5741
        %v5760 = vpack.c.bf16 %v5744, %v5743
        %s5761 = scalar_lea.vmem [#allocation4], 512
        %v5762 = vld [vmem:[%s5761] sm:$0xf]
        %v5763 = vld [vmem:[%s5761 + $0x4] sm:$0xf]
        %v5764 = vld [vmem:[%s5761 + $0x8] sm:$0xf]
        %v5765 = vld [vmem:[%s5761 + $0xc] sm:$0xf]
        %v5766 = vld [vmem:[%s5761 + $0x10] sm:$0xf]
        %v5767 = vld [vmem:[%s5761 + $0x14] sm:$0xf]
        %v5768 = vld [vmem:[%s5761 + $0x18] sm:$0xf]
        %v5769 = vld [vmem:[%s5761 + $0x1c] sm:$0xf]
        %v5770 = vld [vmem:[%s5761 + $0x20] sm:$0xf]
        %v5771 = vld [vmem:[%s5761 + $0x24] sm:$0xf]
        %v5772 = vld [vmem:[%s5761 + $0x28] sm:$0xf]
        %v5773 = vld [vmem:[%s5761 + $0x2c] sm:$0xf]
        %v5774 = vld [vmem:[%s5761 + $0x30] sm:$0xf]
        %v5775 = vld [vmem:[%s5761 + $0x34] sm:$0xf]
        %v5776 = vld [vmem:[%s5761 + $0x38] sm:$0xf]
        %v5777 = vld [vmem:[%s5761 + $0x3c] sm:$0xf]
        %v5794 = vunpack.c.l.b16 %v5762
        %v5795 = vunpack.c.l.b16 %v5763
        %v5796 = vunpack.c.l.b16 %v5764
        %v5797 = vunpack.c.l.b16 %v5765
        %v5798 = vunpack.c.l.b16 %v5766
        %v5799 = vunpack.c.l.b16 %v5767
        %v5800 = vunpack.c.l.b16 %v5768
        %v5801 = vunpack.c.l.b16 %v5769
        %v5802 = vunpack.c.l.b16 %v5770
        %v5803 = vunpack.c.l.b16 %v5771
        %v5804 = vunpack.c.l.b16 %v5772
        %v5805 = vunpack.c.l.b16 %v5773
        %v5806 = vunpack.c.l.b16 %v5774
        %v5807 = vunpack.c.l.b16 %v5775
        %v5808 = vunpack.c.l.b16 %v5776
        %v5809 = vunpack.c.l.b16 %v5777
        %v5810 = vpack.c.b16 %v5795, %v5794
        %v5811 = vpack.c.b16 %v5797, %v5796
        %v5812 = vpack.c.b16 %v5799, %v5798
        %v5813 = vpack.c.b16 %v5801, %v5800
        %v5814 = vpack.c.b16 %v5803, %v5802
        %v5815 = vpack.c.b16 %v5805, %v5804
        %v5816 = vpack.c.b16 %v5807, %v5806
        %v5817 = vpack.c.b16 %v5809, %v5808
        %5826 = vmatprep.subr.bf16.mxu0 0
        %5827 = vmatpush1.bf16.msra.mxu0 %v5810
        %5828 = vmatprep.subr.bf16.mxu0 0
        %5829 = vmatpush1.bf16.msra.mxu0 %v5811
        %5830 = vmatprep.subr.bf16.mxu0 0
        %5831 = vmatpush1.bf16.msra.mxu0 %v5812
        %5832 = vmatprep.subr.bf16.mxu0 0
        %5833 = vmatpush1.bf16.msra.mxu0 %v5813
        %5834 = vmatprep.subr.bf16.mxu0 0
        %5835 = vmatpush1.bf16.msra.mxu0 %v5814
        %5836 = vmatprep.subr.bf16.mxu0 0
        %5837 = vmatpush1.bf16.msra.mxu0 %v5815
        %5838 = vmatprep.subr.bf16.mxu0 0
        %5839 = vmatpush1.bf16.msra.mxu0 %v5816
        %5840 = vmatprep.subr.bf16.mxu0 0
        %5841 = vmatpush1.bf16.msra.mxu0 %v5817
        %5842 = vmatprep.subr.bf16.mxu0 0
        %5843 = vmatpush1.bf16.msra.mxu0 0
        %5844 = vmatprep.subr.bf16.mxu0 0
        %5845 = vmatpush1.bf16.msra.mxu0 0
        %5846 = vmatprep.subr.bf16.mxu0 0
        %5847 = vmatpush1.bf16.msra.mxu0 0
        %5848 = vmatprep.subr.bf16.mxu0 0
        %5849 = vmatpush1.bf16.msra.mxu0 0
        %5850 = vmatprep.subr.bf16.mxu0 0
        %5851 = vmatpush1.bf16.msra.mxu0 0
        %5852 = vmatprep.subr.bf16.mxu0 0
        %5853 = vmatpush1.bf16.msra.mxu0 0
        %5854 = vmatprep.subr.bf16.mxu0 0
        %5855 = vmatpush1.bf16.msra.mxu0 0
        %5856 = vmatprep.subr.bf16.mxu0 0
        %5857 = vmatpush1.bf16.msra.mxu0 0
        %5858 = vmatprep.mubr.bf16.mxu0 0
        %5859 = vmatmul.mubr.bf16.gmra.mrb[0].mxu0 %v5745
        %v5860 = vpop.f32.mrb[0].mxu0
        %v5861 = vadd.f32 0.0, %v5860
        %v5862 = vpop.f32.mrb[0].mxu0
        %v5863 = vpop.f32.mrb[0].mxu0
        %v5864 = vadd.f32 0.0, %v5863
        %v5865 = vpop.f32.mrb[0].mxu0
        %5866 = vmatprep.mubr.bf16.mxu0 0
        %5867 = vmatmul.mubr.bf16.gmra.mrb[0].mxu0 %v5746
        %v5868 = vpop.f32.mrb[0].mxu0
        %v5869 = vadd.f32 0.0, %v5868
        %v5870 = vpop.f32.mrb[0].mxu0
        %v5871 = vpop.f32.mrb[0].mxu0
        %v5872 = vadd.f32 0.0, %v5871
        %v5873 = vpop.f32.mrb[0].mxu0
        %5874 = vmatprep.mubr.bf16.mxu0 0
        %5875 = vmatmul.mubr.bf16.gmra.mrb[0].mxu0 %v5747
        %v5876 = vpop.f32.mrb[0].mxu0
        %v5877 = vadd.f32 0.0, %v5876
        %v5878 = vpop.f32.mrb[0].mxu0
        %v5879 = vpop.f32.mrb[0].mxu0
        %v5880 = vadd.f32 0.0, %v5879
        %v5881 = vpop.f32.mrb[0].mxu0
        %5882 = vmatprep.mubr.bf16.mxu0 0
        %5883 = vmatmul.mubr.bf16.gmra.mrb[0].mxu0 %v5748
        %v5884 = vpop.f32.mrb[0].mxu0
        %v5885 = vadd.f32 0.0, %v5884
        %v5886 = vpop.f32.mrb[0].mxu0
        %v5887 = vpop.f32.mrb[0].mxu0
        %v5888 = vadd.f32 0.0, %v5887
        %v5889 = vpop.f32.mrb[0].mxu0
        %5890 = vmatprep.mubr.bf16.mxu0 0
        %5891 = vmatmul.mubr.bf16.gmra.mrb[0].mxu0 %v5749
        %v5892 = vpop.f32.mrb[0].mxu0
        %v5893 = vadd.f32 0.0, %v5892
        %v5894 = vpop.f32.mrb[0].mxu0
        %v5895 = vpop.f32.mrb[0].mxu0
        %v5896 = vadd.f32 0.0, %v5895
        %v5897 = vpop.f32.mrb[0].mxu0
        %5898 = vmatprep.mubr.bf16.mxu0 0
        %5899 = vmatmul.mubr.bf16.gmra.mrb[0].mxu0 %v5750
        %v5900 = vpop.f32.mrb[0].mxu0
        %v5901 = vadd.f32 0.0, %v5900
        %v5902 = vpop.f32.mrb[0].mxu0
        %v5903 = vpop.f32.mrb[0].mxu0
        %v5904 = vadd.f32 0.0, %v5903
        %v5905 = vpop.f32.mrb[0].mxu0
        %5906 = vmatprep.mubr.bf16.mxu0 0
        %5907 = vmatmul.mubr.bf16.gmra.mrb[0].mxu0 %v5751
        %v5908 = vpop.f32.mrb[0].mxu0
        %v5909 = vadd.f32 0.0, %v5908
        %v5910 = vpop.f32.mrb[0].mxu0
        %v5911 = vpop.f32.mrb[0].mxu0
        %v5912 = vadd.f32 0.0, %v5911
        %v5913 = vpop.f32.mrb[0].mxu0
        %5914 = vmatprep.mubr.bf16.mxu0 0
        %5915 = vmatmul.mubr.bf16.gmra.mrb[0].mxu0 %v5752
        %v5916 = vpop.f32.mrb[0].mxu0
        %v5917 = vadd.f32 0.0, %v5916
        %v5918 = vpop.f32.mrb[0].mxu0
        %v5919 = vpop.f32.mrb[0].mxu0
        %v5920 = vadd.f32 0.0, %v5919
        %v5921 = vpop.f32.mrb[0].mxu0
        %5922 = vmatprep.mubr.bf16.mxu0 0
        %5923 = vmatmul.mubr.bf16.gmra.mrb[0].mxu0 %v5753
        %v5924 = vpop.f32.mrb[0].mxu0
        %v5925 = vadd.f32 0.0, %v5924
        %v5926 = vpop.f32.mrb[0].mxu0
        %v5927 = vpop.f32.mrb[0].mxu0
        %v5928 = vadd.f32 0.0, %v5927
        %v5929 = vpop.f32.mrb[0].mxu0
        %5930 = vmatprep.mubr.bf16.mxu0 0
        %5931 = vmatmul.mubr.bf16.gmra.mrb[0].mxu0 %v5754
        %v5932 = vpop.f32.mrb[0].mxu0
        %v5933 = vadd.f32 0.0, %v5932
        %v5934 = vpop.f32.mrb[0].mxu0
        %v5935 = vpop.f32.mrb[0].mxu0
        %v5936 = vadd.f32 0.0, %v5935
        %v5937 = vpop.f32.mrb[0].mxu0
        %5938 = vmatprep.mubr.bf16.mxu0 0
        %5939 = vmatmul.mubr.bf16.gmra.mrb[0].mxu0 %v5755
        %v5940 = vpop.f32.mrb[0].mxu0
        %v5941 = vadd.f32 0.0, %v5940
        %v5942 = vpop.f32.mrb[0].mxu0
        %v5943 = vpop.f32.mrb[0].mxu0
        %v5944 = vadd.f32 0.0, %v5943
        %v5945 = vpop.f32.mrb[0].mxu0
        %5946 = vmatprep.mubr.bf16.mxu0 0
        %5947 = vmatmul.mubr.bf16.gmra.mrb[0].mxu0 %v5756
        %v5948 = vpop.f32.mrb[0].mxu0
        %v5949 = vadd.f32 0.0, %v5948
        %v5950 = vpop.f32.mrb[0].mxu0
        %v5951 = vpop.f32.mrb[0].mxu0
        %v5952 = vadd.f32 0.0, %v5951
        %v5953 = vpop.f32.mrb[0].mxu0
        %5954 = vmatprep.mubr.bf16.mxu0 0
        %5955 = vmatmul.mubr.bf16.gmra.mrb[0].mxu0 %v5757
        %v5956 = vpop.f32.mrb[0].mxu0
        %v5957 = vadd.f32 0.0, %v5956
        %v5958 = vpop.f32.mrb[0].mxu0
        %v5959 = vpop.f32.mrb[0].mxu0
        %v5960 = vadd.f32 0.0, %v5959
        %v5961 = vpop.f32.mrb[0].mxu0
        %5962 = vmatprep.mubr.bf16.mxu0 0
        %5963 = vmatmul.mubr.bf16.gmra.mrb[0].mxu0 %v5758
        %v5964 = vpop.f32.mrb[0].mxu0
        %v5965 = vadd.f32 0.0, %v5964
        %v5966 = vpop.f32.mrb[0].mxu0
        %v5967 = vpop.f32.mrb[0].mxu0
        %v5968 = vadd.f32 0.0, %v5967
        %v5969 = vpop.f32.mrb[0].mxu0
        %5970 = vmatprep.mubr.bf16.mxu0 0
        %5971 = vmatmul.mubr.bf16.gmra.mrb[0].mxu0 %v5759
        %v5972 = vpop.f32.mrb[0].mxu0
        %v5973 = vadd.f32 0.0, %v5972
        %v5974 = vpop.f32.mrb[0].mxu0
        %v5975 = vpop.f32.mrb[0].mxu0
        %v5976 = vadd.f32 0.0, %v5975
        %v5977 = vpop.f32.mrb[0].mxu0
        %5978 = vmatprep.mubr.bf16.mxu0 0
        %5979 = vmatmul.mubr.bf16.gmra.mrb[0].mxu0 %v5760
        %v5980 = vpop.f32.mrb[0].mxu0
        %v5981 = vadd.f32 0.0, %v5980
        %v5982 = vpop.f32.mrb[0].mxu0
        %v5983 = vpop.f32.mrb[0].mxu0
        %v5984 = vadd.f32 0.0, %v5983
        %v5985 = vpop.f32.mrb[0].mxu0
        %5986 = vdwg.mxu0
        %v5987 = vadd.f32 %v5681, %v5861
        %v5988 = vadd.f32 %v5682, %v5864
        %v5989 = vadd.f32 %v5683, %v5869
        %v5990 = vadd.f32 %v5684, %v5872
        %v5991 = vadd.f32 %v5685, %v5877
        %v5992 = vadd.f32 %v5686, %v5880
        %v5993 = vadd.f32 %v5687, %v5885
        %v5994 = vadd.f32 %v5688, %v5888
        %v5995 = vadd.f32 %v5689, %v5893
        %v5996 = vadd.f32 %v5690, %v5896
        %v5997 = vadd.f32 %v5691, %v5901
        %v5998 = vadd.f32 %v5692, %v5904
        %v5999 = vadd.f32 %v5693, %v5909
        %v6000 = vadd.f32 %v5694, %v5912
        %v6001 = vadd.f32 %v5695, %v5917
        %v6002 = vadd.f32 %v5696, %v5920
        %v6003 = vadd.f32 %v5697, %v5925
        %v6004 = vadd.f32 %v5698, %v5928
        %v6005 = vadd.f32 %v5699, %v5933
        %v6006 = vadd.f32 %v5700, %v5936
        %v6007 = vadd.f32 %v5701, %v5941
        %v6008 = vadd.f32 %v5702, %v5944
        %v6009 = vadd.f32 %v5703, %v5949
        %v6010 = vadd.f32 %v5704, %v5952
        %v6011 = vadd.f32 %v5705, %v5957
        %v6012 = vadd.f32 %v5706, %v5960
        %v6013 = vadd.f32 %v5707, %v5965
        %v6014 = vadd.f32 %v5708, %v5968
        %v6015 = vadd.f32 %v5709, %v5973
        %v6016 = vadd.f32 %v5710, %v5976
        %v6017 = vadd.f32 %v5711, %v5981
        %v6018 = vadd.f32 %v5712, %v5984
        %v6019 = vld [vmem:[%s5] sm:$0x1]
        %v6021 = vlaneseq
        %v6022 = vshrl.u32 %v6021, 7
        %v6023 = vsub.s32 0, %v6022
        %v6024 = vrot.slane %v6019, %v6023
        %v6026 = vmul.f32 %v5987, %v6024
        %v6027 = vmul.f32 %v5988, %v6024
        %v6028 = vmul.f32 %v5989, %v6024
        %v6029 = vmul.f32 %v5990, %v6024
        %v6030 = vmul.f32 %v5991, %v6024
        %v6031 = vmul.f32 %v5992, %v6024
        %v6032 = vmul.f32 %v5993, %v6024
        %v6033 = vmul.f32 %v5994, %v6024
        %v6034 = vmul.f32 %v5995, %v6024
        %v6035 = vmul.f32 %v5996, %v6024
        %v6036 = vmul.f32 %v5997, %v6024
        %v6037 = vmul.f32 %v5998, %v6024
        %v6038 = vmul.f32 %v5999, %v6024
        %v6039 = vmul.f32 %v6000, %v6024
        %v6040 = vmul.f32 %v6001, %v6024
        %v6041 = vmul.f32 %v6002, %v6024
        %v6042 = vmul.f32 %v6003, %v6024
        %v6043 = vmul.f32 %v6004, %v6024
        %v6044 = vmul.f32 %v6005, %v6024
        %v6045 = vmul.f32 %v6006, %v6024
        %v6046 = vmul.f32 %v6007, %v6024
        %v6047 = vmul.f32 %v6008, %v6024
        %v6048 = vmul.f32 %v6009, %v6024
        %v6049 = vmul.f32 %v6010, %v6024
        %v6050 = vmul.f32 %v6011, %v6024
        %v6051 = vmul.f32 %v6012, %v6024
        %v6052 = vmul.f32 %v6013, %v6024
        %v6053 = vmul.f32 %v6014, %v6024
        %v6054 = vmul.f32 %v6015, %v6024
        %v6055 = vmul.f32 %v6016, %v6024
        %v6056 = vmul.f32 %v6017, %v6024
        %v6057 = vmul.f32 %v6018, %v6024
        %v6058 = vld [vmem:[%s6] sm:$0x1]
        %v6060 = vlaneseq
        %v6061 = vshrl.u32 %v6060, 7
        %v6062 = vsub.s32 0, %v6061
        %v6063 = vrot.slane %v6058, %v6062
        %v6065 = vadd.f32 %v6026, %v6063
        %v6066 = vadd.f32 %v6027, %v6063
        %v6067 = vadd.f32 %v6028, %v6063
        %v6068 = vadd.f32 %v6029, %v6063
        %v6069 = vadd.f32 %v6030, %v6063
        %v6070 = vadd.f32 %v6031, %v6063
        %v6071 = vadd.f32 %v6032, %v6063
        %v6072 = vadd.f32 %v6033, %v6063
        %v6073 = vadd.f32 %v6034, %v6063
        %v6074 = vadd.f32 %v6035, %v6063
        %v6075 = vadd.f32 %v6036, %v6063
        %v6076 = vadd.f32 %v6037, %v6063
        %v6077 = vadd.f32 %v6038, %v6063
        %v6078 = vadd.f32 %v6039, %v6063
        %v6079 = vadd.f32 %v6040, %v6063
        %v6080 = vadd.f32 %v6041, %v6063
        %v6081 = vadd.f32 %v6042, %v6063
        %v6082 = vadd.f32 %v6043, %v6063
        %v6083 = vadd.f32 %v6044, %v6063
        %v6084 = vadd.f32 %v6045, %v6063
        %v6085 = vadd.f32 %v6046, %v6063
        %v6086 = vadd.f32 %v6047, %v6063
        %v6087 = vadd.f32 %v6048, %v6063
        %v6088 = vadd.f32 %v6049, %v6063
        %v6089 = vadd.f32 %v6050, %v6063
        %v6090 = vadd.f32 %v6051, %v6063
        %v6091 = vadd.f32 %v6052, %v6063
        %v6092 = vadd.f32 %v6053, %v6063
        %v6093 = vadd.f32 %v6054, %v6063
        %v6094 = vadd.f32 %v6055, %v6063
        %v6095 = vadd.f32 %v6056, %v6063
        %v6096 = vadd.f32 %v6057, %v6063
        %v6097 = vmax.f32 %v6065, 0.0
        %v6098 = vmax.f32 %v6066, 0.0
        %v6099 = vmax.f32 %v6067, 0.0
        %v6100 = vmax.f32 %v6068, 0.0
        %v6101 = vmax.f32 %v6069, 0.0
        %v6102 = vmax.f32 %v6070, 0.0
        %v6103 = vmax.f32 %v6071, 0.0
        %v6104 = vmax.f32 %v6072, 0.0
        %v6105 = vmax.f32 %v6073, 0.0
        %v6106 = vmax.f32 %v6074, 0.0
        %v6107 = vmax.f32 %v6075, 0.0
        %v6108 = vmax.f32 %v6076, 0.0
        %v6109 = vmax.f32 %v6077, 0.0
        %v6110 = vmax.f32 %v6078, 0.0
        %v6111 = vmax.f32 %v6079, 0.0
        %v6112 = vmax.f32 %v6080, 0.0
        %v6113 = vmax.f32 %v6081, 0.0
        %v6114 = vmax.f32 %v6082, 0.0
        %v6115 = vmax.f32 %v6083, 0.0
        %v6116 = vmax.f32 %v6084, 0.0
        %v6117 = vmax.f32 %v6085, 0.0
        %v6118 = vmax.f32 %v6086, 0.0
        %v6119 = vmax.f32 %v6087, 0.0
        %v6120 = vmax.f32 %v6088, 0.0
        %v6121 = vmax.f32 %v6089, 0.0
        %v6122 = vmax.f32 %v6090, 0.0
        %v6123 = vmax.f32 %v6091, 0.0
        %v6124 = vmax.f32 %v6092, 0.0
        %v6125 = vmax.f32 %v6093, 0.0
        %v6126 = vmax.f32 %v6094, 0.0
        %v6127 = vmax.f32 %v6095, 0.0
        %v6128 = vmax.f32 %v6096, 0.0
        %v6129 = vld [vmem:[%s408 + $0x1] sm:$0xff]
        %v6130 = vld [vmem:[%s408 + $0x9] sm:$0xff]
        %v6131 = vld [vmem:[%s408 + $0x19] sm:$0xff]
        %v6132 = vld [vmem:[%s408 + $0x21] sm:$0xff]
        %v6133 = vld [vmem:[%s408 + $0x31] sm:$0xff]
        %v6134 = vld [vmem:[%s408 + $0x39] sm:$0xff]
        %v6135 = vld [vmem:[%s408 + $0x49] sm:$0xff]
        %v6136 = vld [vmem:[%s408 + $0x51] sm:$0xff]
        %v6137 = vld [vmem:[%s408 + $0x61] sm:$0xff]
        %v6138 = vld [vmem:[%s408 + $0x69] sm:$0xff]
        %v6139 = vld [vmem:[%s408 + $0x79] sm:$0xff]
        %v6140 = vld [vmem:[%s408 + $0x81] sm:$0xff]
        %v6141 = vld [vmem:[%s408 + $0x91] sm:$0xff]
        %v6142 = vld [vmem:[%s408 + $0x99] sm:$0xff]
        %v6143 = vld [vmem:[%s408 + $0xa9] sm:$0xff]
        %v6144 = vld [vmem:[%s408 + $0xb1] sm:$0xff]
        %v6145 = vld [vmem:[%s408 + $0xc1] sm:$0xff]
        %v6146 = vld [vmem:[%s408 + $0xc9] sm:$0xff]
        %v6147 = vld [vmem:[%s408 + $0xd9] sm:$0xff]
        %v6148 = vld [vmem:[%s408 + $0xe1] sm:$0xff]
        %v6149 = vld [vmem:[%s408 + $0xf1] sm:$0xff]
        %v6150 = vld [vmem:[%s408 + $0xf9] sm:$0xff]
        %v6151 = vld [vmem:[%s408 + $0x109] sm:$0xff]
        %v6152 = vld [vmem:[%s408 + $0x111] sm:$0xff]
        %v6153 = vld [vmem:[%s408 + $0x121] sm:$0xff]
        %v6154 = vld [vmem:[%s408 + $0x129] sm:$0xff]
        %v6155 = vld [vmem:[%s408 + $0x139] sm:$0xff]
        %v6156 = vld [vmem:[%s408 + $0x141] sm:$0xff]
        %v6157 = vld [vmem:[%s408 + $0x151] sm:$0xff]
        %v6158 = vld [vmem:[%s408 + $0x159] sm:$0xff]
        %v6159 = vld [vmem:[%s408 + $0x169] sm:$0xff]
        %v6160 = vld [vmem:[%s408 + $0x171] sm:$0xff]
        %v6161 = vpack.c.bf16 %v6130, %v6129
        %v6162 = vpack.c.bf16 %v6132, %v6131
        %v6163 = vpack.c.bf16 %v6134, %v6133
        %v6164 = vpack.c.bf16 %v6136, %v6135
        %v6165 = vpack.c.bf16 %v6138, %v6137
        %v6166 = vpack.c.bf16 %v6140, %v6139
        %v6167 = vpack.c.bf16 %v6142, %v6141
        %v6168 = vpack.c.bf16 %v6144, %v6143
        %v6169 = vpack.c.bf16 %v6146, %v6145
        %v6170 = vpack.c.bf16 %v6148, %v6147
        %v6171 = vpack.c.bf16 %v6150, %v6149
        %v6172 = vpack.c.bf16 %v6152, %v6151
        %v6173 = vpack.c.bf16 %v6154, %v6153
        %v6174 = vpack.c.bf16 %v6156, %v6155
        %v6175 = vpack.c.bf16 %v6158, %v6157
        %v6176 = vpack.c.bf16 %v6160, %v6159
        %v6177 = vld [vmem:[%s7] sm:$0xf]
        %v6178 = vld [vmem:[%s7 + $0x4] sm:$0xf]
        %v6179 = vld [vmem:[%s7 + $0x8] sm:$0xf]
        %v6180 = vld [vmem:[%s7 + $0xc] sm:$0xf]
        %v6181 = vld [vmem:[%s7 + $0x10] sm:$0xf]
        %v6182 = vld [vmem:[%s7 + $0x14] sm:$0xf]
        %v6183 = vld [vmem:[%s7 + $0x18] sm:$0xf]
        %v6184 = vld [vmem:[%s7 + $0x1c] sm:$0xf]
        %v6185 = vld [vmem:[%s7 + $0x20] sm:$0xf]
        %v6186 = vld [vmem:[%s7 + $0x24] sm:$0xf]
        %v6187 = vld [vmem:[%s7 + $0x28] sm:$0xf]
        %v6188 = vld [vmem:[%s7 + $0x2c] sm:$0xf]
        %v6189 = vld [vmem:[%s7 + $0x30] sm:$0xf]
        %v6190 = vld [vmem:[%s7 + $0x34] sm:$0xf]
        %v6191 = vld [vmem:[%s7 + $0x38] sm:$0xf]
        %v6192 = vld [vmem:[%s7 + $0x3c] sm:$0xf]
        %v6209 = vunpack.c.l.b16 %v6177
        %v6210 = vunpack.c.l.b16 %v6178
        %v6211 = vunpack.c.l.b16 %v6179
        %v6212 = vunpack.c.l.b16 %v6180
        %v6213 = vunpack.c.l.b16 %v6181
        %v6214 = vunpack.c.l.b16 %v6182
        %v6215 = vunpack.c.l.b16 %v6183
        %v6216 = vunpack.c.l.b16 %v6184
        %v6217 = vunpack.c.l.b16 %v6185
        %v6218 = vunpack.c.l.b16 %v6186
        %v6219 = vunpack.c.l.b16 %v6187
        %v6220 = vunpack.c.l.b16 %v6188
        %v6221 = vunpack.c.l.b16 %v6189
        %v6222 = vunpack.c.l.b16 %v6190
        %v6223 = vunpack.c.l.b16 %v6191
        %v6224 = vunpack.c.l.b16 %v6192
        %v6225 = vpack.c.b16 %v6210, %v6209
        %v6226 = vpack.c.b16 %v6212, %v6211
        %v6227 = vpack.c.b16 %v6214, %v6213
        %v6228 = vpack.c.b16 %v6216, %v6215
        %v6229 = vpack.c.b16 %v6218, %v6217
        %v6230 = vpack.c.b16 %v6220, %v6219
        %v6231 = vpack.c.b16 %v6222, %v6221
        %v6232 = vpack.c.b16 %v6224, %v6223
        %6241 = vmatprep.subr.bf16.mxu0 0
        %6242 = vmatpush1.bf16.msra.mxu0 %v6225
        %6243 = vmatprep.subr.bf16.mxu0 0
        %6244 = vmatpush1.bf16.msra.mxu0 %v6226
        %6245 = vmatprep.subr.bf16.mxu0 0
        %6246 = vmatpush1.bf16.msra.mxu0 %v6227
        %6247 = vmatprep.subr.bf16.mxu0 0
        %6248 = vmatpush1.bf16.msra.mxu0 %v6228
        %6249 = vmatprep.subr.bf16.mxu0 0
        %6250 = vmatpush1.bf16.msra.mxu0 %v6229
        %6251 = vmatprep.subr.bf16.mxu0 0
        %6252 = vmatpush1.bf16.msra.mxu0 %v6230
        %6253 = vmatprep.subr.bf16.mxu0 0
        %6254 = vmatpush1.bf16.msra.mxu0 %v6231
        %6255 = vmatprep.subr.bf16.mxu0 0
        %6256 = vmatpush1.bf16.msra.mxu0 %v6232
        %6257 = vmatprep.subr.bf16.mxu0 0
        %6258 = vmatpush1.bf16.msra.mxu0 0
        %6259 = vmatprep.subr.bf16.mxu0 0
        %6260 = vmatpush1.bf16.msra.mxu0 0
        %6261 = vmatprep.subr.bf16.mxu0 0
        %6262 = vmatpush1.bf16.msra.mxu0 0
        %6263 = vmatprep.subr.bf16.mxu0 0
        %6264 = vmatpush1.bf16.msra.mxu0 0
        %6265 = vmatprep.subr.bf16.mxu0 0
        %6266 = vmatpush1.bf16.msra.mxu0 0
        %6267 = vmatprep.subr.bf16.mxu0 0
        %6268 = vmatpush1.bf16.msra.mxu0 0
        %6269 = vmatprep.subr.bf16.mxu0 0
        %6270 = vmatpush1.bf16.msra.mxu0 0
        %6271 = vmatprep.subr.bf16.mxu0 0
        %6272 = vmatpush1.bf16.msra.mxu0 0
        %6273 = vmatprep.mubr.bf16.mxu0 0
        %6274 = vmatmul.mubr.bf16.gmra.mrb[0].mxu0 %v6161
        %v6275 = vpop.f32.mrb[0].mxu0
        %v6276 = vadd.f32 0.0, %v6275
        %v6277 = vpop.f32.mrb[0].mxu0
        %v6278 = vpop.f32.mrb[0].mxu0
        %v6279 = vadd.f32 0.0, %v6278
        %v6280 = vpop.f32.mrb[0].mxu0
        %6281 = vmatprep.mubr.bf16.mxu0 0
        %6282 = vmatmul.mubr.bf16.gmra.mrb[0].mxu0 %v6162
        %v6283 = vpop.f32.mrb[0].mxu0
        %v6284 = vadd.f32 0.0, %v6283
        %v6285 = vpop.f32.mrb[0].mxu0
        %v6286 = vpop.f32.mrb[0].mxu0
        %v6287 = vadd.f32 0.0, %v6286
        %v6288 = vpop.f32.mrb[0].mxu0
        %6289 = vmatprep.mubr.bf16.mxu0 0
        %6290 = vmatmul.mubr.bf16.gmra.mrb[0].mxu0 %v6163
        %v6291 = vpop.f32.mrb[0].mxu0
        %v6292 = vadd.f32 0.0, %v6291
        %v6293 = vpop.f32.mrb[0].mxu0
        %v6294 = vpop.f32.mrb[0].mxu0
        %v6295 = vadd.f32 0.0, %v6294
        %v6296 = vpop.f32.mrb[0].mxu0
        %6297 = vmatprep.mubr.bf16.mxu0 0
        %6298 = vmatmul.mubr.bf16.gmra.mrb[0].mxu0 %v6164
        %v6299 = vpop.f32.mrb[0].mxu0
        %v6300 = vadd.f32 0.0, %v6299
        %v6301 = vpop.f32.mrb[0].mxu0
        %v6302 = vpop.f32.mrb[0].mxu0
        %v6303 = vadd.f32 0.0, %v6302
        %v6304 = vpop.f32.mrb[0].mxu0
        %6305 = vmatprep.mubr.bf16.mxu0 0
        %6306 = vmatmul.mubr.bf16.gmra.mrb[0].mxu0 %v6165
        %v6307 = vpop.f32.mrb[0].mxu0
        %v6308 = vadd.f32 0.0, %v6307
        %v6309 = vpop.f32.mrb[0].mxu0
        %v6310 = vpop.f32.mrb[0].mxu0
        %v6311 = vadd.f32 0.0, %v6310
        %v6312 = vpop.f32.mrb[0].mxu0
        %6313 = vmatprep.mubr.bf16.mxu0 0
        %6314 = vmatmul.mubr.bf16.gmra.mrb[0].mxu0 %v6166
        %v6315 = vpop.f32.mrb[0].mxu0
        %v6316 = vadd.f32 0.0, %v6315
        %v6317 = vpop.f32.mrb[0].mxu0
        %v6318 = vpop.f32.mrb[0].mxu0
        %v6319 = vadd.f32 0.0, %v6318
        %v6320 = vpop.f32.mrb[0].mxu0
        %6321 = vmatprep.mubr.bf16.mxu0 0
        %6322 = vmatmul.mubr.bf16.gmra.mrb[0].mxu0 %v6167
        %v6323 = vpop.f32.mrb[0].mxu0
        %v6324 = vadd.f32 0.0, %v6323
        %v6325 = vpop.f32.mrb[0].mxu0
        %v6326 = vpop.f32.mrb[0].mxu0
        %v6327 = vadd.f32 0.0, %v6326
        %v6328 = vpop.f32.mrb[0].mxu0
        %6329 = vmatprep.mubr.bf16.mxu0 0
        %6330 = vmatmul.mubr.bf16.gmra.mrb[0].mxu0 %v6168
        %v6331 = vpop.f32.mrb[0].mxu0
        %v6332 = vadd.f32 0.0, %v6331
        %v6333 = vpop.f32.mrb[0].mxu0
        %v6334 = vpop.f32.mrb[0].mxu0
        %v6335 = vadd.f32 0.0, %v6334
        %v6336 = vpop.f32.mrb[0].mxu0
        %6337 = vmatprep.mubr.bf16.mxu0 0
        %6338 = vmatmul.mubr.bf16.gmra.mrb[0].mxu0 %v6169
        %v6339 = vpop.f32.mrb[0].mxu0
        %v6340 = vadd.f32 0.0, %v6339
        %v6341 = vpop.f32.mrb[0].mxu0
        %v6342 = vpop.f32.mrb[0].mxu0
        %v6343 = vadd.f32 0.0, %v6342
        %v6344 = vpop.f32.mrb[0].mxu0
        %6345 = vmatprep.mubr.bf16.mxu0 0
        %6346 = vmatmul.mubr.bf16.gmra.mrb[0].mxu0 %v6170
        %v6347 = vpop.f32.mrb[0].mxu0
        %v6348 = vadd.f32 0.0, %v6347
        %v6349 = vpop.f32.mrb[0].mxu0
        %v6350 = vpop.f32.mrb[0].mxu0
        %v6351 = vadd.f32 0.0, %v6350
        %v6352 = vpop.f32.mrb[0].mxu0
        %6353 = vmatprep.mubr.bf16.mxu0 0
        %6354 = vmatmul.mubr.bf16.gmra.mrb[0].mxu0 %v6171
        %v6355 = vpop.f32.mrb[0].mxu0
        %v6356 = vadd.f32 0.0, %v6355
        %v6357 = vpop.f32.mrb[0].mxu0
        %v6358 = vpop.f32.mrb[0].mxu0
        %v6359 = vadd.f32 0.0, %v6358
        %v6360 = vpop.f32.mrb[0].mxu0
        %6361 = vmatprep.mubr.bf16.mxu0 0
        %6362 = vmatmul.mubr.bf16.gmra.mrb[0].mxu0 %v6172
        %v6363 = vpop.f32.mrb[0].mxu0
        %v6364 = vadd.f32 0.0, %v6363
        %v6365 = vpop.f32.mrb[0].mxu0
        %v6366 = vpop.f32.mrb[0].mxu0
        %v6367 = vadd.f32 0.0, %v6366
        %v6368 = vpop.f32.mrb[0].mxu0
        %6369 = vmatprep.mubr.bf16.mxu0 0
        %6370 = vmatmul.mubr.bf16.gmra.mrb[0].mxu0 %v6173
        %v6371 = vpop.f32.mrb[0].mxu0
        %v6372 = vadd.f32 0.0, %v6371
        %v6373 = vpop.f32.mrb[0].mxu0
        %v6374 = vpop.f32.mrb[0].mxu0
        %v6375 = vadd.f32 0.0, %v6374
        %v6376 = vpop.f32.mrb[0].mxu0
        %6377 = vmatprep.mubr.bf16.mxu0 0
        %6378 = vmatmul.mubr.bf16.gmra.mrb[0].mxu0 %v6174
        %v6379 = vpop.f32.mrb[0].mxu0
        %v6380 = vadd.f32 0.0, %v6379
        %v6381 = vpop.f32.mrb[0].mxu0
        %v6382 = vpop.f32.mrb[0].mxu0
        %v6383 = vadd.f32 0.0, %v6382
        %v6384 = vpop.f32.mrb[0].mxu0
        %6385 = vmatprep.mubr.bf16.mxu0 0
        %6386 = vmatmul.mubr.bf16.gmra.mrb[0].mxu0 %v6175
        %v6387 = vpop.f32.mrb[0].mxu0
        %v6388 = vadd.f32 0.0, %v6387
        %v6389 = vpop.f32.mrb[0].mxu0
        %v6390 = vpop.f32.mrb[0].mxu0
        %v6391 = vadd.f32 0.0, %v6390
        %v6392 = vpop.f32.mrb[0].mxu0
        %6393 = vmatprep.mubr.bf16.mxu0 0
        %6394 = vmatmul.mubr.bf16.gmra.mrb[0].mxu0 %v6176
        %v6395 = vpop.f32.mrb[0].mxu0
        %v6396 = vadd.f32 0.0, %v6395
        %v6397 = vpop.f32.mrb[0].mxu0
        %v6398 = vpop.f32.mrb[0].mxu0
        %v6399 = vadd.f32 0.0, %v6398
        %v6400 = vpop.f32.mrb[0].mxu0
        %6401 = vdwg.mxu0
        %v6402 = vadd.f32 %v6097, %v6276
        %v6403 = vadd.f32 %v6098, %v6279
        %v6404 = vadd.f32 %v6099, %v6284
        %v6405 = vadd.f32 %v6100, %v6287
        %v6406 = vadd.f32 %v6101, %v6292
        %v6407 = vadd.f32 %v6102, %v6295
        %v6408 = vadd.f32 %v6103, %v6300
        %v6409 = vadd.f32 %v6104, %v6303
        %v6410 = vadd.f32 %v6105, %v6308
        %v6411 = vadd.f32 %v6106, %v6311
        %v6412 = vadd.f32 %v6107, %v6316
        %v6413 = vadd.f32 %v6108, %v6319
        %v6414 = vadd.f32 %v6109, %v6324
        %v6415 = vadd.f32 %v6110, %v6327
        %v6416 = vadd.f32 %v6111, %v6332
        %v6417 = vadd.f32 %v6112, %v6335
        %v6418 = vadd.f32 %v6113, %v6340
        %v6419 = vadd.f32 %v6114, %v6343
        %v6420 = vadd.f32 %v6115, %v6348
        %v6421 = vadd.f32 %v6116, %v6351
        %v6422 = vadd.f32 %v6117, %v6356
        %v6423 = vadd.f32 %v6118, %v6359
        %v6424 = vadd.f32 %v6119, %v6364
        %v6425 = vadd.f32 %v6120, %v6367
        %v6426 = vadd.f32 %v6121, %v6372
        %v6427 = vadd.f32 %v6122, %v6375
        %v6428 = vadd.f32 %v6123, %v6380
        %v6429 = vadd.f32 %v6124, %v6383
        %v6430 = vadd.f32 %v6125, %v6388
        %v6431 = vadd.f32 %v6126, %v6391
        %v6432 = vadd.f32 %v6127, %v6396
        %v6433 = vadd.f32 %v6128, %v6399
        %6434 = vst [vmem:[%s320] sm:$0xff] %v6402
        %6435 = vst [vmem:[%s320 + $0x8] sm:$0xff] %v6403
        %6436 = vst [vmem:[%s320 + $0x10] sm:$0xff] %v6404
        %6437 = vst [vmem:[%s320 + $0x18] sm:$0xff] %v6405
        %6438 = vst [vmem:[%s320 + $0x20] sm:$0xff] %v6406
        %6439 = vst [vmem:[%s320 + $0x28] sm:$0xff] %v6407
        %6440 = vst [vmem:[%s320 + $0x30] sm:$0xff] %v6408
        %6441 = vst [vmem:[%s320 + $0x38] sm:$0xff] %v6409
        %6442 = vst [vmem:[%s320 + $0x40] sm:$0xff] %v6410
        %6443 = vst [vmem:[%s320 + $0x48] sm:$0xff] %v6411
        %6444 = vst [vmem:[%s320 + $0x50] sm:$0xff] %v6412
        %6445 = vst [vmem:[%s320 + $0x58] sm:$0xff] %v6413
        %6446 = vst [vmem:[%s320 + $0x60] sm:$0xff] %v6414
        %6447 = vst [vmem:[%s320 + $0x68] sm:$0xff] %v6415
        %6448 = vst [vmem:[%s320 + $0x70] sm:$0xff] %v6416
        %6449 = vst [vmem:[%s320 + $0x78] sm:$0xff] %v6417
        %6450 = vst [vmem:[%s320 + $0x80] sm:$0xff] %v6418
        %6451 = vst [vmem:[%s320 + $0x88] sm:$0xff] %v6419
        %6452 = vst [vmem:[%s320 + $0x90] sm:$0xff] %v6420
        %6453 = vst [vmem:[%s320 + $0x98] sm:$0xff] %v6421
        %6454 = vst [vmem:[%s320 + $0xa0] sm:$0xff] %v6422
        %6455 = vst [vmem:[%s320 + $0xa8] sm:$0xff] %v6423
        %6456 = vst [vmem:[%s320 + $0xb0] sm:$0xff] %v6424
        %6457 = vst [vmem:[%s320 + $0xb8] sm:$0xff] %v6425
        %6458 = vst [vmem:[%s320 + $0xc0] sm:$0xff] %v6426
        %6459 = vst [vmem:[%s320 + $0xc8] sm:$0xff] %v6427
        %6460 = vst [vmem:[%s320 + $0xd0] sm:$0xff] %v6428
        %6461 = vst [vmem:[%s320 + $0xd8] sm:$0xff] %v6429
        %6462 = vst [vmem:[%s320 + $0xe0] sm:$0xff] %v6430
        %6463 = vst [vmem:[%s320 + $0xe8] sm:$0xff] %v6431
        %6464 = vst [vmem:[%s320 + $0xf0] sm:$0xff] %v6432
        %6465 = vst [vmem:[%s320 + $0xf8] sm:$0xff] %v6433
        %p6466 = scmp.lt.s32.totalorder %s20, 1
        %s6467 = scalar_select %p6466, %s20, 1
        %s6468 = smul.addr %s6467, 32
        %s6469 = smul.addr %s6468, 8
        %s6470 = scalar_lea.vmem %s8, %s6469
        // Predicated region
        $region57: #{preact_block_forward.1} parent=51 // pred_check
          %p6471 = pneg %p211
        $region58: #{preact_block_forward.1} parent=51 // pred_check_branch
          %6473 = sbr.rel (%p6471) target = $region60
        $region59: #{preact_block_forward.1} parent=51 // pred_region
          _
        $region60: #{preact_block_forward.1} parent=51 // pred_fallthru
          _
      $region52: #{preact_block_forward.1} parent=5 // pred_fallthru
        _
      %p6474 = scmp.le.s32.totalorder 2, %s15
      // Predicated region
      $region61: #{preact_block_forward.1} parent=5 // pred_check
        %p6475 = pneg %p6474
      $region62: #{preact_block_forward.1} parent=5 // pred_check_branch
        %6477 = sbr.rel (%p6475) target = $region64
      $region63: #{preact_block_forward.1} parent=5 // pred_region
        %s6478 = ssub.s32 %s15, 2
        // Predicated region
        $region65: #{preact_block_forward.1} parent=63 // pred_check
          %p6479 = pneg %p217
        $region66: #{preact_block_forward.1} parent=63 // pred_check_branch
          %6481 = sbr.rel (%p6479) target = $region68
        $region67: #{preact_block_forward.1} parent=63 // pred_region
          %p6482 = scmp.lt.s32.totalorder %s21, 1
          %s6483 = scalar_select %p6482, %s21, 1
          %s6484 = smul.addr %s6483, 32
          %s6485 = smul.addr %s6484, 8
          %s6486 = scalar_lea.vmem %s8, %s6485
        $region68: #{preact_block_forward.1} parent=63 // pred_fallthru
          _
      $region64: #{preact_block_forward.1} parent=5 // pred_fallthru
        _
    $region6: #{preact_block_forward.1} parent=1 // loop_footer
      %s19 = sadd.s32 1, %s15
    $region7: #{preact_block_forward.1} parent=1 // loop_footer_branch
      %14 = sbr.rel target = $region3
    $region8: #{preact_block_forward.1} parent=1 // loop_exit
      _
    %6487 = vsyncpa [#allocation5], 1
    %s6488 = scalar_lea.sflag [#allocation5], 1
    %6489 = vsyncpa %s6488, 1

</llo_original>
